<compile_context>
chip_gen: v7x
topology: tpu7x:2x2x1
jax: 0.10.0
libtpu: 0.0.40
codegen_flags: <defaults>
</compile_context>

<pallas_src>
import functools

import jax
import jax.numpy as jnp
import numpy as np
from jax.experimental import pallas as pl
from jax.experimental.pallas import tpu as pltpu

NORMALIZATION_FACTOR = 100.0  # GCLConv default, aggregation_method='sum'


# ---------------------------------------------------------------------------
# Pallas kernel: all GCLConv layers fused (whole graph resident in VMEM)
# ---------------------------------------------------------------------------
def fused_gcl_encoder_kernel(
    h_ref, ea_ref, row_oh_ref, col_oh_ref, row_oh_t_ref,
    w1ab_ref, w1c_ref, b1_ref,
    w2_ref, b2_ref,
    w3_ref, b3_ref,
    w4_ref, b4_ref,
    out_ref,
    *, num_layers, hidden,
):
    H = hidden
    h = h_ref[...]                                    # (N, H) f32
    ea = ea_ref[...]                                  # (E, H) f32
    # bf16 gather/scatter matrices used directly (0/1 exact in bf16) -> native
    # bf16 MXU path for the dominant E*N*H matmuls; no f32 copies are kept.
    row_oh = row_oh_ref[...]                          # (E, N) bf16
    col_oh = col_oh_ref[...]                          # (E, N) bf16
    row_oh_t = row_oh_t_ref[...]                      # (N, E) bf16 (scatter)

    for l in range(num_layers):                       # static unroll (L = 3)
        # ---- edge_mlp layer 1: Linear(3H -> H), transform-then-gather ------
        # (row_oh @ h) @ w1a == row_oh @ (h @ w1a); w1a|w1b pre-fused to (H,2H)
        # so one K=H matmul produces both halves (fills the 256-wide MXU).
        hw = jnp.dot(h, w1ab_ref[l], preferred_element_type=jnp.float32)   # (N, 2H)
        hw_b16 = hw.astype(jnp.bfloat16)
        gath = (jnp.dot(row_oh, hw_b16[:, :H], preferred_element_type=jnp.float32)
                + jnp.dot(col_oh, hw_b16[:, H:], preferred_element_type=jnp.float32))
        e1 = jax.nn.silu(
            gath
            + jnp.dot(ea, w1c_ref[l], preferred_element_type=jnp.float32)
            + b1_ref[l])                              # (E, H) f32

        # ---- edge_mlp layer 2: Linear(H -> H), SiLU -------------------------
        m = jax.nn.silu(
            jnp.dot(e1, w2_ref[l], preferred_element_type=jnp.float32) + b2_ref[l]
        )                                             # (E, H) f32

        # ---- unsorted_segment_sum over `row`: bf16 scatter matmul -----------
        # row_oh_t built in the wrapper -> no in-kernel transpose of the
        # loop-invariant largest tensor.  1/normalization_factor is folded
        # into the agg rows of w3 below.
        agg = jnp.dot(row_oh_t, m.astype(jnp.bfloat16),
                      preferred_element_type=jnp.float32)                 # (N, H)

        # ---- node_mlp: Linear(2H -> H), SiLU, Linear(H -> H); residual -----
        hcat = jnp.concatenate([h, agg], axis=-1)     # (N, 2H), single K=2H matmul
        n1 = jax.nn.silu(
            jnp.dot(hcat, w3_ref[l], preferred_element_type=jnp.float32) + b3_ref[l])
        h = h + jnp.dot(n1, w4_ref[l], preferred_element_type=jnp.float32) + b4_ref[l]

    out_ref[...] = h


def gcl_encoder_forward(z, edge_index, edge_attr, stacked_params):
    """GCLEncoder forward (embed_node=False, concat_hidden=False): fused convs."""
    # TODO(synk): node_emb (MultiLayerPerceptron) only runs when embed_node=True;
    #   that branch is not on this forward path and is not implemented.
    # TODO(synk): concat_hidden=True would need the intermediate hiddens; the
    #   fused kernel returns only the last hidden (concat_hidden=False default).
    N, H = z.shape
    E = edge_attr.shape[0]
    L = stacked_params["w1ab"].shape[0]
    row, col = edge_index[0], edge_index[1]
    # bf16 gather/scatter matrices (0/1 exact in bf16, half the bytes).
    # Note: out-of-range indices produce all-zero rows (edge silently dropped),
    # matching segment_sum semantics (PyTorch index_select would error).
    row_oh = jax.nn.one_hot(row, N, dtype=jnp.bfloat16)     # (E, N)
    col_oh = jax.nn.one_hot(col, N, dtype=jnp.bfloat16)     # (E, N)
    row_oh_t = jnp.transpose(row_oh)                        # (N, E), built in wrapper

    args = (
        z.astype(jnp.float32), edge_attr.astype(jnp.float32),
        row_oh, col_oh, row_oh_t,
        stacked_params["w1ab"], stacked_params["w1c"], stacked_params["b1"],
        stacked_params["w2"], stacked_params["b2"],
        stacked_params["w3"], stacked_params["b3"],
        stacked_params["w4"], stacked_params["b4"],
    )

    in_bytes = sum(int(np.prod(a.shape)) * a.dtype.itemsize for a in args)
    out_bytes = N * H * 4
    # live in-kernel intermediates: hw (N,2H), e1/m (E,H), agg (N,H),
    # hcat (N,2H), n1 (N,H) in f32, plus bf16 copies of hw and m.
    interm_bytes = (
        4 * (2 * N * H + 2 * E * H + N * H + 2 * N * H + N * H)
        + 2 * (2 * N * H + E * H)
    )
    vmem_needed = in_bytes + out_bytes + interm_bytes
    try:
        vmem_cap = int(getattr(pltpu.get_tpu_info(), "vmem_capacity_bytes", 64 << 20))
    except Exception:
        vmem_cap = 64 << 20
    # ceiling: ~48 MiB on v7x (64 MiB VMEM), ~96 MiB on v5e/v6e (128 MiB).
    ceiling = min(int(0.75 * vmem_cap), 112 << 20)
    vmem_limit = int(min(max(2 * vmem_needed, 32 << 20), ceiling))

    cost = pl.CostEstimate(
        flops=int(L * (10 * N * H * H + 6 * E * N * H + 4 * E * H * H)),
        transcendentals=int(L * H * (2 * E + N)),     # exp() in SiLU
        bytes_accessed=int(in_bytes + out_bytes),
    )

    vmem_spec = pl.BlockSpec(memory_space=pltpu.MemorySpace.VMEM)
    return pl.pallas_call(
        functools.partial(fused_gcl_encoder_kernel, num_layers=L, hidden=H),
        out_shape=jax.ShapeDtypeStruct((N, H), jnp.float32),
        in_specs=[vmem_spec] * len(args),
        out_specs=vmem_spec,
        # output (N,H) f32 aliases the z input buffer (read once, written once)
        input_output_aliases={0: 0},
        compiler_params=pltpu.CompilerParams(vmem_limit_bytes=vmem_limit),
        cost_estimate=cost,
    )(*args)


# ---------------------------------------------------------------------------
# Parameter init (deterministic, PyTorch nn.Linear-style uniform) + stacking
# ---------------------------------------------------------------------------
def _linear_params(key, fan_in, fan_out):
    k = 1.0 / np.sqrt(fan_in)
    kw, kb = jax.random.split(key)
    w = jax.random.uniform(kw, (fan_in, fan_out), jnp.float32, -k, k)
    b = jax.random.uniform(kb, (1, fan_out), jnp.float32, -k, k)
    return w, b


def init_gcl_conv_params(key, hidden):
    H = hidden
    k1, k2, k3, k4 = jax.random.split(key, 4)
    w1, b1 = _linear_params(k1, 3 * H, H)   # edge_mlp Linear(2H + edges_in_d=H, H)
    w2, b2 = _linear_params(k2, H, H)       # edge_mlp Linear(H, H)
    w3, b3 = _linear_params(k3, 2 * H, H)   # node_mlp Linear(H + H, H)
    w4, b4 = _linear_params(k4, H, H)       # node_mlp Linear(H, H)
    return {"w1": w1, "b1": b1, "w2": w2, "b2": b2,
            "w3": w3, "b3": b3, "w4": w4, "b4": b4}


def stack_conv_params(per_layer):
    """Stack params on a leading layer axis; pre-fuse [w1a|w1b]; fold 1/100
    (segment-sum 'sum' normalization) into the agg rows of w3."""
    H = per_layer[0]["w2"].shape[0]
    w1 = jnp.stack([p["w1"] for p in per_layer], axis=0)        # (L, 3H, H)
    w1ab = jnp.concatenate([w1[:, :H, :], w1[:, H:2 * H, :]], axis=-1)  # (L, H, 2H)
    w1c = w1[:, 2 * H:, :]                                       # (L, H, H)
    w3 = jnp.stack([p["w3"] for p in per_layer], axis=0)         # (L, 2H, H)
    # agg only ever flows through these rows, so the fold is exact.
    w3 = w3.at[:, H:, :].divide(NORMALIZATION_FACTOR)
    return {
        "w1ab": w1ab, "w1c": w1c,
        "b1": jnp.stack([p["b1"] for p in per_layer], axis=0),
        "w2": jnp.stack([p["w2"] for p in per_layer], axis=0),
        "b2": jnp.stack([p["b2"] for p in per_layer], axis=0),
        "w3": w3,
        "b3": jnp.stack([p["b3"] for p in per_layer], axis=0),
        "w4": jnp.stack([p["w4"] for p in per_layer], axis=0),
        "b4": jnp.stack([p["b4"] for p in per_layer], axis=0),
    }


# ---------------------------------------------------------------------------
# Pure-JAX reference (mirrors the PyTorch code) for a correctness check
# ---------------------------------------------------------------------------
def gcl_conv_ref(h, edge_index, edge_attr, params):
    row, col = edge_index[0], edge_index[1]
    src, tgt = h[row], h[col]
    x = jnp.concatenate([src, tgt, edge_attr], axis=1)
    m = jax.nn.silu(x @ params["w1"] + params["b1"])
    m = jax.nn.silu(m @ params["w2"] + params["b2"])
    agg = jax.ops.segment_sum(m, row, num_segments=h.shape[0]) / NORMALIZATION_FACTOR
    y = jnp.concatenate([h, agg], axis=1)
    n = jax.nn.silu(y @ params["w3"] + params["b3"])
    return h + (n @ params["w4"] + params["b4"])


def gcl_encoder_ref(z, edge_index, edge_attr, per_layer_params):
    h = z
    for params in per_layer_params:
        h = gcl_conv_ref(h, edge_index, edge_attr, params)
    return h


if __name__ == "__main__":
    key = jax.random.PRNGKey(0)
    # nodes multiple of 128 (dense lanes / full MXU contraction depth),
    # edges multiple of 16 (bf16 sublane packing), hidden_dim = 128.
    N, E, H = 128, 256, 128
    num_convs = 3

    k_z, k_ei, k_ea, k_p = jax.random.split(key, 4)
    z = jax.random.normal(k_z, (N, H), jnp.float32)             # node feats (embed_node=False)
    edge_index = jax.random.randint(k_ei, (2, E), 0, N)         # (row, col)
    edge_attr = jax.random.normal(k_ea, (E, H), jnp.float32)    # edges_in_d = hidden_dim

    per_layer = [init_gcl_conv_params(k, H) for k in jax.random.split(k_p, num_convs)]
    stacked = stack_conv_params(per_layer)

    # Reference computed first: the kernel aliases/donates z's buffer for its output.
    ref = jax.block_until_ready(gcl_encoder_ref(z, edge_index, edge_attr, per_layer))
    out = jax.block_until_ready(gcl_encoder_forward(z, edge_index, edge_attr, stacked))

    if not np.allclose(np.asarray(out), np.asarray(ref), rtol=2e-3, atol=2e-3):
        err = float(np.max(np.abs(np.asarray(out) - np.asarray(ref))))
        raise AssertionError(
            f"Pallas GCLEncoder output mismatch vs. JAX reference (max abs err {err})"
        )

    print("KERNEL_OK")
</pallas_src>

<mosaic_0001>
module attributes {stable_mosaic.version = 11 : i64} {
  func.func @fused_gcl_encoder_kernel(%arg0: memref<128x128xf32, #tpu.memory_space<vmem>>, %arg1: memref<256x128xf32, #tpu.memory_space<vmem>>, %arg2: memref<256x128xbf16, #tpu.memory_space<vmem>>, %arg3: memref<256x128xbf16, #tpu.memory_space<vmem>>, %arg4: memref<128x256xbf16, #tpu.memory_space<vmem>>, %arg5: memref<3x128x256xf32, #tpu.memory_space<vmem>>, %arg6: memref<3x128x128xf32, #tpu.memory_space<vmem>>, %arg7: memref<3x1x128xf32, #tpu.memory_space<vmem>>, %arg8: memref<3x128x128xf32, #tpu.memory_space<vmem>>, %arg9: memref<3x1x128xf32, #tpu.memory_space<vmem>>, %arg10: memref<3x256x128xf32, #tpu.memory_space<vmem>>, %arg11: memref<3x1x128xf32, #tpu.memory_space<vmem>>, %arg12: memref<3x128x128xf32, #tpu.memory_space<vmem>>, %arg13: memref<3x1x128xf32, #tpu.memory_space<vmem>>, %arg14: memref<128x128xf32, #tpu.memory_space<vmem>>) attributes {dimension_semantics = [], scalar_prefetch = 0 : i64, scratch_operands = 0 : i64, tpu.core_type = #tpu.core_type<tc>} {
    %c0 = arith.constant 0 : index
    %c0_0 = arith.constant 0 : index
    %0 = vector.load %arg0[%c0, %c0_0] : memref<128x128xf32, #tpu.memory_space<vmem>>, vector<128x128xf32>
    %c0_1 = arith.constant 0 : index
    %c0_2 = arith.constant 0 : index
    %1 = vector.load %arg1[%c0_1, %c0_2] : memref<256x128xf32, #tpu.memory_space<vmem>>, vector<256x128xf32>
    %c0_3 = arith.constant 0 : index
    %c0_4 = arith.constant 0 : index
    %2 = vector.load %arg2[%c0_3, %c0_4] : memref<256x128xbf16, #tpu.memory_space<vmem>>, vector<256x128xbf16>
    %c0_5 = arith.constant 0 : index
    %c0_6 = arith.constant 0 : index
    %3 = vector.load %arg3[%c0_5, %c0_6] : memref<256x128xbf16, #tpu.memory_space<vmem>>, vector<256x128xbf16>
    %c0_7 = arith.constant 0 : index
    %c0_8 = arith.constant 0 : index
    %4 = vector.load %arg4[%c0_7, %c0_8] : memref<128x256xbf16, #tpu.memory_space<vmem>>, vector<128x256xbf16>
    %c0_9 = arith.constant 0 : index
    %c0_10 = arith.constant 0 : index
    %c0_11 = arith.constant 0 : index
    %5 = vector.load %arg5[%c0_9, %c0_10, %c0_11] : memref<3x128x256xf32, #tpu.memory_space<vmem>>, vector<1x128x256xf32>
    %6 = vector.shape_cast %5 : vector<1x128x256xf32> to vector<128x256xf32>
    %cst = arith.constant dense<0.000000e+00> : vector<128x256xf32>
    %7 = tpu.matmul %0, %6, %cst {dimension_numbers = #tpu.dot_dimension_numbers<[1], [0], [0], [1], [0, 0, 1, 1], [], []>} : vector<128x128xf32>, vector<128x256xf32>, vector<128x256xf32> -> vector<128x256xf32>
    %8 = arith.truncf %7 : vector<128x256xf32> to vector<128x256xbf16>
    %9 = vector.extract_strided_slice %8 {offsets = [0, 0], sizes = [128, 128], strides = [1, 1]} : vector<128x256xbf16> to vector<128x128xbf16>
    %cst_12 = arith.constant dense<0.000000e+00> : vector<256x128xf32>
    %10 = tpu.matmul %2, %9, %cst_12 {dimension_numbers = #tpu.dot_dimension_numbers<[1], [0], [0], [1], [0, 0, 1, 1], [], []>} : vector<256x128xbf16>, vector<128x128xbf16>, vector<256x128xf32> -> vector<256x128xf32>
    %11 = vector.extract_strided_slice %8 {offsets = [0, 128], sizes = [128, 128], strides = [1, 1]} : vector<128x256xbf16> to vector<128x128xbf16>
    %cst_13 = arith.constant dense<0.000000e+00> : vector<256x128xf32>
    %12 = tpu.matmul %3, %11, %cst_13 {dimension_numbers = #tpu.dot_dimension_numbers<[1], [0], [0], [1], [0, 0, 1, 1], [], []>} : vector<256x128xbf16>, vector<128x128xbf16>, vector<256x128xf32> -> vector<256x128xf32>
    %13 = arith.addf %10, %12 : vector<256x128xf32>
    %c0_14 = arith.constant 0 : index
    %c0_15 = arith.constant 0 : index
    %c0_16 = arith.constant 0 : index
    %14 = vector.load %arg6[%c0_14, %c0_15, %c0_16] : memref<3x128x128xf32, #tpu.memory_space<vmem>>, vector<1x128x128xf32>
    %15 = vector.shape_cast %14 : vector<1x128x128xf32> to vector<128x128xf32>
    %cst_17 = arith.constant dense<0.000000e+00> : vector<256x128xf32>
    %16 = tpu.matmul %1, %15, %cst_17 {dimension_numbers = #tpu.dot_dimension_numbers<[1], [0], [0], [1], [0, 0, 1, 1], [], []>} : vector<256x128xf32>, vector<128x128xf32>, vector<256x128xf32> -> vector<256x128xf32>
    %17 = arith.addf %13, %16 : vector<256x128xf32>
    %c0_18 = arith.constant 0 : index
    %c0_19 = arith.constant 0 : index
    %c0_20 = arith.constant 0 : index
    %18 = vector.load %arg7[%c0_18, %c0_19, %c0_20] : memref<3x1x128xf32, #tpu.memory_space<vmem>>, vector<1x1x128xf32>
    %19 = vector.shape_cast %18 : vector<1x1x128xf32> to vector<1x128xf32>
    %20 = vector.broadcast %19 : vector<1x128xf32> to vector<256x128xf32>
    %21 = arith.addf %17, %20 : vector<256x128xf32>
    %22 = arith.negf %21 : vector<256x128xf32>
    %23 = math.exp %22 : vector<256x128xf32>
    %cst_21 = arith.constant 1.000000e+00 : f32
    %24 = vector.broadcast %cst_21 : f32 to vector<256x128xf32>
    %25 = arith.addf %24, %23 : vector<256x128xf32>
    %26 = arith.divf %24, %25 : vector<256x128xf32>
    %27 = arith.mulf %21, %26 : vector<256x128xf32>
    %c0_22 = arith.constant 0 : index
    %c0_23 = arith.constant 0 : index
    %c0_24 = arith.constant 0 : index
    %28 = vector.load %arg8[%c0_22, %c0_23, %c0_24] : memref<3x128x128xf32, #tpu.memory_space<vmem>>, vector<1x128x128xf32>
    %29 = vector.shape_cast %28 : vector<1x128x128xf32> to vector<128x128xf32>
    %cst_25 = arith.constant dense<0.000000e+00> : vector<256x128xf32>
    %30 = tpu.matmul %27, %29, %cst_25 {dimension_numbers = #tpu.dot_dimension_numbers<[1], [0], [0], [1], [0, 0, 1, 1], [], []>} : vector<256x128xf32>, vector<128x128xf32>, vector<256x128xf32> -> vector<256x128xf32>
    %c0_26 = arith.constant 0 : index
    %c0_27 = arith.constant 0 : index
    %c0_28 = arith.constant 0 : index
    %31 = vector.load %arg9[%c0_26, %c0_27, %c0_28] : memref<3x1x128xf32, #tpu.memory_space<vmem>>, vector<1x1x128xf32>
    %32 = vector.shape_cast %31 : vector<1x1x128xf32> to vector<1x128xf32>
    %33 = vector.broadcast %32 : vector<1x128xf32> to vector<256x128xf32>
    %34 = arith.addf %30, %33 : vector<256x128xf32>
    %35 = arith.negf %34 : vector<256x128xf32>
    %36 = math.exp %35 : vector<256x128xf32>
    %cst_29 = arith.constant 1.000000e+00 : f32
    %37 = vector.broadcast %cst_29 : f32 to vector<256x128xf32>
    %38 = arith.addf %37, %36 : vector<256x128xf32>
    %39 = arith.divf %37, %38 : vector<256x128xf32>
    %40 = arith.mulf %34, %39 : vector<256x128xf32>
    %41 = arith.truncf %40 : vector<256x128xf32> to vector<256x128xbf16>
    %cst_30 = arith.constant dense<0.000000e+00> : vector<128x128xf32>
    %42 = tpu.matmul %4, %41, %cst_30 {dimension_numbers = #tpu.dot_dimension_numbers<[1], [0], [0], [1], [0, 0, 1, 1], [], []>} : vector<128x256xbf16>, vector<256x128xbf16>, vector<128x128xf32> -> vector<128x128xf32>
    %43 = tpu.concatenate %0, %42 in 1 : vector<128x128xf32>, vector<128x128xf32> -> vector<128x256xf32>
    %c0_31 = arith.constant 0 : index
    %c0_32 = arith.constant 0 : index
    %c0_33 = arith.constant 0 : index
    %44 = vector.load %arg10[%c0_31, %c0_32, %c0_33] : memref<3x256x128xf32, #tpu.memory_space<vmem>>, vector<1x256x128xf32>
    %45 = vector.shape_cast %44 : vector<1x256x128xf32> to vector<256x128xf32>
    %cst_34 = arith.constant dense<0.000000e+00> : vector<128x128xf32>
    %46 = tpu.matmul %43, %45, %cst_34 {dimension_numbers = #tpu.dot_dimension_numbers<[1], [0], [0], [1], [0, 0, 1, 1], [], []>} : vector<128x256xf32>, vector<256x128xf32>, vector<128x128xf32> -> vector<128x128xf32>
    %c0_35 = arith.constant 0 : index
    %c0_36 = arith.constant 0 : index
    %c0_37 = arith.constant 0 : index
    %47 = vector.load %arg11[%c0_35, %c0_36, %c0_37] : memref<3x1x128xf32, #tpu.memory_space<vmem>>, vector<1x1x128xf32>
    %48 = vector.shape_cast %47 : vector<1x1x128xf32> to vector<1x128xf32>
    %49 = vector.broadcast %48 : vector<1x128xf32> to vector<128x128xf32>
    %50 = arith.addf %46, %49 : vector<128x128xf32>
    %51 = arith.negf %50 : vector<128x128xf32>
    %52 = math.exp %51 : vector<128x128xf32>
    %cst_38 = arith.constant 1.000000e+00 : f32
    %53 = vector.broadcast %cst_38 : f32 to vector<128x128xf32>
    %54 = arith.addf %53, %52 : vector<128x128xf32>
    %55 = arith.divf %53, %54 : vector<128x128xf32>
    %56 = arith.mulf %50, %55 : vector<128x128xf32>
    %c0_39 = arith.constant 0 : index
    %c0_40 = arith.constant 0 : index
    %c0_41 = arith.constant 0 : index
    %57 = vector.load %arg12[%c0_39, %c0_40, %c0_41] : memref<3x128x128xf32, #tpu.memory_space<vmem>>, vector<1x128x128xf32>
    %58 = vector.shape_cast %57 : vector<1x128x128xf32> to vector<128x128xf32>
    %cst_42 = arith.constant dense<0.000000e+00> : vector<128x128xf32>
    %59 = tpu.matmul %56, %58, %cst_42 {dimension_numbers = #tpu.dot_dimension_numbers<[1], [0], [0], [1], [0, 0, 1, 1], [], []>} : vector<128x128xf32>, vector<128x128xf32>, vector<128x128xf32> -> vector<128x128xf32>
    %60 = arith.addf %0, %59 : vector<128x128xf32>
    %c0_43 = arith.constant 0 : index
    %c0_44 = arith.constant 0 : index
    %c0_45 = arith.constant 0 : index
    %61 = vector.load %arg13[%c0_43, %c0_44, %c0_45] : memref<3x1x128xf32, #tpu.memory_space<vmem>>, vector<1x1x128xf32>
    %62 = vector.shape_cast %61 : vector<1x1x128xf32> to vector<1x128xf32>
    %63 = vector.broadcast %62 : vector<1x128xf32> to vector<128x128xf32>
    %64 = arith.addf %60, %63 : vector<128x128xf32>
    %c1 = arith.constant 1 : index
    %c0_46 = arith.constant 0 : index
    %c0_47 = arith.constant 0 : index
    %65 = vector.load %arg5[%c1, %c0_46, %c0_47] : memref<3x128x256xf32, #tpu.memory_space<vmem>>, vector<1x128x256xf32>
    %66 = vector.shape_cast %65 : vector<1x128x256xf32> to vector<128x256xf32>
    %cst_48 = arith.constant dense<0.000000e+00> : vector<128x256xf32>
    %67 = tpu.matmul %64, %66, %cst_48 {dimension_numbers = #tpu.dot_dimension_numbers<[1], [0], [0], [1], [0, 0, 1, 1], [], []>} : vector<128x128xf32>, vector<128x256xf32>, vector<128x256xf32> -> vector<128x256xf32>
    %68 = arith.truncf %67 : vector<128x256xf32> to vector<128x256xbf16>
    %69 = vector.extract_strided_slice %68 {offsets = [0, 0], sizes = [128, 128], strides = [1, 1]} : vector<128x256xbf16> to vector<128x128xbf16>
    %cst_49 = arith.constant dense<0.000000e+00> : vector<256x128xf32>
    %70 = tpu.matmul %2, %69, %cst_49 {dimension_numbers = #tpu.dot_dimension_numbers<[1], [0], [0], [1], [0, 0, 1, 1], [], []>} : vector<256x128xbf16>, vector<128x128xbf16>, vector<256x128xf32> -> vector<256x128xf32>
    %71 = vector.extract_strided_slice %68 {offsets = [0, 128], sizes = [128, 128], strides = [1, 1]} : vector<128x256xbf16> to vector<128x128xbf16>
    %cst_50 = arith.constant dense<0.000000e+00> : vector<256x128xf32>
    %72 = tpu.matmul %3, %71, %cst_50 {dimension_numbers = #tpu.dot_dimension_numbers<[1], [0], [0], [1], [0, 0, 1, 1], [], []>} : vector<256x128xbf16>, vector<128x128xbf16>, vector<256x128xf32> -> vector<256x128xf32>
    %73 = arith.addf %70, %72 : vector<256x128xf32>
    %c1_51 = arith.constant 1 : index
    %c0_52 = arith.constant 0 : index
    %c0_53 = arith.constant 0 : index
    %74 = vector.load %arg6[%c1_51, %c0_52, %c0_53] : memref<3x128x128xf32, #tpu.memory_space<vmem>>, vector<1x128x128xf32>
    %75 = vector.shape_cast %74 : vector<1x128x128xf32> to vector<128x128xf32>
    %cst_54 = arith.constant dense<0.000000e+00> : vector<256x128xf32>
    %76 = tpu.matmul %1, %75, %cst_54 {dimension_numbers = #tpu.dot_dimension_numbers<[1], [0], [0], [1], [0, 0, 1, 1], [], []>} : vector<256x128xf32>, vector<128x128xf32>, vector<256x128xf32> -> vector<256x128xf32>
    %77 = arith.addf %73, %76 : vector<256x128xf32>
    %c1_55 = arith.constant 1 : index
    %c0_56 = arith.constant 0 : index
    %c0_57 = arith.constant 0 : index
    %78 = vector.load %arg7[%c1_55, %c0_56, %c0_57] : memref<3x1x128xf32, #tpu.memory_space<vmem>>, vector<1x1x128xf32>
    %79 = vector.shape_cast %78 : vector<1x1x128xf32> to vector<1x128xf32>
    %80 = vector.broadcast %79 : vector<1x128xf32> to vector<256x128xf32>
    %81 = arith.addf %77, %80 : vector<256x128xf32>
    %82 = arith.negf %81 : vector<256x128xf32>
    %83 = math.exp %82 : vector<256x128xf32>
    %cst_58 = arith.constant 1.000000e+00 : f32
    %84 = vector.broadcast %cst_58 : f32 to vector<256x128xf32>
    %85 = arith.addf %84, %83 : vector<256x128xf32>
    %86 = arith.divf %84, %85 : vector<256x128xf32>
    %87 = arith.mulf %81, %86 : vector<256x128xf32>
    %c1_59 = arith.constant 1 : index
    %c0_60 = arith.constant 0 : index
    %c0_61 = arith.constant 0 : index
    %88 = vector.load %arg8[%c1_59, %c0_60, %c0_61] : memref<3x128x128xf32, #tpu.memory_space<vmem>>, vector<1x128x128xf32>
    %89 = vector.shape_cast %88 : vector<1x128x128xf32> to vector<128x128xf32>
    %cst_62 = arith.constant dense<0.000000e+00> : vector<256x128xf32>
    %90 = tpu.matmul %87, %89, %cst_62 {dimension_numbers = #tpu.dot_dimension_numbers<[1], [0], [0], [1], [0, 0, 1, 1], [], []>} : vector<256x128xf32>, vector<128x128xf32>, vector<256x128xf32> -> vector<256x128xf32>
    %c1_63 = arith.constant 1 : index
    %c0_64 = arith.constant 0 : index
    %c0_65 = arith.constant 0 : index
    %91 = vector.load %arg9[%c1_63, %c0_64, %c0_65] : memref<3x1x128xf32, #tpu.memory_space<vmem>>, vector<1x1x128xf32>
    %92 = vector.shape_cast %91 : vector<1x1x128xf32> to vector<1x128xf32>
    %93 = vector.broadcast %92 : vector<1x128xf32> to vector<256x128xf32>
    %94 = arith.addf %90, %93 : vector<256x128xf32>
    %95 = arith.negf %94 : vector<256x128xf32>
    %96 = math.exp %95 : vector<256x128xf32>
    %cst_66 = arith.constant 1.000000e+00 : f32
    %97 = vector.broadcast %cst_66 : f32 to vector<256x128xf32>
    %98 = arith.addf %97, %96 : vector<256x128xf32>
    %99 = arith.divf %97, %98 : vector<256x128xf32>
    %100 = arith.mulf %94, %99 : vector<256x128xf32>
    %101 = arith.truncf %100 : vector<256x128xf32> to vector<256x128xbf16>
    %cst_67 = arith.constant dense<0.000000e+00> : vector<128x128xf32>
    %102 = tpu.matmul %4, %101, %cst_67 {dimension_numbers = #tpu.dot_dimension_numbers<[1], [0], [0], [1], [0, 0, 1, 1], [], []>} : vector<128x256xbf16>, vector<256x128xbf16>, vector<128x128xf32> -> vector<128x128xf32>
    %103 = tpu.concatenate %64, %102 in 1 : vector<128x128xf32>, vector<128x128xf32> -> vector<128x256xf32>
    %c1_68 = arith.constant 1 : index
    %c0_69 = arith.constant 0 : index
    %c0_70 = arith.constant 0 : index
    %104 = vector.load %arg10[%c1_68, %c0_69, %c0_70] : memref<3x256x128xf32, #tpu.memory_space<vmem>>, vector<1x256x128xf32>
    %105 = vector.shape_cast %104 : vector<1x256x128xf32> to vector<256x128xf32>
    %cst_71 = arith.constant dense<0.000000e+00> : vector<128x128xf32>
    %106 = tpu.matmul %103, %105, %cst_71 {dimension_numbers = #tpu.dot_dimension_numbers<[1], [0], [0], [1], [0, 0, 1, 1], [], []>} : vector<128x256xf32>, vector<256x128xf32>, vector<128x128xf32> -> vector<128x128xf32>
    %c1_72 = arith.constant 1 : index
    %c0_73 = arith.constant 0 : index
    %c0_74 = arith.constant 0 : index
    %107 = vector.load %arg11[%c1_72, %c0_73, %c0_74] : memref<3x1x128xf32, #tpu.memory_space<vmem>>, vector<1x1x128xf32>
    %108 = vector.shape_cast %107 : vector<1x1x128xf32> to vector<1x128xf32>
    %109 = vector.broadcast %108 : vector<1x128xf32> to vector<128x128xf32>
    %110 = arith.addf %106, %109 : vector<128x128xf32>
    %111 = arith.negf %110 : vector<128x128xf32>
    %112 = math.exp %111 : vector<128x128xf32>
    %cst_75 = arith.constant 1.000000e+00 : f32
    %113 = vector.broadcast %cst_75 : f32 to vector<128x128xf32>
    %114 = arith.addf %113, %112 : vector<128x128xf32>
    %115 = arith.divf %113, %114 : vector<128x128xf32>
    %116 = arith.mulf %110, %115 : vector<128x128xf32>
    %c1_76 = arith.constant 1 : index
    %c0_77 = arith.constant 0 : index
    %c0_78 = arith.constant 0 : index
    %117 = vector.load %arg12[%c1_76, %c0_77, %c0_78] : memref<3x128x128xf32, #tpu.memory_space<vmem>>, vector<1x128x128xf32>
    %118 = vector.shape_cast %117 : vector<1x128x128xf32> to vector<128x128xf32>
    %cst_79 = arith.constant dense<0.000000e+00> : vector<128x128xf32>
    %119 = tpu.matmul %116, %118, %cst_79 {dimension_numbers = #tpu.dot_dimension_numbers<[1], [0], [0], [1], [0, 0, 1, 1], [], []>} : vector<128x128xf32>, vector<128x128xf32>, vector<128x128xf32> -> vector<128x128xf32>
    %120 = arith.addf %64, %119 : vector<128x128xf32>
    %c1_80 = arith.constant 1 : index
    %c0_81 = arith.constant 0 : index
    %c0_82 = arith.constant 0 : index
    %121 = vector.load %arg13[%c1_80, %c0_81, %c0_82] : memref<3x1x128xf32, #tpu.memory_space<vmem>>, vector<1x1x128xf32>
    %122 = vector.shape_cast %121 : vector<1x1x128xf32> to vector<1x128xf32>
    %123 = vector.broadcast %122 : vector<1x128xf32> to vector<128x128xf32>
    %124 = arith.addf %120, %123 : vector<128x128xf32>
    %c2 = arith.constant 2 : index
    %c0_83 = arith.constant 0 : index
    %c0_84 = arith.constant 0 : index
    %125 = vector.load %arg5[%c2, %c0_83, %c0_84] : memref<3x128x256xf32, #tpu.memory_space<vmem>>, vector<1x128x256xf32>
    %126 = vector.shape_cast %125 : vector<1x128x256xf32> to vector<128x256xf32>
    %cst_85 = arith.constant dense<0.000000e+00> : vector<128x256xf32>
    %127 = tpu.matmul %124, %126, %cst_85 {dimension_numbers = #tpu.dot_dimension_numbers<[1], [0], [0], [1], [0, 0, 1, 1], [], []>} : vector<128x128xf32>, vector<128x256xf32>, vector<128x256xf32> -> vector<128x256xf32>
    %128 = arith.truncf %127 : vector<128x256xf32> to vector<128x256xbf16>
    %129 = vector.extract_strided_slice %128 {offsets = [0, 0], sizes = [128, 128], strides = [1, 1]} : vector<128x256xbf16> to vector<128x128xbf16>
    %cst_86 = arith.constant dense<0.000000e+00> : vector<256x128xf32>
    %130 = tpu.matmul %2, %129, %cst_86 {dimension_numbers = #tpu.dot_dimension_numbers<[1], [0], [0], [1], [0, 0, 1, 1], [], []>} : vector<256x128xbf16>, vector<128x128xbf16>, vector<256x128xf32> -> vector<256x128xf32>
    %131 = vector.extract_strided_slice %128 {offsets = [0, 128], sizes = [128, 128], strides = [1, 1]} : vector<128x256xbf16> to vector<128x128xbf16>
    %cst_87 = arith.constant dense<0.000000e+00> : vector<256x128xf32>
    %132 = tpu.matmul %3, %131, %cst_87 {dimension_numbers = #tpu.dot_dimension_numbers<[1], [0], [0], [1], [0, 0, 1, 1], [], []>} : vector<256x128xbf16>, vector<128x128xbf16>, vector<256x128xf32> -> vector<256x128xf32>
    %133 = arith.addf %130, %132 : vector<256x128xf32>
    %c2_88 = arith.constant 2 : index
    %c0_89 = arith.constant 0 : index
    %c0_90 = arith.constant 0 : index
    %134 = vector.load %arg6[%c2_88, %c0_89, %c0_90] : memref<3x128x128xf32, #tpu.memory_space<vmem>>, vector<1x128x128xf32>
    %135 = vector.shape_cast %134 : vector<1x128x128xf32> to vector<128x128xf32>
    %cst_91 = arith.constant dense<0.000000e+00> : vector<256x128xf32>
    %136 = tpu.matmul %1, %135, %cst_91 {dimension_numbers = #tpu.dot_dimension_numbers<[1], [0], [0], [1], [0, 0, 1, 1], [], []>} : vector<256x128xf32>, vector<128x128xf32>, vector<256x128xf32> -> vector<256x128xf32>
    %137 = arith.addf %133, %136 : vector<256x128xf32>
    %c2_92 = arith.constant 2 : index
    %c0_93 = arith.constant 0 : index
    %c0_94 = arith.constant 0 : index
    %138 = vector.load %arg7[%c2_92, %c0_93, %c0_94] : memref<3x1x128xf32, #tpu.memory_space<vmem>>, vector<1x1x128xf32>
    %139 = vector.shape_cast %138 : vector<1x1x128xf32> to vector<1x128xf32>
    %140 = vector.broadcast %139 : vector<1x128xf32> to vector<256x128xf32>
    %141 = arith.addf %137, %140 : vector<256x128xf32>
    %142 = arith.negf %141 : vector<256x128xf32>
    %143 = math.exp %142 : vector<256x128xf32>
    %cst_95 = arith.constant 1.000000e+00 : f32
    %144 = vector.broadcast %cst_95 : f32 to vector<256x128xf32>
    %145 = arith.addf %144, %143 : vector<256x128xf32>
    %146 = arith.divf %144, %145 : vector<256x128xf32>
    %147 = arith.mulf %141, %146 : vector<256x128xf32>
    %c2_96 = arith.constant 2 : index
    %c0_97 = arith.constant 0 : index
    %c0_98 = arith.constant 0 : index
    %148 = vector.load %arg8[%c2_96, %c0_97, %c0_98] : memref<3x128x128xf32, #tpu.memory_space<vmem>>, vector<1x128x128xf32>
    %149 = vector.shape_cast %148 : vector<1x128x128xf32> to vector<128x128xf32>
    %cst_99 = arith.constant dense<0.000000e+00> : vector<256x128xf32>
    %150 = tpu.matmul %147, %149, %cst_99 {dimension_numbers = #tpu.dot_dimension_numbers<[1], [0], [0], [1], [0, 0, 1, 1], [], []>} : vector<256x128xf32>, vector<128x128xf32>, vector<256x128xf32> -> vector<256x128xf32>
    %c2_100 = arith.constant 2 : index
    %c0_101 = arith.constant 0 : index
    %c0_102 = arith.constant 0 : index
    %151 = vector.load %arg9[%c2_100, %c0_101, %c0_102] : memref<3x1x128xf32, #tpu.memory_space<vmem>>, vector<1x1x128xf32>
    %152 = vector.shape_cast %151 : vector<1x1x128xf32> to vector<1x128xf32>
    %153 = vector.broadcast %152 : vector<1x128xf32> to vector<256x128xf32>
    %154 = arith.addf %150, %153 : vector<256x128xf32>
    %155 = arith.negf %154 : vector<256x128xf32>
    %156 = math.exp %155 : vector<256x128xf32>
    %cst_103 = arith.constant 1.000000e+00 : f32
    %157 = vector.broadcast %cst_103 : f32 to vector<256x128xf32>
    %158 = arith.addf %157, %156 : vector<256x128xf32>
    %159 = arith.divf %157, %158 : vector<256x128xf32>
    %160 = arith.mulf %154, %159 : vector<256x128xf32>
    %161 = arith.truncf %160 : vector<256x128xf32> to vector<256x128xbf16>
    %cst_104 = arith.constant dense<0.000000e+00> : vector<128x128xf32>
    %162 = tpu.matmul %4, %161, %cst_104 {dimension_numbers = #tpu.dot_dimension_numbers<[1], [0], [0], [1], [0, 0, 1, 1], [], []>} : vector<128x256xbf16>, vector<256x128xbf16>, vector<128x128xf32> -> vector<128x128xf32>
    %163 = tpu.concatenate %124, %162 in 1 : vector<128x128xf32>, vector<128x128xf32> -> vector<128x256xf32>
    %c2_105 = arith.constant 2 : index
    %c0_106 = arith.constant 0 : index
    %c0_107 = arith.constant 0 : index
    %164 = vector.load %arg10[%c2_105, %c0_106, %c0_107] : memref<3x256x128xf32, #tpu.memory_space<vmem>>, vector<1x256x128xf32>
    %165 = vector.shape_cast %164 : vector<1x256x128xf32> to vector<256x128xf32>
    %cst_108 = arith.constant dense<0.000000e+00> : vector<128x128xf32>
    %166 = tpu.matmul %163, %165, %cst_108 {dimension_numbers = #tpu.dot_dimension_numbers<[1], [0], [0], [1], [0, 0, 1, 1], [], []>} : vector<128x256xf32>, vector<256x128xf32>, vector<128x128xf32> -> vector<128x128xf32>
    %c2_109 = arith.constant 2 : index
    %c0_110 = arith.constant 0 : index
    %c0_111 = arith.constant 0 : index
    %167 = vector.load %arg11[%c2_109, %c0_110, %c0_111] : memref<3x1x128xf32, #tpu.memory_space<vmem>>, vector<1x1x128xf32>
    %168 = vector.shape_cast %167 : vector<1x1x128xf32> to vector<1x128xf32>
    %169 = vector.broadcast %168 : vector<1x128xf32> to vector<128x128xf32>
    %170 = arith.addf %166, %169 : vector<128x128xf32>
    %171 = arith.negf %170 : vector<128x128xf32>
    %172 = math.exp %171 : vector<128x128xf32>
    %cst_112 = arith.constant 1.000000e+00 : f32
    %173 = vector.broadcast %cst_112 : f32 to vector<128x128xf32>
    %174 = arith.addf %173, %172 : vector<128x128xf32>
    %175 = arith.divf %173, %174 : vector<128x128xf32>
    %176 = arith.mulf %170, %175 : vector<128x128xf32>
    %c2_113 = arith.constant 2 : index
    %c0_114 = arith.constant 0 : index
    %c0_115 = arith.constant 0 : index
    %177 = vector.load %arg12[%c2_113, %c0_114, %c0_115] : memref<3x128x128xf32, #tpu.memory_space<vmem>>, vector<1x128x128xf32>
    %178 = vector.shape_cast %177 : vector<1x128x128xf32> to vector<128x128xf32>
    %cst_116 = arith.constant dense<0.000000e+00> : vector<128x128xf32>
    %179 = tpu.matmul %176, %178, %cst_116 {dimension_numbers = #tpu.dot_dimension_numbers<[1], [0], [0], [1], [0, 0, 1, 1], [], []>} : vector<128x128xf32>, vector<128x128xf32>, vector<128x128xf32> -> vector<128x128xf32>
    %180 = arith.addf %124, %179 : vector<128x128xf32>
    %c2_117 = arith.constant 2 : index
    %c0_118 = arith.constant 0 : index
    %c0_119 = arith.constant 0 : index
    %181 = vector.load %arg13[%c2_117, %c0_118, %c0_119] : memref<3x1x128xf32, #tpu.memory_space<vmem>>, vector<1x1x128xf32>
    %182 = vector.shape_cast %181 : vector<1x1x128xf32> to vector<1x128xf32>
    %183 = vector.broadcast %182 : vector<1x128xf32> to vector<128x128xf32>
    %184 = arith.addf %180, %183 : vector<128x128xf32>
    %c0_120 = arith.constant 0 : index
    %c0_121 = arith.constant 0 : index
    %185 = vector.load %arg14[%c0_120, %c0_121] : memref<128x128xf32, #tpu.memory_space<vmem>>, vector<128x128xf32>
    tpu.vector_store %arg14[%c0_120, %c0_121], %184 {strides = array<i32>} : memref<128x128xf32, #tpu.memory_space<vmem>>, vector<128x128xf32>,
    return
  }
}

</mosaic_0001>

<llo_original>
// kernel: tpu_custom_call.1
$region0: #{tpu_custom_call.1}
  #allocation0 [shape = 'u32[]', space=smem, size = 0x4, offset = 0x4, fixed_abs, tag = 'smem constant byte address 0x4 - core index']
  #allocation1 [shape = 'u32[144,128]{1,0:T(1,128)}', space=vmem, size = 0x12000, scoped, tag = 'internal scratch']
  %s0 = inlined_call_operand.hbm [shape: f32[128,128], index: 0, kind: input, shape index: {}, may-alias: {0,14}]
  %s1 = inlined_call_operand.vmem [shape: f32[256,128], index: 1, kind: input, shape index: {}]
  %s2 = inlined_call_operand.hbm [shape: bf16[256,128], index: 2, kind: input, shape index: {}]
  %s3 = inlined_call_operand.hbm [shape: bf16[256,128], index: 3, kind: input, shape index: {}]
  %s4 = inlined_call_operand.hbm [shape: bf16[128,256], index: 4, kind: input, shape index: {}]
  %s5 = inlined_call_operand.hbm [shape: f32[3,128,256], index: 5, kind: input, shape index: {}]
  %s6 = inlined_call_operand.hbm [shape: f32[3,128,128], index: 6, kind: input, shape index: {}]
  %s7 = inlined_call_operand.vmem [shape: f32[3,1,128], index: 7, kind: input, shape index: {}]
  %s8 = inlined_call_operand.hbm [shape: f32[3,128,128], index: 8, kind: input, shape index: {}]
  %s9 = inlined_call_operand.vmem [shape: f32[3,1,128], index: 9, kind: input, shape index: {}]
  %s10 = inlined_call_operand.hbm [shape: f32[3,256,128], index: 10, kind: input, shape index: {}]
  %s11 = inlined_call_operand.vmem [shape: f32[3,1,128], index: 11, kind: input, shape index: {}]
  %s12 = inlined_call_operand.hbm [shape: f32[3,128,128], index: 12, kind: input, shape index: {}]
  %s13 = inlined_call_operand.vmem [shape: f32[3,1,128], index: 13, kind: input, shape index: {}]
  %s14 = inlined_call_operand.hbm [shape: f32[128,128], index: 14, kind: output, shape index: {}, may-alias: {0,14}]
  %s15 = sld [smem:[#allocation0]]
  $region102: #{tpu_custom_call.1} parent=0
    _
  %s17 = ssub.s32 1, %s15
  %s18 = scalar_select 0, %s17, %s15
  $region1: #{tpu_custom_call.1} parent=0
    #allocation2 [shape = 'u8[65536]{0}', space=vmem, size = 0x10000, scoped, tag = 'input window, operand 0, single buffered']
    #allocation3 [shape = 's32[1]{0}', space=sflag, size = 0x4, scoped, tag = 'scoped memory for tpu_custom_call.1']
    #allocation4 [shape = 's32[1]{0}', space=sflag, size = 0x4, scoped, tag = 'scoped memory for tpu_custom_call.1']
    #allocation5 [shape = 'u8[65536]{0}', space=vmem, size = 0x10000, scoped, tag = 'input window, operand 2, single buffered']
    #allocation6 [shape = 's32[1]{0}', space=sflag, size = 0x4, scoped, tag = 'scoped memory for tpu_custom_call.1']
    #allocation7 [shape = 'u8[65536]{0}', space=vmem, size = 0x10000, scoped, tag = 'input window, operand 3, single buffered']
    #allocation8 [shape = 'u8[65536]{0}', space=vmem, size = 0x10000, scoped, tag = 'input window, operand 4, single buffered']
    #allocation9 [shape = 's32[1]{0}', space=sflag, size = 0x4, scoped, tag = 'scoped memory for tpu_custom_call.1']
    #allocation10 [shape = 'u8[393216]{0}', space=vmem, size = 0x60000, scoped, tag = 'input window, operand 5, single buffered']
    #allocation11 [shape = 'u8[196608]{0}', space=vmem, size = 0x30000, scoped, tag = 'input window, operand 6, single buffered']
    #allocation12 [shape = 's32[1]{0}', space=sflag, size = 0x4, scoped, tag = 'scoped memory for tpu_custom_call.1']
    #allocation13 [shape = 'u8[196608]{0}', space=vmem, size = 0x30000, scoped, tag = 'input window, operand 8, single buffered']
    #allocation14 [shape = 'u8[393216]{0}', space=vmem, size = 0x60000, scoped, tag = 'input window, operand 10, single buffered']
    #allocation15 [shape = 's32[1]{0}', space=sflag, size = 0x4, scoped, tag = 'scoped memory for tpu_custom_call.1']
    #allocation16 [shape = 'u8[196608]{0}', space=vmem, size = 0x30000, scoped, tag = 'input window, operand 12, single buffered']
    #allocation17 [shape = 'u8[65536]{0}', space=vmem, size = 0x10000, scoped, tag = 'output window, operand 0, single buffered']
    %19 = vsyncpa [#allocation3], 0
    %20 = vsyncpa [#allocation6], 0
    %21 = vsyncpa [#allocation9], 0
    %22 = vsyncpa [#allocation12], 0
    %23 = vsyncpa [#allocation15], 0
    %24 = vsyncpa [#allocation4], 0
    // Predicated region
    $region2: #{tpu_custom_call.1} parent=1 // pred_check
      _
    $region3: #{tpu_custom_call.1} parent=1 // pred_check_branch
      %26 = sbr.rel (0) target = $region5
    $region4: #{tpu_custom_call.1} parent=1 // pred_region
      %s28 = ssub.s32 2048, 2048
      %29 = vsyncadd [#allocation3], %s28
      %s30 = sshll.u32 [#allocation2], 4
      %s31 = int_to_ptr.vmem [resolvable:$true] %s30
      %36 = dma.hbm_to_vmem [thread:$0]  %s0, 2048, %s31, [#allocation3], 128, 128, 8
    $region5: #{tpu_custom_call.1} parent=1 // pred_fallthru
      _
    // Predicated region
    $region6: #{tpu_custom_call.1} parent=1 // pred_check
      _
    $region7: #{tpu_custom_call.1} parent=1 // pred_check_branch
      %38 = sbr.rel (0) target = $region9
    $region8: #{tpu_custom_call.1} parent=1 // pred_region
      _
    $region9: #{tpu_custom_call.1} parent=1 // pred_fallthru
      _
    // Predicated region
    $region10: #{tpu_custom_call.1} parent=1 // pred_check
      _
    $region11: #{tpu_custom_call.1} parent=1 // pred_check_branch
      %40 = sbr.rel (0) target = $region13
    $region12: #{tpu_custom_call.1} parent=1 // pred_region
      %s42 = ssub.s32 2048, 2048
      %43 = vsyncadd [#allocation6], %s42
      %s44 = sshll.u32 [#allocation5], 4
      %s45 = int_to_ptr.vmem [resolvable:$true] %s44
      %50 = dma.hbm_to_vmem [thread:$0]  %s2, 2048, %s45, [#allocation6], 64, 64, 4
    $region13: #{tpu_custom_call.1} parent=1 // pred_fallthru
      _
    // Predicated region
    $region14: #{tpu_custom_call.1} parent=1 // pred_check
      _
    $region15: #{tpu_custom_call.1} parent=1 // pred_check_branch
      %52 = sbr.rel (0) target = $region17
    $region16: #{tpu_custom_call.1} parent=1 // pred_region
      %s54 = ssub.s32 2048, 2048
      %55 = vsyncadd [#allocation6], %s54
      %s56 = sshll.u32 [#allocation7], 4
      %s57 = int_to_ptr.vmem [resolvable:$true] %s56
      %62 = dma.hbm_to_vmem [thread:$0]  %s3, 2048, %s57, [#allocation6], 64, 64, 4
    $region17: #{tpu_custom_call.1} parent=1 // pred_fallthru
      _
    // Predicated region
    $region18: #{tpu_custom_call.1} parent=1 // pred_check
      _
    $region19: #{tpu_custom_call.1} parent=1 // pred_check_branch
      %64 = sbr.rel (0) target = $region21
    $region20: #{tpu_custom_call.1} parent=1 // pred_region
      %s66 = ssub.s32 2048, 2048
      %67 = vsyncadd [#allocation9], %s66
      %s68 = sshll.u32 [#allocation8], 4
      %s69 = int_to_ptr.vmem [resolvable:$true] %s68
      %74 = dma.hbm_to_vmem [thread:$0]  %s4, 2048, %s69, [#allocation9], 128, 128, 8
    $region21: #{tpu_custom_call.1} parent=1 // pred_fallthru
      _
    // Predicated region
    $region22: #{tpu_custom_call.1} parent=1 // pred_check
      _
    $region23: #{tpu_custom_call.1} parent=1 // pred_check_branch
      %76 = sbr.rel (0) target = $region25
    $region24: #{tpu_custom_call.1} parent=1 // pred_region
      %s78 = ssub.s32 12288, 12288
      %79 = vsyncadd [#allocation9], %s78
      %s80 = sshll.u32 [#allocation10], 4
      %s81 = int_to_ptr.vmem [resolvable:$true] %s80
      %86 = dma.hbm_to_vmem [thread:$0]  %s5, 12288, %s81, [#allocation9], 256, 256, 16
    $region25: #{tpu_custom_call.1} parent=1 // pred_fallthru
      _
    // Predicated region
    $region26: #{tpu_custom_call.1} parent=1 // pred_check
      _
    $region27: #{tpu_custom_call.1} parent=1 // pred_check_branch
      %88 = sbr.rel (0) target = $region29
    $region28: #{tpu_custom_call.1} parent=1 // pred_region
      %s90 = ssub.s32 6144, 6144
      %91 = vsyncadd [#allocation12], %s90
      %s92 = sshll.u32 [#allocation11], 4
      %s93 = int_to_ptr.vmem [resolvable:$true] %s92
      %98 = dma.hbm_to_vmem [thread:$0]  %s6, 6144, %s93, [#allocation12], 128, 128, 8
    $region29: #{tpu_custom_call.1} parent=1 // pred_fallthru
      _
    // Predicated region
    $region30: #{tpu_custom_call.1} parent=1 // pred_check
      _
    $region31: #{tpu_custom_call.1} parent=1 // pred_check_branch
      %100 = sbr.rel (0) target = $region33
    $region32: #{tpu_custom_call.1} parent=1 // pred_region
      _
    $region33: #{tpu_custom_call.1} parent=1 // pred_fallthru
      _
    // Predicated region
    $region34: #{tpu_custom_call.1} parent=1 // pred_check
      _
    $region35: #{tpu_custom_call.1} parent=1 // pred_check_branch
      %102 = sbr.rel (0) target = $region37
    $region36: #{tpu_custom_call.1} parent=1 // pred_region
      %s104 = ssub.s32 6144, 6144
      %105 = vsyncadd [#allocation12], %s104
      %s106 = sshll.u32 [#allocation13], 4
      %s107 = int_to_ptr.vmem [resolvable:$true] %s106
      %112 = dma.hbm_to_vmem [thread:$0]  %s8, 6144, %s107, [#allocation12], 128, 128, 8
    $region37: #{tpu_custom_call.1} parent=1 // pred_fallthru
      _
    // Predicated region
    $region38: #{tpu_custom_call.1} parent=1 // pred_check
      _
    $region39: #{tpu_custom_call.1} parent=1 // pred_check_branch
      %114 = sbr.rel (0) target = $region41
    $region40: #{tpu_custom_call.1} parent=1 // pred_region
      _
    $region41: #{tpu_custom_call.1} parent=1 // pred_fallthru
      _
    // Predicated region
    $region42: #{tpu_custom_call.1} parent=1 // pred_check
      _
    $region43: #{tpu_custom_call.1} parent=1 // pred_check_branch
      %116 = sbr.rel (0) target = $region45
    $region44: #{tpu_custom_call.1} parent=1 // pred_region
      %s118 = ssub.s32 12288, 12288
      %119 = vsyncadd [#allocation15], %s118
      %s120 = sshll.u32 [#allocation14], 4
      %s121 = int_to_ptr.vmem [resolvable:$true] %s120
      %126 = dma.hbm_to_vmem [thread:$0]  %s10, 12288, %s121, [#allocation15], 128, 128, 8
    $region45: #{tpu_custom_call.1} parent=1 // pred_fallthru
      _
    // Predicated region
    $region46: #{tpu_custom_call.1} parent=1 // pred_check
      _
    $region47: #{tpu_custom_call.1} parent=1 // pred_check_branch
      %128 = sbr.rel (0) target = $region49
    $region48: #{tpu_custom_call.1} parent=1 // pred_region
      _
    $region49: #{tpu_custom_call.1} parent=1 // pred_fallthru
      _
    // Predicated region
    $region50: #{tpu_custom_call.1} parent=1 // pred_check
      _
    $region51: #{tpu_custom_call.1} parent=1 // pred_check_branch
      %130 = sbr.rel (0) target = $region53
    $region52: #{tpu_custom_call.1} parent=1 // pred_region
      %s132 = ssub.s32 6144, 6144
      %133 = vsyncadd [#allocation15], %s132
      %s134 = sshll.u32 [#allocation16], 4
      %s135 = int_to_ptr.vmem [resolvable:$true] %s134
      %140 = dma.hbm_to_vmem [thread:$0]  %s12, 6144, %s135, [#allocation15], 128, 128, 8
    $region53: #{tpu_custom_call.1} parent=1 // pred_fallthru
      _
    // Predicated region
    $region54: #{tpu_custom_call.1} parent=1 // pred_check
      _
    $region55: #{tpu_custom_call.1} parent=1 // pred_check_branch
      %142 = sbr.rel (0) target = $region57
    $region56: #{tpu_custom_call.1} parent=1 // pred_region
      _
    $region57: #{tpu_custom_call.1} parent=1 // pred_fallthru
      _
    // Predicated region
    $region58: #{tpu_custom_call.1} parent=1 // pred_check
      _
    $region59: #{tpu_custom_call.1} parent=1 // pred_check_branch
      %144 = sbr.rel (0) target = $region61
    $region60: #{tpu_custom_call.1} parent=1 // pred_region
      %145 = dma.done [#allocation3], 2048
    $region61: #{tpu_custom_call.1} parent=1 // pred_fallthru
      _
    // Predicated region
    $region62: #{tpu_custom_call.1} parent=1 // pred_check
      _
    $region63: #{tpu_custom_call.1} parent=1 // pred_check_branch
      %147 = sbr.rel (0) target = $region65
    $region64: #{tpu_custom_call.1} parent=1 // pred_region
      %148 = dma.done [#allocation6], 2048
    $region65: #{tpu_custom_call.1} parent=1 // pred_fallthru
      _
    // Predicated region
    $region66: #{tpu_custom_call.1} parent=1 // pred_check
      _
    $region67: #{tpu_custom_call.1} parent=1 // pred_check_branch
      %150 = sbr.rel (0) target = $region69
    $region68: #{tpu_custom_call.1} parent=1 // pred_region
      %151 = dma.done [#allocation6], 2048
    $region69: #{tpu_custom_call.1} parent=1 // pred_fallthru
      _
    // Predicated region
    $region70: #{tpu_custom_call.1} parent=1 // pred_check
      _
    $region71: #{tpu_custom_call.1} parent=1 // pred_check_branch
      %153 = sbr.rel (0) target = $region73
    $region72: #{tpu_custom_call.1} parent=1 // pred_region
      %154 = dma.done [#allocation9], 2048
    $region73: #{tpu_custom_call.1} parent=1 // pred_fallthru
      _
    // Predicated region
    $region74: #{tpu_custom_call.1} parent=1 // pred_check
      _
    $region75: #{tpu_custom_call.1} parent=1 // pred_check_branch
      %156 = sbr.rel (0) target = $region77
    $region76: #{tpu_custom_call.1} parent=1 // pred_region
      %157 = dma.done [#allocation9], 12288
    $region77: #{tpu_custom_call.1} parent=1 // pred_fallthru
      _
    // Predicated region
    $region78: #{tpu_custom_call.1} parent=1 // pred_check
      _
    $region79: #{tpu_custom_call.1} parent=1 // pred_check_branch
      %159 = sbr.rel (0) target = $region81
    $region80: #{tpu_custom_call.1} parent=1 // pred_region
      %160 = dma.done [#allocation12], 6144
    $region81: #{tpu_custom_call.1} parent=1 // pred_fallthru
      _
    // Predicated region
    $region82: #{tpu_custom_call.1} parent=1 // pred_check
      _
    $region83: #{tpu_custom_call.1} parent=1 // pred_check_branch
      %162 = sbr.rel (0) target = $region85
    $region84: #{tpu_custom_call.1} parent=1 // pred_region
      %163 = dma.done [#allocation12], 6144
    $region85: #{tpu_custom_call.1} parent=1 // pred_fallthru
      _
    // Predicated region
    $region86: #{tpu_custom_call.1} parent=1 // pred_check
      _
    $region87: #{tpu_custom_call.1} parent=1 // pred_check_branch
      %165 = sbr.rel (0) target = $region89
    $region88: #{tpu_custom_call.1} parent=1 // pred_region
      %166 = dma.done [#allocation15], 12288
    $region89: #{tpu_custom_call.1} parent=1 // pred_fallthru
      _
    // Predicated region
    $region90: #{tpu_custom_call.1} parent=1 // pred_check
      _
    $region91: #{tpu_custom_call.1} parent=1 // pred_check_branch
      %168 = sbr.rel (0) target = $region93
    $region92: #{tpu_custom_call.1} parent=1 // pred_region
      %169 = dma.done [#allocation15], 6144
    $region93: #{tpu_custom_call.1} parent=1 // pred_fallthru
      _
    %v171 = vld [vmem:[#allocation2] sm:$0xff]
    %v172 = vld [vmem:[#allocation2 + $0x8] sm:$0xff]
    %v173 = vld [vmem:[#allocation2 + $0x10] sm:$0xff]
    %v174 = vld [vmem:[#allocation2 + $0x18] sm:$0xff]
    %v175 = vld [vmem:[#allocation2 + $0x20] sm:$0xff]
    %v176 = vld [vmem:[#allocation2 + $0x28] sm:$0xff]
    %v177 = vld [vmem:[#allocation2 + $0x30] sm:$0xff]
    %v178 = vld [vmem:[#allocation2 + $0x38] sm:$0xff]
    %v179 = vld [vmem:[#allocation2 + $0x40] sm:$0xff]
    %v180 = vld [vmem:[#allocation2 + $0x48] sm:$0xff]
    %v181 = vld [vmem:[#allocation2 + $0x50] sm:$0xff]
    %v182 = vld [vmem:[#allocation2 + $0x58] sm:$0xff]
    %v183 = vld [vmem:[#allocation2 + $0x60] sm:$0xff]
    %v184 = vld [vmem:[#allocation2 + $0x68] sm:$0xff]
    %v185 = vld [vmem:[#allocation2 + $0x70] sm:$0xff]
    %v186 = vld [vmem:[#allocation2 + $0x78] sm:$0xff]
    %v187 = vld [vmem:[%s1] sm:$0xff]
    %v188 = vld [vmem:[%s1 + $0x8] sm:$0xff]
    %v189 = vld [vmem:[%s1 + $0x10] sm:$0xff]
    %v190 = vld [vmem:[%s1 + $0x18] sm:$0xff]
    %v191 = vld [vmem:[%s1 + $0x20] sm:$0xff]
    %v192 = vld [vmem:[%s1 + $0x28] sm:$0xff]
    %v193 = vld [vmem:[%s1 + $0x30] sm:$0xff]
    %v194 = vld [vmem:[%s1 + $0x38] sm:$0xff]
    %v195 = vld [vmem:[%s1 + $0x40] sm:$0xff]
    %v196 = vld [vmem:[%s1 + $0x48] sm:$0xff]
    %v197 = vld [vmem:[%s1 + $0x50] sm:$0xff]
    %v198 = vld [vmem:[%s1 + $0x58] sm:$0xff]
    %v199 = vld [vmem:[%s1 + $0x60] sm:$0xff]
    %v200 = vld [vmem:[%s1 + $0x68] sm:$0xff]
    %v201 = vld [vmem:[%s1 + $0x70] sm:$0xff]
    %v202 = vld [vmem:[%s1 + $0x78] sm:$0xff]
    %v203 = vld [vmem:[%s1 + $0x80] sm:$0xff]
    %v204 = vld [vmem:[%s1 + $0x88] sm:$0xff]
    %v205 = vld [vmem:[%s1 + $0x90] sm:$0xff]
    %v206 = vld [vmem:[%s1 + $0x98] sm:$0xff]
    %v207 = vld [vmem:[%s1 + $0xa0] sm:$0xff]
    %v208 = vld [vmem:[%s1 + $0xa8] sm:$0xff]
    %v209 = vld [vmem:[%s1 + $0xb0] sm:$0xff]
    %v210 = vld [vmem:[%s1 + $0xb8] sm:$0xff]
    %v211 = vld [vmem:[%s1 + $0xc0] sm:$0xff]
    %v212 = vld [vmem:[%s1 + $0xc8] sm:$0xff]
    %v213 = vld [vmem:[%s1 + $0xd0] sm:$0xff]
    %v214 = vld [vmem:[%s1 + $0xd8] sm:$0xff]
    %v215 = vld [vmem:[%s1 + $0xe0] sm:$0xff]
    %v216 = vld [vmem:[%s1 + $0xe8] sm:$0xff]
    %v217 = vld [vmem:[%s1 + $0xf0] sm:$0xff]
    %v218 = vld [vmem:[%s1 + $0xf8] sm:$0xff]
    %v219 = vld [vmem:[#allocation5] sm:$0xf]
    %v220 = vld [vmem:[#allocation5 + $0x4] sm:$0xf]
    %v221 = vld [vmem:[#allocation5 + $0x8] sm:$0xf]
    %v222 = vld [vmem:[#allocation5 + $0xc] sm:$0xf]
    %v223 = vld [vmem:[#allocation5 + $0x10] sm:$0xf]
    %v224 = vld [vmem:[#allocation5 + $0x14] sm:$0xf]
    %v225 = vld [vmem:[#allocation5 + $0x18] sm:$0xf]
    %v226 = vld [vmem:[#allocation5 + $0x1c] sm:$0xf]
    %v227 = vld [vmem:[#allocation5 + $0x20] sm:$0xf]
    %v228 = vld [vmem:[#allocation5 + $0x24] sm:$0xf]
    %v229 = vld [vmem:[#allocation5 + $0x28] sm:$0xf]
    %v230 = vld [vmem:[#allocation5 + $0x2c] sm:$0xf]
    %v231 = vld [vmem:[#allocation5 + $0x30] sm:$0xf]
    %v232 = vld [vmem:[#allocation5 + $0x34] sm:$0xf]
    %v233 = vld [vmem:[#allocation5 + $0x38] sm:$0xf]
    %v234 = vld [vmem:[#allocation5 + $0x3c] sm:$0xf]
    %v235 = vld [vmem:[#allocation5 + $0x40] sm:$0xf]
    %v236 = vld [vmem:[#allocation5 + $0x44] sm:$0xf]
    %v237 = vld [vmem:[#allocation5 + $0x48] sm:$0xf]
    %v238 = vld [vmem:[#allocation5 + $0x4c] sm:$0xf]
    %v239 = vld [vmem:[#allocation5 + $0x50] sm:$0xf]
    %v240 = vld [vmem:[#allocation5 + $0x54] sm:$0xf]
    %v241 = vld [vmem:[#allocation5 + $0x58] sm:$0xf]
    %v242 = vld [vmem:[#allocation5 + $0x5c] sm:$0xf]
    %v243 = vld [vmem:[#allocation5 + $0x60] sm:$0xf]
    %v244 = vld [vmem:[#allocation5 + $0x64] sm:$0xf]
    %v245 = vld [vmem:[#allocation5 + $0x68] sm:$0xf]
    %v246 = vld [vmem:[#allocation5 + $0x6c] sm:$0xf]
    %v247 = vld [vmem:[#allocation5 + $0x70] sm:$0xf]
    %v248 = vld [vmem:[#allocation5 + $0x74] sm:$0xf]
    %v249 = vld [vmem:[#allocation5 + $0x78] sm:$0xf]
    %v250 = vld [vmem:[#allocation5 + $0x7c] sm:$0xf]
    %v251 = vld [vmem:[#allocation7] sm:$0xf]
    %v252 = vld [vmem:[#allocation7 + $0x4] sm:$0xf]
    %v253 = vld [vmem:[#allocation7 + $0x8] sm:$0xf]
    %v254 = vld [vmem:[#allocation7 + $0xc] sm:$0xf]
    %v255 = vld [vmem:[#allocation7 + $0x10] sm:$0xf]
    %v256 = vld [vmem:[#allocation7 + $0x14] sm:$0xf]
    %v257 = vld [vmem:[#allocation7 + $0x18] sm:$0xf]
    %v258 = vld [vmem:[#allocation7 + $0x1c] sm:$0xf]
    %v259 = vld [vmem:[#allocation7 + $0x20] sm:$0xf]
    %v260 = vld [vmem:[#allocation7 + $0x24] sm:$0xf]
    %v261 = vld [vmem:[#allocation7 + $0x28] sm:$0xf]
    %v262 = vld [vmem:[#allocation7 + $0x2c] sm:$0xf]
    %v263 = vld [vmem:[#allocation7 + $0x30] sm:$0xf]
    %v264 = vld [vmem:[#allocation7 + $0x34] sm:$0xf]
    %v265 = vld [vmem:[#allocation7 + $0x38] sm:$0xf]
    %v266 = vld [vmem:[#allocation7 + $0x3c] sm:$0xf]
    %v267 = vld [vmem:[#allocation7 + $0x40] sm:$0xf]
    %v268 = vld [vmem:[#allocation7 + $0x44] sm:$0xf]
    %v269 = vld [vmem:[#allocation7 + $0x48] sm:$0xf]
    %v270 = vld [vmem:[#allocation7 + $0x4c] sm:$0xf]
    %v271 = vld [vmem:[#allocation7 + $0x50] sm:$0xf]
    %v272 = vld [vmem:[#allocation7 + $0x54] sm:$0xf]
    %v273 = vld [vmem:[#allocation7 + $0x58] sm:$0xf]
    %v274 = vld [vmem:[#allocation7 + $0x5c] sm:$0xf]
    %v275 = vld [vmem:[#allocation7 + $0x60] sm:$0xf]
    %v276 = vld [vmem:[#allocation7 + $0x64] sm:$0xf]
    %v277 = vld [vmem:[#allocation7 + $0x68] sm:$0xf]
    %v278 = vld [vmem:[#allocation7 + $0x6c] sm:$0xf]
    %v279 = vld [vmem:[#allocation7 + $0x70] sm:$0xf]
    %v280 = vld [vmem:[#allocation7 + $0x74] sm:$0xf]
    %v281 = vld [vmem:[#allocation7 + $0x78] sm:$0xf]
    %v282 = vld [vmem:[#allocation7 + $0x7c] sm:$0xf]
    %v283 = vld [vmem:[#allocation8] sm:$0xff]
    %v284 = vld [vmem:[#allocation8 + $0x8] sm:$0xff]
    %v285 = vld [vmem:[#allocation8 + $0x10] sm:$0xff]
    %v286 = vld [vmem:[#allocation8 + $0x18] sm:$0xff]
    %v287 = vld [vmem:[#allocation8 + $0x20] sm:$0xff]
    %v288 = vld [vmem:[#allocation8 + $0x28] sm:$0xff]
    %v289 = vld [vmem:[#allocation8 + $0x30] sm:$0xff]
    %v290 = vld [vmem:[#allocation8 + $0x38] sm:$0xff]
    %v291 = vld [vmem:[#allocation8 + $0x40] sm:$0xff]
    %v292 = vld [vmem:[#allocation8 + $0x48] sm:$0xff]
    %v293 = vld [vmem:[#allocation8 + $0x50] sm:$0xff]
    %v294 = vld [vmem:[#allocation8 + $0x58] sm:$0xff]
    %v295 = vld [vmem:[#allocation8 + $0x60] sm:$0xff]
    %v296 = vld [vmem:[#allocation8 + $0x68] sm:$0xff]
    %v297 = vld [vmem:[#allocation8 + $0x70] sm:$0xff]
    %v298 = vld [vmem:[#allocation8 + $0x78] sm:$0xff]
    %v299 = vld [vmem:[#allocation10] sm:$0xff]
    %v300 = vld [vmem:[#allocation10 + $0x8] sm:$0xff]
    %v301 = vld [vmem:[#allocation10 + $0x10] sm:$0xff]
    %v302 = vld [vmem:[#allocation10 + $0x18] sm:$0xff]
    %v303 = vld [vmem:[#allocation10 + $0x20] sm:$0xff]
    %v304 = vld [vmem:[#allocation10 + $0x28] sm:$0xff]
    %v305 = vld [vmem:[#allocation10 + $0x30] sm:$0xff]
    %v306 = vld [vmem:[#allocation10 + $0x38] sm:$0xff]
    %v307 = vld [vmem:[#allocation10 + $0x40] sm:$0xff]
    %v308 = vld [vmem:[#allocation10 + $0x48] sm:$0xff]
    %v309 = vld [vmem:[#allocation10 + $0x50] sm:$0xff]
    %v310 = vld [vmem:[#allocation10 + $0x58] sm:$0xff]
    %v311 = vld [vmem:[#allocation10 + $0x60] sm:$0xff]
    %v312 = vld [vmem:[#allocation10 + $0x68] sm:$0xff]
    %v313 = vld [vmem:[#allocation10 + $0x70] sm:$0xff]
    %v314 = vld [vmem:[#allocation10 + $0x78] sm:$0xff]
    %v315 = vld [vmem:[#allocation10 + $0x80] sm:$0xff]
    %v316 = vld [vmem:[#allocation10 + $0x88] sm:$0xff]
    %v317 = vld [vmem:[#allocation10 + $0x90] sm:$0xff]
    %v318 = vld [vmem:[#allocation10 + $0x98] sm:$0xff]
    %v319 = vld [vmem:[#allocation10 + $0xa0] sm:$0xff]
    %v320 = vld [vmem:[#allocation10 + $0xa8] sm:$0xff]
    %v321 = vld [vmem:[#allocation10 + $0xb0] sm:$0xff]
    %v322 = vld [vmem:[#allocation10 + $0xb8] sm:$0xff]
    %v323 = vld [vmem:[#allocation10 + $0xc0] sm:$0xff]
    %v324 = vld [vmem:[#allocation10 + $0xc8] sm:$0xff]
    %v325 = vld [vmem:[#allocation10 + $0xd0] sm:$0xff]
    %v326 = vld [vmem:[#allocation10 + $0xd8] sm:$0xff]
    %v327 = vld [vmem:[#allocation10 + $0xe0] sm:$0xff]
    %v328 = vld [vmem:[#allocation10 + $0xe8] sm:$0xff]
    %v329 = vld [vmem:[#allocation10 + $0xf0] sm:$0xff]
    %v330 = vld [vmem:[#allocation10 + $0xf8] sm:$0xff]
    %331 = vmatprep.subr.mxu0 %v300
    %332 = vmatpush1.msra.mxu0 %v299
    %333 = vmatprep.subr.mxu0 %v302
    %334 = vmatpush1.msra.mxu0 %v301
    %335 = vmatprep.subr.mxu0 %v304
    %336 = vmatpush1.msra.mxu0 %v303
    %337 = vmatprep.subr.mxu0 %v306
    %338 = vmatpush1.msra.mxu0 %v305
    %339 = vmatprep.subr.mxu0 %v308
    %340 = vmatpush1.msra.mxu0 %v307
    %341 = vmatprep.subr.mxu0 %v310
    %342 = vmatpush1.msra.mxu0 %v309
    %343 = vmatprep.subr.mxu0 %v312
    %344 = vmatpush1.msra.mxu0 %v311
    %345 = vmatprep.subr.mxu0 %v314
    %346 = vmatpush1.msra.mxu0 %v313
    %347 = vmatprep.subr.mxu0 %v316
    %348 = vmatpush1.msra.mxu0 %v315
    %349 = vmatprep.subr.mxu0 %v318
    %350 = vmatpush1.msra.mxu0 %v317
    %351 = vmatprep.subr.mxu0 %v320
    %352 = vmatpush1.msra.mxu0 %v319
    %353 = vmatprep.subr.mxu0 %v322
    %354 = vmatpush1.msra.mxu0 %v321
    %355 = vmatprep.subr.mxu0 %v324
    %356 = vmatpush1.msra.mxu0 %v323
    %357 = vmatprep.subr.mxu0 %v326
    %358 = vmatpush1.msra.mxu0 %v325
    %359 = vmatprep.subr.mxu0 %v328
    %360 = vmatpush1.msra.mxu0 %v327
    %361 = vmatprep.subr.mxu0 %v330
    %362 = vmatpush1.msra.mxu0 %v329
    %363 = vmatprep.subr.mxu0 0.0
    %364 = vmatpush1.msra.mxu0 0.0
    %365 = vmatprep.subr.mxu0 0.0
    %366 = vmatpush1.msra.mxu0 0.0
    %367 = vmatprep.subr.mxu0 0.0
    %368 = vmatpush1.msra.mxu0 0.0
    %369 = vmatprep.subr.mxu0 0.0
    %370 = vmatpush1.msra.mxu0 0.0
    %371 = vmatprep.subr.mxu0 0.0
    %372 = vmatpush1.msra.mxu0 0.0
    %373 = vmatprep.subr.mxu0 0.0
    %374 = vmatpush1.msra.mxu0 0.0
    %375 = vmatprep.subr.mxu0 0.0
    %376 = vmatpush1.msra.mxu0 0.0
    %377 = vmatprep.subr.mxu0 0.0
    %378 = vmatpush1.msra.mxu0 0.0
    %379 = vmatprep.subr.mxu0 0.0
    %380 = vmatpush1.msra.mxu0 0.0
    %381 = vmatprep.subr.mxu0 0.0
    %382 = vmatpush1.msra.mxu0 0.0
    %383 = vmatprep.subr.mxu0 0.0
    %384 = vmatpush1.msra.mxu0 0.0
    %385 = vmatprep.subr.mxu0 0.0
    %386 = vmatpush1.msra.mxu0 0.0
    %387 = vmatprep.subr.mxu0 0.0
    %388 = vmatpush1.msra.mxu0 0.0
    %389 = vmatprep.subr.mxu0 0.0
    %390 = vmatpush1.msra.mxu0 0.0
    %391 = vmatprep.subr.mxu0 0.0
    %392 = vmatpush1.msra.mxu0 0.0
    %393 = vmatprep.subr.mxu0 0.0
    %394 = vmatpush1.msra.mxu0 0.0
    %395 = vmatprep.mubr.f32.mxu0 0.0
    %396 = vmatmul.mubr.f32.gmra.mrb[0].mxu0 %v171
    %v397 = vpop.f32.mrb[0].mxu0
    %v398 = vadd.f32 0.0, %v397
    %v399 = vpop.f32.mrb[0].mxu0
    %v400 = vadd.f32 0.0, %v399
    %401 = vmatprep.mubr.f32.mxu0 0.0
    %402 = vmatmul.mubr.f32.gmra.mrb[0].mxu0 %v172
    %v403 = vpop.f32.mrb[0].mxu0
    %v404 = vadd.f32 0.0, %v403
    %v405 = vpop.f32.mrb[0].mxu0
    %v406 = vadd.f32 0.0, %v405
    %407 = vmatprep.mubr.f32.mxu0 0.0
    %408 = vmatmul.mubr.f32.gmra.mrb[0].mxu0 %v173
    %v409 = vpop.f32.mrb[0].mxu0
    %v410 = vadd.f32 0.0, %v409
    %v411 = vpop.f32.mrb[0].mxu0
    %v412 = vadd.f32 0.0, %v411
    %413 = vmatprep.mubr.f32.mxu0 0.0
    %414 = vmatmul.mubr.f32.gmra.mrb[0].mxu0 %v174
    %v415 = vpop.f32.mrb[0].mxu0
    %v416 = vadd.f32 0.0, %v415
    %v417 = vpop.f32.mrb[0].mxu0
    %v418 = vadd.f32 0.0, %v417
    %419 = vmatprep.mubr.f32.mxu0 0.0
    %420 = vmatmul.mubr.f32.gmra.mrb[0].mxu0 %v175
    %v421 = vpop.f32.mrb[0].mxu0
    %v422 = vadd.f32 0.0, %v421
    %v423 = vpop.f32.mrb[0].mxu0
    %v424 = vadd.f32 0.0, %v423
    %425 = vmatprep.mubr.f32.mxu0 0.0
    %426 = vmatmul.mubr.f32.gmra.mrb[0].mxu0 %v176
    %v427 = vpop.f32.mrb[0].mxu0
    %v428 = vadd.f32 0.0, %v427
    %v429 = vpop.f32.mrb[0].mxu0
    %v430 = vadd.f32 0.0, %v429
    %431 = vmatprep.mubr.f32.mxu0 0.0
    %432 = vmatmul.mubr.f32.gmra.mrb[0].mxu0 %v177
    %v433 = vpop.f32.mrb[0].mxu0
    %v434 = vadd.f32 0.0, %v433
    %v435 = vpop.f32.mrb[0].mxu0
    %v436 = vadd.f32 0.0, %v435
    %437 = vmatprep.mubr.f32.mxu0 0.0
    %438 = vmatmul.mubr.f32.gmra.mrb[0].mxu0 %v178
    %v439 = vpop.f32.mrb[0].mxu0
    %v440 = vadd.f32 0.0, %v439
    %v441 = vpop.f32.mrb[0].mxu0
    %v442 = vadd.f32 0.0, %v441
    %443 = vmatprep.mubr.f32.mxu0 0.0
    %444 = vmatmul.mubr.f32.gmra.mrb[0].mxu0 %v179
    %v445 = vpop.f32.mrb[0].mxu0
    %v446 = vadd.f32 0.0, %v445
    %v447 = vpop.f32.mrb[0].mxu0
    %v448 = vadd.f32 0.0, %v447
    %449 = vmatprep.mubr.f32.mxu0 0.0
    %450 = vmatmul.mubr.f32.gmra.mrb[0].mxu0 %v180
    %v451 = vpop.f32.mrb[0].mxu0
    %v452 = vadd.f32 0.0, %v451
    %v453 = vpop.f32.mrb[0].mxu0
    %v454 = vadd.f32 0.0, %v453
    %455 = vmatprep.mubr.f32.mxu0 0.0
    %456 = vmatmul.mubr.f32.gmra.mrb[0].mxu0 %v181
    %v457 = vpop.f32.mrb[0].mxu0
    %v458 = vadd.f32 0.0, %v457
    %v459 = vpop.f32.mrb[0].mxu0
    %v460 = vadd.f32 0.0, %v459
    %461 = vmatprep.mubr.f32.mxu0 0.0
    %462 = vmatmul.mubr.f32.gmra.mrb[0].mxu0 %v182
    %v463 = vpop.f32.mrb[0].mxu0
    %v464 = vadd.f32 0.0, %v463
    %v465 = vpop.f32.mrb[0].mxu0
    %v466 = vadd.f32 0.0, %v465
    %467 = vmatprep.mubr.f32.mxu0 0.0
    %468 = vmatmul.mubr.f32.gmra.mrb[0].mxu0 %v183
    %v469 = vpop.f32.mrb[0].mxu0
    %v470 = vadd.f32 0.0, %v469
    %v471 = vpop.f32.mrb[0].mxu0
    %v472 = vadd.f32 0.0, %v471
    %473 = vmatprep.mubr.f32.mxu0 0.0
    %474 = vmatmul.mubr.f32.gmra.mrb[0].mxu0 %v184
    %v475 = vpop.f32.mrb[0].mxu0
    %v476 = vadd.f32 0.0, %v475
    %v477 = vpop.f32.mrb[0].mxu0
    %v478 = vadd.f32 0.0, %v477
    %479 = vmatprep.mubr.f32.mxu0 0.0
    %480 = vmatmul.mubr.f32.gmra.mrb[0].mxu0 %v185
    %v481 = vpop.f32.mrb[0].mxu0
    %v482 = vadd.f32 0.0, %v481
    %v483 = vpop.f32.mrb[0].mxu0
    %v484 = vadd.f32 0.0, %v483
    %485 = vmatprep.mubr.f32.mxu0 0.0
    %486 = vmatmul.mubr.f32.gmra.mrb[0].mxu0 %v186
    %v487 = vpop.f32.mrb[0].mxu0
    %v488 = vadd.f32 0.0, %v487
    %v489 = vpop.f32.mrb[0].mxu0
    %v490 = vadd.f32 0.0, %v489
    %491 = vdwg.mxu0
    %v492 = vpack.c.bf16 %v404, %v398
    %v493 = vpack.c.bf16 %v406, %v400
    %v494 = vpack.c.bf16 %v416, %v410
    %v495 = vpack.c.bf16 %v418, %v412
    %v496 = vpack.c.bf16 %v428, %v422
    %v497 = vpack.c.bf16 %v430, %v424
    %v498 = vpack.c.bf16 %v440, %v434
    %v499 = vpack.c.bf16 %v442, %v436
    %v500 = vpack.c.bf16 %v452, %v446
    %v501 = vpack.c.bf16 %v454, %v448
    %v502 = vpack.c.bf16 %v464, %v458
    %v503 = vpack.c.bf16 %v466, %v460
    %v504 = vpack.c.bf16 %v476, %v470
    %v505 = vpack.c.bf16 %v478, %v472
    %v506 = vpack.c.bf16 %v488, %v482
    %v507 = vpack.c.bf16 %v490, %v484
    %v540 = vunpack.c.l.b16 %v251
    %v541 = vunpack.c.l.b16 %v252
    %v542 = vunpack.c.l.b16 %v253
    %v543 = vunpack.c.l.b16 %v254
    %v544 = vunpack.c.l.b16 %v255
    %v545 = vunpack.c.l.b16 %v256
    %v546 = vunpack.c.l.b16 %v257
    %v547 = vunpack.c.l.b16 %v258
    %v548 = vunpack.c.l.b16 %v259
    %v549 = vunpack.c.l.b16 %v260
    %v550 = vunpack.c.l.b16 %v261
    %v551 = vunpack.c.l.b16 %v262
    %v552 = vunpack.c.l.b16 %v263
    %v553 = vunpack.c.l.b16 %v264
    %v554 = vunpack.c.l.b16 %v265
    %v555 = vunpack.c.l.b16 %v266
    %v556 = vunpack.c.l.b16 %v267
    %v557 = vunpack.c.l.b16 %v268
    %v558 = vunpack.c.l.b16 %v269
    %v559 = vunpack.c.l.b16 %v270
    %v560 = vunpack.c.l.b16 %v271
    %v561 = vunpack.c.l.b16 %v272
    %v562 = vunpack.c.l.b16 %v273
    %v563 = vunpack.c.l.b16 %v274
    %v564 = vunpack.c.l.b16 %v275
    %v565 = vunpack.c.l.b16 %v276
    %v566 = vunpack.c.l.b16 %v277
    %v567 = vunpack.c.l.b16 %v278
    %v568 = vunpack.c.l.b16 %v279
    %v569 = vunpack.c.l.b16 %v280
    %v570 = vunpack.c.l.b16 %v281
    %v571 = vunpack.c.l.b16 %v282
    %v572 = vpack.c.b16 %v541, %v540
    %v573 = vpack.c.b16 %v543, %v542
    %v574 = vpack.c.b16 %v545, %v544
    %v575 = vpack.c.b16 %v547, %v546
    %v576 = vpack.c.b16 %v549, %v548
    %v577 = vpack.c.b16 %v551, %v550
    %v578 = vpack.c.b16 %v553, %v552
    %v579 = vpack.c.b16 %v555, %v554
    %v580 = vpack.c.b16 %v557, %v556
    %v581 = vpack.c.b16 %v559, %v558
    %v582 = vpack.c.b16 %v561, %v560
    %v583 = vpack.c.b16 %v563, %v562
    %v584 = vpack.c.b16 %v565, %v564
    %v585 = vpack.c.b16 %v567, %v566
    %v586 = vpack.c.b16 %v569, %v568
    %v587 = vpack.c.b16 %v571, %v570
    %604 = vmatprep.subr.bf16.mxu0 0
    %605 = vmatpush1.bf16.msra.mxu0 %v493
    %606 = vmatprep.subr.bf16.mxu0 0
    %607 = vmatpush1.bf16.msra.mxu0 %v495
    %608 = vmatprep.subr.bf16.mxu0 0
    %609 = vmatpush1.bf16.msra.mxu0 %v497
    %610 = vmatprep.subr.bf16.mxu0 0
    %611 = vmatpush1.bf16.msra.mxu0 %v499
    %612 = vmatprep.subr.bf16.mxu0 0
    %613 = vmatpush1.bf16.msra.mxu0 %v501
    %614 = vmatprep.subr.bf16.mxu0 0
    %615 = vmatpush1.bf16.msra.mxu0 %v503
    %616 = vmatprep.subr.bf16.mxu0 0
    %617 = vmatpush1.bf16.msra.mxu0 %v505
    %618 = vmatprep.subr.bf16.mxu0 0
    %619 = vmatpush1.bf16.msra.mxu0 %v507
    %620 = vmatprep.subr.bf16.mxu0 0
    %621 = vmatpush1.bf16.msra.mxu0 0
    %622 = vmatprep.subr.bf16.mxu0 0
    %623 = vmatpush1.bf16.msra.mxu0 0
    %624 = vmatprep.subr.bf16.mxu0 0
    %625 = vmatpush1.bf16.msra.mxu0 0
    %626 = vmatprep.subr.bf16.mxu0 0
    %627 = vmatpush1.bf16.msra.mxu0 0
    %628 = vmatprep.subr.bf16.mxu0 0
    %629 = vmatpush1.bf16.msra.mxu0 0
    %630 = vmatprep.subr.bf16.mxu0 0
    %631 = vmatpush1.bf16.msra.mxu0 0
    %632 = vmatprep.subr.bf16.mxu0 0
    %633 = vmatpush1.bf16.msra.mxu0 0
    %634 = vmatprep.subr.bf16.mxu0 0
    %635 = vmatpush1.bf16.msra.mxu0 0
    %636 = vmatprep.mubr.bf16.mxu0 0
    %637 = vmatmul.mubr.bf16.gmra.mrb[0].mxu0 %v572
    %v638 = vpop.f32.mrb[0].mxu0
    %v639 = vadd.f32 0.0, %v638
    %v640 = vpop.f32.mrb[0].mxu0
    %v641 = vpop.f32.mrb[0].mxu0
    %v642 = vadd.f32 0.0, %v641
    %v643 = vpop.f32.mrb[0].mxu0
    %644 = vmatprep.mubr.bf16.mxu0 0
    %645 = vmatmul.mubr.bf16.gmra.mrb[0].mxu0 %v573
    %v646 = vpop.f32.mrb[0].mxu0
    %v647 = vadd.f32 0.0, %v646
    %v648 = vpop.f32.mrb[0].mxu0
    %v649 = vpop.f32.mrb[0].mxu0
    %v650 = vadd.f32 0.0, %v649
    %v651 = vpop.f32.mrb[0].mxu0
    %652 = vmatprep.mubr.bf16.mxu0 0
    %653 = vmatmul.mubr.bf16.gmra.mrb[0].mxu0 %v574
    %v654 = vpop.f32.mrb[0].mxu0
    %v655 = vadd.f32 0.0, %v654
    %v656 = vpop.f32.mrb[0].mxu0
    %v657 = vpop.f32.mrb[0].mxu0
    %v658 = vadd.f32 0.0, %v657
    %v659 = vpop.f32.mrb[0].mxu0
    %660 = vmatprep.mubr.bf16.mxu0 0
    %661 = vmatmul.mubr.bf16.gmra.mrb[0].mxu0 %v575
    %v662 = vpop.f32.mrb[0].mxu0
    %v663 = vadd.f32 0.0, %v662
    %v664 = vpop.f32.mrb[0].mxu0
    %v665 = vpop.f32.mrb[0].mxu0
    %v666 = vadd.f32 0.0, %v665
    %v667 = vpop.f32.mrb[0].mxu0
    %668 = vmatprep.mubr.bf16.mxu0 0
    %669 = vmatmul.mubr.bf16.gmra.mrb[0].mxu0 %v576
    %v670 = vpop.f32.mrb[0].mxu0
    %v671 = vadd.f32 0.0, %v670
    %v672 = vpop.f32.mrb[0].mxu0
    %v673 = vpop.f32.mrb[0].mxu0
    %v674 = vadd.f32 0.0, %v673
    %v675 = vpop.f32.mrb[0].mxu0
    %676 = vmatprep.mubr.bf16.mxu0 0
    %677 = vmatmul.mubr.bf16.gmra.mrb[0].mxu0 %v577
    %v678 = vpop.f32.mrb[0].mxu0
    %v679 = vadd.f32 0.0, %v678
    %v680 = vpop.f32.mrb[0].mxu0
    %v681 = vpop.f32.mrb[0].mxu0
    %v682 = vadd.f32 0.0, %v681
    %v683 = vpop.f32.mrb[0].mxu0
    %684 = vmatprep.mubr.bf16.mxu0 0
    %685 = vmatmul.mubr.bf16.gmra.mrb[0].mxu0 %v578
    %v686 = vpop.f32.mrb[0].mxu0
    %v687 = vadd.f32 0.0, %v686
    %v688 = vpop.f32.mrb[0].mxu0
    %v689 = vpop.f32.mrb[0].mxu0
    %v690 = vadd.f32 0.0, %v689
    %v691 = vpop.f32.mrb[0].mxu0
    %692 = vmatprep.mubr.bf16.mxu0 0
    %693 = vmatmul.mubr.bf16.gmra.mrb[0].mxu0 %v579
    %v694 = vpop.f32.mrb[0].mxu0
    %v695 = vadd.f32 0.0, %v694
    %v696 = vpop.f32.mrb[0].mxu0
    %v697 = vpop.f32.mrb[0].mxu0
    %v698 = vadd.f32 0.0, %v697
    %v699 = vpop.f32.mrb[0].mxu0
    %700 = vmatprep.mubr.bf16.mxu0 0
    %701 = vmatmul.mubr.bf16.gmra.mrb[0].mxu0 %v580
    %v702 = vpop.f32.mrb[0].mxu0
    %v703 = vadd.f32 0.0, %v702
    %v704 = vpop.f32.mrb[0].mxu0
    %v705 = vpop.f32.mrb[0].mxu0
    %v706 = vadd.f32 0.0, %v705
    %v707 = vpop.f32.mrb[0].mxu0
    %708 = vmatprep.mubr.bf16.mxu0 0
    %709 = vmatmul.mubr.bf16.gmra.mrb[0].mxu0 %v581
    %v710 = vpop.f32.mrb[0].mxu0
    %v711 = vadd.f32 0.0, %v710
    %v712 = vpop.f32.mrb[0].mxu0
    %v713 = vpop.f32.mrb[0].mxu0
    %v714 = vadd.f32 0.0, %v713
    %v715 = vpop.f32.mrb[0].mxu0
    %716 = vmatprep.mubr.bf16.mxu0 0
    %717 = vmatmul.mubr.bf16.gmra.mrb[0].mxu0 %v582
    %v718 = vpop.f32.mrb[0].mxu0
    %v719 = vadd.f32 0.0, %v718
    %v720 = vpop.f32.mrb[0].mxu0
    %v721 = vpop.f32.mrb[0].mxu0
    %v722 = vadd.f32 0.0, %v721
    %v723 = vpop.f32.mrb[0].mxu0
    %724 = vmatprep.mubr.bf16.mxu0 0
    %725 = vmatmul.mubr.bf16.gmra.mrb[0].mxu0 %v583
    %v726 = vpop.f32.mrb[0].mxu0
    %v727 = vadd.f32 0.0, %v726
    %v728 = vpop.f32.mrb[0].mxu0
    %v729 = vpop.f32.mrb[0].mxu0
    %v730 = vadd.f32 0.0, %v729
    %v731 = vpop.f32.mrb[0].mxu0
    %732 = vmatprep.mubr.bf16.mxu0 0
    %733 = vmatmul.mubr.bf16.gmra.mrb[0].mxu0 %v584
    %v734 = vpop.f32.mrb[0].mxu0
    %v735 = vadd.f32 0.0, %v734
    %v736 = vpop.f32.mrb[0].mxu0
    %v737 = vpop.f32.mrb[0].mxu0
    %v738 = vadd.f32 0.0, %v737
    %v739 = vpop.f32.mrb[0].mxu0
    %740 = vmatprep.mubr.bf16.mxu0 0
    %741 = vmatmul.mubr.bf16.gmra.mrb[0].mxu0 %v585
    %v742 = vpop.f32.mrb[0].mxu0
    %v743 = vadd.f32 0.0, %v742
    %v744 = vpop.f32.mrb[0].mxu0
    %v745 = vpop.f32.mrb[0].mxu0
    %v746 = vadd.f32 0.0, %v745
    %v747 = vpop.f32.mrb[0].mxu0
    %748 = vmatprep.mubr.bf16.mxu0 0
    %749 = vmatmul.mubr.bf16.gmra.mrb[0].mxu0 %v586
    %v750 = vpop.f32.mrb[0].mxu0
    %v751 = vadd.f32 0.0, %v750
    %v752 = vpop.f32.mrb[0].mxu0
    %v753 = vpop.f32.mrb[0].mxu0
    %v754 = vadd.f32 0.0, %v753
    %v755 = vpop.f32.mrb[0].mxu0
    %756 = vmatprep.mubr.bf16.mxu0 0
    %757 = vmatmul.mubr.bf16.gmra.mrb[0].mxu0 %v587
    %v758 = vpop.f32.mrb[0].mxu0
    %v759 = vadd.f32 0.0, %v758
    %v760 = vpop.f32.mrb[0].mxu0
    %v761 = vpop.f32.mrb[0].mxu0
    %v762 = vadd.f32 0.0, %v761
    %v763 = vpop.f32.mrb[0].mxu0
    %764 = vdwg.mxu0
    %v797 = vunpack.c.l.b16 %v219
    %v798 = vunpack.c.l.b16 %v220
    %v799 = vunpack.c.l.b16 %v221
    %v800 = vunpack.c.l.b16 %v222
    %v801 = vunpack.c.l.b16 %v223
    %v802 = vunpack.c.l.b16 %v224
    %v803 = vunpack.c.l.b16 %v225
    %v804 = vunpack.c.l.b16 %v226
    %v805 = vunpack.c.l.b16 %v227
    %v806 = vunpack.c.l.b16 %v228
    %v807 = vunpack.c.l.b16 %v229
    %v808 = vunpack.c.l.b16 %v230
    %v809 = vunpack.c.l.b16 %v231
    %v810 = vunpack.c.l.b16 %v232
    %v811 = vunpack.c.l.b16 %v233
    %v812 = vunpack.c.l.b16 %v234
    %v813 = vunpack.c.l.b16 %v235
    %v814 = vunpack.c.l.b16 %v236
    %v815 = vunpack.c.l.b16 %v237
    %v816 = vunpack.c.l.b16 %v238
    %v817 = vunpack.c.l.b16 %v239
    %v818 = vunpack.c.l.b16 %v240
    %v819 = vunpack.c.l.b16 %v241
    %v820 = vunpack.c.l.b16 %v242
    %v821 = vunpack.c.l.b16 %v243
    %v822 = vunpack.c.l.b16 %v244
    %v823 = vunpack.c.l.b16 %v245
    %v824 = vunpack.c.l.b16 %v246
    %v825 = vunpack.c.l.b16 %v247
    %v826 = vunpack.c.l.b16 %v248
    %v827 = vunpack.c.l.b16 %v249
    %v828 = vunpack.c.l.b16 %v250
    %v829 = vpack.c.b16 %v798, %v797
    %v830 = vpack.c.b16 %v800, %v799
    %v831 = vpack.c.b16 %v802, %v801
    %v832 = vpack.c.b16 %v804, %v803
    %v833 = vpack.c.b16 %v806, %v805
    %v834 = vpack.c.b16 %v808, %v807
    %v835 = vpack.c.b16 %v810, %v809
    %v836 = vpack.c.b16 %v812, %v811
    %v837 = vpack.c.b16 %v814, %v813
    %v838 = vpack.c.b16 %v816, %v815
    %v839 = vpack.c.b16 %v818, %v817
    %v840 = vpack.c.b16 %v820, %v819
    %v841 = vpack.c.b16 %v822, %v821
    %v842 = vpack.c.b16 %v824, %v823
    %v843 = vpack.c.b16 %v826, %v825
    %v844 = vpack.c.b16 %v828, %v827
    %861 = vmatprep.subr.bf16.mxu0 0
    %862 = vmatpush1.bf16.msra.mxu0 %v492
    %863 = vmatprep.subr.bf16.mxu0 0
    %864 = vmatpush1.bf16.msra.mxu0 %v494
    %865 = vmatprep.subr.bf16.mxu0 0
    %866 = vmatpush1.bf16.msra.mxu0 %v496
    %867 = vmatprep.subr.bf16.mxu0 0
    %868 = vmatpush1.bf16.msra.mxu0 %v498
    %869 = vmatprep.subr.bf16.mxu0 0
    %870 = vmatpush1.bf16.msra.mxu0 %v500
    %871 = vmatprep.subr.bf16.mxu0 0
    %872 = vmatpush1.bf16.msra.mxu0 %v502
    %873 = vmatprep.subr.bf16.mxu0 0
    %874 = vmatpush1.bf16.msra.mxu0 %v504
    %875 = vmatprep.subr.bf16.mxu0 0
    %876 = vmatpush1.bf16.msra.mxu0 %v506
    %877 = vmatprep.subr.bf16.mxu0 0
    %878 = vmatpush1.bf16.msra.mxu0 0
    %879 = vmatprep.subr.bf16.mxu0 0
    %880 = vmatpush1.bf16.msra.mxu0 0
    %881 = vmatprep.subr.bf16.mxu0 0
    %882 = vmatpush1.bf16.msra.mxu0 0
    %883 = vmatprep.subr.bf16.mxu0 0
    %884 = vmatpush1.bf16.msra.mxu0 0
    %885 = vmatprep.subr.bf16.mxu0 0
    %886 = vmatpush1.bf16.msra.mxu0 0
    %887 = vmatprep.subr.bf16.mxu0 0
    %888 = vmatpush1.bf16.msra.mxu0 0
    %889 = vmatprep.subr.bf16.mxu0 0
    %890 = vmatpush1.bf16.msra.mxu0 0
    %891 = vmatprep.subr.bf16.mxu0 0
    %892 = vmatpush1.bf16.msra.mxu0 0
    %893 = vmatprep.mubr.bf16.mxu0 0
    %894 = vmatmul.mubr.bf16.gmra.mrb[0].mxu0 %v829
    %v895 = vpop.f32.mrb[0].mxu0
    %v896 = vadd.f32 %v639, %v895
    %v897 = vpop.f32.mrb[0].mxu0
    %v898 = vpop.f32.mrb[0].mxu0
    %v899 = vadd.f32 %v642, %v898
    %v900 = vpop.f32.mrb[0].mxu0
    %901 = vmatprep.mubr.bf16.mxu0 0
    %902 = vmatmul.mubr.bf16.gmra.mrb[0].mxu0 %v830
    %v903 = vpop.f32.mrb[0].mxu0
    %v904 = vadd.f32 %v647, %v903
    %v905 = vpop.f32.mrb[0].mxu0
    %v906 = vpop.f32.mrb[0].mxu0
    %v907 = vadd.f32 %v650, %v906
    %v908 = vpop.f32.mrb[0].mxu0
    %909 = vmatprep.mubr.bf16.mxu0 0
    %910 = vmatmul.mubr.bf16.gmra.mrb[0].mxu0 %v831
    %v911 = vpop.f32.mrb[0].mxu0
    %v912 = vadd.f32 %v655, %v911
    %v913 = vpop.f32.mrb[0].mxu0
    %v914 = vpop.f32.mrb[0].mxu0
    %v915 = vadd.f32 %v658, %v914
    %v916 = vpop.f32.mrb[0].mxu0
    %917 = vmatprep.mubr.bf16.mxu0 0
    %918 = vmatmul.mubr.bf16.gmra.mrb[0].mxu0 %v832
    %v919 = vpop.f32.mrb[0].mxu0
    %v920 = vadd.f32 %v663, %v919
    %v921 = vpop.f32.mrb[0].mxu0
    %v922 = vpop.f32.mrb[0].mxu0
    %v923 = vadd.f32 %v666, %v922
    %v924 = vpop.f32.mrb[0].mxu0
    %925 = vmatprep.mubr.bf16.mxu0 0
    %926 = vmatmul.mubr.bf16.gmra.mrb[0].mxu0 %v833
    %v927 = vpop.f32.mrb[0].mxu0
    %v928 = vadd.f32 %v671, %v927
    %v929 = vpop.f32.mrb[0].mxu0
    %v930 = vpop.f32.mrb[0].mxu0
    %v931 = vadd.f32 %v674, %v930
    %v932 = vpop.f32.mrb[0].mxu0
    %933 = vmatprep.mubr.bf16.mxu0 0
    %934 = vmatmul.mubr.bf16.gmra.mrb[0].mxu0 %v834
    %v935 = vpop.f32.mrb[0].mxu0
    %v936 = vadd.f32 %v679, %v935
    %v937 = vpop.f32.mrb[0].mxu0
    %v938 = vpop.f32.mrb[0].mxu0
    %v939 = vadd.f32 %v682, %v938
    %v940 = vpop.f32.mrb[0].mxu0
    %941 = vmatprep.mubr.bf16.mxu0 0
    %942 = vmatmul.mubr.bf16.gmra.mrb[0].mxu0 %v835
    %v943 = vpop.f32.mrb[0].mxu0
    %v944 = vadd.f32 %v687, %v943
    %v945 = vpop.f32.mrb[0].mxu0
    %v946 = vpop.f32.mrb[0].mxu0
    %v947 = vadd.f32 %v690, %v946
    %v948 = vpop.f32.mrb[0].mxu0
    %949 = vmatprep.mubr.bf16.mxu0 0
    %950 = vmatmul.mubr.bf16.gmra.mrb[0].mxu0 %v836
    %v951 = vpop.f32.mrb[0].mxu0
    %v952 = vadd.f32 %v695, %v951
    %v953 = vpop.f32.mrb[0].mxu0
    %v954 = vpop.f32.mrb[0].mxu0
    %v955 = vadd.f32 %v698, %v954
    %v956 = vpop.f32.mrb[0].mxu0
    %957 = vmatprep.mubr.bf16.mxu0 0
    %958 = vmatmul.mubr.bf16.gmra.mrb[0].mxu0 %v837
    %v959 = vpop.f32.mrb[0].mxu0
    %v960 = vadd.f32 %v703, %v959
    %v961 = vpop.f32.mrb[0].mxu0
    %v962 = vpop.f32.mrb[0].mxu0
    %v963 = vadd.f32 %v706, %v962
    %v964 = vpop.f32.mrb[0].mxu0
    %965 = vmatprep.mubr.bf16.mxu0 0
    %966 = vmatmul.mubr.bf16.gmra.mrb[0].mxu0 %v838
    %v967 = vpop.f32.mrb[0].mxu0
    %v968 = vadd.f32 %v711, %v967
    %v969 = vpop.f32.mrb[0].mxu0
    %v970 = vpop.f32.mrb[0].mxu0
    %v971 = vadd.f32 %v714, %v970
    %v972 = vpop.f32.mrb[0].mxu0
    %973 = vmatprep.mubr.bf16.mxu0 0
    %974 = vmatmul.mubr.bf16.gmra.mrb[0].mxu0 %v839
    %v975 = vpop.f32.mrb[0].mxu0
    %v976 = vadd.f32 %v719, %v975
    %v977 = vpop.f32.mrb[0].mxu0
    %v978 = vpop.f32.mrb[0].mxu0
    %v979 = vadd.f32 %v722, %v978
    %v980 = vpop.f32.mrb[0].mxu0
    %981 = vmatprep.mubr.bf16.mxu0 0
    %982 = vmatmul.mubr.bf16.gmra.mrb[0].mxu0 %v840
    %v983 = vpop.f32.mrb[0].mxu0
    %v984 = vadd.f32 %v727, %v983
    %v985 = vpop.f32.mrb[0].mxu0
    %v986 = vpop.f32.mrb[0].mxu0
    %v987 = vadd.f32 %v730, %v986
    %v988 = vpop.f32.mrb[0].mxu0
    %989 = vmatprep.mubr.bf16.mxu0 0
    %990 = vmatmul.mubr.bf16.gmra.mrb[0].mxu0 %v841
    %v991 = vpop.f32.mrb[0].mxu0
    %v992 = vadd.f32 %v735, %v991
    %v993 = vpop.f32.mrb[0].mxu0
    %v994 = vpop.f32.mrb[0].mxu0
    %v995 = vadd.f32 %v738, %v994
    %v996 = vpop.f32.mrb[0].mxu0
    %997 = vmatprep.mubr.bf16.mxu0 0
    %998 = vmatmul.mubr.bf16.gmra.mrb[0].mxu0 %v842
    %v999 = vpop.f32.mrb[0].mxu0
    %v1000 = vadd.f32 %v743, %v999
    %v1001 = vpop.f32.mrb[0].mxu0
    %v1002 = vpop.f32.mrb[0].mxu0
    %v1003 = vadd.f32 %v746, %v1002
    %v1004 = vpop.f32.mrb[0].mxu0
    %1005 = vmatprep.mubr.bf16.mxu0 0
    %1006 = vmatmul.mubr.bf16.gmra.mrb[0].mxu0 %v843
    %v1007 = vpop.f32.mrb[0].mxu0
    %v1008 = vadd.f32 %v751, %v1007
    %v1009 = vpop.f32.mrb[0].mxu0
    %v1010 = vpop.f32.mrb[0].mxu0
    %v1011 = vadd.f32 %v754, %v1010
    %v1012 = vpop.f32.mrb[0].mxu0
    %1013 = vmatprep.mubr.bf16.mxu0 0
    %1014 = vmatmul.mubr.bf16.gmra.mrb[0].mxu0 %v844
    %v1015 = vpop.f32.mrb[0].mxu0
    %v1016 = vadd.f32 %v759, %v1015
    %v1017 = vpop.f32.mrb[0].mxu0
    %v1018 = vpop.f32.mrb[0].mxu0
    %v1019 = vadd.f32 %v762, %v1018
    %v1020 = vpop.f32.mrb[0].mxu0
    %1021 = vdwg.mxu0
    %v1022 = vld [vmem:[#allocation11] sm:$0xff]
    %v1023 = vld [vmem:[#allocation11 + $0x8] sm:$0xff]
    %v1024 = vld [vmem:[#allocation11 + $0x10] sm:$0xff]
    %v1025 = vld [vmem:[#allocation11 + $0x18] sm:$0xff]
    %v1026 = vld [vmem:[#allocation11 + $0x20] sm:$0xff]
    %v1027 = vld [vmem:[#allocation11 + $0x28] sm:$0xff]
    %v1028 = vld [vmem:[#allocation11 + $0x30] sm:$0xff]
    %v1029 = vld [vmem:[#allocation11 + $0x38] sm:$0xff]
    %v1030 = vld [vmem:[#allocation11 + $0x40] sm:$0xff]
    %v1031 = vld [vmem:[#allocation11 + $0x48] sm:$0xff]
    %v1032 = vld [vmem:[#allocation11 + $0x50] sm:$0xff]
    %v1033 = vld [vmem:[#allocation11 + $0x58] sm:$0xff]
    %v1034 = vld [vmem:[#allocation11 + $0x60] sm:$0xff]
    %v1035 = vld [vmem:[#allocation11 + $0x68] sm:$0xff]
    %v1036 = vld [vmem:[#allocation11 + $0x70] sm:$0xff]
    %v1037 = vld [vmem:[#allocation11 + $0x78] sm:$0xff]
    %1038 = vmatprep.subr.mxu0 0.0
    %1039 = vmatpush1.msra.mxu0 %v1022
    %1040 = vmatprep.subr.mxu0 0.0
    %1041 = vmatpush1.msra.mxu0 %v1023
    %1042 = vmatprep.subr.mxu0 0.0
    %1043 = vmatpush1.msra.mxu0 %v1024
    %1044 = vmatprep.subr.mxu0 0.0
    %1045 = vmatpush1.msra.mxu0 %v1025
    %1046 = vmatprep.subr.mxu0 0.0
    %1047 = vmatpush1.msra.mxu0 %v1026
    %1048 = vmatprep.subr.mxu0 0.0
    %1049 = vmatpush1.msra.mxu0 %v1027
    %1050 = vmatprep.subr.mxu0 0.0
    %1051 = vmatpush1.msra.mxu0 %v1028
    %1052 = vmatprep.subr.mxu0 0.0
    %1053 = vmatpush1.msra.mxu0 %v1029
    %1054 = vmatprep.subr.mxu0 0.0
    %1055 = vmatpush1.msra.mxu0 %v1030
    %1056 = vmatprep.subr.mxu0 0.0
    %1057 = vmatpush1.msra.mxu0 %v1031
    %1058 = vmatprep.subr.mxu0 0.0
    %1059 = vmatpush1.msra.mxu0 %v1032
    %1060 = vmatprep.subr.mxu0 0.0
    %1061 = vmatpush1.msra.mxu0 %v1033
    %1062 = vmatprep.subr.mxu0 0.0
    %1063 = vmatpush1.msra.mxu0 %v1034
    %1064 = vmatprep.subr.mxu0 0.0
    %1065 = vmatpush1.msra.mxu0 %v1035
    %1066 = vmatprep.subr.mxu0 0.0
    %1067 = vmatpush1.msra.mxu0 %v1036
    %1068 = vmatprep.subr.mxu0 0.0
    %1069 = vmatpush1.msra.mxu0 %v1037
    %1070 = vmatprep.subr.mxu0 0.0
    %1071 = vmatpush1.msra.mxu0 0.0
    %1072 = vmatprep.subr.mxu0 0.0
    %1073 = vmatpush1.msra.mxu0 0.0
    %1074 = vmatprep.subr.mxu0 0.0
    %1075 = vmatpush1.msra.mxu0 0.0
    %1076 = vmatprep.subr.mxu0 0.0
    %1077 = vmatpush1.msra.mxu0 0.0
    %1078 = vmatprep.subr.mxu0 0.0
    %1079 = vmatpush1.msra.mxu0 0.0
    %1080 = vmatprep.subr.mxu0 0.0
    %1081 = vmatpush1.msra.mxu0 0.0
    %1082 = vmatprep.subr.mxu0 0.0
    %1083 = vmatpush1.msra.mxu0 0.0
    %1084 = vmatprep.subr.mxu0 0.0
    %1085 = vmatpush1.msra.mxu0 0.0
    %1086 = vmatprep.subr.mxu0 0.0
    %1087 = vmatpush1.msra.mxu0 0.0
    %1088 = vmatprep.subr.mxu0 0.0
    %1089 = vmatpush1.msra.mxu0 0.0
    %1090 = vmatprep.subr.mxu0 0.0
    %1091 = vmatpush1.msra.mxu0 0.0
    %1092 = vmatprep.subr.mxu0 0.0
    %1093 = vmatpush1.msra.mxu0 0.0
    %1094 = vmatprep.subr.mxu0 0.0
    %1095 = vmatpush1.msra.mxu0 0.0
    %1096 = vmatprep.subr.mxu0 0.0
    %1097 = vmatpush1.msra.mxu0 0.0
    %1098 = vmatprep.subr.mxu0 0.0
    %1099 = vmatpush1.msra.mxu0 0.0
    %1100 = vmatprep.subr.mxu0 0.0
    %1101 = vmatpush1.msra.mxu0 0.0
    %1102 = vmatprep.mubr.f32.mxu0 0.0
    %1103 = vmatmul.mubr.f32.gmra.mrb[0].mxu0 %v187
    %v1104 = vpop.f32.mrb[0].mxu0
    %v1105 = vadd.f32 0.0, %v1104
    %v1106 = vpop.f32.mrb[0].mxu0
    %1107 = vmatprep.mubr.f32.mxu0 0.0
    %1108 = vmatmul.mubr.f32.gmra.mrb[0].mxu0 %v188
    %v1109 = vpop.f32.mrb[0].mxu0
    %v1110 = vadd.f32 0.0, %v1109
    %v1111 = vpop.f32.mrb[0].mxu0
    %1112 = vmatprep.mubr.f32.mxu0 0.0
    %1113 = vmatmul.mubr.f32.gmra.mrb[0].mxu0 %v189
    %v1114 = vpop.f32.mrb[0].mxu0
    %v1115 = vadd.f32 0.0, %v1114
    %v1116 = vpop.f32.mrb[0].mxu0
    %1117 = vmatprep.mubr.f32.mxu0 0.0
    %1118 = vmatmul.mubr.f32.gmra.mrb[0].mxu0 %v190
    %v1119 = vpop.f32.mrb[0].mxu0
    %v1120 = vadd.f32 0.0, %v1119
    %v1121 = vpop.f32.mrb[0].mxu0
    %1122 = vmatprep.mubr.f32.mxu0 0.0
    %1123 = vmatmul.mubr.f32.gmra.mrb[0].mxu0 %v191
    %v1124 = vpop.f32.mrb[0].mxu0
    %v1125 = vadd.f32 0.0, %v1124
    %v1126 = vpop.f32.mrb[0].mxu0
    %1127 = vmatprep.mubr.f32.mxu0 0.0
    %1128 = vmatmul.mubr.f32.gmra.mrb[0].mxu0 %v192
    %v1129 = vpop.f32.mrb[0].mxu0
    %v1130 = vadd.f32 0.0, %v1129
    %v1131 = vpop.f32.mrb[0].mxu0
    %1132 = vmatprep.mubr.f32.mxu0 0.0
    %1133 = vmatmul.mubr.f32.gmra.mrb[0].mxu0 %v193
    %v1134 = vpop.f32.mrb[0].mxu0
    %v1135 = vadd.f32 0.0, %v1134
    %v1136 = vpop.f32.mrb[0].mxu0
    %1137 = vmatprep.mubr.f32.mxu0 0.0
    %1138 = vmatmul.mubr.f32.gmra.mrb[0].mxu0 %v194
    %v1139 = vpop.f32.mrb[0].mxu0
    %v1140 = vadd.f32 0.0, %v1139
    %v1141 = vpop.f32.mrb[0].mxu0
    %1142 = vmatprep.mubr.f32.mxu0 0.0
    %1143 = vmatmul.mubr.f32.gmra.mrb[0].mxu0 %v195
    %v1144 = vpop.f32.mrb[0].mxu0
    %v1145 = vadd.f32 0.0, %v1144
    %v1146 = vpop.f32.mrb[0].mxu0
    %1147 = vmatprep.mubr.f32.mxu0 0.0
    %1148 = vmatmul.mubr.f32.gmra.mrb[0].mxu0 %v196
    %v1149 = vpop.f32.mrb[0].mxu0
    %v1150 = vadd.f32 0.0, %v1149
    %v1151 = vpop.f32.mrb[0].mxu0
    %1152 = vmatprep.mubr.f32.mxu0 0.0
    %1153 = vmatmul.mubr.f32.gmra.mrb[0].mxu0 %v197
    %v1154 = vpop.f32.mrb[0].mxu0
    %v1155 = vadd.f32 0.0, %v1154
    %v1156 = vpop.f32.mrb[0].mxu0
    %1157 = vmatprep.mubr.f32.mxu0 0.0
    %1158 = vmatmul.mubr.f32.gmra.mrb[0].mxu0 %v198
    %v1159 = vpop.f32.mrb[0].mxu0
    %v1160 = vadd.f32 0.0, %v1159
    %v1161 = vpop.f32.mrb[0].mxu0
    %1162 = vmatprep.mubr.f32.mxu0 0.0
    %1163 = vmatmul.mubr.f32.gmra.mrb[0].mxu0 %v199
    %v1164 = vpop.f32.mrb[0].mxu0
    %v1165 = vadd.f32 0.0, %v1164
    %v1166 = vpop.f32.mrb[0].mxu0
    %1167 = vmatprep.mubr.f32.mxu0 0.0
    %1168 = vmatmul.mubr.f32.gmra.mrb[0].mxu0 %v200
    %v1169 = vpop.f32.mrb[0].mxu0
    %v1170 = vadd.f32 0.0, %v1169
    %v1171 = vpop.f32.mrb[0].mxu0
    %1172 = vmatprep.mubr.f32.mxu0 0.0
    %1173 = vmatmul.mubr.f32.gmra.mrb[0].mxu0 %v201
    %v1174 = vpop.f32.mrb[0].mxu0
    %v1175 = vadd.f32 0.0, %v1174
    %v1176 = vpop.f32.mrb[0].mxu0
    %1177 = vmatprep.mubr.f32.mxu0 0.0
    %1178 = vmatmul.mubr.f32.gmra.mrb[0].mxu0 %v202
    %v1179 = vpop.f32.mrb[0].mxu0
    %v1180 = vadd.f32 0.0, %v1179
    %v1181 = vpop.f32.mrb[0].mxu0
    %1182 = vmatprep.mubr.f32.mxu0 0.0
    %1183 = vmatmul.mubr.f32.gmra.mrb[0].mxu0 %v203
    %v1184 = vpop.f32.mrb[0].mxu0
    %v1185 = vadd.f32 0.0, %v1184
    %v1186 = vpop.f32.mrb[0].mxu0
    %1187 = vmatprep.mubr.f32.mxu0 0.0
    %1188 = vmatmul.mubr.f32.gmra.mrb[0].mxu0 %v204
    %v1189 = vpop.f32.mrb[0].mxu0
    %v1190 = vadd.f32 0.0, %v1189
    %v1191 = vpop.f32.mrb[0].mxu0
    %1192 = vmatprep.mubr.f32.mxu0 0.0
    %1193 = vmatmul.mubr.f32.gmra.mrb[0].mxu0 %v205
    %v1194 = vpop.f32.mrb[0].mxu0
    %v1195 = vadd.f32 0.0, %v1194
    %v1196 = vpop.f32.mrb[0].mxu0
    %1197 = vmatprep.mubr.f32.mxu0 0.0
    %1198 = vmatmul.mubr.f32.gmra.mrb[0].mxu0 %v206
    %v1199 = vpop.f32.mrb[0].mxu0
    %v1200 = vadd.f32 0.0, %v1199
    %v1201 = vpop.f32.mrb[0].mxu0
    %1202 = vmatprep.mubr.f32.mxu0 0.0
    %1203 = vmatmul.mubr.f32.gmra.mrb[0].mxu0 %v207
    %v1204 = vpop.f32.mrb[0].mxu0
    %v1205 = vadd.f32 0.0, %v1204
    %v1206 = vpop.f32.mrb[0].mxu0
    %1207 = vmatprep.mubr.f32.mxu0 0.0
    %1208 = vmatmul.mubr.f32.gmra.mrb[0].mxu0 %v208
    %v1209 = vpop.f32.mrb[0].mxu0
    %v1210 = vadd.f32 0.0, %v1209
    %v1211 = vpop.f32.mrb[0].mxu0
    %1212 = vmatprep.mubr.f32.mxu0 0.0
    %1213 = vmatmul.mubr.f32.gmra.mrb[0].mxu0 %v209
    %v1214 = vpop.f32.mrb[0].mxu0
    %v1215 = vadd.f32 0.0, %v1214
    %v1216 = vpop.f32.mrb[0].mxu0
    %1217 = vmatprep.mubr.f32.mxu0 0.0
    %1218 = vmatmul.mubr.f32.gmra.mrb[0].mxu0 %v210
    %v1219 = vpop.f32.mrb[0].mxu0
    %v1220 = vadd.f32 0.0, %v1219
    %v1221 = vpop.f32.mrb[0].mxu0
    %1222 = vmatprep.mubr.f32.mxu0 0.0
    %1223 = vmatmul.mubr.f32.gmra.mrb[0].mxu0 %v211
    %v1224 = vpop.f32.mrb[0].mxu0
    %v1225 = vadd.f32 0.0, %v1224
    %v1226 = vpop.f32.mrb[0].mxu0
    %1227 = vmatprep.mubr.f32.mxu0 0.0
    %1228 = vmatmul.mubr.f32.gmra.mrb[0].mxu0 %v212
    %v1229 = vpop.f32.mrb[0].mxu0
    %v1230 = vadd.f32 0.0, %v1229
    %v1231 = vpop.f32.mrb[0].mxu0
    %1232 = vmatprep.mubr.f32.mxu0 0.0
    %1233 = vmatmul.mubr.f32.gmra.mrb[0].mxu0 %v213
    %v1234 = vpop.f32.mrb[0].mxu0
    %v1235 = vadd.f32 0.0, %v1234
    %v1236 = vpop.f32.mrb[0].mxu0
    %1237 = vmatprep.mubr.f32.mxu0 0.0
    %1238 = vmatmul.mubr.f32.gmra.mrb[0].mxu0 %v214
    %v1239 = vpop.f32.mrb[0].mxu0
    %v1240 = vadd.f32 0.0, %v1239
    %v1241 = vpop.f32.mrb[0].mxu0
    %1242 = vmatprep.mubr.f32.mxu0 0.0
    %1243 = vmatmul.mubr.f32.gmra.mrb[0].mxu0 %v215
    %v1244 = vpop.f32.mrb[0].mxu0
    %v1245 = vadd.f32 0.0, %v1244
    %v1246 = vpop.f32.mrb[0].mxu0
    %1247 = vmatprep.mubr.f32.mxu0 0.0
    %1248 = vmatmul.mubr.f32.gmra.mrb[0].mxu0 %v216
    %v1249 = vpop.f32.mrb[0].mxu0
    %v1250 = vadd.f32 0.0, %v1249
    %v1251 = vpop.f32.mrb[0].mxu0
    %1252 = vmatprep.mubr.f32.mxu0 0.0
    %1253 = vmatmul.mubr.f32.gmra.mrb[0].mxu0 %v217
    %v1254 = vpop.f32.mrb[0].mxu0
    %v1255 = vadd.f32 0.0, %v1254
    %v1256 = vpop.f32.mrb[0].mxu0
    %1257 = vmatprep.mubr.f32.mxu0 0.0
    %1258 = vmatmul.mubr.f32.gmra.mrb[0].mxu0 %v218
    %v1259 = vpop.f32.mrb[0].mxu0
    %v1260 = vadd.f32 0.0, %v1259
    %v1261 = vpop.f32.mrb[0].mxu0
    %1262 = vdwg.mxu0
    %v1263 = vadd.f32 %v896, %v1105
    %v1264 = vadd.f32 %v899, %v1110
    %v1265 = vadd.f32 %v904, %v1115
    %v1266 = vadd.f32 %v907, %v1120
    %v1267 = vadd.f32 %v912, %v1125
    %v1268 = vadd.f32 %v915, %v1130
    %v1269 = vadd.f32 %v920, %v1135
    %v1270 = vadd.f32 %v923, %v1140
    %v1271 = vadd.f32 %v928, %v1145
    %v1272 = vadd.f32 %v931, %v1150
    %v1273 = vadd.f32 %v936, %v1155
    %v1274 = vadd.f32 %v939, %v1160
    %v1275 = vadd.f32 %v944, %v1165
    %v1276 = vadd.f32 %v947, %v1170
    %v1277 = vadd.f32 %v952, %v1175
    %v1278 = vadd.f32 %v955, %v1180
    %v1279 = vadd.f32 %v960, %v1185
    %v1280 = vadd.f32 %v963, %v1190
    %v1281 = vadd.f32 %v968, %v1195
    %v1282 = vadd.f32 %v971, %v1200
    %v1283 = vadd.f32 %v976, %v1205
    %v1284 = vadd.f32 %v979, %v1210
    %v1285 = vadd.f32 %v984, %v1215
    %v1286 = vadd.f32 %v987, %v1220
    %v1287 = vadd.f32 %v992, %v1225
    %v1288 = vadd.f32 %v995, %v1230
    %v1289 = vadd.f32 %v1000, %v1235
    %v1290 = vadd.f32 %v1003, %v1240
    %v1291 = vadd.f32 %v1008, %v1245
    %v1292 = vadd.f32 %v1011, %v1250
    %v1293 = vadd.f32 %v1016, %v1255
    %v1294 = vadd.f32 %v1019, %v1260
    %v1295 = vld [vmem:[%s7] sm:$0x1]
    %v1297 = vlaneseq
    %v1298 = vshrl.u32 %v1297, 7
    %v1299 = vsub.s32 0, %v1298
    %v1300 = vrot.slane %v1295, %v1299
    %v1302 = vadd.f32 %v1263, %v1300
    %v1303 = vadd.f32 %v1264, %v1300
    %v1304 = vadd.f32 %v1265, %v1300
    %v1305 = vadd.f32 %v1266, %v1300
    %v1306 = vadd.f32 %v1267, %v1300
    %v1307 = vadd.f32 %v1268, %v1300
    %v1308 = vadd.f32 %v1269, %v1300
    %v1309 = vadd.f32 %v1270, %v1300
    %v1310 = vadd.f32 %v1271, %v1300
    %v1311 = vadd.f32 %v1272, %v1300
    %v1312 = vadd.f32 %v1273, %v1300
    %v1313 = vadd.f32 %v1274, %v1300
    %v1314 = vadd.f32 %v1275, %v1300
    %v1315 = vadd.f32 %v1276, %v1300
    %v1316 = vadd.f32 %v1277, %v1300
    %v1317 = vadd.f32 %v1278, %v1300
    %v1318 = vadd.f32 %v1279, %v1300
    %v1319 = vadd.f32 %v1280, %v1300
    %v1320 = vadd.f32 %v1281, %v1300
    %v1321 = vadd.f32 %v1282, %v1300
    %v1322 = vadd.f32 %v1283, %v1300
    %v1323 = vadd.f32 %v1284, %v1300
    %v1324 = vadd.f32 %v1285, %v1300
    %v1325 = vadd.f32 %v1286, %v1300
    %v1326 = vadd.f32 %v1287, %v1300
    %v1327 = vadd.f32 %v1288, %v1300
    %v1328 = vadd.f32 %v1289, %v1300
    %v1329 = vadd.f32 %v1290, %v1300
    %v1330 = vadd.f32 %v1291, %v1300
    %v1331 = vadd.f32 %v1292, %v1300
    %v1332 = vadd.f32 %v1293, %v1300
    %v1333 = vadd.f32 %v1294, %v1300
    %v1334 = vxor.u32 %v1302, 2147483648
    %v1335 = vxor.u32 %v1303, 2147483648
    %v1336 = vxor.u32 %v1304, 2147483648
    %v1337 = vxor.u32 %v1305, 2147483648
    %v1338 = vxor.u32 %v1306, 2147483648
    %v1339 = vxor.u32 %v1307, 2147483648
    %v1340 = vxor.u32 %v1308, 2147483648
    %v1341 = vxor.u32 %v1309, 2147483648
    %v1342 = vxor.u32 %v1310, 2147483648
    %v1343 = vxor.u32 %v1311, 2147483648
    %v1344 = vxor.u32 %v1312, 2147483648
    %v1345 = vxor.u32 %v1313, 2147483648
    %v1346 = vxor.u32 %v1314, 2147483648
    %v1347 = vxor.u32 %v1315, 2147483648
    %v1348 = vxor.u32 %v1316, 2147483648
    %v1349 = vxor.u32 %v1317, 2147483648
    %v1350 = vxor.u32 %v1318, 2147483648
    %v1351 = vxor.u32 %v1319, 2147483648
    %v1352 = vxor.u32 %v1320, 2147483648
    %v1353 = vxor.u32 %v1321, 2147483648
    %v1354 = vxor.u32 %v1322, 2147483648
    %v1355 = vxor.u32 %v1323, 2147483648
    %v1356 = vxor.u32 %v1324, 2147483648
    %v1357 = vxor.u32 %v1325, 2147483648
    %v1358 = vxor.u32 %v1326, 2147483648
    %v1359 = vxor.u32 %v1327, 2147483648
    %v1360 = vxor.u32 %v1328, 2147483648
    %v1361 = vxor.u32 %v1329, 2147483648
    %v1362 = vxor.u32 %v1330, 2147483648
    %v1363 = vxor.u32 %v1331, 2147483648
    %v1364 = vxor.u32 %v1332, 2147483648
    %v1365 = vxor.u32 %v1333, 2147483648
    %v1366 = vmul.f32 %v1334, 1.442695
    %v1367 = vpow.pop %v1366
    %v1368 = vmul.f32 %v1335, 1.442695
    %v1369 = vpow.pop %v1368
    %v1370 = vmul.f32 %v1336, 1.442695
    %v1371 = vpow.pop %v1370
    %v1372 = vmul.f32 %v1337, 1.442695
    %v1373 = vpow.pop %v1372
    %v1374 = vmul.f32 %v1338, 1.442695
    %v1375 = vpow.pop %v1374
    %v1376 = vmul.f32 %v1339, 1.442695
    %v1377 = vpow.pop %v1376
    %v1378 = vmul.f32 %v1340, 1.442695
    %v1379 = vpow.pop %v1378
    %v1380 = vmul.f32 %v1341, 1.442695
    %v1381 = vpow.pop %v1380
    %v1382 = vmul.f32 %v1342, 1.442695
    %v1383 = vpow.pop %v1382
    %v1384 = vmul.f32 %v1343, 1.442695
    %v1385 = vpow.pop %v1384
    %v1386 = vmul.f32 %v1344, 1.442695
    %v1387 = vpow.pop %v1386
    %v1388 = vmul.f32 %v1345, 1.442695
    %v1389 = vpow.pop %v1388
    %v1390 = vmul.f32 %v1346, 1.442695
    %v1391 = vpow.pop %v1390
    %v1392 = vmul.f32 %v1347, 1.442695
    %v1393 = vpow.pop %v1392
    %v1394 = vmul.f32 %v1348, 1.442695
    %v1395 = vpow.pop %v1394
    %v1396 = vmul.f32 %v1349, 1.442695
    %v1397 = vpow.pop %v1396
    %v1398 = vmul.f32 %v1350, 1.442695
    %v1399 = vpow.pop %v1398
    %v1400 = vmul.f32 %v1351, 1.442695
    %v1401 = vpow.pop %v1400
    %v1402 = vmul.f32 %v1352, 1.442695
    %v1403 = vpow.pop %v1402
    %v1404 = vmul.f32 %v1353, 1.442695
    %v1405 = vpow.pop %v1404
    %v1406 = vmul.f32 %v1354, 1.442695
    %v1407 = vpow.pop %v1406
    %v1408 = vmul.f32 %v1355, 1.442695
    %v1409 = vpow.pop %v1408
    %v1410 = vmul.f32 %v1356, 1.442695
    %v1411 = vpow.pop %v1410
    %v1412 = vmul.f32 %v1357, 1.442695
    %v1413 = vpow.pop %v1412
    %v1414 = vmul.f32 %v1358, 1.442695
    %v1415 = vpow.pop %v1414
    %v1416 = vmul.f32 %v1359, 1.442695
    %v1417 = vpow.pop %v1416
    %v1418 = vmul.f32 %v1360, 1.442695
    %v1419 = vpow.pop %v1418
    %v1420 = vmul.f32 %v1361, 1.442695
    %v1421 = vpow.pop %v1420
    %v1422 = vmul.f32 %v1362, 1.442695
    %v1423 = vpow.pop %v1422
    %v1424 = vmul.f32 %v1363, 1.442695
    %v1425 = vpow.pop %v1424
    %v1426 = vmul.f32 %v1364, 1.442695
    %v1427 = vpow.pop %v1426
    %v1428 = vmul.f32 %v1365, 1.442695
    %v1429 = vpow.pop %v1428
    %v1430 = vadd.f32 %v1367, 1.0
    %v1431 = vadd.f32 %v1369, 1.0
    %v1432 = vadd.f32 %v1371, 1.0
    %v1433 = vadd.f32 %v1373, 1.0
    %v1434 = vadd.f32 %v1375, 1.0
    %v1435 = vadd.f32 %v1377, 1.0
    %v1436 = vadd.f32 %v1379, 1.0
    %v1437 = vadd.f32 %v1381, 1.0
    %v1438 = vadd.f32 %v1383, 1.0
    %v1439 = vadd.f32 %v1385, 1.0
    %v1440 = vadd.f32 %v1387, 1.0
    %v1441 = vadd.f32 %v1389, 1.0
    %v1442 = vadd.f32 %v1391, 1.0
    %v1443 = vadd.f32 %v1393, 1.0
    %v1444 = vadd.f32 %v1395, 1.0
    %v1445 = vadd.f32 %v1397, 1.0
    %v1446 = vadd.f32 %v1399, 1.0
    %v1447 = vadd.f32 %v1401, 1.0
    %v1448 = vadd.f32 %v1403, 1.0
    %v1449 = vadd.f32 %v1405, 1.0
    %v1450 = vadd.f32 %v1407, 1.0
    %v1451 = vadd.f32 %v1409, 1.0
    %v1452 = vadd.f32 %v1411, 1.0
    %v1453 = vadd.f32 %v1413, 1.0
    %v1454 = vadd.f32 %v1415, 1.0
    %v1455 = vadd.f32 %v1417, 1.0
    %v1456 = vadd.f32 %v1419, 1.0
    %v1457 = vadd.f32 %v1421, 1.0
    %v1458 = vadd.f32 %v1423, 1.0
    %v1459 = vadd.f32 %v1425, 1.0
    %v1460 = vadd.f32 %v1427, 1.0
    %v1461 = vadd.f32 %v1429, 1.0
    %v1462 = vrcp.pop %v1430
    %v1463 = vmul.f32 1.0, %v1462
    %v1464 = vrcp.pop %v1431
    %v1465 = vmul.f32 1.0, %v1464
    %v1466 = vrcp.pop %v1432
    %v1467 = vmul.f32 1.0, %v1466
    %v1468 = vrcp.pop %v1433
    %v1469 = vmul.f32 1.0, %v1468
    %v1470 = vrcp.pop %v1434
    %v1471 = vmul.f32 1.0, %v1470
    %v1472 = vrcp.pop %v1435
    %v1473 = vmul.f32 1.0, %v1472
    %v1474 = vrcp.pop %v1436
    %v1475 = vmul.f32 1.0, %v1474
    %v1476 = vrcp.pop %v1437
    %v1477 = vmul.f32 1.0, %v1476
    %v1478 = vrcp.pop %v1438
    %v1479 = vmul.f32 1.0, %v1478
    %v1480 = vrcp.pop %v1439
    %v1481 = vmul.f32 1.0, %v1480
    %v1482 = vrcp.pop %v1440
    %v1483 = vmul.f32 1.0, %v1482
    %v1484 = vrcp.pop %v1441
    %v1485 = vmul.f32 1.0, %v1484
    %v1486 = vrcp.pop %v1442
    %v1487 = vmul.f32 1.0, %v1486
    %v1488 = vrcp.pop %v1443
    %v1489 = vmul.f32 1.0, %v1488
    %v1490 = vrcp.pop %v1444
    %v1491 = vmul.f32 1.0, %v1490
    %v1492 = vrcp.pop %v1445
    %v1493 = vmul.f32 1.0, %v1492
    %v1494 = vrcp.pop %v1446
    %v1495 = vmul.f32 1.0, %v1494
    %v1496 = vrcp.pop %v1447
    %v1497 = vmul.f32 1.0, %v1496
    %v1498 = vrcp.pop %v1448
    %v1499 = vmul.f32 1.0, %v1498
    %v1500 = vrcp.pop %v1449
    %v1501 = vmul.f32 1.0, %v1500
    %v1502 = vrcp.pop %v1450
    %v1503 = vmul.f32 1.0, %v1502
    %v1504 = vrcp.pop %v1451
    %v1505 = vmul.f32 1.0, %v1504
    %v1506 = vrcp.pop %v1452
    %v1507 = vmul.f32 1.0, %v1506
    %v1508 = vrcp.pop %v1453
    %v1509 = vmul.f32 1.0, %v1508
    %v1510 = vrcp.pop %v1454
    %v1511 = vmul.f32 1.0, %v1510
    %v1512 = vrcp.pop %v1455
    %v1513 = vmul.f32 1.0, %v1512
    %v1514 = vrcp.pop %v1456
    %v1515 = vmul.f32 1.0, %v1514
    %v1516 = vrcp.pop %v1457
    %v1517 = vmul.f32 1.0, %v1516
    %v1518 = vrcp.pop %v1458
    %v1519 = vmul.f32 1.0, %v1518
    %v1520 = vrcp.pop %v1459
    %v1521 = vmul.f32 1.0, %v1520
    %v1522 = vrcp.pop %v1460
    %v1523 = vmul.f32 1.0, %v1522
    %v1524 = vrcp.pop %v1461
    %v1525 = vmul.f32 1.0, %v1524
    %v1526 = vmul.f32 %v1302, %v1463
    %v1527 = vmul.f32 %v1303, %v1465
    %v1528 = vmul.f32 %v1304, %v1467
    %v1529 = vmul.f32 %v1305, %v1469
    %v1530 = vmul.f32 %v1306, %v1471
    %v1531 = vmul.f32 %v1307, %v1473
    %v1532 = vmul.f32 %v1308, %v1475
    %v1533 = vmul.f32 %v1309, %v1477
    %v1534 = vmul.f32 %v1310, %v1479
    %v1535 = vmul.f32 %v1311, %v1481
    %v1536 = vmul.f32 %v1312, %v1483
    %v1537 = vmul.f32 %v1313, %v1485
    %v1538 = vmul.f32 %v1314, %v1487
    %v1539 = vmul.f32 %v1315, %v1489
    %v1540 = vmul.f32 %v1316, %v1491
    %v1541 = vmul.f32 %v1317, %v1493
    %v1542 = vmul.f32 %v1318, %v1495
    %v1543 = vmul.f32 %v1319, %v1497
    %v1544 = vmul.f32 %v1320, %v1499
    %v1545 = vmul.f32 %v1321, %v1501
    %v1546 = vmul.f32 %v1322, %v1503
    %v1547 = vmul.f32 %v1323, %v1505
    %v1548 = vmul.f32 %v1324, %v1507
    %v1549 = vmul.f32 %v1325, %v1509
    %v1550 = vmul.f32 %v1326, %v1511
    %v1551 = vmul.f32 %v1327, %v1513
    %v1552 = vmul.f32 %v1328, %v1515
    %v1553 = vmul.f32 %v1329, %v1517
    %v1554 = vmul.f32 %v1330, %v1519
    %v1555 = vmul.f32 %v1331, %v1521
    %v1556 = vmul.f32 %v1332, %v1523
    %v1557 = vmul.f32 %v1333, %v1525
    %v1558 = vld [vmem:[#allocation13] sm:$0xff]
    %v1559 = vld [vmem:[#allocation13 + $0x8] sm:$0xff]
    %v1560 = vld [vmem:[#allocation13 + $0x10] sm:$0xff]
    %v1561 = vld [vmem:[#allocation13 + $0x18] sm:$0xff]
    %v1562 = vld [vmem:[#allocation13 + $0x20] sm:$0xff]
    %v1563 = vld [vmem:[#allocation13 + $0x28] sm:$0xff]
    %v1564 = vld [vmem:[#allocation13 + $0x30] sm:$0xff]
    %v1565 = vld [vmem:[#allocation13 + $0x38] sm:$0xff]
    %v1566 = vld [vmem:[#allocation13 + $0x40] sm:$0xff]
    %v1567 = vld [vmem:[#allocation13 + $0x48] sm:$0xff]
    %v1568 = vld [vmem:[#allocation13 + $0x50] sm:$0xff]
    %v1569 = vld [vmem:[#allocation13 + $0x58] sm:$0xff]
    %v1570 = vld [vmem:[#allocation13 + $0x60] sm:$0xff]
    %v1571 = vld [vmem:[#allocation13 + $0x68] sm:$0xff]
    %v1572 = vld [vmem:[#allocation13 + $0x70] sm:$0xff]
    %v1573 = vld [vmem:[#allocation13 + $0x78] sm:$0xff]
    %v1574 = vld [vmem:[%s9] sm:$0x1]
    %v1576 = vlaneseq
    %v1577 = vshrl.u32 %v1576, 7
    %v1578 = vsub.s32 0, %v1577
    %v1579 = vrot.slane %v1574, %v1578
    %1581 = vmatprep.subr.mxu0 0.0
    %1582 = vmatpush1.msra.mxu0 %v1558
    %1583 = vmatprep.subr.mxu0 0.0
    %1584 = vmatpush1.msra.mxu0 %v1559
    %1585 = vmatprep.subr.mxu0 0.0
    %1586 = vmatpush1.msra.mxu0 %v1560
    %1587 = vmatprep.subr.mxu0 0.0
    %1588 = vmatpush1.msra.mxu0 %v1561
    %1589 = vmatprep.subr.mxu0 0.0
    %1590 = vmatpush1.msra.mxu0 %v1562
    %1591 = vmatprep.subr.mxu0 0.0
    %1592 = vmatpush1.msra.mxu0 %v1563
    %1593 = vmatprep.subr.mxu0 0.0
    %1594 = vmatpush1.msra.mxu0 %v1564
    %1595 = vmatprep.subr.mxu0 0.0
    %1596 = vmatpush1.msra.mxu0 %v1565
    %1597 = vmatprep.subr.mxu0 0.0
    %1598 = vmatpush1.msra.mxu0 %v1566
    %1599 = vmatprep.subr.mxu0 0.0
    %1600 = vmatpush1.msra.mxu0 %v1567
    %1601 = vmatprep.subr.mxu0 0.0
    %1602 = vmatpush1.msra.mxu0 %v1568
    %1603 = vmatprep.subr.mxu0 0.0
    %1604 = vmatpush1.msra.mxu0 %v1569
    %1605 = vmatprep.subr.mxu0 0.0
    %1606 = vmatpush1.msra.mxu0 %v1570
    %1607 = vmatprep.subr.mxu0 0.0
    %1608 = vmatpush1.msra.mxu0 %v1571
    %1609 = vmatprep.subr.mxu0 0.0
    %1610 = vmatpush1.msra.mxu0 %v1572
    %1611 = vmatprep.subr.mxu0 0.0
    %1612 = vmatpush1.msra.mxu0 %v1573
    %1613 = vmatprep.subr.mxu0 0.0
    %1614 = vmatpush1.msra.mxu0 0.0
    %1615 = vmatprep.subr.mxu0 0.0
    %1616 = vmatpush1.msra.mxu0 0.0
    %1617 = vmatprep.subr.mxu0 0.0
    %1618 = vmatpush1.msra.mxu0 0.0
    %1619 = vmatprep.subr.mxu0 0.0
    %1620 = vmatpush1.msra.mxu0 0.0
    %1621 = vmatprep.subr.mxu0 0.0
    %1622 = vmatpush1.msra.mxu0 0.0
    %1623 = vmatprep.subr.mxu0 0.0
    %1624 = vmatpush1.msra.mxu0 0.0
    %1625 = vmatprep.subr.mxu0 0.0
    %1626 = vmatpush1.msra.mxu0 0.0
    %1627 = vmatprep.subr.mxu0 0.0
    %1628 = vmatpush1.msra.mxu0 0.0
    %1629 = vmatprep.subr.mxu0 0.0
    %1630 = vmatpush1.msra.mxu0 0.0
    %1631 = vmatprep.subr.mxu0 0.0
    %1632 = vmatpush1.msra.mxu0 0.0
    %1633 = vmatprep.subr.mxu0 0.0
    %1634 = vmatpush1.msra.mxu0 0.0
    %1635 = vmatprep.subr.mxu0 0.0
    %1636 = vmatpush1.msra.mxu0 0.0
    %1637 = vmatprep.subr.mxu0 0.0
    %1638 = vmatpush1.msra.mxu0 0.0
    %1639 = vmatprep.subr.mxu0 0.0
    %1640 = vmatpush1.msra.mxu0 0.0
    %1641 = vmatprep.subr.mxu0 0.0
    %1642 = vmatpush1.msra.mxu0 0.0
    %1643 = vmatprep.subr.mxu0 0.0
    %1644 = vmatpush1.msra.mxu0 0.0
    %1645 = vmatprep.mubr.f32.mxu0 0.0
    %1646 = vmatmul.mubr.f32.gmra.mrb[0].mxu0 %v1526
    %v1647 = vpop.f32.mrb[0].mxu0
    %v1648 = vadd.f32 %v1579, %v1647
    %v1649 = vpop.f32.mrb[0].mxu0
    %1650 = vmatprep.mubr.f32.mxu0 0.0
    %1651 = vmatmul.mubr.f32.gmra.mrb[0].mxu0 %v1527
    %v1652 = vpop.f32.mrb[0].mxu0
    %v1653 = vadd.f32 %v1579, %v1652
    %v1654 = vpop.f32.mrb[0].mxu0
    %1655 = vmatprep.mubr.f32.mxu0 0.0
    %1656 = vmatmul.mubr.f32.gmra.mrb[0].mxu0 %v1528
    %v1657 = vpop.f32.mrb[0].mxu0
    %v1658 = vadd.f32 %v1579, %v1657
    %v1659 = vpop.f32.mrb[0].mxu0
    %1660 = vmatprep.mubr.f32.mxu0 0.0
    %1661 = vmatmul.mubr.f32.gmra.mrb[0].mxu0 %v1529
    %v1662 = vpop.f32.mrb[0].mxu0
    %v1663 = vadd.f32 %v1579, %v1662
    %v1664 = vpop.f32.mrb[0].mxu0
    %1665 = vmatprep.mubr.f32.mxu0 0.0
    %1666 = vmatmul.mubr.f32.gmra.mrb[0].mxu0 %v1530
    %v1667 = vpop.f32.mrb[0].mxu0
    %v1668 = vadd.f32 %v1579, %v1667
    %v1669 = vpop.f32.mrb[0].mxu0
    %1670 = vmatprep.mubr.f32.mxu0 0.0
    %1671 = vmatmul.mubr.f32.gmra.mrb[0].mxu0 %v1531
    %v1672 = vpop.f32.mrb[0].mxu0
    %v1673 = vadd.f32 %v1579, %v1672
    %v1674 = vpop.f32.mrb[0].mxu0
    %1675 = vmatprep.mubr.f32.mxu0 0.0
    %1676 = vmatmul.mubr.f32.gmra.mrb[0].mxu0 %v1532
    %v1677 = vpop.f32.mrb[0].mxu0
    %v1678 = vadd.f32 %v1579, %v1677
    %v1679 = vpop.f32.mrb[0].mxu0
    %1680 = vmatprep.mubr.f32.mxu0 0.0
    %1681 = vmatmul.mubr.f32.gmra.mrb[0].mxu0 %v1533
    %v1682 = vpop.f32.mrb[0].mxu0
    %v1683 = vadd.f32 %v1579, %v1682
    %v1684 = vpop.f32.mrb[0].mxu0
    %1685 = vmatprep.mubr.f32.mxu0 0.0
    %1686 = vmatmul.mubr.f32.gmra.mrb[0].mxu0 %v1534
    %v1687 = vpop.f32.mrb[0].mxu0
    %v1688 = vadd.f32 %v1579, %v1687
    %v1689 = vpop.f32.mrb[0].mxu0
    %1690 = vmatprep.mubr.f32.mxu0 0.0
    %1691 = vmatmul.mubr.f32.gmra.mrb[0].mxu0 %v1535
    %v1692 = vpop.f32.mrb[0].mxu0
    %v1693 = vadd.f32 %v1579, %v1692
    %v1694 = vpop.f32.mrb[0].mxu0
    %1695 = vmatprep.mubr.f32.mxu0 0.0
    %1696 = vmatmul.mubr.f32.gmra.mrb[0].mxu0 %v1536
    %v1697 = vpop.f32.mrb[0].mxu0
    %v1698 = vadd.f32 %v1579, %v1697
    %v1699 = vpop.f32.mrb[0].mxu0
    %1700 = vmatprep.mubr.f32.mxu0 0.0
    %1701 = vmatmul.mubr.f32.gmra.mrb[0].mxu0 %v1537
    %v1702 = vpop.f32.mrb[0].mxu0
    %v1703 = vadd.f32 %v1579, %v1702
    %v1704 = vpop.f32.mrb[0].mxu0
    %1705 = vmatprep.mubr.f32.mxu0 0.0
    %1706 = vmatmul.mubr.f32.gmra.mrb[0].mxu0 %v1538
    %v1707 = vpop.f32.mrb[0].mxu0
    %v1708 = vadd.f32 %v1579, %v1707
    %v1709 = vpop.f32.mrb[0].mxu0
    %1710 = vmatprep.mubr.f32.mxu0 0.0
    %1711 = vmatmul.mubr.f32.gmra.mrb[0].mxu0 %v1539
    %v1712 = vpop.f32.mrb[0].mxu0
    %v1713 = vadd.f32 %v1579, %v1712
    %v1714 = vpop.f32.mrb[0].mxu0
    %1715 = vmatprep.mubr.f32.mxu0 0.0
    %1716 = vmatmul.mubr.f32.gmra.mrb[0].mxu0 %v1540
    %v1717 = vpop.f32.mrb[0].mxu0
    %v1718 = vadd.f32 %v1579, %v1717
    %v1719 = vpop.f32.mrb[0].mxu0
    %1720 = vmatprep.mubr.f32.mxu0 0.0
    %1721 = vmatmul.mubr.f32.gmra.mrb[0].mxu0 %v1541
    %v1722 = vpop.f32.mrb[0].mxu0
    %v1723 = vadd.f32 %v1579, %v1722
    %v1724 = vpop.f32.mrb[0].mxu0
    %1725 = vmatprep.mubr.f32.mxu0 0.0
    %1726 = vmatmul.mubr.f32.gmra.mrb[0].mxu0 %v1542
    %v1727 = vpop.f32.mrb[0].mxu0
    %v1728 = vadd.f32 %v1579, %v1727
    %v1729 = vpop.f32.mrb[0].mxu0
    %1730 = vmatprep.mubr.f32.mxu0 0.0
    %1731 = vmatmul.mubr.f32.gmra.mrb[0].mxu0 %v1543
    %v1732 = vpop.f32.mrb[0].mxu0
    %v1733 = vadd.f32 %v1579, %v1732
    %v1734 = vpop.f32.mrb[0].mxu0
    %1735 = vmatprep.mubr.f32.mxu0 0.0
    %1736 = vmatmul.mubr.f32.gmra.mrb[0].mxu0 %v1544
    %v1737 = vpop.f32.mrb[0].mxu0
    %v1738 = vadd.f32 %v1579, %v1737
    %v1739 = vpop.f32.mrb[0].mxu0
    %1740 = vmatprep.mubr.f32.mxu0 0.0
    %1741 = vmatmul.mubr.f32.gmra.mrb[0].mxu0 %v1545
    %v1742 = vpop.f32.mrb[0].mxu0
    %v1743 = vadd.f32 %v1579, %v1742
    %v1744 = vpop.f32.mrb[0].mxu0
    %1745 = vmatprep.mubr.f32.mxu0 0.0
    %1746 = vmatmul.mubr.f32.gmra.mrb[0].mxu0 %v1546
    %v1747 = vpop.f32.mrb[0].mxu0
    %v1748 = vadd.f32 %v1579, %v1747
    %v1749 = vpop.f32.mrb[0].mxu0
    %1750 = vmatprep.mubr.f32.mxu0 0.0
    %1751 = vmatmul.mubr.f32.gmra.mrb[0].mxu0 %v1547
    %v1752 = vpop.f32.mrb[0].mxu0
    %v1753 = vadd.f32 %v1579, %v1752
    %v1754 = vpop.f32.mrb[0].mxu0
    %1755 = vmatprep.mubr.f32.mxu0 0.0
    %1756 = vmatmul.mubr.f32.gmra.mrb[0].mxu0 %v1548
    %v1757 = vpop.f32.mrb[0].mxu0
    %v1758 = vadd.f32 %v1579, %v1757
    %v1759 = vpop.f32.mrb[0].mxu0
    %1760 = vmatprep.mubr.f32.mxu0 0.0
    %1761 = vmatmul.mubr.f32.gmra.mrb[0].mxu0 %v1549
    %v1762 = vpop.f32.mrb[0].mxu0
    %v1763 = vadd.f32 %v1579, %v1762
    %v1764 = vpop.f32.mrb[0].mxu0
    %1765 = vmatprep.mubr.f32.mxu0 0.0
    %1766 = vmatmul.mubr.f32.gmra.mrb[0].mxu0 %v1550
    %v1767 = vpop.f32.mrb[0].mxu0
    %v1768 = vadd.f32 %v1579, %v1767
    %v1769 = vpop.f32.mrb[0].mxu0
    %1770 = vmatprep.mubr.f32.mxu0 0.0
    %1771 = vmatmul.mubr.f32.gmra.mrb[0].mxu0 %v1551
    %v1772 = vpop.f32.mrb[0].mxu0
    %v1773 = vadd.f32 %v1579, %v1772
    %v1774 = vpop.f32.mrb[0].mxu0
    %1775 = vmatprep.mubr.f32.mxu0 0.0
    %1776 = vmatmul.mubr.f32.gmra.mrb[0].mxu0 %v1552
    %v1777 = vpop.f32.mrb[0].mxu0
    %v1778 = vadd.f32 %v1579, %v1777
    %v1779 = vpop.f32.mrb[0].mxu0
    %1780 = vmatprep.mubr.f32.mxu0 0.0
    %1781 = vmatmul.mubr.f32.gmra.mrb[0].mxu0 %v1553
    %v1782 = vpop.f32.mrb[0].mxu0
    %v1783 = vadd.f32 %v1579, %v1782
    %v1784 = vpop.f32.mrb[0].mxu0
    %1785 = vmatprep.mubr.f32.mxu0 0.0
    %1786 = vmatmul.mubr.f32.gmra.mrb[0].mxu0 %v1554
    %v1787 = vpop.f32.mrb[0].mxu0
    %v1788 = vadd.f32 %v1579, %v1787
    %v1789 = vpop.f32.mrb[0].mxu0
    %1790 = vmatprep.mubr.f32.mxu0 0.0
    %1791 = vmatmul.mubr.f32.gmra.mrb[0].mxu0 %v1555
    %v1792 = vpop.f32.mrb[0].mxu0
    %v1793 = vadd.f32 %v1579, %v1792
    %v1794 = vpop.f32.mrb[0].mxu0
    %1795 = vmatprep.mubr.f32.mxu0 0.0
    %1796 = vmatmul.mubr.f32.gmra.mrb[0].mxu0 %v1556
    %v1797 = vpop.f32.mrb[0].mxu0
    %v1798 = vadd.f32 %v1579, %v1797
    %v1799 = vpop.f32.mrb[0].mxu0
    %1800 = vmatprep.mubr.f32.mxu0 0.0
    %1801 = vmatmul.mubr.f32.gmra.mrb[0].mxu0 %v1557
    %v1802 = vpop.f32.mrb[0].mxu0
    %v1803 = vadd.f32 %v1579, %v1802
    %v1804 = vpop.f32.mrb[0].mxu0
    %1805 = vdwg.mxu0
    %v1806 = vxor.u32 %v1648, 2147483648
    %v1807 = vxor.u32 %v1653, 2147483648
    %v1808 = vxor.u32 %v1658, 2147483648
    %v1809 = vxor.u32 %v1663, 2147483648
    %v1810 = vxor.u32 %v1668, 2147483648
    %v1811 = vxor.u32 %v1673, 2147483648
    %v1812 = vxor.u32 %v1678, 2147483648
    %v1813 = vxor.u32 %v1683, 2147483648
    %v1814 = vxor.u32 %v1688, 2147483648
    %v1815 = vxor.u32 %v1693, 2147483648
    %v1816 = vxor.u32 %v1698, 2147483648
    %v1817 = vxor.u32 %v1703, 2147483648
    %v1818 = vxor.u32 %v1708, 2147483648
    %v1819 = vxor.u32 %v1713, 2147483648
    %v1820 = vxor.u32 %v1718, 2147483648
    %v1821 = vxor.u32 %v1723, 2147483648
    %v1822 = vxor.u32 %v1728, 2147483648
    %v1823 = vxor.u32 %v1733, 2147483648
    %v1824 = vxor.u32 %v1738, 2147483648
    %v1825 = vxor.u32 %v1743, 2147483648
    %v1826 = vxor.u32 %v1748, 2147483648
    %v1827 = vxor.u32 %v1753, 2147483648
    %v1828 = vxor.u32 %v1758, 2147483648
    %v1829 = vxor.u32 %v1763, 2147483648
    %v1830 = vxor.u32 %v1768, 2147483648
    %v1831 = vxor.u32 %v1773, 2147483648
    %v1832 = vxor.u32 %v1778, 2147483648
    %v1833 = vxor.u32 %v1783, 2147483648
    %v1834 = vxor.u32 %v1788, 2147483648
    %v1835 = vxor.u32 %v1793, 2147483648
    %v1836 = vxor.u32 %v1798, 2147483648
    %v1837 = vxor.u32 %v1803, 2147483648
    %v1838 = vmul.f32 %v1806, 1.442695
    %v1839 = vpow.pop %v1838
    %v1840 = vmul.f32 %v1807, 1.442695
    %v1841 = vpow.pop %v1840
    %v1842 = vmul.f32 %v1808, 1.442695
    %v1843 = vpow.pop %v1842
    %v1844 = vmul.f32 %v1809, 1.442695
    %v1845 = vpow.pop %v1844
    %v1846 = vmul.f32 %v1810, 1.442695
    %v1847 = vpow.pop %v1846
    %v1848 = vmul.f32 %v1811, 1.442695
    %v1849 = vpow.pop %v1848
    %v1850 = vmul.f32 %v1812, 1.442695
    %v1851 = vpow.pop %v1850
    %v1852 = vmul.f32 %v1813, 1.442695
    %v1853 = vpow.pop %v1852
    %v1854 = vmul.f32 %v1814, 1.442695
    %v1855 = vpow.pop %v1854
    %v1856 = vmul.f32 %v1815, 1.442695
    %v1857 = vpow.pop %v1856
    %v1858 = vmul.f32 %v1816, 1.442695
    %v1859 = vpow.pop %v1858
    %v1860 = vmul.f32 %v1817, 1.442695
    %v1861 = vpow.pop %v1860
    %v1862 = vmul.f32 %v1818, 1.442695
    %v1863 = vpow.pop %v1862
    %v1864 = vmul.f32 %v1819, 1.442695
    %v1865 = vpow.pop %v1864
    %v1866 = vmul.f32 %v1820, 1.442695
    %v1867 = vpow.pop %v1866
    %v1868 = vmul.f32 %v1821, 1.442695
    %v1869 = vpow.pop %v1868
    %v1870 = vmul.f32 %v1822, 1.442695
    %v1871 = vpow.pop %v1870
    %v1872 = vmul.f32 %v1823, 1.442695
    %v1873 = vpow.pop %v1872
    %v1874 = vmul.f32 %v1824, 1.442695
    %v1875 = vpow.pop %v1874
    %v1876 = vmul.f32 %v1825, 1.442695
    %v1877 = vpow.pop %v1876
    %v1878 = vmul.f32 %v1826, 1.442695
    %v1879 = vpow.pop %v1878
    %v1880 = vmul.f32 %v1827, 1.442695
    %v1881 = vpow.pop %v1880
    %v1882 = vmul.f32 %v1828, 1.442695
    %v1883 = vpow.pop %v1882
    %v1884 = vmul.f32 %v1829, 1.442695
    %v1885 = vpow.pop %v1884
    %v1886 = vmul.f32 %v1830, 1.442695
    %v1887 = vpow.pop %v1886
    %v1888 = vmul.f32 %v1831, 1.442695
    %v1889 = vpow.pop %v1888
    %v1890 = vmul.f32 %v1832, 1.442695
    %v1891 = vpow.pop %v1890
    %v1892 = vmul.f32 %v1833, 1.442695
    %v1893 = vpow.pop %v1892
    %v1894 = vmul.f32 %v1834, 1.442695
    %v1895 = vpow.pop %v1894
    %v1896 = vmul.f32 %v1835, 1.442695
    %v1897 = vpow.pop %v1896
    %v1898 = vmul.f32 %v1836, 1.442695
    %v1899 = vpow.pop %v1898
    %v1900 = vmul.f32 %v1837, 1.442695
    %v1901 = vpow.pop %v1900
    %v1902 = vadd.f32 %v1839, 1.0
    %v1903 = vadd.f32 %v1841, 1.0
    %v1904 = vadd.f32 %v1843, 1.0
    %v1905 = vadd.f32 %v1845, 1.0
    %v1906 = vadd.f32 %v1847, 1.0
    %v1907 = vadd.f32 %v1849, 1.0
    %v1908 = vadd.f32 %v1851, 1.0
    %v1909 = vadd.f32 %v1853, 1.0
    %v1910 = vadd.f32 %v1855, 1.0
    %v1911 = vadd.f32 %v1857, 1.0
    %v1912 = vadd.f32 %v1859, 1.0
    %v1913 = vadd.f32 %v1861, 1.0
    %v1914 = vadd.f32 %v1863, 1.0
    %v1915 = vadd.f32 %v1865, 1.0
    %v1916 = vadd.f32 %v1867, 1.0
    %v1917 = vadd.f32 %v1869, 1.0
    %v1918 = vadd.f32 %v1871, 1.0
    %v1919 = vadd.f32 %v1873, 1.0
    %v1920 = vadd.f32 %v1875, 1.0
    %v1921 = vadd.f32 %v1877, 1.0
    %v1922 = vadd.f32 %v1879, 1.0
    %v1923 = vadd.f32 %v1881, 1.0
    %v1924 = vadd.f32 %v1883, 1.0
    %v1925 = vadd.f32 %v1885, 1.0
    %v1926 = vadd.f32 %v1887, 1.0
    %v1927 = vadd.f32 %v1889, 1.0
    %v1928 = vadd.f32 %v1891, 1.0
    %v1929 = vadd.f32 %v1893, 1.0
    %v1930 = vadd.f32 %v1895, 1.0
    %v1931 = vadd.f32 %v1897, 1.0
    %v1932 = vadd.f32 %v1899, 1.0
    %v1933 = vadd.f32 %v1901, 1.0
    %v1934 = vrcp.pop %v1902
    %v1935 = vmul.f32 1.0, %v1934
    %v1936 = vrcp.pop %v1903
    %v1937 = vmul.f32 1.0, %v1936
    %v1938 = vrcp.pop %v1904
    %v1939 = vmul.f32 1.0, %v1938
    %v1940 = vrcp.pop %v1905
    %v1941 = vmul.f32 1.0, %v1940
    %v1942 = vrcp.pop %v1906
    %v1943 = vmul.f32 1.0, %v1942
    %v1944 = vrcp.pop %v1907
    %v1945 = vmul.f32 1.0, %v1944
    %v1946 = vrcp.pop %v1908
    %v1947 = vmul.f32 1.0, %v1946
    %v1948 = vrcp.pop %v1909
    %v1949 = vmul.f32 1.0, %v1948
    %v1950 = vrcp.pop %v1910
    %v1951 = vmul.f32 1.0, %v1950
    %v1952 = vrcp.pop %v1911
    %v1953 = vmul.f32 1.0, %v1952
    %v1954 = vrcp.pop %v1912
    %v1955 = vmul.f32 1.0, %v1954
    %v1956 = vrcp.pop %v1913
    %v1957 = vmul.f32 1.0, %v1956
    %v1958 = vrcp.pop %v1914
    %v1959 = vmul.f32 1.0, %v1958
    %v1960 = vrcp.pop %v1915
    %v1961 = vmul.f32 1.0, %v1960
    %v1962 = vrcp.pop %v1916
    %v1963 = vmul.f32 1.0, %v1962
    %v1964 = vrcp.pop %v1917
    %v1965 = vmul.f32 1.0, %v1964
    %v1966 = vrcp.pop %v1918
    %v1967 = vmul.f32 1.0, %v1966
    %v1968 = vrcp.pop %v1919
    %v1969 = vmul.f32 1.0, %v1968
    %v1970 = vrcp.pop %v1920
    %v1971 = vmul.f32 1.0, %v1970
    %v1972 = vrcp.pop %v1921
    %v1973 = vmul.f32 1.0, %v1972
    %v1974 = vrcp.pop %v1922
    %v1975 = vmul.f32 1.0, %v1974
    %v1976 = vrcp.pop %v1923
    %v1977 = vmul.f32 1.0, %v1976
    %v1978 = vrcp.pop %v1924
    %v1979 = vmul.f32 1.0, %v1978
    %v1980 = vrcp.pop %v1925
    %v1981 = vmul.f32 1.0, %v1980
    %v1982 = vrcp.pop %v1926
    %v1983 = vmul.f32 1.0, %v1982
    %v1984 = vrcp.pop %v1927
    %v1985 = vmul.f32 1.0, %v1984
    %v1986 = vrcp.pop %v1928
    %v1987 = vmul.f32 1.0, %v1986
    %v1988 = vrcp.pop %v1929
    %v1989 = vmul.f32 1.0, %v1988
    %v1990 = vrcp.pop %v1930
    %v1991 = vmul.f32 1.0, %v1990
    %v1992 = vrcp.pop %v1931
    %v1993 = vmul.f32 1.0, %v1992
    %v1994 = vrcp.pop %v1932
    %v1995 = vmul.f32 1.0, %v1994
    %v1996 = vrcp.pop %v1933
    %v1997 = vmul.f32 1.0, %v1996
    %v1998 = vmul.f32 %v1648, %v1935
    %v1999 = vmul.f32 %v1653, %v1937
    %v2000 = vmul.f32 %v1658, %v1939
    %v2001 = vmul.f32 %v1663, %v1941
    %v2002 = vmul.f32 %v1668, %v1943
    %v2003 = vmul.f32 %v1673, %v1945
    %v2004 = vmul.f32 %v1678, %v1947
    %v2005 = vmul.f32 %v1683, %v1949
    %v2006 = vmul.f32 %v1688, %v1951
    %v2007 = vmul.f32 %v1693, %v1953
    %v2008 = vmul.f32 %v1698, %v1955
    %v2009 = vmul.f32 %v1703, %v1957
    %v2010 = vmul.f32 %v1708, %v1959
    %v2011 = vmul.f32 %v1713, %v1961
    %v2012 = vmul.f32 %v1718, %v1963
    %v2013 = vmul.f32 %v1723, %v1965
    %v2014 = vmul.f32 %v1728, %v1967
    %v2015 = vmul.f32 %v1733, %v1969
    %v2016 = vmul.f32 %v1738, %v1971
    %v2017 = vmul.f32 %v1743, %v1973
    %v2018 = vmul.f32 %v1748, %v1975
    %v2019 = vmul.f32 %v1753, %v1977
    %v2020 = vmul.f32 %v1758, %v1979
    %v2021 = vmul.f32 %v1763, %v1981
    %v2022 = vmul.f32 %v1768, %v1983
    %v2023 = vmul.f32 %v1773, %v1985
    %v2024 = vmul.f32 %v1778, %v1987
    %v2025 = vmul.f32 %v1783, %v1989
    %v2026 = vmul.f32 %v1788, %v1991
    %v2027 = vmul.f32 %v1793, %v1993
    %v2028 = vmul.f32 %v1798, %v1995
    %v2029 = vmul.f32 %v1803, %v1997
    %v2030 = vpack.c.bf16 %v1999, %v1998
    %v2031 = vpack.c.bf16 %v2001, %v2000
    %v2032 = vpack.c.bf16 %v2003, %v2002
    %v2033 = vpack.c.bf16 %v2005, %v2004
    %v2034 = vpack.c.bf16 %v2007, %v2006
    %v2035 = vpack.c.bf16 %v2009, %v2008
    %v2036 = vpack.c.bf16 %v2011, %v2010
    %v2037 = vpack.c.bf16 %v2013, %v2012
    %v2038 = vpack.c.bf16 %v2015, %v2014
    %v2039 = vpack.c.bf16 %v2017, %v2016
    %v2040 = vpack.c.bf16 %v2019, %v2018
    %v2041 = vpack.c.bf16 %v2021, %v2020
    %v2042 = vpack.c.bf16 %v2023, %v2022
    %v2043 = vpack.c.bf16 %v2025, %v2024
    %v2044 = vpack.c.bf16 %v2027, %v2026
    %v2045 = vpack.c.bf16 %v2029, %v2028
    %v2062 = vunpack.c.l.b16 %v283
    %v2063 = vunpack.c.h.b16 %v283
    %v2064 = vunpack.c.l.b16 %v284
    %v2065 = vunpack.c.h.b16 %v284
    %v2066 = vunpack.c.l.b16 %v285
    %v2067 = vunpack.c.h.b16 %v285
    %v2068 = vunpack.c.l.b16 %v286
    %v2069 = vunpack.c.h.b16 %v286
    %v2070 = vunpack.c.l.b16 %v287
    %v2071 = vunpack.c.h.b16 %v287
    %v2072 = vunpack.c.l.b16 %v288
    %v2073 = vunpack.c.h.b16 %v288
    %v2074 = vunpack.c.l.b16 %v289
    %v2075 = vunpack.c.h.b16 %v289
    %v2076 = vunpack.c.l.b16 %v290
    %v2077 = vunpack.c.h.b16 %v290
    %v2078 = vunpack.c.l.b16 %v291
    %v2079 = vunpack.c.h.b16 %v291
    %v2080 = vunpack.c.l.b16 %v292
    %v2081 = vunpack.c.h.b16 %v292
    %v2082 = vunpack.c.l.b16 %v293
    %v2083 = vunpack.c.h.b16 %v293
    %v2084 = vunpack.c.l.b16 %v294
    %v2085 = vunpack.c.h.b16 %v294
    %v2086 = vunpack.c.l.b16 %v295
    %v2087 = vunpack.c.h.b16 %v295
    %v2088 = vunpack.c.l.b16 %v296
    %v2089 = vunpack.c.h.b16 %v296
    %v2090 = vunpack.c.l.b16 %v297
    %v2091 = vunpack.c.h.b16 %v297
    %v2092 = vunpack.c.l.b16 %v298
    %v2093 = vunpack.c.h.b16 %v298
    %v2094 = vpack.c.b16 %v2064, %v2062
    %v2095 = vpack.c.b16 %v2065, %v2063
    %v2096 = vpack.c.b16 %v2068, %v2066
    %v2097 = vpack.c.b16 %v2069, %v2067
    %v2098 = vpack.c.b16 %v2072, %v2070
    %v2099 = vpack.c.b16 %v2073, %v2071
    %v2100 = vpack.c.b16 %v2076, %v2074
    %v2101 = vpack.c.b16 %v2077, %v2075
    %v2102 = vpack.c.b16 %v2080, %v2078
    %v2103 = vpack.c.b16 %v2081, %v2079
    %v2104 = vpack.c.b16 %v2084, %v2082
    %v2105 = vpack.c.b16 %v2085, %v2083
    %v2106 = vpack.c.b16 %v2088, %v2086
    %v2107 = vpack.c.b16 %v2089, %v2087
    %v2108 = vpack.c.b16 %v2092, %v2090
    %v2109 = vpack.c.b16 %v2093, %v2091
    %2126 = vmatprep.subr.bf16.mxu0 0
    %2127 = vmatpush1.bf16.msra.mxu0 %v2030
    %2128 = vmatprep.subr.bf16.mxu0 0
    %2129 = vmatpush1.bf16.msra.mxu0 %v2031
    %2130 = vmatprep.subr.bf16.mxu0 0
    %2131 = vmatpush1.bf16.msra.mxu0 %v2032
    %2132 = vmatprep.subr.bf16.mxu0 0
    %2133 = vmatpush1.bf16.msra.mxu0 %v2033
    %2134 = vmatprep.subr.bf16.mxu0 0
    %2135 = vmatpush1.bf16.msra.mxu0 %v2034
    %2136 = vmatprep.subr.bf16.mxu0 0
    %2137 = vmatpush1.bf16.msra.mxu0 %v2035
    %2138 = vmatprep.subr.bf16.mxu0 0
    %2139 = vmatpush1.bf16.msra.mxu0 %v2036
    %2140 = vmatprep.subr.bf16.mxu0 0
    %2141 = vmatpush1.bf16.msra.mxu0 %v2037
    %2142 = vmatprep.subr.bf16.mxu0 0
    %2143 = vmatpush1.bf16.msra.mxu0 %v2038
    %2144 = vmatprep.subr.bf16.mxu0 0
    %2145 = vmatpush1.bf16.msra.mxu0 %v2039
    %2146 = vmatprep.subr.bf16.mxu0 0
    %2147 = vmatpush1.bf16.msra.mxu0 %v2040
    %2148 = vmatprep.subr.bf16.mxu0 0
    %2149 = vmatpush1.bf16.msra.mxu0 %v2041
    %2150 = vmatprep.subr.bf16.mxu0 0
    %2151 = vmatpush1.bf16.msra.mxu0 %v2042
    %2152 = vmatprep.subr.bf16.mxu0 0
    %2153 = vmatpush1.bf16.msra.mxu0 %v2043
    %2154 = vmatprep.subr.bf16.mxu0 0
    %2155 = vmatpush1.bf16.msra.mxu0 %v2044
    %2156 = vmatprep.subr.bf16.mxu0 0
    %2157 = vmatpush1.bf16.msra.mxu0 %v2045
    %2158 = vmatprep.mubr.bf16.mxu0 %v2095
    %2159 = vmatmul.mubr.bf16.gmra.mrb[0].mxu0 %v2094
    %v2160 = vpop.f32.mrb[0].mxu0
    %v2161 = vadd.f32 0.0, %v2160
    %v2162 = vpop.f32.mrb[0].mxu0
    %v2163 = vpop.f32.mrb[0].mxu0
    %v2164 = vadd.f32 0.0, %v2163
    %v2165 = vpop.f32.mrb[0].mxu0
    %2166 = vmatprep.mubr.bf16.mxu0 %v2097
    %2167 = vmatmul.mubr.bf16.gmra.mrb[0].mxu0 %v2096
    %v2168 = vpop.f32.mrb[0].mxu0
    %v2169 = vadd.f32 0.0, %v2168
    %v2170 = vpop.f32.mrb[0].mxu0
    %v2171 = vpop.f32.mrb[0].mxu0
    %v2172 = vadd.f32 0.0, %v2171
    %v2173 = vpop.f32.mrb[0].mxu0
    %2174 = vmatprep.mubr.bf16.mxu0 %v2099
    %2175 = vmatmul.mubr.bf16.gmra.mrb[0].mxu0 %v2098
    %v2176 = vpop.f32.mrb[0].mxu0
    %v2177 = vadd.f32 0.0, %v2176
    %v2178 = vpop.f32.mrb[0].mxu0
    %v2179 = vpop.f32.mrb[0].mxu0
    %v2180 = vadd.f32 0.0, %v2179
    %v2181 = vpop.f32.mrb[0].mxu0
    %2182 = vmatprep.mubr.bf16.mxu0 %v2101
    %2183 = vmatmul.mubr.bf16.gmra.mrb[0].mxu0 %v2100
    %v2184 = vpop.f32.mrb[0].mxu0
    %v2185 = vadd.f32 0.0, %v2184
    %v2186 = vpop.f32.mrb[0].mxu0
    %v2187 = vpop.f32.mrb[0].mxu0
    %v2188 = vadd.f32 0.0, %v2187
    %v2189 = vpop.f32.mrb[0].mxu0
    %2190 = vmatprep.mubr.bf16.mxu0 %v2103
    %2191 = vmatmul.mubr.bf16.gmra.mrb[0].mxu0 %v2102
    %v2192 = vpop.f32.mrb[0].mxu0
    %v2193 = vadd.f32 0.0, %v2192
    %v2194 = vpop.f32.mrb[0].mxu0
    %v2195 = vpop.f32.mrb[0].mxu0
    %v2196 = vadd.f32 0.0, %v2195
    %v2197 = vpop.f32.mrb[0].mxu0
    %2198 = vmatprep.mubr.bf16.mxu0 %v2105
    %2199 = vmatmul.mubr.bf16.gmra.mrb[0].mxu0 %v2104
    %v2200 = vpop.f32.mrb[0].mxu0
    %v2201 = vadd.f32 0.0, %v2200
    %v2202 = vpop.f32.mrb[0].mxu0
    %v2203 = vpop.f32.mrb[0].mxu0
    %v2204 = vadd.f32 0.0, %v2203
    %v2205 = vpop.f32.mrb[0].mxu0
    %2206 = vmatprep.mubr.bf16.mxu0 %v2107
    %2207 = vmatmul.mubr.bf16.gmra.mrb[0].mxu0 %v2106
    %v2208 = vpop.f32.mrb[0].mxu0
    %v2209 = vadd.f32 0.0, %v2208
    %v2210 = vpop.f32.mrb[0].mxu0
    %v2211 = vpop.f32.mrb[0].mxu0
    %v2212 = vadd.f32 0.0, %v2211
    %v2213 = vpop.f32.mrb[0].mxu0
    %2214 = vmatprep.mubr.bf16.mxu0 %v2109
    %2215 = vmatmul.mubr.bf16.gmra.mrb[0].mxu0 %v2108
    %v2216 = vpop.f32.mrb[0].mxu0
    %v2217 = vadd.f32 0.0, %v2216
    %v2218 = vpop.f32.mrb[0].mxu0
    %v2219 = vpop.f32.mrb[0].mxu0
    %v2220 = vadd.f32 0.0, %v2219
    %v2221 = vpop.f32.mrb[0].mxu0
    %2222 = vdwg.mxu0
    %v2223 = vld [vmem:[#allocation14] sm:$0xff]
    %v2224 = vld [vmem:[#allocation14 + $0x8] sm:$0xff]
    %v2225 = vld [vmem:[#allocation14 + $0x10] sm:$0xff]
    %v2226 = vld [vmem:[#allocation14 + $0x18] sm:$0xff]
    %v2227 = vld [vmem:[#allocation14 + $0x20] sm:$0xff]
    %v2228 = vld [vmem:[#allocation14 + $0x28] sm:$0xff]
    %v2229 = vld [vmem:[#allocation14 + $0x30] sm:$0xff]
    %v2230 = vld [vmem:[#allocation14 + $0x38] sm:$0xff]
    %v2231 = vld [vmem:[#allocation14 + $0x40] sm:$0xff]
    %v2232 = vld [vmem:[#allocation14 + $0x48] sm:$0xff]
    %v2233 = vld [vmem:[#allocation14 + $0x50] sm:$0xff]
    %v2234 = vld [vmem:[#allocation14 + $0x58] sm:$0xff]
    %v2235 = vld [vmem:[#allocation14 + $0x60] sm:$0xff]
    %v2236 = vld [vmem:[#allocation14 + $0x68] sm:$0xff]
    %v2237 = vld [vmem:[#allocation14 + $0x70] sm:$0xff]
    %v2238 = vld [vmem:[#allocation14 + $0x78] sm:$0xff]
    %v2239 = vld [vmem:[#allocation14 + $0x80] sm:$0xff]
    %v2240 = vld [vmem:[#allocation14 + $0x88] sm:$0xff]
    %v2241 = vld [vmem:[#allocation14 + $0x90] sm:$0xff]
    %v2242 = vld [vmem:[#allocation14 + $0x98] sm:$0xff]
    %v2243 = vld [vmem:[#allocation14 + $0xa0] sm:$0xff]
    %v2244 = vld [vmem:[#allocation14 + $0xa8] sm:$0xff]
    %v2245 = vld [vmem:[#allocation14 + $0xb0] sm:$0xff]
    %v2246 = vld [vmem:[#allocation14 + $0xb8] sm:$0xff]
    %v2247 = vld [vmem:[#allocation14 + $0xc0] sm:$0xff]
    %v2248 = vld [vmem:[#allocation14 + $0xc8] sm:$0xff]
    %v2249 = vld [vmem:[#allocation14 + $0xd0] sm:$0xff]
    %v2250 = vld [vmem:[#allocation14 + $0xd8] sm:$0xff]
    %v2251 = vld [vmem:[#allocation14 + $0xe0] sm:$0xff]
    %v2252 = vld [vmem:[#allocation14 + $0xe8] sm:$0xff]
    %v2253 = vld [vmem:[#allocation14 + $0xf0] sm:$0xff]
    %v2254 = vld [vmem:[#allocation14 + $0xf8] sm:$0xff]
    %v2255 = vld [vmem:[%s11] sm:$0x1]
    %v2257 = vlaneseq
    %v2258 = vshrl.u32 %v2257, 7
    %v2259 = vsub.s32 0, %v2258
    %v2260 = vrot.slane %v2255, %v2259
    %2262 = vmatprep.subr.mxu0 0.0
    %2263 = vmatpush1.msra.mxu0 %v2223
    %2264 = vmatprep.subr.mxu0 0.0
    %2265 = vmatpush1.msra.mxu0 %v2224
    %2266 = vmatprep.subr.mxu0 0.0
    %2267 = vmatpush1.msra.mxu0 %v2225
    %2268 = vmatprep.subr.mxu0 0.0
    %2269 = vmatpush1.msra.mxu0 %v2226
    %2270 = vmatprep.subr.mxu0 0.0
    %2271 = vmatpush1.msra.mxu0 %v2227
    %2272 = vmatprep.subr.mxu0 0.0
    %2273 = vmatpush1.msra.mxu0 %v2228
    %2274 = vmatprep.subr.mxu0 0.0
    %2275 = vmatpush1.msra.mxu0 %v2229
    %2276 = vmatprep.subr.mxu0 0.0
    %2277 = vmatpush1.msra.mxu0 %v2230
    %2278 = vmatprep.subr.mxu0 0.0
    %2279 = vmatpush1.msra.mxu0 %v2231
    %2280 = vmatprep.subr.mxu0 0.0
    %2281 = vmatpush1.msra.mxu0 %v2232
    %2282 = vmatprep.subr.mxu0 0.0
    %2283 = vmatpush1.msra.mxu0 %v2233
    %2284 = vmatprep.subr.mxu0 0.0
    %2285 = vmatpush1.msra.mxu0 %v2234
    %2286 = vmatprep.subr.mxu0 0.0
    %2287 = vmatpush1.msra.mxu0 %v2235
    %2288 = vmatprep.subr.mxu0 0.0
    %2289 = vmatpush1.msra.mxu0 %v2236
    %2290 = vmatprep.subr.mxu0 0.0
    %2291 = vmatpush1.msra.mxu0 %v2237
    %2292 = vmatprep.subr.mxu0 0.0
    %2293 = vmatpush1.msra.mxu0 %v2238
    %2294 = vmatprep.subr.mxu0 0.0
    %2295 = vmatpush1.msra.mxu0 %v2239
    %2296 = vmatprep.subr.mxu0 0.0
    %2297 = vmatpush1.msra.mxu0 %v2240
    %2298 = vmatprep.subr.mxu0 0.0
    %2299 = vmatpush1.msra.mxu0 %v2241
    %2300 = vmatprep.subr.mxu0 0.0
    %2301 = vmatpush1.msra.mxu0 %v2242
    %2302 = vmatprep.subr.mxu0 0.0
    %2303 = vmatpush1.msra.mxu0 %v2243
    %2304 = vmatprep.subr.mxu0 0.0
    %2305 = vmatpush1.msra.mxu0 %v2244
    %2306 = vmatprep.subr.mxu0 0.0
    %2307 = vmatpush1.msra.mxu0 %v2245
    %2308 = vmatprep.subr.mxu0 0.0
    %2309 = vmatpush1.msra.mxu0 %v2246
    %2310 = vmatprep.subr.mxu0 0.0
    %2311 = vmatpush1.msra.mxu0 %v2247
    %2312 = vmatprep.subr.mxu0 0.0
    %2313 = vmatpush1.msra.mxu0 %v2248
    %2314 = vmatprep.subr.mxu0 0.0
    %2315 = vmatpush1.msra.mxu0 %v2249
    %2316 = vmatprep.subr.mxu0 0.0
    %2317 = vmatpush1.msra.mxu0 %v2250
    %2318 = vmatprep.subr.mxu0 0.0
    %2319 = vmatpush1.msra.mxu0 %v2251
    %2320 = vmatprep.subr.mxu0 0.0
    %2321 = vmatpush1.msra.mxu0 %v2252
    %2322 = vmatprep.subr.mxu0 0.0
    %2323 = vmatpush1.msra.mxu0 %v2253
    %2324 = vmatprep.subr.mxu0 0.0
    %2325 = vmatpush1.msra.mxu0 %v2254
    %2326 = vmatprep.mubr.f32.mxu0 %v2161
    %2327 = vmatmul.mubr.f32.gmra.mrb[0].mxu0 %v171
    %v2328 = vpop.f32.mrb[0].mxu0
    %v2329 = vadd.f32 %v2260, %v2328
    %v2330 = vpop.f32.mrb[0].mxu0
    %2331 = vmatprep.mubr.f32.mxu0 %v2164
    %2332 = vmatmul.mubr.f32.gmra.mrb[0].mxu0 %v172
    %v2333 = vpop.f32.mrb[0].mxu0
    %v2334 = vadd.f32 %v2260, %v2333
    %v2335 = vpop.f32.mrb[0].mxu0
    %2336 = vmatprep.mubr.f32.mxu0 %v2169
    %2337 = vmatmul.mubr.f32.gmra.mrb[0].mxu0 %v173
    %v2338 = vpop.f32.mrb[0].mxu0
    %v2339 = vadd.f32 %v2260, %v2338
    %v2340 = vpop.f32.mrb[0].mxu0
    %2341 = vmatprep.mubr.f32.mxu0 %v2172
    %2342 = vmatmul.mubr.f32.gmra.mrb[0].mxu0 %v174
    %v2343 = vpop.f32.mrb[0].mxu0
    %v2344 = vadd.f32 %v2260, %v2343
    %v2345 = vpop.f32.mrb[0].mxu0
    %2346 = vmatprep.mubr.f32.mxu0 %v2177
    %2347 = vmatmul.mubr.f32.gmra.mrb[0].mxu0 %v175
    %v2348 = vpop.f32.mrb[0].mxu0
    %v2349 = vadd.f32 %v2260, %v2348
    %v2350 = vpop.f32.mrb[0].mxu0
    %2351 = vmatprep.mubr.f32.mxu0 %v2180
    %2352 = vmatmul.mubr.f32.gmra.mrb[0].mxu0 %v176
    %v2353 = vpop.f32.mrb[0].mxu0
    %v2354 = vadd.f32 %v2260, %v2353
    %v2355 = vpop.f32.mrb[0].mxu0
    %2356 = vmatprep.mubr.f32.mxu0 %v2185
    %2357 = vmatmul.mubr.f32.gmra.mrb[0].mxu0 %v177
    %v2358 = vpop.f32.mrb[0].mxu0
    %v2359 = vadd.f32 %v2260, %v2358
    %v2360 = vpop.f32.mrb[0].mxu0
    %2361 = vmatprep.mubr.f32.mxu0 %v2188
    %2362 = vmatmul.mubr.f32.gmra.mrb[0].mxu0 %v178
    %v2363 = vpop.f32.mrb[0].mxu0
    %v2364 = vadd.f32 %v2260, %v2363
    %v2365 = vpop.f32.mrb[0].mxu0
    %2366 = vmatprep.mubr.f32.mxu0 %v2193
    %2367 = vmatmul.mubr.f32.gmra.mrb[0].mxu0 %v179
    %v2368 = vpop.f32.mrb[0].mxu0
    %v2369 = vadd.f32 %v2260, %v2368
    %v2370 = vpop.f32.mrb[0].mxu0
    %2371 = vmatprep.mubr.f32.mxu0 %v2196
    %2372 = vmatmul.mubr.f32.gmra.mrb[0].mxu0 %v180
    %v2373 = vpop.f32.mrb[0].mxu0
    %v2374 = vadd.f32 %v2260, %v2373
    %v2375 = vpop.f32.mrb[0].mxu0
    %2376 = vmatprep.mubr.f32.mxu0 %v2201
    %2377 = vmatmul.mubr.f32.gmra.mrb[0].mxu0 %v181
    %v2378 = vpop.f32.mrb[0].mxu0
    %v2379 = vadd.f32 %v2260, %v2378
    %v2380 = vpop.f32.mrb[0].mxu0
    %2381 = vmatprep.mubr.f32.mxu0 %v2204
    %2382 = vmatmul.mubr.f32.gmra.mrb[0].mxu0 %v182
    %v2383 = vpop.f32.mrb[0].mxu0
    %v2384 = vadd.f32 %v2260, %v2383
    %v2385 = vpop.f32.mrb[0].mxu0
    %2386 = vmatprep.mubr.f32.mxu0 %v2209
    %2387 = vmatmul.mubr.f32.gmra.mrb[0].mxu0 %v183
    %v2388 = vpop.f32.mrb[0].mxu0
    %v2389 = vadd.f32 %v2260, %v2388
    %v2390 = vpop.f32.mrb[0].mxu0
    %2391 = vmatprep.mubr.f32.mxu0 %v2212
    %2392 = vmatmul.mubr.f32.gmra.mrb[0].mxu0 %v184
    %v2393 = vpop.f32.mrb[0].mxu0
    %v2394 = vadd.f32 %v2260, %v2393
    %v2395 = vpop.f32.mrb[0].mxu0
    %2396 = vmatprep.mubr.f32.mxu0 %v2217
    %2397 = vmatmul.mubr.f32.gmra.mrb[0].mxu0 %v185
    %v2398 = vpop.f32.mrb[0].mxu0
    %v2399 = vadd.f32 %v2260, %v2398
    %v2400 = vpop.f32.mrb[0].mxu0
    %2401 = vmatprep.mubr.f32.mxu0 %v2220
    %2402 = vmatmul.mubr.f32.gmra.mrb[0].mxu0 %v186
    %v2403 = vpop.f32.mrb[0].mxu0
    %v2404 = vadd.f32 %v2260, %v2403
    %v2405 = vpop.f32.mrb[0].mxu0
    %2406 = vdwg.mxu0
    %v2407 = vxor.u32 %v2329, 2147483648
    %v2408 = vxor.u32 %v2334, 2147483648
    %v2409 = vxor.u32 %v2339, 2147483648
    %v2410 = vxor.u32 %v2344, 2147483648
    %v2411 = vxor.u32 %v2349, 2147483648
    %v2412 = vxor.u32 %v2354, 2147483648
    %v2413 = vxor.u32 %v2359, 2147483648
    %v2414 = vxor.u32 %v2364, 2147483648
    %v2415 = vxor.u32 %v2369, 2147483648
    %v2416 = vxor.u32 %v2374, 2147483648
    %v2417 = vxor.u32 %v2379, 2147483648
    %v2418 = vxor.u32 %v2384, 2147483648
    %v2419 = vxor.u32 %v2389, 2147483648
    %v2420 = vxor.u32 %v2394, 2147483648
    %v2421 = vxor.u32 %v2399, 2147483648
    %v2422 = vxor.u32 %v2404, 2147483648
    %v2423 = vmul.f32 %v2407, 1.442695
    %v2424 = vpow.pop %v2423
    %v2425 = vmul.f32 %v2408, 1.442695
    %v2426 = vpow.pop %v2425
    %v2427 = vmul.f32 %v2409, 1.442695
    %v2428 = vpow.pop %v2427
    %v2429 = vmul.f32 %v2410, 1.442695
    %v2430 = vpow.pop %v2429
    %v2431 = vmul.f32 %v2411, 1.442695
    %v2432 = vpow.pop %v2431
    %v2433 = vmul.f32 %v2412, 1.442695
    %v2434 = vpow.pop %v2433
    %v2435 = vmul.f32 %v2413, 1.442695
    %v2436 = vpow.pop %v2435
    %v2437 = vmul.f32 %v2414, 1.442695
    %v2438 = vpow.pop %v2437
    %v2439 = vmul.f32 %v2415, 1.442695
    %v2440 = vpow.pop %v2439
    %v2441 = vmul.f32 %v2416, 1.442695
    %v2442 = vpow.pop %v2441
    %v2443 = vmul.f32 %v2417, 1.442695
    %v2444 = vpow.pop %v2443
    %v2445 = vmul.f32 %v2418, 1.442695
    %v2446 = vpow.pop %v2445
    %v2447 = vmul.f32 %v2419, 1.442695
    %v2448 = vpow.pop %v2447
    %v2449 = vmul.f32 %v2420, 1.442695
    %v2450 = vpow.pop %v2449
    %v2451 = vmul.f32 %v2421, 1.442695
    %v2452 = vpow.pop %v2451
    %v2453 = vmul.f32 %v2422, 1.442695
    %v2454 = vpow.pop %v2453
    %v2455 = vadd.f32 %v2424, 1.0
    %v2456 = vadd.f32 %v2426, 1.0
    %v2457 = vadd.f32 %v2428, 1.0
    %v2458 = vadd.f32 %v2430, 1.0
    %v2459 = vadd.f32 %v2432, 1.0
    %v2460 = vadd.f32 %v2434, 1.0
    %v2461 = vadd.f32 %v2436, 1.0
    %v2462 = vadd.f32 %v2438, 1.0
    %v2463 = vadd.f32 %v2440, 1.0
    %v2464 = vadd.f32 %v2442, 1.0
    %v2465 = vadd.f32 %v2444, 1.0
    %v2466 = vadd.f32 %v2446, 1.0
    %v2467 = vadd.f32 %v2448, 1.0
    %v2468 = vadd.f32 %v2450, 1.0
    %v2469 = vadd.f32 %v2452, 1.0
    %v2470 = vadd.f32 %v2454, 1.0
    %v2471 = vrcp.pop %v2455
    %v2472 = vmul.f32 1.0, %v2471
    %v2473 = vrcp.pop %v2456
    %v2474 = vmul.f32 1.0, %v2473
    %v2475 = vrcp.pop %v2457
    %v2476 = vmul.f32 1.0, %v2475
    %v2477 = vrcp.pop %v2458
    %v2478 = vmul.f32 1.0, %v2477
    %v2479 = vrcp.pop %v2459
    %v2480 = vmul.f32 1.0, %v2479
    %v2481 = vrcp.pop %v2460
    %v2482 = vmul.f32 1.0, %v2481
    %v2483 = vrcp.pop %v2461
    %v2484 = vmul.f32 1.0, %v2483
    %v2485 = vrcp.pop %v2462
    %v2486 = vmul.f32 1.0, %v2485
    %v2487 = vrcp.pop %v2463
    %v2488 = vmul.f32 1.0, %v2487
    %v2489 = vrcp.pop %v2464
    %v2490 = vmul.f32 1.0, %v2489
    %v2491 = vrcp.pop %v2465
    %v2492 = vmul.f32 1.0, %v2491
    %v2493 = vrcp.pop %v2466
    %v2494 = vmul.f32 1.0, %v2493
    %v2495 = vrcp.pop %v2467
    %v2496 = vmul.f32 1.0, %v2495
    %v2497 = vrcp.pop %v2468
    %v2498 = vmul.f32 1.0, %v2497
    %v2499 = vrcp.pop %v2469
    %v2500 = vmul.f32 1.0, %v2499
    %v2501 = vrcp.pop %v2470
    %v2502 = vmul.f32 1.0, %v2501
    %v2503 = vmul.f32 %v2329, %v2472
    %v2504 = vmul.f32 %v2334, %v2474
    %v2505 = vmul.f32 %v2339, %v2476
    %v2506 = vmul.f32 %v2344, %v2478
    %v2507 = vmul.f32 %v2349, %v2480
    %v2508 = vmul.f32 %v2354, %v2482
    %v2509 = vmul.f32 %v2359, %v2484
    %v2510 = vmul.f32 %v2364, %v2486
    %v2511 = vmul.f32 %v2369, %v2488
    %v2512 = vmul.f32 %v2374, %v2490
    %v2513 = vmul.f32 %v2379, %v2492
    %v2514 = vmul.f32 %v2384, %v2494
    %v2515 = vmul.f32 %v2389, %v2496
    %v2516 = vmul.f32 %v2394, %v2498
    %v2517 = vmul.f32 %v2399, %v2500
    %v2518 = vmul.f32 %v2404, %v2502
    %v2519 = vld [vmem:[#allocation16] sm:$0xff]
    %v2520 = vld [vmem:[#allocation16 + $0x8] sm:$0xff]
    %v2521 = vld [vmem:[#allocation16 + $0x10] sm:$0xff]
    %v2522 = vld [vmem:[#allocation16 + $0x18] sm:$0xff]
    %v2523 = vld [vmem:[#allocation16 + $0x20] sm:$0xff]
    %v2524 = vld [vmem:[#allocation16 + $0x28] sm:$0xff]
    %v2525 = vld [vmem:[#allocation16 + $0x30] sm:$0xff]
    %v2526 = vld [vmem:[#allocation16 + $0x38] sm:$0xff]
    %v2527 = vld [vmem:[#allocation16 + $0x40] sm:$0xff]
    %v2528 = vld [vmem:[#allocation16 + $0x48] sm:$0xff]
    %v2529 = vld [vmem:[#allocation16 + $0x50] sm:$0xff]
    %v2530 = vld [vmem:[#allocation16 + $0x58] sm:$0xff]
    %v2531 = vld [vmem:[#allocation16 + $0x60] sm:$0xff]
    %v2532 = vld [vmem:[#allocation16 + $0x68] sm:$0xff]
    %v2533 = vld [vmem:[#allocation16 + $0x70] sm:$0xff]
    %v2534 = vld [vmem:[#allocation16 + $0x78] sm:$0xff]
    %2535 = vmatprep.subr.mxu0 0.0
    %2536 = vmatpush1.msra.mxu0 %v2519
    %2537 = vmatprep.subr.mxu0 0.0
    %2538 = vmatpush1.msra.mxu0 %v2520
    %2539 = vmatprep.subr.mxu0 0.0
    %2540 = vmatpush1.msra.mxu0 %v2521
    %2541 = vmatprep.subr.mxu0 0.0
    %2542 = vmatpush1.msra.mxu0 %v2522
    %2543 = vmatprep.subr.mxu0 0.0
    %2544 = vmatpush1.msra.mxu0 %v2523
    %2545 = vmatprep.subr.mxu0 0.0
    %2546 = vmatpush1.msra.mxu0 %v2524
    %2547 = vmatprep.subr.mxu0 0.0
    %2548 = vmatpush1.msra.mxu0 %v2525
    %2549 = vmatprep.subr.mxu0 0.0
    %2550 = vmatpush1.msra.mxu0 %v2526
    %2551 = vmatprep.subr.mxu0 0.0
    %2552 = vmatpush1.msra.mxu0 %v2527
    %2553 = vmatprep.subr.mxu0 0.0
    %2554 = vmatpush1.msra.mxu0 %v2528
    %2555 = vmatprep.subr.mxu0 0.0
    %2556 = vmatpush1.msra.mxu0 %v2529
    %2557 = vmatprep.subr.mxu0 0.0
    %2558 = vmatpush1.msra.mxu0 %v2530
    %2559 = vmatprep.subr.mxu0 0.0
    %2560 = vmatpush1.msra.mxu0 %v2531
    %2561 = vmatprep.subr.mxu0 0.0
    %2562 = vmatpush1.msra.mxu0 %v2532
    %2563 = vmatprep.subr.mxu0 0.0
    %2564 = vmatpush1.msra.mxu0 %v2533
    %2565 = vmatprep.subr.mxu0 0.0
    %2566 = vmatpush1.msra.mxu0 %v2534
    %2567 = vmatprep.subr.mxu0 0.0
    %2568 = vmatpush1.msra.mxu0 0.0
    %2569 = vmatprep.subr.mxu0 0.0
    %2570 = vmatpush1.msra.mxu0 0.0
    %2571 = vmatprep.subr.mxu0 0.0
    %2572 = vmatpush1.msra.mxu0 0.0
    %2573 = vmatprep.subr.mxu0 0.0
    %2574 = vmatpush1.msra.mxu0 0.0
    %2575 = vmatprep.subr.mxu0 0.0
    %2576 = vmatpush1.msra.mxu0 0.0
    %2577 = vmatprep.subr.mxu0 0.0
    %2578 = vmatpush1.msra.mxu0 0.0
    %2579 = vmatprep.subr.mxu0 0.0
    %2580 = vmatpush1.msra.mxu0 0.0
    %2581 = vmatprep.subr.mxu0 0.0
    %2582 = vmatpush1.msra.mxu0 0.0
    %2583 = vmatprep.subr.mxu0 0.0
    %2584 = vmatpush1.msra.mxu0 0.0
    %2585 = vmatprep.subr.mxu0 0.0
    %2586 = vmatpush1.msra.mxu0 0.0
    %2587 = vmatprep.subr.mxu0 0.0
    %2588 = vmatpush1.msra.mxu0 0.0
    %2589 = vmatprep.subr.mxu0 0.0
    %2590 = vmatpush1.msra.mxu0 0.0
    %2591 = vmatprep.subr.mxu0 0.0
    %2592 = vmatpush1.msra.mxu0 0.0
    %2593 = vmatprep.subr.mxu0 0.0
    %2594 = vmatpush1.msra.mxu0 0.0
    %2595 = vmatprep.subr.mxu0 0.0
    %2596 = vmatpush1.msra.mxu0 0.0
    %2597 = vmatprep.subr.mxu0 0.0
    %2598 = vmatpush1.msra.mxu0 0.0
    %2599 = vmatprep.mubr.f32.mxu0 0.0
    %2600 = vmatmul.mubr.f32.gmra.mrb[0].mxu0 %v2503
    %v2601 = vpop.f32.mrb[0].mxu0
    %v2602 = vadd.f32 0.0, %v2601
    %v2603 = vpop.f32.mrb[0].mxu0
    %2604 = vmatprep.mubr.f32.mxu0 0.0
    %2605 = vmatmul.mubr.f32.gmra.mrb[0].mxu0 %v2504
    %v2606 = vpop.f32.mrb[0].mxu0
    %v2607 = vadd.f32 0.0, %v2606
    %v2608 = vpop.f32.mrb[0].mxu0
    %2609 = vmatprep.mubr.f32.mxu0 0.0
    %2610 = vmatmul.mubr.f32.gmra.mrb[0].mxu0 %v2505
    %v2611 = vpop.f32.mrb[0].mxu0
    %v2612 = vadd.f32 0.0, %v2611
    %v2613 = vpop.f32.mrb[0].mxu0
    %2614 = vmatprep.mubr.f32.mxu0 0.0
    %2615 = vmatmul.mubr.f32.gmra.mrb[0].mxu0 %v2506
    %v2616 = vpop.f32.mrb[0].mxu0
    %v2617 = vadd.f32 0.0, %v2616
    %v2618 = vpop.f32.mrb[0].mxu0
    %2619 = vmatprep.mubr.f32.mxu0 0.0
    %2620 = vmatmul.mubr.f32.gmra.mrb[0].mxu0 %v2507
    %v2621 = vpop.f32.mrb[0].mxu0
    %v2622 = vadd.f32 0.0, %v2621
    %v2623 = vpop.f32.mrb[0].mxu0
    %2624 = vmatprep.mubr.f32.mxu0 0.0
    %2625 = vmatmul.mubr.f32.gmra.mrb[0].mxu0 %v2508
    %v2626 = vpop.f32.mrb[0].mxu0
    %v2627 = vadd.f32 0.0, %v2626
    %v2628 = vpop.f32.mrb[0].mxu0
    %2629 = vmatprep.mubr.f32.mxu0 0.0
    %2630 = vmatmul.mubr.f32.gmra.mrb[0].mxu0 %v2509
    %v2631 = vpop.f32.mrb[0].mxu0
    %v2632 = vadd.f32 0.0, %v2631
    %v2633 = vpop.f32.mrb[0].mxu0
    %2634 = vmatprep.mubr.f32.mxu0 0.0
    %2635 = vmatmul.mubr.f32.gmra.mrb[0].mxu0 %v2510
    %v2636 = vpop.f32.mrb[0].mxu0
    %v2637 = vadd.f32 0.0, %v2636
    %v2638 = vpop.f32.mrb[0].mxu0
    %2639 = vmatprep.mubr.f32.mxu0 0.0
    %2640 = vmatmul.mubr.f32.gmra.mrb[0].mxu0 %v2511
    %v2641 = vpop.f32.mrb[0].mxu0
    %v2642 = vadd.f32 0.0, %v2641
    %v2643 = vpop.f32.mrb[0].mxu0
    %2644 = vmatprep.mubr.f32.mxu0 0.0
    %2645 = vmatmul.mubr.f32.gmra.mrb[0].mxu0 %v2512
    %v2646 = vpop.f32.mrb[0].mxu0
    %v2647 = vadd.f32 0.0, %v2646
    %v2648 = vpop.f32.mrb[0].mxu0
    %2649 = vmatprep.mubr.f32.mxu0 0.0
    %2650 = vmatmul.mubr.f32.gmra.mrb[0].mxu0 %v2513
    %v2651 = vpop.f32.mrb[0].mxu0
    %v2652 = vadd.f32 0.0, %v2651
    %v2653 = vpop.f32.mrb[0].mxu0
    %2654 = vmatprep.mubr.f32.mxu0 0.0
    %2655 = vmatmul.mubr.f32.gmra.mrb[0].mxu0 %v2514
    %v2656 = vpop.f32.mrb[0].mxu0
    %v2657 = vadd.f32 0.0, %v2656
    %v2658 = vpop.f32.mrb[0].mxu0
    %2659 = vmatprep.mubr.f32.mxu0 0.0
    %2660 = vmatmul.mubr.f32.gmra.mrb[0].mxu0 %v2515
    %v2661 = vpop.f32.mrb[0].mxu0
    %v2662 = vadd.f32 0.0, %v2661
    %v2663 = vpop.f32.mrb[0].mxu0
    %2664 = vmatprep.mubr.f32.mxu0 0.0
    %2665 = vmatmul.mubr.f32.gmra.mrb[0].mxu0 %v2516
    %v2666 = vpop.f32.mrb[0].mxu0
    %v2667 = vadd.f32 0.0, %v2666
    %v2668 = vpop.f32.mrb[0].mxu0
    %2669 = vmatprep.mubr.f32.mxu0 0.0
    %2670 = vmatmul.mubr.f32.gmra.mrb[0].mxu0 %v2517
    %v2671 = vpop.f32.mrb[0].mxu0
    %v2672 = vadd.f32 0.0, %v2671
    %v2673 = vpop.f32.mrb[0].mxu0
    %2674 = vmatprep.mubr.f32.mxu0 0.0
    %2675 = vmatmul.mubr.f32.gmra.mrb[0].mxu0 %v2518
    %v2676 = vpop.f32.mrb[0].mxu0
    %v2677 = vadd.f32 0.0, %v2676
    %v2678 = vpop.f32.mrb[0].mxu0
    %2679 = vdwg.mxu0
    %v2680 = vadd.f32 %v171, %v2602
    %v2681 = vadd.f32 %v172, %v2607
    %v2682 = vadd.f32 %v173, %v2612
    %v2683 = vadd.f32 %v174, %v2617
    %v2684 = vadd.f32 %v175, %v2622
    %v2685 = vadd.f32 %v176, %v2627
    %v2686 = vadd.f32 %v177, %v2632
    %v2687 = vadd.f32 %v178, %v2637
    %v2688 = vadd.f32 %v179, %v2642
    %v2689 = vadd.f32 %v180, %v2647
    %v2690 = vadd.f32 %v181, %v2652
    %v2691 = vadd.f32 %v182, %v2657
    %v2692 = vadd.f32 %v183, %v2662
    %v2693 = vadd.f32 %v184, %v2667
    %v2694 = vadd.f32 %v185, %v2672
    %v2695 = vadd.f32 %v186, %v2677
    %v2696 = vld [vmem:[%s13] sm:$0x1]
    %v2698 = vlaneseq
    %v2699 = vshrl.u32 %v2698, 7
    %v2700 = vsub.s32 0, %v2699
    %v2701 = vrot.slane %v2696, %v2700
    %v2703 = vadd.f32 %v2680, %v2701
    %v2704 = vadd.f32 %v2681, %v2701
    %v2705 = vadd.f32 %v2682, %v2701
    %v2706 = vadd.f32 %v2683, %v2701
    %v2707 = vadd.f32 %v2684, %v2701
    %v2708 = vadd.f32 %v2685, %v2701
    %v2709 = vadd.f32 %v2686, %v2701
    %v2710 = vadd.f32 %v2687, %v2701
    %v2711 = vadd.f32 %v2688, %v2701
    %v2712 = vadd.f32 %v2689, %v2701
    %v2713 = vadd.f32 %v2690, %v2701
    %v2714 = vadd.f32 %v2691, %v2701
    %v2715 = vadd.f32 %v2692, %v2701
    %v2716 = vadd.f32 %v2693, %v2701
    %v2717 = vadd.f32 %v2694, %v2701
    %v2718 = vadd.f32 %v2695, %v2701
    %s2719 = scalar_lea.vmem [#allocation10], 256
    %v2720 = vld [vmem:[%s2719] sm:$0xff]
    %v2721 = vld [vmem:[%s2719 + $0x8] sm:$0xff]
    %v2722 = vld [vmem:[%s2719 + $0x10] sm:$0xff]
    %v2723 = vld [vmem:[%s2719 + $0x18] sm:$0xff]
    %v2724 = vld [vmem:[%s2719 + $0x20] sm:$0xff]
    %v2725 = vld [vmem:[%s2719 + $0x28] sm:$0xff]
    %v2726 = vld [vmem:[%s2719 + $0x30] sm:$0xff]
    %v2727 = vld [vmem:[%s2719 + $0x38] sm:$0xff]
    %v2728 = vld [vmem:[%s2719 + $0x40] sm:$0xff]
    %v2729 = vld [vmem:[%s2719 + $0x48] sm:$0xff]
    %v2730 = vld [vmem:[%s2719 + $0x50] sm:$0xff]
    %v2731 = vld [vmem:[%s2719 + $0x58] sm:$0xff]
    %v2732 = vld [vmem:[%s2719 + $0x60] sm:$0xff]
    %v2733 = vld [vmem:[%s2719 + $0x68] sm:$0xff]
    %v2734 = vld [vmem:[%s2719 + $0x70] sm:$0xff]
    %v2735 = vld [vmem:[%s2719 + $0x78] sm:$0xff]
    %v2736 = vld [vmem:[%s2719 + $0x80] sm:$0xff]
    %v2737 = vld [vmem:[%s2719 + $0x88] sm:$0xff]
    %v2738 = vld [vmem:[%s2719 + $0x90] sm:$0xff]
    %v2739 = vld [vmem:[%s2719 + $0x98] sm:$0xff]
    %v2740 = vld [vmem:[%s2719 + $0xa0] sm:$0xff]
    %v2741 = vld [vmem:[%s2719 + $0xa8] sm:$0xff]
    %v2742 = vld [vmem:[%s2719 + $0xb0] sm:$0xff]
    %v2743 = vld [vmem:[%s2719 + $0xb8] sm:$0xff]
    %v2744 = vld [vmem:[%s2719 + $0xc0] sm:$0xff]
    %v2745 = vld [vmem:[%s2719 + $0xc8] sm:$0xff]
    %v2746 = vld [vmem:[%s2719 + $0xd0] sm:$0xff]
    %v2747 = vld [vmem:[%s2719 + $0xd8] sm:$0xff]
    %v2748 = vld [vmem:[%s2719 + $0xe0] sm:$0xff]
    %v2749 = vld [vmem:[%s2719 + $0xe8] sm:$0xff]
    %v2750 = vld [vmem:[%s2719 + $0xf0] sm:$0xff]
    %v2751 = vld [vmem:[%s2719 + $0xf8] sm:$0xff]
    %2752 = vmatprep.subr.mxu0 %v2721
    %2753 = vmatpush1.msra.mxu0 %v2720
    %2754 = vmatprep.subr.mxu0 %v2723
    %2755 = vmatpush1.msra.mxu0 %v2722
    %2756 = vmatprep.subr.mxu0 %v2725
    %2757 = vmatpush1.msra.mxu0 %v2724
    %2758 = vmatprep.subr.mxu0 %v2727
    %2759 = vmatpush1.msra.mxu0 %v2726
    %2760 = vmatprep.subr.mxu0 %v2729
    %2761 = vmatpush1.msra.mxu0 %v2728
    %2762 = vmatprep.subr.mxu0 %v2731
    %2763 = vmatpush1.msra.mxu0 %v2730
    %2764 = vmatprep.subr.mxu0 %v2733
    %2765 = vmatpush1.msra.mxu0 %v2732
    %2766 = vmatprep.subr.mxu0 %v2735
    %2767 = vmatpush1.msra.mxu0 %v2734
    %2768 = vmatprep.subr.mxu0 %v2737
    %2769 = vmatpush1.msra.mxu0 %v2736
    %2770 = vmatprep.subr.mxu0 %v2739
    %2771 = vmatpush1.msra.mxu0 %v2738
    %2772 = vmatprep.subr.mxu0 %v2741
    %2773 = vmatpush1.msra.mxu0 %v2740
    %2774 = vmatprep.subr.mxu0 %v2743
    %2775 = vmatpush1.msra.mxu0 %v2742
    %2776 = vmatprep.subr.mxu0 %v2745
    %2777 = vmatpush1.msra.mxu0 %v2744
    %2778 = vmatprep.subr.mxu0 %v2747
    %2779 = vmatpush1.msra.mxu0 %v2746
    %2780 = vmatprep.subr.mxu0 %v2749
    %2781 = vmatpush1.msra.mxu0 %v2748
    %2782 = vmatprep.subr.mxu0 %v2751
    %2783 = vmatpush1.msra.mxu0 %v2750
    %2784 = vmatprep.subr.mxu0 0.0
    %2785 = vmatpush1.msra.mxu0 0.0
    %2786 = vmatprep.subr.mxu0 0.0
    %2787 = vmatpush1.msra.mxu0 0.0
    %2788 = vmatprep.subr.mxu0 0.0
    %2789 = vmatpush1.msra.mxu0 0.0
    %2790 = vmatprep.subr.mxu0 0.0
    %2791 = vmatpush1.msra.mxu0 0.0
    %2792 = vmatprep.subr.mxu0 0.0
    %2793 = vmatpush1.msra.mxu0 0.0
    %2794 = vmatprep.subr.mxu0 0.0
    %2795 = vmatpush1.msra.mxu0 0.0
    %2796 = vmatprep.subr.mxu0 0.0
    %2797 = vmatpush1.msra.mxu0 0.0
    %2798 = vmatprep.subr.mxu0 0.0
    %2799 = vmatpush1.msra.mxu0 0.0
    %2800 = vmatprep.subr.mxu0 0.0
    %2801 = vmatpush1.msra.mxu0 0.0
    %2802 = vmatprep.subr.mxu0 0.0
    %2803 = vmatpush1.msra.mxu0 0.0
    %2804 = vmatprep.subr.mxu0 0.0
    %2805 = vmatpush1.msra.mxu0 0.0
    %2806 = vmatprep.subr.mxu0 0.0
    %2807 = vmatpush1.msra.mxu0 0.0
    %2808 = vmatprep.subr.mxu0 0.0
    %2809 = vmatpush1.msra.mxu0 0.0
    %2810 = vmatprep.subr.mxu0 0.0
    %2811 = vmatpush1.msra.mxu0 0.0
    %2812 = vmatprep.subr.mxu0 0.0
    %2813 = vmatpush1.msra.mxu0 0.0
    %2814 = vmatprep.subr.mxu0 0.0
    %2815 = vmatpush1.msra.mxu0 0.0
    %2816 = vmatprep.mubr.f32.mxu0 0.0
    %2817 = vmatmul.mubr.f32.gmra.mrb[0].mxu0 %v2703
    %v2818 = vpop.f32.mrb[0].mxu0
    %v2819 = vadd.f32 0.0, %v2818
    %v2820 = vpop.f32.mrb[0].mxu0
    %v2821 = vadd.f32 0.0, %v2820
    %2822 = vmatprep.mubr.f32.mxu0 0.0
    %2823 = vmatmul.mubr.f32.gmra.mrb[0].mxu0 %v2704
    %v2824 = vpop.f32.mrb[0].mxu0
    %v2825 = vadd.f32 0.0, %v2824
    %v2826 = vpop.f32.mrb[0].mxu0
    %v2827 = vadd.f32 0.0, %v2826
    %2828 = vmatprep.mubr.f32.mxu0 0.0
    %2829 = vmatmul.mubr.f32.gmra.mrb[0].mxu0 %v2705
    %v2830 = vpop.f32.mrb[0].mxu0
    %v2831 = vadd.f32 0.0, %v2830
    %v2832 = vpop.f32.mrb[0].mxu0
    %v2833 = vadd.f32 0.0, %v2832
    %2834 = vmatprep.mubr.f32.mxu0 0.0
    %2835 = vmatmul.mubr.f32.gmra.mrb[0].mxu0 %v2706
    %v2836 = vpop.f32.mrb[0].mxu0
    %v2837 = vadd.f32 0.0, %v2836
    %v2838 = vpop.f32.mrb[0].mxu0
    %v2839 = vadd.f32 0.0, %v2838
    %2840 = vmatprep.mubr.f32.mxu0 0.0
    %2841 = vmatmul.mubr.f32.gmra.mrb[0].mxu0 %v2707
    %v2842 = vpop.f32.mrb[0].mxu0
    %v2843 = vadd.f32 0.0, %v2842
    %v2844 = vpop.f32.mrb[0].mxu0
    %v2845 = vadd.f32 0.0, %v2844
    %2846 = vmatprep.mubr.f32.mxu0 0.0
    %2847 = vmatmul.mubr.f32.gmra.mrb[0].mxu0 %v2708
    %v2848 = vpop.f32.mrb[0].mxu0
    %v2849 = vadd.f32 0.0, %v2848
    %v2850 = vpop.f32.mrb[0].mxu0
    %v2851 = vadd.f32 0.0, %v2850
    %2852 = vmatprep.mubr.f32.mxu0 0.0
    %2853 = vmatmul.mubr.f32.gmra.mrb[0].mxu0 %v2709
    %v2854 = vpop.f32.mrb[0].mxu0
    %v2855 = vadd.f32 0.0, %v2854
    %v2856 = vpop.f32.mrb[0].mxu0
    %v2857 = vadd.f32 0.0, %v2856
    %2858 = vmatprep.mubr.f32.mxu0 0.0
    %2859 = vmatmul.mubr.f32.gmra.mrb[0].mxu0 %v2710
    %v2860 = vpop.f32.mrb[0].mxu0
    %v2861 = vadd.f32 0.0, %v2860
    %v2862 = vpop.f32.mrb[0].mxu0
    %v2863 = vadd.f32 0.0, %v2862
    %2864 = vmatprep.mubr.f32.mxu0 0.0
    %2865 = vmatmul.mubr.f32.gmra.mrb[0].mxu0 %v2711
    %v2866 = vpop.f32.mrb[0].mxu0
    %v2867 = vadd.f32 0.0, %v2866
    %v2868 = vpop.f32.mrb[0].mxu0
    %v2869 = vadd.f32 0.0, %v2868
    %2870 = vmatprep.mubr.f32.mxu0 0.0
    %2871 = vmatmul.mubr.f32.gmra.mrb[0].mxu0 %v2712
    %v2872 = vpop.f32.mrb[0].mxu0
    %v2873 = vadd.f32 0.0, %v2872
    %v2874 = vpop.f32.mrb[0].mxu0
    %v2875 = vadd.f32 0.0, %v2874
    %2876 = vmatprep.mubr.f32.mxu0 0.0
    %2877 = vmatmul.mubr.f32.gmra.mrb[0].mxu0 %v2713
    %v2878 = vpop.f32.mrb[0].mxu0
    %v2879 = vadd.f32 0.0, %v2878
    %v2880 = vpop.f32.mrb[0].mxu0
    %v2881 = vadd.f32 0.0, %v2880
    %2882 = vmatprep.mubr.f32.mxu0 0.0
    %2883 = vmatmul.mubr.f32.gmra.mrb[0].mxu0 %v2714
    %v2884 = vpop.f32.mrb[0].mxu0
    %v2885 = vadd.f32 0.0, %v2884
    %v2886 = vpop.f32.mrb[0].mxu0
    %v2887 = vadd.f32 0.0, %v2886
    %2888 = vmatprep.mubr.f32.mxu0 0.0
    %2889 = vmatmul.mubr.f32.gmra.mrb[0].mxu0 %v2715
    %v2890 = vpop.f32.mrb[0].mxu0
    %v2891 = vadd.f32 0.0, %v2890
    %v2892 = vpop.f32.mrb[0].mxu0
    %v2893 = vadd.f32 0.0, %v2892
    %2894 = vmatprep.mubr.f32.mxu0 0.0
    %2895 = vmatmul.mubr.f32.gmra.mrb[0].mxu0 %v2716
    %v2896 = vpop.f32.mrb[0].mxu0
    %v2897 = vadd.f32 0.0, %v2896
    %v2898 = vpop.f32.mrb[0].mxu0
    %v2899 = vadd.f32 0.0, %v2898
    %2900 = vmatprep.mubr.f32.mxu0 0.0
    %2901 = vmatmul.mubr.f32.gmra.mrb[0].mxu0 %v2717
    %v2902 = vpop.f32.mrb[0].mxu0
    %v2903 = vadd.f32 0.0, %v2902
    %v2904 = vpop.f32.mrb[0].mxu0
    %v2905 = vadd.f32 0.0, %v2904
    %2906 = vmatprep.mubr.f32.mxu0 0.0
    %2907 = vmatmul.mubr.f32.gmra.mrb[0].mxu0 %v2718
    %v2908 = vpop.f32.mrb[0].mxu0
    %v2909 = vadd.f32 0.0, %v2908
    %v2910 = vpop.f32.mrb[0].mxu0
    %v2911 = vadd.f32 0.0, %v2910
    %2912 = vdwg.mxu0
    %v2913 = vpack.c.bf16 %v2825, %v2819
    %v2914 = vpack.c.bf16 %v2827, %v2821
    %v2915 = vpack.c.bf16 %v2837, %v2831
    %v2916 = vpack.c.bf16 %v2839, %v2833
    %v2917 = vpack.c.bf16 %v2849, %v2843
    %v2918 = vpack.c.bf16 %v2851, %v2845
    %v2919 = vpack.c.bf16 %v2861, %v2855
    %v2920 = vpack.c.bf16 %v2863, %v2857
    %v2921 = vpack.c.bf16 %v2873, %v2867
    %v2922 = vpack.c.bf16 %v2875, %v2869
    %v2923 = vpack.c.bf16 %v2885, %v2879
    %v2924 = vpack.c.bf16 %v2887, %v2881
    %v2925 = vpack.c.bf16 %v2897, %v2891
    %v2926 = vpack.c.bf16 %v2899, %v2893
    %v2927 = vpack.c.bf16 %v2909, %v2903
    %v2928 = vpack.c.bf16 %v2911, %v2905
    %2929 = vmatprep.subr.bf16.mxu0 0
    %2930 = vmatpush1.bf16.msra.mxu0 %v2914
    %2931 = vmatprep.subr.bf16.mxu0 0
    %2932 = vmatpush1.bf16.msra.mxu0 %v2916
    %2933 = vmatprep.subr.bf16.mxu0 0
    %2934 = vmatpush1.bf16.msra.mxu0 %v2918
    %2935 = vmatprep.subr.bf16.mxu0 0
    %2936 = vmatpush1.bf16.msra.mxu0 %v2920
    %2937 = vmatprep.subr.bf16.mxu0 0
    %2938 = vmatpush1.bf16.msra.mxu0 %v2922
    %2939 = vmatprep.subr.bf16.mxu0 0
    %2940 = vmatpush1.bf16.msra.mxu0 %v2924
    %2941 = vmatprep.subr.bf16.mxu0 0
    %2942 = vmatpush1.bf16.msra.mxu0 %v2926
    %2943 = vmatprep.subr.bf16.mxu0 0
    %2944 = vmatpush1.bf16.msra.mxu0 %v2928
    %2945 = vmatprep.subr.bf16.mxu0 0
    %2946 = vmatpush1.bf16.msra.mxu0 0
    %2947 = vmatprep.subr.bf16.mxu0 0
    %2948 = vmatpush1.bf16.msra.mxu0 0
    %2949 = vmatprep.subr.bf16.mxu0 0
    %2950 = vmatpush1.bf16.msra.mxu0 0
    %2951 = vmatprep.subr.bf16.mxu0 0
    %2952 = vmatpush1.bf16.msra.mxu0 0
    %2953 = vmatprep.subr.bf16.mxu0 0
    %2954 = vmatpush1.bf16.msra.mxu0 0
    %2955 = vmatprep.subr.bf16.mxu0 0
    %2956 = vmatpush1.bf16.msra.mxu0 0
    %2957 = vmatprep.subr.bf16.mxu0 0
    %2958 = vmatpush1.bf16.msra.mxu0 0
    %2959 = vmatprep.subr.bf16.mxu0 0
    %2960 = vmatpush1.bf16.msra.mxu0 0
    %2961 = vmatprep.mubr.bf16.mxu0 0
    %2962 = vmatmul.mubr.bf16.gmra.mrb[0].mxu0 %v572
    %v2963 = vpop.f32.mrb[0].mxu0
    %v2964 = vadd.f32 0.0, %v2963
    %v2965 = vpop.f32.mrb[0].mxu0
    %v2966 = vpop.f32.mrb[0].mxu0
    %v2967 = vadd.f32 0.0, %v2966
    %v2968 = vpop.f32.mrb[0].mxu0
    %2969 = vmatprep.mubr.bf16.mxu0 0
    %2970 = vmatmul.mubr.bf16.gmra.mrb[0].mxu0 %v573
    %v2971 = vpop.f32.mrb[0].mxu0
    %v2972 = vadd.f32 0.0, %v2971
    %v2973 = vpop.f32.mrb[0].mxu0
    %v2974 = vpop.f32.mrb[0].mxu0
    %v2975 = vadd.f32 0.0, %v2974
    %v2976 = vpop.f32.mrb[0].mxu0
    %2977 = vmatprep.mubr.bf16.mxu0 0
    %2978 = vmatmul.mubr.bf16.gmra.mrb[0].mxu0 %v574
    %v2979 = vpop.f32.mrb[0].mxu0
    %v2980 = vadd.f32 0.0, %v2979
    %v2981 = vpop.f32.mrb[0].mxu0
    %v2982 = vpop.f32.mrb[0].mxu0
    %v2983 = vadd.f32 0.0, %v2982
    %v2984 = vpop.f32.mrb[0].mxu0
    %2985 = vmatprep.mubr.bf16.mxu0 0
    %2986 = vmatmul.mubr.bf16.gmra.mrb[0].mxu0 %v575
    %v2987 = vpop.f32.mrb[0].mxu0
    %v2988 = vadd.f32 0.0, %v2987
    %v2989 = vpop.f32.mrb[0].mxu0
    %v2990 = vpop.f32.mrb[0].mxu0
    %v2991 = vadd.f32 0.0, %v2990
    %v2992 = vpop.f32.mrb[0].mxu0
    %2993 = vmatprep.mubr.bf16.mxu0 0
    %2994 = vmatmul.mubr.bf16.gmra.mrb[0].mxu0 %v576
    %v2995 = vpop.f32.mrb[0].mxu0
    %v2996 = vadd.f32 0.0, %v2995
    %v2997 = vpop.f32.mrb[0].mxu0
    %v2998 = vpop.f32.mrb[0].mxu0
    %v2999 = vadd.f32 0.0, %v2998
    %v3000 = vpop.f32.mrb[0].mxu0
    %3001 = vmatprep.mubr.bf16.mxu0 0
    %3002 = vmatmul.mubr.bf16.gmra.mrb[0].mxu0 %v577
    %v3003 = vpop.f32.mrb[0].mxu0
    %v3004 = vadd.f32 0.0, %v3003
    %v3005 = vpop.f32.mrb[0].mxu0
    %v3006 = vpop.f32.mrb[0].mxu0
    %v3007 = vadd.f32 0.0, %v3006
    %v3008 = vpop.f32.mrb[0].mxu0
    %3009 = vmatprep.mubr.bf16.mxu0 0
    %3010 = vmatmul.mubr.bf16.gmra.mrb[0].mxu0 %v578
    %v3011 = vpop.f32.mrb[0].mxu0
    %v3012 = vadd.f32 0.0, %v3011
    %v3013 = vpop.f32.mrb[0].mxu0
    %v3014 = vpop.f32.mrb[0].mxu0
    %v3015 = vadd.f32 0.0, %v3014
    %v3016 = vpop.f32.mrb[0].mxu0
    %3017 = vmatprep.mubr.bf16.mxu0 0
    %3018 = vmatmul.mubr.bf16.gmra.mrb[0].mxu0 %v579
    %v3019 = vpop.f32.mrb[0].mxu0
    %v3020 = vadd.f32 0.0, %v3019
    %v3021 = vpop.f32.mrb[0].mxu0
    %v3022 = vpop.f32.mrb[0].mxu0
    %v3023 = vadd.f32 0.0, %v3022
    %v3024 = vpop.f32.mrb[0].mxu0
    %3025 = vmatprep.mubr.bf16.mxu0 0
    %3026 = vmatmul.mubr.bf16.gmra.mrb[0].mxu0 %v580
    %v3027 = vpop.f32.mrb[0].mxu0
    %v3028 = vadd.f32 0.0, %v3027
    %v3029 = vpop.f32.mrb[0].mxu0
    %v3030 = vpop.f32.mrb[0].mxu0
    %v3031 = vadd.f32 0.0, %v3030
    %v3032 = vpop.f32.mrb[0].mxu0
    %3033 = vmatprep.mubr.bf16.mxu0 0
    %3034 = vmatmul.mubr.bf16.gmra.mrb[0].mxu0 %v581
    %v3035 = vpop.f32.mrb[0].mxu0
    %v3036 = vadd.f32 0.0, %v3035
    %v3037 = vpop.f32.mrb[0].mxu0
    %v3038 = vpop.f32.mrb[0].mxu0
    %v3039 = vadd.f32 0.0, %v3038
    %v3040 = vpop.f32.mrb[0].mxu0
    %3041 = vmatprep.mubr.bf16.mxu0 0
    %3042 = vmatmul.mubr.bf16.gmra.mrb[0].mxu0 %v582
    %v3043 = vpop.f32.mrb[0].mxu0
    %v3044 = vadd.f32 0.0, %v3043
    %v3045 = vpop.f32.mrb[0].mxu0
    %v3046 = vpop.f32.mrb[0].mxu0
    %v3047 = vadd.f32 0.0, %v3046
    %v3048 = vpop.f32.mrb[0].mxu0
    %3049 = vmatprep.mubr.bf16.mxu0 0
    %3050 = vmatmul.mubr.bf16.gmra.mrb[0].mxu0 %v583
    %v3051 = vpop.f32.mrb[0].mxu0
    %v3052 = vadd.f32 0.0, %v3051
    %v3053 = vpop.f32.mrb[0].mxu0
    %v3054 = vpop.f32.mrb[0].mxu0
    %v3055 = vadd.f32 0.0, %v3054
    %v3056 = vpop.f32.mrb[0].mxu0
    %3057 = vmatprep.mubr.bf16.mxu0 0
    %3058 = vmatmul.mubr.bf16.gmra.mrb[0].mxu0 %v584
    %v3059 = vpop.f32.mrb[0].mxu0
    %v3060 = vadd.f32 0.0, %v3059
    %v3061 = vpop.f32.mrb[0].mxu0
    %v3062 = vpop.f32.mrb[0].mxu0
    %v3063 = vadd.f32 0.0, %v3062
    %v3064 = vpop.f32.mrb[0].mxu0
    %3065 = vmatprep.mubr.bf16.mxu0 0
    %3066 = vmatmul.mubr.bf16.gmra.mrb[0].mxu0 %v585
    %v3067 = vpop.f32.mrb[0].mxu0
    %v3068 = vadd.f32 0.0, %v3067
    %v3069 = vpop.f32.mrb[0].mxu0
    %v3070 = vpop.f32.mrb[0].mxu0
    %v3071 = vadd.f32 0.0, %v3070
    %v3072 = vpop.f32.mrb[0].mxu0
    %3073 = vmatprep.mubr.bf16.mxu0 0
    %3074 = vmatmul.mubr.bf16.gmra.mrb[0].mxu0 %v586
    %v3075 = vpop.f32.mrb[0].mxu0
    %v3076 = vadd.f32 0.0, %v3075
    %v3077 = vpop.f32.mrb[0].mxu0
    %v3078 = vpop.f32.mrb[0].mxu0
    %v3079 = vadd.f32 0.0, %v3078
    %v3080 = vpop.f32.mrb[0].mxu0
    %3081 = vmatprep.mubr.bf16.mxu0 0
    %3082 = vmatmul.mubr.bf16.gmra.mrb[0].mxu0 %v587
    %v3083 = vpop.f32.mrb[0].mxu0
    %v3084 = vadd.f32 0.0, %v3083
    %v3085 = vpop.f32.mrb[0].mxu0
    %v3086 = vpop.f32.mrb[0].mxu0
    %v3087 = vadd.f32 0.0, %v3086
    %v3088 = vpop.f32.mrb[0].mxu0
    %3089 = vdwg.mxu0
    %3090 = vmatprep.subr.bf16.mxu0 0
    %3091 = vmatpush1.bf16.msra.mxu0 %v2913
    %3092 = vmatprep.subr.bf16.mxu0 0
    %3093 = vmatpush1.bf16.msra.mxu0 %v2915
    %3094 = vmatprep.subr.bf16.mxu0 0
    %3095 = vmatpush1.bf16.msra.mxu0 %v2917
    %3096 = vmatprep.subr.bf16.mxu0 0
    %3097 = vmatpush1.bf16.msra.mxu0 %v2919
    %3098 = vmatprep.subr.bf16.mxu0 0
    %3099 = vmatpush1.bf16.msra.mxu0 %v2921
    %3100 = vmatprep.subr.bf16.mxu0 0
    %3101 = vmatpush1.bf16.msra.mxu0 %v2923
    %3102 = vmatprep.subr.bf16.mxu0 0
    %3103 = vmatpush1.bf16.msra.mxu0 %v2925
    %3104 = vmatprep.subr.bf16.mxu0 0
    %3105 = vmatpush1.bf16.msra.mxu0 %v2927
    %3106 = vmatprep.subr.bf16.mxu0 0
    %3107 = vmatpush1.bf16.msra.mxu0 0
    %3108 = vmatprep.subr.bf16.mxu0 0
    %3109 = vmatpush1.bf16.msra.mxu0 0
    %3110 = vmatprep.subr.bf16.mxu0 0
    %3111 = vmatpush1.bf16.msra.mxu0 0
    %3112 = vmatprep.subr.bf16.mxu0 0
    %3113 = vmatpush1.bf16.msra.mxu0 0
    %3114 = vmatprep.subr.bf16.mxu0 0
    %3115 = vmatpush1.bf16.msra.mxu0 0
    %3116 = vmatprep.subr.bf16.mxu0 0
    %3117 = vmatpush1.bf16.msra.mxu0 0
    %3118 = vmatprep.subr.bf16.mxu0 0
    %3119 = vmatpush1.bf16.msra.mxu0 0
    %3120 = vmatprep.subr.bf16.mxu0 0
    %3121 = vmatpush1.bf16.msra.mxu0 0
    %3122 = vmatprep.mubr.bf16.mxu0 0
    %3123 = vmatmul.mubr.bf16.gmra.mrb[0].mxu0 %v829
    %v3124 = vpop.f32.mrb[0].mxu0
    %v3125 = vadd.f32 %v2964, %v3124
    %v3126 = vpop.f32.mrb[0].mxu0
    %v3127 = vpop.f32.mrb[0].mxu0
    %v3128 = vadd.f32 %v2967, %v3127
    %v3129 = vpop.f32.mrb[0].mxu0
    %3130 = vmatprep.mubr.bf16.mxu0 0
    %3131 = vmatmul.mubr.bf16.gmra.mrb[0].mxu0 %v830
    %v3132 = vpop.f32.mrb[0].mxu0
    %v3133 = vadd.f32 %v2972, %v3132
    %v3134 = vpop.f32.mrb[0].mxu0
    %v3135 = vpop.f32.mrb[0].mxu0
    %v3136 = vadd.f32 %v2975, %v3135
    %v3137 = vpop.f32.mrb[0].mxu0
    %3138 = vmatprep.mubr.bf16.mxu0 0
    %3139 = vmatmul.mubr.bf16.gmra.mrb[0].mxu0 %v831
    %v3140 = vpop.f32.mrb[0].mxu0
    %v3141 = vadd.f32 %v2980, %v3140
    %v3142 = vpop.f32.mrb[0].mxu0
    %v3143 = vpop.f32.mrb[0].mxu0
    %v3144 = vadd.f32 %v2983, %v3143
    %v3145 = vpop.f32.mrb[0].mxu0
    %3146 = vmatprep.mubr.bf16.mxu0 0
    %3147 = vmatmul.mubr.bf16.gmra.mrb[0].mxu0 %v832
    %v3148 = vpop.f32.mrb[0].mxu0
    %v3149 = vadd.f32 %v2988, %v3148
    %v3150 = vpop.f32.mrb[0].mxu0
    %v3151 = vpop.f32.mrb[0].mxu0
    %v3152 = vadd.f32 %v2991, %v3151
    %v3153 = vpop.f32.mrb[0].mxu0
    %3154 = vmatprep.mubr.bf16.mxu0 0
    %3155 = vmatmul.mubr.bf16.gmra.mrb[0].mxu0 %v833
    %v3156 = vpop.f32.mrb[0].mxu0
    %v3157 = vadd.f32 %v2996, %v3156
    %v3158 = vpop.f32.mrb[0].mxu0
    %v3159 = vpop.f32.mrb[0].mxu0
    %v3160 = vadd.f32 %v2999, %v3159
    %v3161 = vpop.f32.mrb[0].mxu0
    %3162 = vmatprep.mubr.bf16.mxu0 0
    %3163 = vmatmul.mubr.bf16.gmra.mrb[0].mxu0 %v834
    %v3164 = vpop.f32.mrb[0].mxu0
    %v3165 = vadd.f32 %v3004, %v3164
    %v3166 = vpop.f32.mrb[0].mxu0
    %v3167 = vpop.f32.mrb[0].mxu0
    %v3168 = vadd.f32 %v3007, %v3167
    %v3169 = vpop.f32.mrb[0].mxu0
    %3170 = vmatprep.mubr.bf16.mxu0 0
    %3171 = vmatmul.mubr.bf16.gmra.mrb[0].mxu0 %v835
    %v3172 = vpop.f32.mrb[0].mxu0
    %v3173 = vadd.f32 %v3012, %v3172
    %v3174 = vpop.f32.mrb[0].mxu0
    %v3175 = vpop.f32.mrb[0].mxu0
    %v3176 = vadd.f32 %v3015, %v3175
    %v3177 = vpop.f32.mrb[0].mxu0
    %3178 = vmatprep.mubr.bf16.mxu0 0
    %3179 = vmatmul.mubr.bf16.gmra.mrb[0].mxu0 %v836
    %v3180 = vpop.f32.mrb[0].mxu0
    %v3181 = vadd.f32 %v3020, %v3180
    %v3182 = vpop.f32.mrb[0].mxu0
    %v3183 = vpop.f32.mrb[0].mxu0
    %v3184 = vadd.f32 %v3023, %v3183
    %v3185 = vpop.f32.mrb[0].mxu0
    %3186 = vmatprep.mubr.bf16.mxu0 0
    %3187 = vmatmul.mubr.bf16.gmra.mrb[0].mxu0 %v837
    %v3188 = vpop.f32.mrb[0].mxu0
    %v3189 = vadd.f32 %v3028, %v3188
    %v3190 = vpop.f32.mrb[0].mxu0
    %v3191 = vpop.f32.mrb[0].mxu0
    %v3192 = vadd.f32 %v3031, %v3191
    %v3193 = vpop.f32.mrb[0].mxu0
    %3194 = vmatprep.mubr.bf16.mxu0 0
    %3195 = vmatmul.mubr.bf16.gmra.mrb[0].mxu0 %v838
    %v3196 = vpop.f32.mrb[0].mxu0
    %v3197 = vadd.f32 %v3036, %v3196
    %v3198 = vpop.f32.mrb[0].mxu0
    %v3199 = vpop.f32.mrb[0].mxu0
    %v3200 = vadd.f32 %v3039, %v3199
    %v3201 = vpop.f32.mrb[0].mxu0
    %3202 = vmatprep.mubr.bf16.mxu0 0
    %3203 = vmatmul.mubr.bf16.gmra.mrb[0].mxu0 %v839
    %v3204 = vpop.f32.mrb[0].mxu0
    %v3205 = vadd.f32 %v3044, %v3204
    %v3206 = vpop.f32.mrb[0].mxu0
    %v3207 = vpop.f32.mrb[0].mxu0
    %v3208 = vadd.f32 %v3047, %v3207
    %v3209 = vpop.f32.mrb[0].mxu0
    %3210 = vmatprep.mubr.bf16.mxu0 0
    %3211 = vmatmul.mubr.bf16.gmra.mrb[0].mxu0 %v840
    %v3212 = vpop.f32.mrb[0].mxu0
    %v3213 = vadd.f32 %v3052, %v3212
    %v3214 = vpop.f32.mrb[0].mxu0
    %v3215 = vpop.f32.mrb[0].mxu0
    %v3216 = vadd.f32 %v3055, %v3215
    %v3217 = vpop.f32.mrb[0].mxu0
    %3218 = vmatprep.mubr.bf16.mxu0 0
    %3219 = vmatmul.mubr.bf16.gmra.mrb[0].mxu0 %v841
    %v3220 = vpop.f32.mrb[0].mxu0
    %v3221 = vadd.f32 %v3060, %v3220
    %v3222 = vpop.f32.mrb[0].mxu0
    %v3223 = vpop.f32.mrb[0].mxu0
    %v3224 = vadd.f32 %v3063, %v3223
    %v3225 = vpop.f32.mrb[0].mxu0
    %3226 = vmatprep.mubr.bf16.mxu0 0
    %3227 = vmatmul.mubr.bf16.gmra.mrb[0].mxu0 %v842
    %v3228 = vpop.f32.mrb[0].mxu0
    %v3229 = vadd.f32 %v3068, %v3228
    %v3230 = vpop.f32.mrb[0].mxu0
    %v3231 = vpop.f32.mrb[0].mxu0
    %v3232 = vadd.f32 %v3071, %v3231
    %v3233 = vpop.f32.mrb[0].mxu0
    %3234 = vmatprep.mubr.bf16.mxu0 0
    %3235 = vmatmul.mubr.bf16.gmra.mrb[0].mxu0 %v843
    %v3236 = vpop.f32.mrb[0].mxu0
    %v3237 = vadd.f32 %v3076, %v3236
    %v3238 = vpop.f32.mrb[0].mxu0
    %v3239 = vpop.f32.mrb[0].mxu0
    %v3240 = vadd.f32 %v3079, %v3239
    %v3241 = vpop.f32.mrb[0].mxu0
    %3242 = vmatprep.mubr.bf16.mxu0 0
    %3243 = vmatmul.mubr.bf16.gmra.mrb[0].mxu0 %v844
    %v3244 = vpop.f32.mrb[0].mxu0
    %v3245 = vadd.f32 %v3084, %v3244
    %v3246 = vpop.f32.mrb[0].mxu0
    %v3247 = vpop.f32.mrb[0].mxu0
    %v3248 = vadd.f32 %v3087, %v3247
    %v3249 = vpop.f32.mrb[0].mxu0
    %3250 = vdwg.mxu0
    %s3251 = scalar_lea.vmem [#allocation11], 128
    %v3252 = vld [vmem:[%s3251] sm:$0xff]
    %v3253 = vld [vmem:[%s3251 + $0x8] sm:$0xff]
    %v3254 = vld [vmem:[%s3251 + $0x10] sm:$0xff]
    %v3255 = vld [vmem:[%s3251 + $0x18] sm:$0xff]
    %v3256 = vld [vmem:[%s3251 + $0x20] sm:$0xff]
    %v3257 = vld [vmem:[%s3251 + $0x28] sm:$0xff]
    %v3258 = vld [vmem:[%s3251 + $0x30] sm:$0xff]
    %v3259 = vld [vmem:[%s3251 + $0x38] sm:$0xff]
    %v3260 = vld [vmem:[%s3251 + $0x40] sm:$0xff]
    %v3261 = vld [vmem:[%s3251 + $0x48] sm:$0xff]
    %v3262 = vld [vmem:[%s3251 + $0x50] sm:$0xff]
    %v3263 = vld [vmem:[%s3251 + $0x58] sm:$0xff]
    %v3264 = vld [vmem:[%s3251 + $0x60] sm:$0xff]
    %v3265 = vld [vmem:[%s3251 + $0x68] sm:$0xff]
    %v3266 = vld [vmem:[%s3251 + $0x70] sm:$0xff]
    %v3267 = vld [vmem:[%s3251 + $0x78] sm:$0xff]
    %3268 = vmatprep.subr.mxu0 0.0
    %3269 = vmatpush1.msra.mxu0 %v3252
    %3270 = vmatprep.subr.mxu0 0.0
    %3271 = vmatpush1.msra.mxu0 %v3253
    %3272 = vmatprep.subr.mxu0 0.0
    %3273 = vmatpush1.msra.mxu0 %v3254
    %3274 = vmatprep.subr.mxu0 0.0
    %3275 = vmatpush1.msra.mxu0 %v3255
    %3276 = vmatprep.subr.mxu0 0.0
    %3277 = vmatpush1.msra.mxu0 %v3256
    %3278 = vmatprep.subr.mxu0 0.0
    %3279 = vmatpush1.msra.mxu0 %v3257
    %3280 = vmatprep.subr.mxu0 0.0
    %3281 = vmatpush1.msra.mxu0 %v3258
    %3282 = vmatprep.subr.mxu0 0.0
    %3283 = vmatpush1.msra.mxu0 %v3259
    %3284 = vmatprep.subr.mxu0 0.0
    %3285 = vmatpush1.msra.mxu0 %v3260
    %3286 = vmatprep.subr.mxu0 0.0
    %3287 = vmatpush1.msra.mxu0 %v3261
    %3288 = vmatprep.subr.mxu0 0.0
    %3289 = vmatpush1.msra.mxu0 %v3262
    %3290 = vmatprep.subr.mxu0 0.0
    %3291 = vmatpush1.msra.mxu0 %v3263
    %3292 = vmatprep.subr.mxu0 0.0
    %3293 = vmatpush1.msra.mxu0 %v3264
    %3294 = vmatprep.subr.mxu0 0.0
    %3295 = vmatpush1.msra.mxu0 %v3265
    %3296 = vmatprep.subr.mxu0 0.0
    %3297 = vmatpush1.msra.mxu0 %v3266
    %3298 = vmatprep.subr.mxu0 0.0
    %3299 = vmatpush1.msra.mxu0 %v3267
    %3300 = vmatprep.subr.mxu0 0.0
    %3301 = vmatpush1.msra.mxu0 0.0
    %3302 = vmatprep.subr.mxu0 0.0
    %3303 = vmatpush1.msra.mxu0 0.0
    %3304 = vmatprep.subr.mxu0 0.0
    %3305 = vmatpush1.msra.mxu0 0.0
    %3306 = vmatprep.subr.mxu0 0.0
    %3307 = vmatpush1.msra.mxu0 0.0
    %3308 = vmatprep.subr.mxu0 0.0
    %3309 = vmatpush1.msra.mxu0 0.0
    %3310 = vmatprep.subr.mxu0 0.0
    %3311 = vmatpush1.msra.mxu0 0.0
    %3312 = vmatprep.subr.mxu0 0.0
    %3313 = vmatpush1.msra.mxu0 0.0
    %3314 = vmatprep.subr.mxu0 0.0
    %3315 = vmatpush1.msra.mxu0 0.0
    %3316 = vmatprep.subr.mxu0 0.0
    %3317 = vmatpush1.msra.mxu0 0.0
    %3318 = vmatprep.subr.mxu0 0.0
    %3319 = vmatpush1.msra.mxu0 0.0
    %3320 = vmatprep.subr.mxu0 0.0
    %3321 = vmatpush1.msra.mxu0 0.0
    %3322 = vmatprep.subr.mxu0 0.0
    %3323 = vmatpush1.msra.mxu0 0.0
    %3324 = vmatprep.subr.mxu0 0.0
    %3325 = vmatpush1.msra.mxu0 0.0
    %3326 = vmatprep.subr.mxu0 0.0
    %3327 = vmatpush1.msra.mxu0 0.0
    %3328 = vmatprep.subr.mxu0 0.0
    %3329 = vmatpush1.msra.mxu0 0.0
    %3330 = vmatprep.subr.mxu0 0.0
    %3331 = vmatpush1.msra.mxu0 0.0
    %3332 = vmatprep.mubr.f32.mxu0 0.0
    %3333 = vmatmul.mubr.f32.gmra.mrb[0].mxu0 %v187
    %v3334 = vpop.f32.mrb[0].mxu0
    %v3335 = vadd.f32 0.0, %v3334
    %v3336 = vpop.f32.mrb[0].mxu0
    %3337 = vmatprep.mubr.f32.mxu0 0.0
    %3338 = vmatmul.mubr.f32.gmra.mrb[0].mxu0 %v188
    %v3339 = vpop.f32.mrb[0].mxu0
    %v3340 = vadd.f32 0.0, %v3339
    %v3341 = vpop.f32.mrb[0].mxu0
    %3342 = vmatprep.mubr.f32.mxu0 0.0
    %3343 = vmatmul.mubr.f32.gmra.mrb[0].mxu0 %v189
    %v3344 = vpop.f32.mrb[0].mxu0
    %v3345 = vadd.f32 0.0, %v3344
    %v3346 = vpop.f32.mrb[0].mxu0
    %3347 = vmatprep.mubr.f32.mxu0 0.0
    %3348 = vmatmul.mubr.f32.gmra.mrb[0].mxu0 %v190
    %v3349 = vpop.f32.mrb[0].mxu0
    %v3350 = vadd.f32 0.0, %v3349
    %v3351 = vpop.f32.mrb[0].mxu0
    %3352 = vmatprep.mubr.f32.mxu0 0.0
    %3353 = vmatmul.mubr.f32.gmra.mrb[0].mxu0 %v191
    %v3354 = vpop.f32.mrb[0].mxu0
    %v3355 = vadd.f32 0.0, %v3354
    %v3356 = vpop.f32.mrb[0].mxu0
    %3357 = vmatprep.mubr.f32.mxu0 0.0
    %3358 = vmatmul.mubr.f32.gmra.mrb[0].mxu0 %v192
    %v3359 = vpop.f32.mrb[0].mxu0
    %v3360 = vadd.f32 0.0, %v3359
    %v3361 = vpop.f32.mrb[0].mxu0
    %3362 = vmatprep.mubr.f32.mxu0 0.0
    %3363 = vmatmul.mubr.f32.gmra.mrb[0].mxu0 %v193
    %v3364 = vpop.f32.mrb[0].mxu0
    %v3365 = vadd.f32 0.0, %v3364
    %v3366 = vpop.f32.mrb[0].mxu0
    %3367 = vmatprep.mubr.f32.mxu0 0.0
    %3368 = vmatmul.mubr.f32.gmra.mrb[0].mxu0 %v194
    %v3369 = vpop.f32.mrb[0].mxu0
    %v3370 = vadd.f32 0.0, %v3369
    %v3371 = vpop.f32.mrb[0].mxu0
    %3372 = vmatprep.mubr.f32.mxu0 0.0
    %3373 = vmatmul.mubr.f32.gmra.mrb[0].mxu0 %v195
    %v3374 = vpop.f32.mrb[0].mxu0
    %v3375 = vadd.f32 0.0, %v3374
    %v3376 = vpop.f32.mrb[0].mxu0
    %3377 = vmatprep.mubr.f32.mxu0 0.0
    %3378 = vmatmul.mubr.f32.gmra.mrb[0].mxu0 %v196
    %v3379 = vpop.f32.mrb[0].mxu0
    %v3380 = vadd.f32 0.0, %v3379
    %v3381 = vpop.f32.mrb[0].mxu0
    %3382 = vmatprep.mubr.f32.mxu0 0.0
    %3383 = vmatmul.mubr.f32.gmra.mrb[0].mxu0 %v197
    %v3384 = vpop.f32.mrb[0].mxu0
    %v3385 = vadd.f32 0.0, %v3384
    %v3386 = vpop.f32.mrb[0].mxu0
    %3387 = vmatprep.mubr.f32.mxu0 0.0
    %3388 = vmatmul.mubr.f32.gmra.mrb[0].mxu0 %v198
    %v3389 = vpop.f32.mrb[0].mxu0
    %v3390 = vadd.f32 0.0, %v3389
    %v3391 = vpop.f32.mrb[0].mxu0
    %3392 = vmatprep.mubr.f32.mxu0 0.0
    %3393 = vmatmul.mubr.f32.gmra.mrb[0].mxu0 %v199
    %v3394 = vpop.f32.mrb[0].mxu0
    %v3395 = vadd.f32 0.0, %v3394
    %v3396 = vpop.f32.mrb[0].mxu0
    %3397 = vmatprep.mubr.f32.mxu0 0.0
    %3398 = vmatmul.mubr.f32.gmra.mrb[0].mxu0 %v200
    %v3399 = vpop.f32.mrb[0].mxu0
    %v3400 = vadd.f32 0.0, %v3399
    %v3401 = vpop.f32.mrb[0].mxu0
    %3402 = vmatprep.mubr.f32.mxu0 0.0
    %3403 = vmatmul.mubr.f32.gmra.mrb[0].mxu0 %v201
    %v3404 = vpop.f32.mrb[0].mxu0
    %v3405 = vadd.f32 0.0, %v3404
    %v3406 = vpop.f32.mrb[0].mxu0
    %3407 = vmatprep.mubr.f32.mxu0 0.0
    %3408 = vmatmul.mubr.f32.gmra.mrb[0].mxu0 %v202
    %v3409 = vpop.f32.mrb[0].mxu0
    %v3410 = vadd.f32 0.0, %v3409
    %v3411 = vpop.f32.mrb[0].mxu0
    %3412 = vmatprep.mubr.f32.mxu0 0.0
    %3413 = vmatmul.mubr.f32.gmra.mrb[0].mxu0 %v203
    %v3414 = vpop.f32.mrb[0].mxu0
    %v3415 = vadd.f32 0.0, %v3414
    %v3416 = vpop.f32.mrb[0].mxu0
    %3417 = vmatprep.mubr.f32.mxu0 0.0
    %3418 = vmatmul.mubr.f32.gmra.mrb[0].mxu0 %v204
    %v3419 = vpop.f32.mrb[0].mxu0
    %v3420 = vadd.f32 0.0, %v3419
    %v3421 = vpop.f32.mrb[0].mxu0
    %3422 = vmatprep.mubr.f32.mxu0 0.0
    %3423 = vmatmul.mubr.f32.gmra.mrb[0].mxu0 %v205
    %v3424 = vpop.f32.mrb[0].mxu0
    %v3425 = vadd.f32 0.0, %v3424
    %v3426 = vpop.f32.mrb[0].mxu0
    %3427 = vmatprep.mubr.f32.mxu0 0.0
    %3428 = vmatmul.mubr.f32.gmra.mrb[0].mxu0 %v206
    %v3429 = vpop.f32.mrb[0].mxu0
    %v3430 = vadd.f32 0.0, %v3429
    %v3431 = vpop.f32.mrb[0].mxu0
    %3432 = vmatprep.mubr.f32.mxu0 0.0
    %3433 = vmatmul.mubr.f32.gmra.mrb[0].mxu0 %v207
    %v3434 = vpop.f32.mrb[0].mxu0
    %v3435 = vadd.f32 0.0, %v3434
    %v3436 = vpop.f32.mrb[0].mxu0
    %3437 = vmatprep.mubr.f32.mxu0 0.0
    %3438 = vmatmul.mubr.f32.gmra.mrb[0].mxu0 %v208
    %v3439 = vpop.f32.mrb[0].mxu0
    %v3440 = vadd.f32 0.0, %v3439
    %v3441 = vpop.f32.mrb[0].mxu0
    %3442 = vmatprep.mubr.f32.mxu0 0.0
    %3443 = vmatmul.mubr.f32.gmra.mrb[0].mxu0 %v209
    %v3444 = vpop.f32.mrb[0].mxu0
    %v3445 = vadd.f32 0.0, %v3444
    %v3446 = vpop.f32.mrb[0].mxu0
    %3447 = vmatprep.mubr.f32.mxu0 0.0
    %3448 = vmatmul.mubr.f32.gmra.mrb[0].mxu0 %v210
    %v3449 = vpop.f32.mrb[0].mxu0
    %v3450 = vadd.f32 0.0, %v3449
    %v3451 = vpop.f32.mrb[0].mxu0
    %3452 = vmatprep.mubr.f32.mxu0 0.0
    %3453 = vmatmul.mubr.f32.gmra.mrb[0].mxu0 %v211
    %v3454 = vpop.f32.mrb[0].mxu0
    %v3455 = vadd.f32 0.0, %v3454
    %v3456 = vpop.f32.mrb[0].mxu0
    %3457 = vmatprep.mubr.f32.mxu0 0.0
    %3458 = vmatmul.mubr.f32.gmra.mrb[0].mxu0 %v212
    %v3459 = vpop.f32.mrb[0].mxu0
    %v3460 = vadd.f32 0.0, %v3459
    %v3461 = vpop.f32.mrb[0].mxu0
    %3462 = vmatprep.mubr.f32.mxu0 0.0
    %3463 = vmatmul.mubr.f32.gmra.mrb[0].mxu0 %v213
    %v3464 = vpop.f32.mrb[0].mxu0
    %v3465 = vadd.f32 0.0, %v3464
    %v3466 = vpop.f32.mrb[0].mxu0
    %3467 = vmatprep.mubr.f32.mxu0 0.0
    %3468 = vmatmul.mubr.f32.gmra.mrb[0].mxu0 %v214
    %v3469 = vpop.f32.mrb[0].mxu0
    %v3470 = vadd.f32 0.0, %v3469
    %v3471 = vpop.f32.mrb[0].mxu0
    %3472 = vmatprep.mubr.f32.mxu0 0.0
    %3473 = vmatmul.mubr.f32.gmra.mrb[0].mxu0 %v215
    %v3474 = vpop.f32.mrb[0].mxu0
    %v3475 = vadd.f32 0.0, %v3474
    %v3476 = vpop.f32.mrb[0].mxu0
    %3477 = vmatprep.mubr.f32.mxu0 0.0
    %3478 = vmatmul.mubr.f32.gmra.mrb[0].mxu0 %v216
    %v3479 = vpop.f32.mrb[0].mxu0
    %v3480 = vadd.f32 0.0, %v3479
    %v3481 = vpop.f32.mrb[0].mxu0
    %3482 = vmatprep.mubr.f32.mxu0 0.0
    %3483 = vmatmul.mubr.f32.gmra.mrb[0].mxu0 %v217
    %v3484 = vpop.f32.mrb[0].mxu0
    %v3485 = vadd.f32 0.0, %v3484
    %v3486 = vpop.f32.mrb[0].mxu0
    %3487 = vmatprep.mubr.f32.mxu0 0.0
    %3488 = vmatmul.mubr.f32.gmra.mrb[0].mxu0 %v218
    %v3489 = vpop.f32.mrb[0].mxu0
    %v3490 = vadd.f32 0.0, %v3489
    %v3491 = vpop.f32.mrb[0].mxu0
    %3492 = vdwg.mxu0
    %v3493 = vadd.f32 %v3125, %v3335
    %v3494 = vadd.f32 %v3128, %v3340
    %v3495 = vadd.f32 %v3133, %v3345
    %v3496 = vadd.f32 %v3136, %v3350
    %v3497 = vadd.f32 %v3141, %v3355
    %v3498 = vadd.f32 %v3144, %v3360
    %v3499 = vadd.f32 %v3149, %v3365
    %v3500 = vadd.f32 %v3152, %v3370
    %v3501 = vadd.f32 %v3157, %v3375
    %v3502 = vadd.f32 %v3160, %v3380
    %v3503 = vadd.f32 %v3165, %v3385
    %v3504 = vadd.f32 %v3168, %v3390
    %v3505 = vadd.f32 %v3173, %v3395
    %v3506 = vadd.f32 %v3176, %v3400
    %v3507 = vadd.f32 %v3181, %v3405
    %v3508 = vadd.f32 %v3184, %v3410
    %v3509 = vadd.f32 %v3189, %v3415
    %v3510 = vadd.f32 %v3192, %v3420
    %v3511 = vadd.f32 %v3197, %v3425
    %v3512 = vadd.f32 %v3200, %v3430
    %v3513 = vadd.f32 %v3205, %v3435
    %v3514 = vadd.f32 %v3208, %v3440
    %v3515 = vadd.f32 %v3213, %v3445
    %v3516 = vadd.f32 %v3216, %v3450
    %v3517 = vadd.f32 %v3221, %v3455
    %v3518 = vadd.f32 %v3224, %v3460
    %v3519 = vadd.f32 %v3229, %v3465
    %v3520 = vadd.f32 %v3232, %v3470
    %v3521 = vadd.f32 %v3237, %v3475
    %v3522 = vadd.f32 %v3240, %v3480
    %v3523 = vadd.f32 %v3245, %v3485
    %v3524 = vadd.f32 %v3248, %v3490
    %s3525 = scalar_lea.vmem %s7, 1
    %v3526 = vld [vmem:[%s3525] sm:$0x1]
    %v3528 = vlaneseq
    %v3529 = vshrl.u32 %v3528, 7
    %v3530 = vsub.s32 0, %v3529
    %v3531 = vrot.slane %v3526, %v3530
    %v3533 = vadd.f32 %v3493, %v3531
    %v3534 = vadd.f32 %v3494, %v3531
    %v3535 = vadd.f32 %v3495, %v3531
    %v3536 = vadd.f32 %v3496, %v3531
    %v3537 = vadd.f32 %v3497, %v3531
    %v3538 = vadd.f32 %v3498, %v3531
    %v3539 = vadd.f32 %v3499, %v3531
    %v3540 = vadd.f32 %v3500, %v3531
    %v3541 = vadd.f32 %v3501, %v3531
    %v3542 = vadd.f32 %v3502, %v3531
    %v3543 = vadd.f32 %v3503, %v3531
    %v3544 = vadd.f32 %v3504, %v3531
    %v3545 = vadd.f32 %v3505, %v3531
    %v3546 = vadd.f32 %v3506, %v3531
    %v3547 = vadd.f32 %v3507, %v3531
    %v3548 = vadd.f32 %v3508, %v3531
    %v3549 = vadd.f32 %v3509, %v3531
    %v3550 = vadd.f32 %v3510, %v3531
    %v3551 = vadd.f32 %v3511, %v3531
    %v3552 = vadd.f32 %v3512, %v3531
    %v3553 = vadd.f32 %v3513, %v3531
    %v3554 = vadd.f32 %v3514, %v3531
    %v3555 = vadd.f32 %v3515, %v3531
    %v3556 = vadd.f32 %v3516, %v3531
    %v3557 = vadd.f32 %v3517, %v3531
    %v3558 = vadd.f32 %v3518, %v3531
    %v3559 = vadd.f32 %v3519, %v3531
    %v3560 = vadd.f32 %v3520, %v3531
    %v3561 = vadd.f32 %v3521, %v3531
    %v3562 = vadd.f32 %v3522, %v3531
    %v3563 = vadd.f32 %v3523, %v3531
    %v3564 = vadd.f32 %v3524, %v3531
    %v3565 = vxor.u32 %v3533, 2147483648
    %v3566 = vxor.u32 %v3534, 2147483648
    %v3567 = vxor.u32 %v3535, 2147483648
    %v3568 = vxor.u32 %v3536, 2147483648
    %v3569 = vxor.u32 %v3537, 2147483648
    %v3570 = vxor.u32 %v3538, 2147483648
    %v3571 = vxor.u32 %v3539, 2147483648
    %v3572 = vxor.u32 %v3540, 2147483648
    %v3573 = vxor.u32 %v3541, 2147483648
    %v3574 = vxor.u32 %v3542, 2147483648
    %v3575 = vxor.u32 %v3543, 2147483648
    %v3576 = vxor.u32 %v3544, 2147483648
    %v3577 = vxor.u32 %v3545, 2147483648
    %v3578 = vxor.u32 %v3546, 2147483648
    %v3579 = vxor.u32 %v3547, 2147483648
    %v3580 = vxor.u32 %v3548, 2147483648
    %v3581 = vxor.u32 %v3549, 2147483648
    %v3582 = vxor.u32 %v3550, 2147483648
    %v3583 = vxor.u32 %v3551, 2147483648
    %v3584 = vxor.u32 %v3552, 2147483648
    %v3585 = vxor.u32 %v3553, 2147483648
    %v3586 = vxor.u32 %v3554, 2147483648
    %v3587 = vxor.u32 %v3555, 2147483648
    %v3588 = vxor.u32 %v3556, 2147483648
    %v3589 = vxor.u32 %v3557, 2147483648
    %v3590 = vxor.u32 %v3558, 2147483648
    %v3591 = vxor.u32 %v3559, 2147483648
    %v3592 = vxor.u32 %v3560, 2147483648
    %v3593 = vxor.u32 %v3561, 2147483648
    %v3594 = vxor.u32 %v3562, 2147483648
    %v3595 = vxor.u32 %v3563, 2147483648
    %v3596 = vxor.u32 %v3564, 2147483648
    %v3597 = vmul.f32 %v3565, 1.442695
    %v3598 = vpow.pop %v3597
    %v3599 = vmul.f32 %v3566, 1.442695
    %v3600 = vpow.pop %v3599
    %v3601 = vmul.f32 %v3567, 1.442695
    %v3602 = vpow.pop %v3601
    %v3603 = vmul.f32 %v3568, 1.442695
    %v3604 = vpow.pop %v3603
    %v3605 = vmul.f32 %v3569, 1.442695
    %v3606 = vpow.pop %v3605
    %v3607 = vmul.f32 %v3570, 1.442695
    %v3608 = vpow.pop %v3607
    %v3609 = vmul.f32 %v3571, 1.442695
    %v3610 = vpow.pop %v3609
    %v3611 = vmul.f32 %v3572, 1.442695
    %v3612 = vpow.pop %v3611
    %v3613 = vmul.f32 %v3573, 1.442695
    %v3614 = vpow.pop %v3613
    %v3615 = vmul.f32 %v3574, 1.442695
    %v3616 = vpow.pop %v3615
    %v3617 = vmul.f32 %v3575, 1.442695
    %v3618 = vpow.pop %v3617
    %v3619 = vmul.f32 %v3576, 1.442695
    %v3620 = vpow.pop %v3619
    %v3621 = vmul.f32 %v3577, 1.442695
    %v3622 = vpow.pop %v3621
    %v3623 = vmul.f32 %v3578, 1.442695
    %v3624 = vpow.pop %v3623
    %v3625 = vmul.f32 %v3579, 1.442695
    %v3626 = vpow.pop %v3625
    %v3627 = vmul.f32 %v3580, 1.442695
    %v3628 = vpow.pop %v3627
    %v3629 = vmul.f32 %v3581, 1.442695
    %v3630 = vpow.pop %v3629
    %v3631 = vmul.f32 %v3582, 1.442695
    %v3632 = vpow.pop %v3631
    %v3633 = vmul.f32 %v3583, 1.442695
    %v3634 = vpow.pop %v3633
    %v3635 = vmul.f32 %v3584, 1.442695
    %v3636 = vpow.pop %v3635
    %v3637 = vmul.f32 %v3585, 1.442695
    %v3638 = vpow.pop %v3637
    %v3639 = vmul.f32 %v3586, 1.442695
    %v3640 = vpow.pop %v3639
    %v3641 = vmul.f32 %v3587, 1.442695
    %v3642 = vpow.pop %v3641
    %v3643 = vmul.f32 %v3588, 1.442695
    %v3644 = vpow.pop %v3643
    %v3645 = vmul.f32 %v3589, 1.442695
    %v3646 = vpow.pop %v3645
    %v3647 = vmul.f32 %v3590, 1.442695
    %v3648 = vpow.pop %v3647
    %v3649 = vmul.f32 %v3591, 1.442695
    %v3650 = vpow.pop %v3649
    %v3651 = vmul.f32 %v3592, 1.442695
    %v3652 = vpow.pop %v3651
    %v3653 = vmul.f32 %v3593, 1.442695
    %v3654 = vpow.pop %v3653
    %v3655 = vmul.f32 %v3594, 1.442695
    %v3656 = vpow.pop %v3655
    %v3657 = vmul.f32 %v3595, 1.442695
    %v3658 = vpow.pop %v3657
    %v3659 = vmul.f32 %v3596, 1.442695
    %v3660 = vpow.pop %v3659
    %v3661 = vadd.f32 %v3598, 1.0
    %v3662 = vadd.f32 %v3600, 1.0
    %v3663 = vadd.f32 %v3602, 1.0
    %v3664 = vadd.f32 %v3604, 1.0
    %v3665 = vadd.f32 %v3606, 1.0
    %v3666 = vadd.f32 %v3608, 1.0
    %v3667 = vadd.f32 %v3610, 1.0
    %v3668 = vadd.f32 %v3612, 1.0
    %v3669 = vadd.f32 %v3614, 1.0
    %v3670 = vadd.f32 %v3616, 1.0
    %v3671 = vadd.f32 %v3618, 1.0
    %v3672 = vadd.f32 %v3620, 1.0
    %v3673 = vadd.f32 %v3622, 1.0
    %v3674 = vadd.f32 %v3624, 1.0
    %v3675 = vadd.f32 %v3626, 1.0
    %v3676 = vadd.f32 %v3628, 1.0
    %v3677 = vadd.f32 %v3630, 1.0
    %v3678 = vadd.f32 %v3632, 1.0
    %v3679 = vadd.f32 %v3634, 1.0
    %v3680 = vadd.f32 %v3636, 1.0
    %v3681 = vadd.f32 %v3638, 1.0
    %v3682 = vadd.f32 %v3640, 1.0
    %v3683 = vadd.f32 %v3642, 1.0
    %v3684 = vadd.f32 %v3644, 1.0
    %v3685 = vadd.f32 %v3646, 1.0
    %v3686 = vadd.f32 %v3648, 1.0
    %v3687 = vadd.f32 %v3650, 1.0
    %v3688 = vadd.f32 %v3652, 1.0
    %v3689 = vadd.f32 %v3654, 1.0
    %v3690 = vadd.f32 %v3656, 1.0
    %v3691 = vadd.f32 %v3658, 1.0
    %v3692 = vadd.f32 %v3660, 1.0
    %v3693 = vrcp.pop %v3661
    %v3694 = vmul.f32 1.0, %v3693
    %v3695 = vrcp.pop %v3662
    %v3696 = vmul.f32 1.0, %v3695
    %v3697 = vrcp.pop %v3663
    %v3698 = vmul.f32 1.0, %v3697
    %v3699 = vrcp.pop %v3664
    %v3700 = vmul.f32 1.0, %v3699
    %v3701 = vrcp.pop %v3665
    %v3702 = vmul.f32 1.0, %v3701
    %v3703 = vrcp.pop %v3666
    %v3704 = vmul.f32 1.0, %v3703
    %v3705 = vrcp.pop %v3667
    %v3706 = vmul.f32 1.0, %v3705
    %v3707 = vrcp.pop %v3668
    %v3708 = vmul.f32 1.0, %v3707
    %v3709 = vrcp.pop %v3669
    %v3710 = vmul.f32 1.0, %v3709
    %v3711 = vrcp.pop %v3670
    %v3712 = vmul.f32 1.0, %v3711
    %v3713 = vrcp.pop %v3671
    %v3714 = vmul.f32 1.0, %v3713
    %v3715 = vrcp.pop %v3672
    %v3716 = vmul.f32 1.0, %v3715
    %v3717 = vrcp.pop %v3673
    %v3718 = vmul.f32 1.0, %v3717
    %v3719 = vrcp.pop %v3674
    %v3720 = vmul.f32 1.0, %v3719
    %v3721 = vrcp.pop %v3675
    %v3722 = vmul.f32 1.0, %v3721
    %v3723 = vrcp.pop %v3676
    %v3724 = vmul.f32 1.0, %v3723
    %v3725 = vrcp.pop %v3677
    %v3726 = vmul.f32 1.0, %v3725
    %v3727 = vrcp.pop %v3678
    %v3728 = vmul.f32 1.0, %v3727
    %v3729 = vrcp.pop %v3679
    %v3730 = vmul.f32 1.0, %v3729
    %v3731 = vrcp.pop %v3680
    %v3732 = vmul.f32 1.0, %v3731
    %v3733 = vrcp.pop %v3681
    %v3734 = vmul.f32 1.0, %v3733
    %v3735 = vrcp.pop %v3682
    %v3736 = vmul.f32 1.0, %v3735
    %v3737 = vrcp.pop %v3683
    %v3738 = vmul.f32 1.0, %v3737
    %v3739 = vrcp.pop %v3684
    %v3740 = vmul.f32 1.0, %v3739
    %v3741 = vrcp.pop %v3685
    %v3742 = vmul.f32 1.0, %v3741
    %v3743 = vrcp.pop %v3686
    %v3744 = vmul.f32 1.0, %v3743
    %v3745 = vrcp.pop %v3687
    %v3746 = vmul.f32 1.0, %v3745
    %v3747 = vrcp.pop %v3688
    %v3748 = vmul.f32 1.0, %v3747
    %v3749 = vrcp.pop %v3689
    %v3750 = vmul.f32 1.0, %v3749
    %v3751 = vrcp.pop %v3690
    %v3752 = vmul.f32 1.0, %v3751
    %v3753 = vrcp.pop %v3691
    %v3754 = vmul.f32 1.0, %v3753
    %v3755 = vrcp.pop %v3692
    %v3756 = vmul.f32 1.0, %v3755
    %v3757 = vmul.f32 %v3533, %v3694
    %v3758 = vmul.f32 %v3534, %v3696
    %v3759 = vmul.f32 %v3535, %v3698
    %v3760 = vmul.f32 %v3536, %v3700
    %v3761 = vmul.f32 %v3537, %v3702
    %v3762 = vmul.f32 %v3538, %v3704
    %v3763 = vmul.f32 %v3539, %v3706
    %v3764 = vmul.f32 %v3540, %v3708
    %v3765 = vmul.f32 %v3541, %v3710
    %v3766 = vmul.f32 %v3542, %v3712
    %v3767 = vmul.f32 %v3543, %v3714
    %v3768 = vmul.f32 %v3544, %v3716
    %v3769 = vmul.f32 %v3545, %v3718
    %v3770 = vmul.f32 %v3546, %v3720
    %v3771 = vmul.f32 %v3547, %v3722
    %v3772 = vmul.f32 %v3548, %v3724
    %v3773 = vmul.f32 %v3549, %v3726
    %v3774 = vmul.f32 %v3550, %v3728
    %v3775 = vmul.f32 %v3551, %v3730
    %v3776 = vmul.f32 %v3552, %v3732
    %v3777 = vmul.f32 %v3553, %v3734
    %v3778 = vmul.f32 %v3554, %v3736
    %v3779 = vmul.f32 %v3555, %v3738
    %v3780 = vmul.f32 %v3556, %v3740
    %v3781 = vmul.f32 %v3557, %v3742
    %v3782 = vmul.f32 %v3558, %v3744
    %v3783 = vmul.f32 %v3559, %v3746
    %v3784 = vmul.f32 %v3560, %v3748
    %v3785 = vmul.f32 %v3561, %v3750
    %v3786 = vmul.f32 %v3562, %v3752
    %v3787 = vmul.f32 %v3563, %v3754
    %v3788 = vmul.f32 %v3564, %v3756
    %s3789 = scalar_lea.vmem [#allocation13], 128
    %v3790 = vld [vmem:[%s3789] sm:$0xff]
    %v3791 = vld [vmem:[%s3789 + $0x8] sm:$0xff]
    %v3792 = vld [vmem:[%s3789 + $0x10] sm:$0xff]
    %v3793 = vld [vmem:[%s3789 + $0x18] sm:$0xff]
    %v3794 = vld [vmem:[%s3789 + $0x20] sm:$0xff]
    %v3795 = vld [vmem:[%s3789 + $0x28] sm:$0xff]
    %v3796 = vld [vmem:[%s3789 + $0x30] sm:$0xff]
    %v3797 = vld [vmem:[%s3789 + $0x38] sm:$0xff]
    %v3798 = vld [vmem:[%s3789 + $0x40] sm:$0xff]
    %v3799 = vld [vmem:[%s3789 + $0x48] sm:$0xff]
    %v3800 = vld [vmem:[%s3789 + $0x50] sm:$0xff]
    %v3801 = vld [vmem:[%s3789 + $0x58] sm:$0xff]
    %v3802 = vld [vmem:[%s3789 + $0x60] sm:$0xff]
    %v3803 = vld [vmem:[%s3789 + $0x68] sm:$0xff]
    %v3804 = vld [vmem:[%s3789 + $0x70] sm:$0xff]
    %v3805 = vld [vmem:[%s3789 + $0x78] sm:$0xff]
    %s3806 = scalar_lea.vmem %s9, 1
    %v3807 = vld [vmem:[%s3806] sm:$0x1]
    %v3809 = vlaneseq
    %v3810 = vshrl.u32 %v3809, 7
    %v3811 = vsub.s32 0, %v3810
    %v3812 = vrot.slane %v3807, %v3811
    %3814 = vmatprep.subr.mxu0 0.0
    %3815 = vmatpush1.msra.mxu0 %v3790
    %3816 = vmatprep.subr.mxu0 0.0
    %3817 = vmatpush1.msra.mxu0 %v3791
    %3818 = vmatprep.subr.mxu0 0.0
    %3819 = vmatpush1.msra.mxu0 %v3792
    %3820 = vmatprep.subr.mxu0 0.0
    %3821 = vmatpush1.msra.mxu0 %v3793
    %3822 = vmatprep.subr.mxu0 0.0
    %3823 = vmatpush1.msra.mxu0 %v3794
    %3824 = vmatprep.subr.mxu0 0.0
    %3825 = vmatpush1.msra.mxu0 %v3795
    %3826 = vmatprep.subr.mxu0 0.0
    %3827 = vmatpush1.msra.mxu0 %v3796
    %3828 = vmatprep.subr.mxu0 0.0
    %3829 = vmatpush1.msra.mxu0 %v3797
    %3830 = vmatprep.subr.mxu0 0.0
    %3831 = vmatpush1.msra.mxu0 %v3798
    %3832 = vmatprep.subr.mxu0 0.0
    %3833 = vmatpush1.msra.mxu0 %v3799
    %3834 = vmatprep.subr.mxu0 0.0
    %3835 = vmatpush1.msra.mxu0 %v3800
    %3836 = vmatprep.subr.mxu0 0.0
    %3837 = vmatpush1.msra.mxu0 %v3801
    %3838 = vmatprep.subr.mxu0 0.0
    %3839 = vmatpush1.msra.mxu0 %v3802
    %3840 = vmatprep.subr.mxu0 0.0
    %3841 = vmatpush1.msra.mxu0 %v3803
    %3842 = vmatprep.subr.mxu0 0.0
    %3843 = vmatpush1.msra.mxu0 %v3804
    %3844 = vmatprep.subr.mxu0 0.0
    %3845 = vmatpush1.msra.mxu0 %v3805
    %3846 = vmatprep.subr.mxu0 0.0
    %3847 = vmatpush1.msra.mxu0 0.0
    %3848 = vmatprep.subr.mxu0 0.0
    %3849 = vmatpush1.msra.mxu0 0.0
    %3850 = vmatprep.subr.mxu0 0.0
    %3851 = vmatpush1.msra.mxu0 0.0
    %3852 = vmatprep.subr.mxu0 0.0
    %3853 = vmatpush1.msra.mxu0 0.0
    %3854 = vmatprep.subr.mxu0 0.0
    %3855 = vmatpush1.msra.mxu0 0.0
    %3856 = vmatprep.subr.mxu0 0.0
    %3857 = vmatpush1.msra.mxu0 0.0
    %3858 = vmatprep.subr.mxu0 0.0
    %3859 = vmatpush1.msra.mxu0 0.0
    %3860 = vmatprep.subr.mxu0 0.0
    %3861 = vmatpush1.msra.mxu0 0.0
    %3862 = vmatprep.subr.mxu0 0.0
    %3863 = vmatpush1.msra.mxu0 0.0
    %3864 = vmatprep.subr.mxu0 0.0
    %3865 = vmatpush1.msra.mxu0 0.0
    %3866 = vmatprep.subr.mxu0 0.0
    %3867 = vmatpush1.msra.mxu0 0.0
    %3868 = vmatprep.subr.mxu0 0.0
    %3869 = vmatpush1.msra.mxu0 0.0
    %3870 = vmatprep.subr.mxu0 0.0
    %3871 = vmatpush1.msra.mxu0 0.0
    %3872 = vmatprep.subr.mxu0 0.0
    %3873 = vmatpush1.msra.mxu0 0.0
    %3874 = vmatprep.subr.mxu0 0.0
    %3875 = vmatpush1.msra.mxu0 0.0
    %3876 = vmatprep.subr.mxu0 0.0
    %3877 = vmatpush1.msra.mxu0 0.0
    %3878 = vmatprep.mubr.f32.mxu0 0.0
    %3879 = vmatmul.mubr.f32.gmra.mrb[0].mxu0 %v3757
    %v3880 = vpop.f32.mrb[0].mxu0
    %v3881 = vadd.f32 %v3812, %v3880
    %v3882 = vpop.f32.mrb[0].mxu0
    %3883 = vmatprep.mubr.f32.mxu0 0.0
    %3884 = vmatmul.mubr.f32.gmra.mrb[0].mxu0 %v3758
    %v3885 = vpop.f32.mrb[0].mxu0
    %v3886 = vadd.f32 %v3812, %v3885
    %v3887 = vpop.f32.mrb[0].mxu0
    %3888 = vmatprep.mubr.f32.mxu0 0.0
    %3889 = vmatmul.mubr.f32.gmra.mrb[0].mxu0 %v3759
    %v3890 = vpop.f32.mrb[0].mxu0
    %v3891 = vadd.f32 %v3812, %v3890
    %v3892 = vpop.f32.mrb[0].mxu0
    %3893 = vmatprep.mubr.f32.mxu0 0.0
    %3894 = vmatmul.mubr.f32.gmra.mrb[0].mxu0 %v3760
    %v3895 = vpop.f32.mrb[0].mxu0
    %v3896 = vadd.f32 %v3812, %v3895
    %v3897 = vpop.f32.mrb[0].mxu0
    %3898 = vmatprep.mubr.f32.mxu0 0.0
    %3899 = vmatmul.mubr.f32.gmra.mrb[0].mxu0 %v3761
    %v3900 = vpop.f32.mrb[0].mxu0
    %v3901 = vadd.f32 %v3812, %v3900
    %v3902 = vpop.f32.mrb[0].mxu0
    %3903 = vmatprep.mubr.f32.mxu0 0.0
    %3904 = vmatmul.mubr.f32.gmra.mrb[0].mxu0 %v3762
    %v3905 = vpop.f32.mrb[0].mxu0
    %v3906 = vadd.f32 %v3812, %v3905
    %v3907 = vpop.f32.mrb[0].mxu0
    %3908 = vmatprep.mubr.f32.mxu0 0.0
    %3909 = vmatmul.mubr.f32.gmra.mrb[0].mxu0 %v3763
    %v3910 = vpop.f32.mrb[0].mxu0
    %v3911 = vadd.f32 %v3812, %v3910
    %v3912 = vpop.f32.mrb[0].mxu0
    %3913 = vmatprep.mubr.f32.mxu0 0.0
    %3914 = vmatmul.mubr.f32.gmra.mrb[0].mxu0 %v3764
    %v3915 = vpop.f32.mrb[0].mxu0
    %v3916 = vadd.f32 %v3812, %v3915
    %v3917 = vpop.f32.mrb[0].mxu0
    %3918 = vmatprep.mubr.f32.mxu0 0.0
    %3919 = vmatmul.mubr.f32.gmra.mrb[0].mxu0 %v3765
    %v3920 = vpop.f32.mrb[0].mxu0
    %v3921 = vadd.f32 %v3812, %v3920
    %v3922 = vpop.f32.mrb[0].mxu0
    %3923 = vmatprep.mubr.f32.mxu0 0.0
    %3924 = vmatmul.mubr.f32.gmra.mrb[0].mxu0 %v3766
    %v3925 = vpop.f32.mrb[0].mxu0
    %v3926 = vadd.f32 %v3812, %v3925
    %v3927 = vpop.f32.mrb[0].mxu0
    %3928 = vmatprep.mubr.f32.mxu0 0.0
    %3929 = vmatmul.mubr.f32.gmra.mrb[0].mxu0 %v3767
    %v3930 = vpop.f32.mrb[0].mxu0
    %v3931 = vadd.f32 %v3812, %v3930
    %v3932 = vpop.f32.mrb[0].mxu0
    %3933 = vmatprep.mubr.f32.mxu0 0.0
    %3934 = vmatmul.mubr.f32.gmra.mrb[0].mxu0 %v3768
    %v3935 = vpop.f32.mrb[0].mxu0
    %v3936 = vadd.f32 %v3812, %v3935
    %v3937 = vpop.f32.mrb[0].mxu0
    %3938 = vmatprep.mubr.f32.mxu0 0.0
    %3939 = vmatmul.mubr.f32.gmra.mrb[0].mxu0 %v3769
    %v3940 = vpop.f32.mrb[0].mxu0
    %v3941 = vadd.f32 %v3812, %v3940
    %v3942 = vpop.f32.mrb[0].mxu0
    %3943 = vmatprep.mubr.f32.mxu0 0.0
    %3944 = vmatmul.mubr.f32.gmra.mrb[0].mxu0 %v3770
    %v3945 = vpop.f32.mrb[0].mxu0
    %v3946 = vadd.f32 %v3812, %v3945
    %v3947 = vpop.f32.mrb[0].mxu0
    %3948 = vmatprep.mubr.f32.mxu0 0.0
    %3949 = vmatmul.mubr.f32.gmra.mrb[0].mxu0 %v3771
    %v3950 = vpop.f32.mrb[0].mxu0
    %v3951 = vadd.f32 %v3812, %v3950
    %v3952 = vpop.f32.mrb[0].mxu0
    %3953 = vmatprep.mubr.f32.mxu0 0.0
    %3954 = vmatmul.mubr.f32.gmra.mrb[0].mxu0 %v3772
    %v3955 = vpop.f32.mrb[0].mxu0
    %v3956 = vadd.f32 %v3812, %v3955
    %v3957 = vpop.f32.mrb[0].mxu0
    %3958 = vmatprep.mubr.f32.mxu0 0.0
    %3959 = vmatmul.mubr.f32.gmra.mrb[0].mxu0 %v3773
    %v3960 = vpop.f32.mrb[0].mxu0
    %v3961 = vadd.f32 %v3812, %v3960
    %v3962 = vpop.f32.mrb[0].mxu0
    %3963 = vmatprep.mubr.f32.mxu0 0.0
    %3964 = vmatmul.mubr.f32.gmra.mrb[0].mxu0 %v3774
    %v3965 = vpop.f32.mrb[0].mxu0
    %v3966 = vadd.f32 %v3812, %v3965
    %v3967 = vpop.f32.mrb[0].mxu0
    %3968 = vmatprep.mubr.f32.mxu0 0.0
    %3969 = vmatmul.mubr.f32.gmra.mrb[0].mxu0 %v3775
    %v3970 = vpop.f32.mrb[0].mxu0
    %v3971 = vadd.f32 %v3812, %v3970
    %v3972 = vpop.f32.mrb[0].mxu0
    %3973 = vmatprep.mubr.f32.mxu0 0.0
    %3974 = vmatmul.mubr.f32.gmra.mrb[0].mxu0 %v3776
    %v3975 = vpop.f32.mrb[0].mxu0
    %v3976 = vadd.f32 %v3812, %v3975
    %v3977 = vpop.f32.mrb[0].mxu0
    %3978 = vmatprep.mubr.f32.mxu0 0.0
    %3979 = vmatmul.mubr.f32.gmra.mrb[0].mxu0 %v3777
    %v3980 = vpop.f32.mrb[0].mxu0
    %v3981 = vadd.f32 %v3812, %v3980
    %v3982 = vpop.f32.mrb[0].mxu0
    %3983 = vmatprep.mubr.f32.mxu0 0.0
    %3984 = vmatmul.mubr.f32.gmra.mrb[0].mxu0 %v3778
    %v3985 = vpop.f32.mrb[0].mxu0
    %v3986 = vadd.f32 %v3812, %v3985
    %v3987 = vpop.f32.mrb[0].mxu0
    %3988 = vmatprep.mubr.f32.mxu0 0.0
    %3989 = vmatmul.mubr.f32.gmra.mrb[0].mxu0 %v3779
    %v3990 = vpop.f32.mrb[0].mxu0
    %v3991 = vadd.f32 %v3812, %v3990
    %v3992 = vpop.f32.mrb[0].mxu0
    %3993 = vmatprep.mubr.f32.mxu0 0.0
    %3994 = vmatmul.mubr.f32.gmra.mrb[0].mxu0 %v3780
    %v3995 = vpop.f32.mrb[0].mxu0
    %v3996 = vadd.f32 %v3812, %v3995
    %v3997 = vpop.f32.mrb[0].mxu0
    %3998 = vmatprep.mubr.f32.mxu0 0.0
    %3999 = vmatmul.mubr.f32.gmra.mrb[0].mxu0 %v3781
    %v4000 = vpop.f32.mrb[0].mxu0
    %v4001 = vadd.f32 %v3812, %v4000
    %v4002 = vpop.f32.mrb[0].mxu0
    %4003 = vmatprep.mubr.f32.mxu0 0.0
    %4004 = vmatmul.mubr.f32.gmra.mrb[0].mxu0 %v3782
    %v4005 = vpop.f32.mrb[0].mxu0
    %v4006 = vadd.f32 %v3812, %v4005
    %v4007 = vpop.f32.mrb[0].mxu0
    %4008 = vmatprep.mubr.f32.mxu0 0.0
    %4009 = vmatmul.mubr.f32.gmra.mrb[0].mxu0 %v3783
    %v4010 = vpop.f32.mrb[0].mxu0
    %v4011 = vadd.f32 %v3812, %v4010
    %v4012 = vpop.f32.mrb[0].mxu0
    %4013 = vmatprep.mubr.f32.mxu0 0.0
    %4014 = vmatmul.mubr.f32.gmra.mrb[0].mxu0 %v3784
    %v4015 = vpop.f32.mrb[0].mxu0
    %v4016 = vadd.f32 %v3812, %v4015
    %v4017 = vpop.f32.mrb[0].mxu0
    %4018 = vmatprep.mubr.f32.mxu0 0.0
    %4019 = vmatmul.mubr.f32.gmra.mrb[0].mxu0 %v3785
    %v4020 = vpop.f32.mrb[0].mxu0
    %v4021 = vadd.f32 %v3812, %v4020
    %v4022 = vpop.f32.mrb[0].mxu0
    %4023 = vmatprep.mubr.f32.mxu0 0.0
    %4024 = vmatmul.mubr.f32.gmra.mrb[0].mxu0 %v3786
    %v4025 = vpop.f32.mrb[0].mxu0
    %v4026 = vadd.f32 %v3812, %v4025
    %v4027 = vpop.f32.mrb[0].mxu0
    %4028 = vmatprep.mubr.f32.mxu0 0.0
    %4029 = vmatmul.mubr.f32.gmra.mrb[0].mxu0 %v3787
    %v4030 = vpop.f32.mrb[0].mxu0
    %v4031 = vadd.f32 %v3812, %v4030
    %v4032 = vpop.f32.mrb[0].mxu0
    %4033 = vmatprep.mubr.f32.mxu0 0.0
    %4034 = vmatmul.mubr.f32.gmra.mrb[0].mxu0 %v3788
    %v4035 = vpop.f32.mrb[0].mxu0
    %v4036 = vadd.f32 %v3812, %v4035
    %v4037 = vpop.f32.mrb[0].mxu0
    %4038 = vdwg.mxu0
    %v4039 = vxor.u32 %v3881, 2147483648
    %v4040 = vxor.u32 %v3886, 2147483648
    %v4041 = vxor.u32 %v3891, 2147483648
    %v4042 = vxor.u32 %v3896, 2147483648
    %v4043 = vxor.u32 %v3901, 2147483648
    %v4044 = vxor.u32 %v3906, 2147483648
    %v4045 = vxor.u32 %v3911, 2147483648
    %v4046 = vxor.u32 %v3916, 2147483648
    %v4047 = vxor.u32 %v3921, 2147483648
    %v4048 = vxor.u32 %v3926, 2147483648
    %v4049 = vxor.u32 %v3931, 2147483648
    %v4050 = vxor.u32 %v3936, 2147483648
    %v4051 = vxor.u32 %v3941, 2147483648
    %v4052 = vxor.u32 %v3946, 2147483648
    %v4053 = vxor.u32 %v3951, 2147483648
    %v4054 = vxor.u32 %v3956, 2147483648
    %v4055 = vxor.u32 %v3961, 2147483648
    %v4056 = vxor.u32 %v3966, 2147483648
    %v4057 = vxor.u32 %v3971, 2147483648
    %v4058 = vxor.u32 %v3976, 2147483648
    %v4059 = vxor.u32 %v3981, 2147483648
    %v4060 = vxor.u32 %v3986, 2147483648
    %v4061 = vxor.u32 %v3991, 2147483648
    %v4062 = vxor.u32 %v3996, 2147483648
    %v4063 = vxor.u32 %v4001, 2147483648
    %v4064 = vxor.u32 %v4006, 2147483648
    %v4065 = vxor.u32 %v4011, 2147483648
    %v4066 = vxor.u32 %v4016, 2147483648
    %v4067 = vxor.u32 %v4021, 2147483648
    %v4068 = vxor.u32 %v4026, 2147483648
    %v4069 = vxor.u32 %v4031, 2147483648
    %v4070 = vxor.u32 %v4036, 2147483648
    %v4071 = vmul.f32 %v4039, 1.442695
    %v4072 = vpow.pop %v4071
    %v4073 = vmul.f32 %v4040, 1.442695
    %v4074 = vpow.pop %v4073
    %v4075 = vmul.f32 %v4041, 1.442695
    %v4076 = vpow.pop %v4075
    %v4077 = vmul.f32 %v4042, 1.442695
    %v4078 = vpow.pop %v4077
    %v4079 = vmul.f32 %v4043, 1.442695
    %v4080 = vpow.pop %v4079
    %v4081 = vmul.f32 %v4044, 1.442695
    %v4082 = vpow.pop %v4081
    %v4083 = vmul.f32 %v4045, 1.442695
    %v4084 = vpow.pop %v4083
    %v4085 = vmul.f32 %v4046, 1.442695
    %v4086 = vpow.pop %v4085
    %v4087 = vmul.f32 %v4047, 1.442695
    %v4088 = vpow.pop %v4087
    %v4089 = vmul.f32 %v4048, 1.442695
    %v4090 = vpow.pop %v4089
    %v4091 = vmul.f32 %v4049, 1.442695
    %v4092 = vpow.pop %v4091
    %v4093 = vmul.f32 %v4050, 1.442695
    %v4094 = vpow.pop %v4093
    %v4095 = vmul.f32 %v4051, 1.442695
    %v4096 = vpow.pop %v4095
    %v4097 = vmul.f32 %v4052, 1.442695
    %v4098 = vpow.pop %v4097
    %v4099 = vmul.f32 %v4053, 1.442695
    %v4100 = vpow.pop %v4099
    %v4101 = vmul.f32 %v4054, 1.442695
    %v4102 = vpow.pop %v4101
    %v4103 = vmul.f32 %v4055, 1.442695
    %v4104 = vpow.pop %v4103
    %v4105 = vmul.f32 %v4056, 1.442695
    %v4106 = vpow.pop %v4105
    %v4107 = vmul.f32 %v4057, 1.442695
    %v4108 = vpow.pop %v4107
    %v4109 = vmul.f32 %v4058, 1.442695
    %v4110 = vpow.pop %v4109
    %v4111 = vmul.f32 %v4059, 1.442695
    %v4112 = vpow.pop %v4111
    %v4113 = vmul.f32 %v4060, 1.442695
    %v4114 = vpow.pop %v4113
    %v4115 = vmul.f32 %v4061, 1.442695
    %v4116 = vpow.pop %v4115
    %v4117 = vmul.f32 %v4062, 1.442695
    %v4118 = vpow.pop %v4117
    %v4119 = vmul.f32 %v4063, 1.442695
    %v4120 = vpow.pop %v4119
    %v4121 = vmul.f32 %v4064, 1.442695
    %v4122 = vpow.pop %v4121
    %v4123 = vmul.f32 %v4065, 1.442695
    %v4124 = vpow.pop %v4123
    %v4125 = vmul.f32 %v4066, 1.442695
    %v4126 = vpow.pop %v4125
    %v4127 = vmul.f32 %v4067, 1.442695
    %v4128 = vpow.pop %v4127
    %v4129 = vmul.f32 %v4068, 1.442695
    %v4130 = vpow.pop %v4129
    %v4131 = vmul.f32 %v4069, 1.442695
    %v4132 = vpow.pop %v4131
    %v4133 = vmul.f32 %v4070, 1.442695
    %v4134 = vpow.pop %v4133
    %v4135 = vadd.f32 %v4072, 1.0
    %v4136 = vadd.f32 %v4074, 1.0
    %v4137 = vadd.f32 %v4076, 1.0
    %v4138 = vadd.f32 %v4078, 1.0
    %v4139 = vadd.f32 %v4080, 1.0
    %v4140 = vadd.f32 %v4082, 1.0
    %v4141 = vadd.f32 %v4084, 1.0
    %v4142 = vadd.f32 %v4086, 1.0
    %v4143 = vadd.f32 %v4088, 1.0
    %v4144 = vadd.f32 %v4090, 1.0
    %v4145 = vadd.f32 %v4092, 1.0
    %v4146 = vadd.f32 %v4094, 1.0
    %v4147 = vadd.f32 %v4096, 1.0
    %v4148 = vadd.f32 %v4098, 1.0
    %v4149 = vadd.f32 %v4100, 1.0
    %v4150 = vadd.f32 %v4102, 1.0
    %v4151 = vadd.f32 %v4104, 1.0
    %v4152 = vadd.f32 %v4106, 1.0
    %v4153 = vadd.f32 %v4108, 1.0
    %v4154 = vadd.f32 %v4110, 1.0
    %v4155 = vadd.f32 %v4112, 1.0
    %v4156 = vadd.f32 %v4114, 1.0
    %v4157 = vadd.f32 %v4116, 1.0
    %v4158 = vadd.f32 %v4118, 1.0
    %v4159 = vadd.f32 %v4120, 1.0
    %v4160 = vadd.f32 %v4122, 1.0
    %v4161 = vadd.f32 %v4124, 1.0
    %v4162 = vadd.f32 %v4126, 1.0
    %v4163 = vadd.f32 %v4128, 1.0
    %v4164 = vadd.f32 %v4130, 1.0
    %v4165 = vadd.f32 %v4132, 1.0
    %v4166 = vadd.f32 %v4134, 1.0
    %v4167 = vrcp.pop %v4135
    %v4168 = vmul.f32 1.0, %v4167
    %v4169 = vrcp.pop %v4136
    %v4170 = vmul.f32 1.0, %v4169
    %v4171 = vrcp.pop %v4137
    %v4172 = vmul.f32 1.0, %v4171
    %v4173 = vrcp.pop %v4138
    %v4174 = vmul.f32 1.0, %v4173
    %v4175 = vrcp.pop %v4139
    %v4176 = vmul.f32 1.0, %v4175
    %v4177 = vrcp.pop %v4140
    %v4178 = vmul.f32 1.0, %v4177
    %v4179 = vrcp.pop %v4141
    %v4180 = vmul.f32 1.0, %v4179
    %v4181 = vrcp.pop %v4142
    %v4182 = vmul.f32 1.0, %v4181
    %v4183 = vrcp.pop %v4143
    %v4184 = vmul.f32 1.0, %v4183
    %v4185 = vrcp.pop %v4144
    %v4186 = vmul.f32 1.0, %v4185
    %v4187 = vrcp.pop %v4145
    %v4188 = vmul.f32 1.0, %v4187
    %v4189 = vrcp.pop %v4146
    %v4190 = vmul.f32 1.0, %v4189
    %v4191 = vrcp.pop %v4147
    %v4192 = vmul.f32 1.0, %v4191
    %v4193 = vrcp.pop %v4148
    %v4194 = vmul.f32 1.0, %v4193
    %v4195 = vrcp.pop %v4149
    %v4196 = vmul.f32 1.0, %v4195
    %v4197 = vrcp.pop %v4150
    %v4198 = vmul.f32 1.0, %v4197
    %v4199 = vrcp.pop %v4151
    %v4200 = vmul.f32 1.0, %v4199
    %v4201 = vrcp.pop %v4152
    %v4202 = vmul.f32 1.0, %v4201
    %v4203 = vrcp.pop %v4153
    %v4204 = vmul.f32 1.0, %v4203
    %v4205 = vrcp.pop %v4154
    %v4206 = vmul.f32 1.0, %v4205
    %v4207 = vrcp.pop %v4155
    %v4208 = vmul.f32 1.0, %v4207
    %v4209 = vrcp.pop %v4156
    %v4210 = vmul.f32 1.0, %v4209
    %v4211 = vrcp.pop %v4157
    %v4212 = vmul.f32 1.0, %v4211
    %v4213 = vrcp.pop %v4158
    %v4214 = vmul.f32 1.0, %v4213
    %v4215 = vrcp.pop %v4159
    %v4216 = vmul.f32 1.0, %v4215
    %v4217 = vrcp.pop %v4160
    %v4218 = vmul.f32 1.0, %v4217
    %v4219 = vrcp.pop %v4161
    %v4220 = vmul.f32 1.0, %v4219
    %v4221 = vrcp.pop %v4162
    %v4222 = vmul.f32 1.0, %v4221
    %v4223 = vrcp.pop %v4163
    %v4224 = vmul.f32 1.0, %v4223
    %v4225 = vrcp.pop %v4164
    %v4226 = vmul.f32 1.0, %v4225
    %v4227 = vrcp.pop %v4165
    %v4228 = vmul.f32 1.0, %v4227
    %v4229 = vrcp.pop %v4166
    %v4230 = vmul.f32 1.0, %v4229
    %v4231 = vmul.f32 %v3881, %v4168
    %v4232 = vmul.f32 %v3886, %v4170
    %v4233 = vmul.f32 %v3891, %v4172
    %v4234 = vmul.f32 %v3896, %v4174
    %v4235 = vmul.f32 %v3901, %v4176
    %v4236 = vmul.f32 %v3906, %v4178
    %v4237 = vmul.f32 %v3911, %v4180
    %v4238 = vmul.f32 %v3916, %v4182
    %v4239 = vmul.f32 %v3921, %v4184
    %v4240 = vmul.f32 %v3926, %v4186
    %v4241 = vmul.f32 %v3931, %v4188
    %v4242 = vmul.f32 %v3936, %v4190
    %v4243 = vmul.f32 %v3941, %v4192
    %v4244 = vmul.f32 %v3946, %v4194
    %v4245 = vmul.f32 %v3951, %v4196
    %v4246 = vmul.f32 %v3956, %v4198
    %v4247 = vmul.f32 %v3961, %v4200
    %v4248 = vmul.f32 %v3966, %v4202
    %v4249 = vmul.f32 %v3971, %v4204
    %v4250 = vmul.f32 %v3976, %v4206
    %v4251 = vmul.f32 %v3981, %v4208
    %v4252 = vmul.f32 %v3986, %v4210
    %v4253 = vmul.f32 %v3991, %v4212
    %v4254 = vmul.f32 %v3996, %v4214
    %v4255 = vmul.f32 %v4001, %v4216
    %v4256 = vmul.f32 %v4006, %v4218
    %v4257 = vmul.f32 %v4011, %v4220
    %v4258 = vmul.f32 %v4016, %v4222
    %v4259 = vmul.f32 %v4021, %v4224
    %v4260 = vmul.f32 %v4026, %v4226
    %v4261 = vmul.f32 %v4031, %v4228
    %v4262 = vmul.f32 %v4036, %v4230
    %v4263 = vpack.c.bf16 %v4232, %v4231
    %v4264 = vpack.c.bf16 %v4234, %v4233
    %v4265 = vpack.c.bf16 %v4236, %v4235
    %v4266 = vpack.c.bf16 %v4238, %v4237
    %v4267 = vpack.c.bf16 %v4240, %v4239
    %v4268 = vpack.c.bf16 %v4242, %v4241
    %v4269 = vpack.c.bf16 %v4244, %v4243
    %v4270 = vpack.c.bf16 %v4246, %v4245
    %v4271 = vpack.c.bf16 %v4248, %v4247
    %v4272 = vpack.c.bf16 %v4250, %v4249
    %v4273 = vpack.c.bf16 %v4252, %v4251
    %v4274 = vpack.c.bf16 %v4254, %v4253
    %v4275 = vpack.c.bf16 %v4256, %v4255
    %v4276 = vpack.c.bf16 %v4258, %v4257
    %v4277 = vpack.c.bf16 %v4260, %v4259
    %v4278 = vpack.c.bf16 %v4262, %v4261
    %4279 = vmatprep.subr.bf16.mxu0 0
    %4280 = vmatpush1.bf16.msra.mxu0 %v4263
    %4281 = vmatprep.subr.bf16.mxu0 0
    %4282 = vmatpush1.bf16.msra.mxu0 %v4264
    %4283 = vmatprep.subr.bf16.mxu0 0
    %4284 = vmatpush1.bf16.msra.mxu0 %v4265
    %4285 = vmatprep.subr.bf16.mxu0 0
    %4286 = vmatpush1.bf16.msra.mxu0 %v4266
    %4287 = vmatprep.subr.bf16.mxu0 0
    %4288 = vmatpush1.bf16.msra.mxu0 %v4267
    %4289 = vmatprep.subr.bf16.mxu0 0
    %4290 = vmatpush1.bf16.msra.mxu0 %v4268
    %4291 = vmatprep.subr.bf16.mxu0 0
    %4292 = vmatpush1.bf16.msra.mxu0 %v4269
    %4293 = vmatprep.subr.bf16.mxu0 0
    %4294 = vmatpush1.bf16.msra.mxu0 %v4270
    %4295 = vmatprep.subr.bf16.mxu0 0
    %4296 = vmatpush1.bf16.msra.mxu0 %v4271
    %4297 = vmatprep.subr.bf16.mxu0 0
    %4298 = vmatpush1.bf16.msra.mxu0 %v4272
    %4299 = vmatprep.subr.bf16.mxu0 0
    %4300 = vmatpush1.bf16.msra.mxu0 %v4273
    %4301 = vmatprep.subr.bf16.mxu0 0
    %4302 = vmatpush1.bf16.msra.mxu0 %v4274
    %4303 = vmatprep.subr.bf16.mxu0 0
    %4304 = vmatpush1.bf16.msra.mxu0 %v4275
    %4305 = vmatprep.subr.bf16.mxu0 0
    %4306 = vmatpush1.bf16.msra.mxu0 %v4276
    %4307 = vmatprep.subr.bf16.mxu0 0
    %4308 = vmatpush1.bf16.msra.mxu0 %v4277
    %4309 = vmatprep.subr.bf16.mxu0 0
    %4310 = vmatpush1.bf16.msra.mxu0 %v4278
    %4311 = vmatprep.mubr.bf16.mxu0 %v2095
    %4312 = vmatmul.mubr.bf16.gmra.mrb[0].mxu0 %v2094
    %v4313 = vpop.f32.mrb[0].mxu0
    %v4314 = vadd.f32 0.0, %v4313
    %v4315 = vpop.f32.mrb[0].mxu0
    %v4316 = vpop.f32.mrb[0].mxu0
    %v4317 = vadd.f32 0.0, %v4316
    %v4318 = vpop.f32.mrb[0].mxu0
    %4319 = vmatprep.mubr.bf16.mxu0 %v2097
    %4320 = vmatmul.mubr.bf16.gmra.mrb[0].mxu0 %v2096
    %v4321 = vpop.f32.mrb[0].mxu0
    %v4322 = vadd.f32 0.0, %v4321
    %v4323 = vpop.f32.mrb[0].mxu0
    %v4324 = vpop.f32.mrb[0].mxu0
    %v4325 = vadd.f32 0.0, %v4324
    %v4326 = vpop.f32.mrb[0].mxu0
    %4327 = vmatprep.mubr.bf16.mxu0 %v2099
    %4328 = vmatmul.mubr.bf16.gmra.mrb[0].mxu0 %v2098
    %v4329 = vpop.f32.mrb[0].mxu0
    %v4330 = vadd.f32 0.0, %v4329
    %v4331 = vpop.f32.mrb[0].mxu0
    %v4332 = vpop.f32.mrb[0].mxu0
    %v4333 = vadd.f32 0.0, %v4332
    %v4334 = vpop.f32.mrb[0].mxu0
    %4335 = vmatprep.mubr.bf16.mxu0 %v2101
    %4336 = vmatmul.mubr.bf16.gmra.mrb[0].mxu0 %v2100
    %v4337 = vpop.f32.mrb[0].mxu0
    %v4338 = vadd.f32 0.0, %v4337
    %v4339 = vpop.f32.mrb[0].mxu0
    %v4340 = vpop.f32.mrb[0].mxu0
    %v4341 = vadd.f32 0.0, %v4340
    %v4342 = vpop.f32.mrb[0].mxu0
    %4343 = vmatprep.mubr.bf16.mxu0 %v2103
    %4344 = vmatmul.mubr.bf16.gmra.mrb[0].mxu0 %v2102
    %v4345 = vpop.f32.mrb[0].mxu0
    %v4346 = vadd.f32 0.0, %v4345
    %v4347 = vpop.f32.mrb[0].mxu0
    %v4348 = vpop.f32.mrb[0].mxu0
    %v4349 = vadd.f32 0.0, %v4348
    %v4350 = vpop.f32.mrb[0].mxu0
    %4351 = vmatprep.mubr.bf16.mxu0 %v2105
    %4352 = vmatmul.mubr.bf16.gmra.mrb[0].mxu0 %v2104
    %v4353 = vpop.f32.mrb[0].mxu0
    %v4354 = vadd.f32 0.0, %v4353
    %v4355 = vpop.f32.mrb[0].mxu0
    %v4356 = vpop.f32.mrb[0].mxu0
    %v4357 = vadd.f32 0.0, %v4356
    %v4358 = vpop.f32.mrb[0].mxu0
    %4359 = vmatprep.mubr.bf16.mxu0 %v2107
    %4360 = vmatmul.mubr.bf16.gmra.mrb[0].mxu0 %v2106
    %v4361 = vpop.f32.mrb[0].mxu0
    %v4362 = vadd.f32 0.0, %v4361
    %v4363 = vpop.f32.mrb[0].mxu0
    %v4364 = vpop.f32.mrb[0].mxu0
    %v4365 = vadd.f32 0.0, %v4364
    %v4366 = vpop.f32.mrb[0].mxu0
    %4367 = vmatprep.mubr.bf16.mxu0 %v2109
    %4368 = vmatmul.mubr.bf16.gmra.mrb[0].mxu0 %v2108
    %v4369 = vpop.f32.mrb[0].mxu0
    %v4370 = vadd.f32 0.0, %v4369
    %v4371 = vpop.f32.mrb[0].mxu0
    %v4372 = vpop.f32.mrb[0].mxu0
    %v4373 = vadd.f32 0.0, %v4372
    %v4374 = vpop.f32.mrb[0].mxu0
    %4375 = vdwg.mxu0
    %s4376 = scalar_lea.vmem [#allocation14], 256
    %v4377 = vld [vmem:[%s4376] sm:$0xff]
    %v4378 = vld [vmem:[%s4376 + $0x8] sm:$0xff]
    %v4379 = vld [vmem:[%s4376 + $0x10] sm:$0xff]
    %v4380 = vld [vmem:[%s4376 + $0x18] sm:$0xff]
    %v4381 = vld [vmem:[%s4376 + $0x20] sm:$0xff]
    %v4382 = vld [vmem:[%s4376 + $0x28] sm:$0xff]
    %v4383 = vld [vmem:[%s4376 + $0x30] sm:$0xff]
    %v4384 = vld [vmem:[%s4376 + $0x38] sm:$0xff]
    %v4385 = vld [vmem:[%s4376 + $0x40] sm:$0xff]
    %v4386 = vld [vmem:[%s4376 + $0x48] sm:$0xff]
    %v4387 = vld [vmem:[%s4376 + $0x50] sm:$0xff]
    %v4388 = vld [vmem:[%s4376 + $0x58] sm:$0xff]
    %v4389 = vld [vmem:[%s4376 + $0x60] sm:$0xff]
    %v4390 = vld [vmem:[%s4376 + $0x68] sm:$0xff]
    %v4391 = vld [vmem:[%s4376 + $0x70] sm:$0xff]
    %v4392 = vld [vmem:[%s4376 + $0x78] sm:$0xff]
    %v4393 = vld [vmem:[%s4376 + $0x80] sm:$0xff]
    %v4394 = vld [vmem:[%s4376 + $0x88] sm:$0xff]
    %v4395 = vld [vmem:[%s4376 + $0x90] sm:$0xff]
    %v4396 = vld [vmem:[%s4376 + $0x98] sm:$0xff]
    %v4397 = vld [vmem:[%s4376 + $0xa0] sm:$0xff]
    %v4398 = vld [vmem:[%s4376 + $0xa8] sm:$0xff]
    %v4399 = vld [vmem:[%s4376 + $0xb0] sm:$0xff]
    %v4400 = vld [vmem:[%s4376 + $0xb8] sm:$0xff]
    %v4401 = vld [vmem:[%s4376 + $0xc0] sm:$0xff]
    %v4402 = vld [vmem:[%s4376 + $0xc8] sm:$0xff]
    %v4403 = vld [vmem:[%s4376 + $0xd0] sm:$0xff]
    %v4404 = vld [vmem:[%s4376 + $0xd8] sm:$0xff]
    %v4405 = vld [vmem:[%s4376 + $0xe0] sm:$0xff]
    %v4406 = vld [vmem:[%s4376 + $0xe8] sm:$0xff]
    %v4407 = vld [vmem:[%s4376 + $0xf0] sm:$0xff]
    %v4408 = vld [vmem:[%s4376 + $0xf8] sm:$0xff]
    %s4409 = scalar_lea.vmem %s11, 1
    %v4410 = vld [vmem:[%s4409] sm:$0x1]
    %v4412 = vlaneseq
    %v4413 = vshrl.u32 %v4412, 7
    %v4414 = vsub.s32 0, %v4413
    %v4415 = vrot.slane %v4410, %v4414
    %4417 = vmatprep.subr.mxu0 0.0
    %4418 = vmatpush1.msra.mxu0 %v4377
    %4419 = vmatprep.subr.mxu0 0.0
    %4420 = vmatpush1.msra.mxu0 %v4378
    %4421 = vmatprep.subr.mxu0 0.0
    %4422 = vmatpush1.msra.mxu0 %v4379
    %4423 = vmatprep.subr.mxu0 0.0
    %4424 = vmatpush1.msra.mxu0 %v4380
    %4425 = vmatprep.subr.mxu0 0.0
    %4426 = vmatpush1.msra.mxu0 %v4381
    %4427 = vmatprep.subr.mxu0 0.0
    %4428 = vmatpush1.msra.mxu0 %v4382
    %4429 = vmatprep.subr.mxu0 0.0
    %4430 = vmatpush1.msra.mxu0 %v4383
    %4431 = vmatprep.subr.mxu0 0.0
    %4432 = vmatpush1.msra.mxu0 %v4384
    %4433 = vmatprep.subr.mxu0 0.0
    %4434 = vmatpush1.msra.mxu0 %v4385
    %4435 = vmatprep.subr.mxu0 0.0
    %4436 = vmatpush1.msra.mxu0 %v4386
    %4437 = vmatprep.subr.mxu0 0.0
    %4438 = vmatpush1.msra.mxu0 %v4387
    %4439 = vmatprep.subr.mxu0 0.0
    %4440 = vmatpush1.msra.mxu0 %v4388
    %4441 = vmatprep.subr.mxu0 0.0
    %4442 = vmatpush1.msra.mxu0 %v4389
    %4443 = vmatprep.subr.mxu0 0.0
    %4444 = vmatpush1.msra.mxu0 %v4390
    %4445 = vmatprep.subr.mxu0 0.0
    %4446 = vmatpush1.msra.mxu0 %v4391
    %4447 = vmatprep.subr.mxu0 0.0
    %4448 = vmatpush1.msra.mxu0 %v4392
    %4449 = vmatprep.subr.mxu0 0.0
    %4450 = vmatpush1.msra.mxu0 %v4393
    %4451 = vmatprep.subr.mxu0 0.0
    %4452 = vmatpush1.msra.mxu0 %v4394
    %4453 = vmatprep.subr.mxu0 0.0
    %4454 = vmatpush1.msra.mxu0 %v4395
    %4455 = vmatprep.subr.mxu0 0.0
    %4456 = vmatpush1.msra.mxu0 %v4396
    %4457 = vmatprep.subr.mxu0 0.0
    %4458 = vmatpush1.msra.mxu0 %v4397
    %4459 = vmatprep.subr.mxu0 0.0
    %4460 = vmatpush1.msra.mxu0 %v4398
    %4461 = vmatprep.subr.mxu0 0.0
    %4462 = vmatpush1.msra.mxu0 %v4399
    %4463 = vmatprep.subr.mxu0 0.0
    %4464 = vmatpush1.msra.mxu0 %v4400
    %4465 = vmatprep.subr.mxu0 0.0
    %4466 = vmatpush1.msra.mxu0 %v4401
    %4467 = vmatprep.subr.mxu0 0.0
    %4468 = vmatpush1.msra.mxu0 %v4402
    %4469 = vmatprep.subr.mxu0 0.0
    %4470 = vmatpush1.msra.mxu0 %v4403
    %4471 = vmatprep.subr.mxu0 0.0
    %4472 = vmatpush1.msra.mxu0 %v4404
    %4473 = vmatprep.subr.mxu0 0.0
    %4474 = vmatpush1.msra.mxu0 %v4405
    %4475 = vmatprep.subr.mxu0 0.0
    %4476 = vmatpush1.msra.mxu0 %v4406
    %4477 = vmatprep.subr.mxu0 0.0
    %4478 = vmatpush1.msra.mxu0 %v4407
    %4479 = vmatprep.subr.mxu0 0.0
    %4480 = vmatpush1.msra.mxu0 %v4408
    %4481 = vmatprep.mubr.f32.mxu0 %v4314
    %4482 = vmatmul.mubr.f32.gmra.mrb[0].mxu0 %v2703
    %v4483 = vpop.f32.mrb[0].mxu0
    %v4484 = vadd.f32 %v4415, %v4483
    %v4485 = vpop.f32.mrb[0].mxu0
    %4486 = vmatprep.mubr.f32.mxu0 %v4317
    %4487 = vmatmul.mubr.f32.gmra.mrb[0].mxu0 %v2704
    %v4488 = vpop.f32.mrb[0].mxu0
    %v4489 = vadd.f32 %v4415, %v4488
    %v4490 = vpop.f32.mrb[0].mxu0
    %4491 = vmatprep.mubr.f32.mxu0 %v4322
    %4492 = vmatmul.mubr.f32.gmra.mrb[0].mxu0 %v2705
    %v4493 = vpop.f32.mrb[0].mxu0
    %v4494 = vadd.f32 %v4415, %v4493
    %v4495 = vpop.f32.mrb[0].mxu0
    %4496 = vmatprep.mubr.f32.mxu0 %v4325
    %4497 = vmatmul.mubr.f32.gmra.mrb[0].mxu0 %v2706
    %v4498 = vpop.f32.mrb[0].mxu0
    %v4499 = vadd.f32 %v4415, %v4498
    %v4500 = vpop.f32.mrb[0].mxu0
    %4501 = vmatprep.mubr.f32.mxu0 %v4330
    %4502 = vmatmul.mubr.f32.gmra.mrb[0].mxu0 %v2707
    %v4503 = vpop.f32.mrb[0].mxu0
    %v4504 = vadd.f32 %v4415, %v4503
    %v4505 = vpop.f32.mrb[0].mxu0
    %4506 = vmatprep.mubr.f32.mxu0 %v4333
    %4507 = vmatmul.mubr.f32.gmra.mrb[0].mxu0 %v2708
    %v4508 = vpop.f32.mrb[0].mxu0
    %v4509 = vadd.f32 %v4415, %v4508
    %v4510 = vpop.f32.mrb[0].mxu0
    %4511 = vmatprep.mubr.f32.mxu0 %v4338
    %4512 = vmatmul.mubr.f32.gmra.mrb[0].mxu0 %v2709
    %v4513 = vpop.f32.mrb[0].mxu0
    %v4514 = vadd.f32 %v4415, %v4513
    %v4515 = vpop.f32.mrb[0].mxu0
    %4516 = vmatprep.mubr.f32.mxu0 %v4341
    %4517 = vmatmul.mubr.f32.gmra.mrb[0].mxu0 %v2710
    %v4518 = vpop.f32.mrb[0].mxu0
    %v4519 = vadd.f32 %v4415, %v4518
    %v4520 = vpop.f32.mrb[0].mxu0
    %4521 = vmatprep.mubr.f32.mxu0 %v4346
    %4522 = vmatmul.mubr.f32.gmra.mrb[0].mxu0 %v2711
    %v4523 = vpop.f32.mrb[0].mxu0
    %v4524 = vadd.f32 %v4415, %v4523
    %v4525 = vpop.f32.mrb[0].mxu0
    %4526 = vmatprep.mubr.f32.mxu0 %v4349
    %4527 = vmatmul.mubr.f32.gmra.mrb[0].mxu0 %v2712
    %v4528 = vpop.f32.mrb[0].mxu0
    %v4529 = vadd.f32 %v4415, %v4528
    %v4530 = vpop.f32.mrb[0].mxu0
    %4531 = vmatprep.mubr.f32.mxu0 %v4354
    %4532 = vmatmul.mubr.f32.gmra.mrb[0].mxu0 %v2713
    %v4533 = vpop.f32.mrb[0].mxu0
    %v4534 = vadd.f32 %v4415, %v4533
    %v4535 = vpop.f32.mrb[0].mxu0
    %4536 = vmatprep.mubr.f32.mxu0 %v4357
    %4537 = vmatmul.mubr.f32.gmra.mrb[0].mxu0 %v2714
    %v4538 = vpop.f32.mrb[0].mxu0
    %v4539 = vadd.f32 %v4415, %v4538
    %v4540 = vpop.f32.mrb[0].mxu0
    %4541 = vmatprep.mubr.f32.mxu0 %v4362
    %4542 = vmatmul.mubr.f32.gmra.mrb[0].mxu0 %v2715
    %v4543 = vpop.f32.mrb[0].mxu0
    %v4544 = vadd.f32 %v4415, %v4543
    %v4545 = vpop.f32.mrb[0].mxu0
    %4546 = vmatprep.mubr.f32.mxu0 %v4365
    %4547 = vmatmul.mubr.f32.gmra.mrb[0].mxu0 %v2716
    %v4548 = vpop.f32.mrb[0].mxu0
    %v4549 = vadd.f32 %v4415, %v4548
    %v4550 = vpop.f32.mrb[0].mxu0
    %4551 = vmatprep.mubr.f32.mxu0 %v4370
    %4552 = vmatmul.mubr.f32.gmra.mrb[0].mxu0 %v2717
    %v4553 = vpop.f32.mrb[0].mxu0
    %v4554 = vadd.f32 %v4415, %v4553
    %v4555 = vpop.f32.mrb[0].mxu0
    %4556 = vmatprep.mubr.f32.mxu0 %v4373
    %4557 = vmatmul.mubr.f32.gmra.mrb[0].mxu0 %v2718
    %v4558 = vpop.f32.mrb[0].mxu0
    %v4559 = vadd.f32 %v4415, %v4558
    %v4560 = vpop.f32.mrb[0].mxu0
    %4561 = vdwg.mxu0
    %v4562 = vxor.u32 %v4484, 2147483648
    %v4563 = vxor.u32 %v4489, 2147483648
    %v4564 = vxor.u32 %v4494, 2147483648
    %v4565 = vxor.u32 %v4499, 2147483648
    %v4566 = vxor.u32 %v4504, 2147483648
    %v4567 = vxor.u32 %v4509, 2147483648
    %v4568 = vxor.u32 %v4514, 2147483648
    %v4569 = vxor.u32 %v4519, 2147483648
    %v4570 = vxor.u32 %v4524, 2147483648
    %v4571 = vxor.u32 %v4529, 2147483648
    %v4572 = vxor.u32 %v4534, 2147483648
    %v4573 = vxor.u32 %v4539, 2147483648
    %v4574 = vxor.u32 %v4544, 2147483648
    %v4575 = vxor.u32 %v4549, 2147483648
    %v4576 = vxor.u32 %v4554, 2147483648
    %v4577 = vxor.u32 %v4559, 2147483648
    %v4578 = vmul.f32 %v4562, 1.442695
    %v4579 = vpow.pop %v4578
    %v4580 = vmul.f32 %v4563, 1.442695
    %v4581 = vpow.pop %v4580
    %v4582 = vmul.f32 %v4564, 1.442695
    %v4583 = vpow.pop %v4582
    %v4584 = vmul.f32 %v4565, 1.442695
    %v4585 = vpow.pop %v4584
    %v4586 = vmul.f32 %v4566, 1.442695
    %v4587 = vpow.pop %v4586
    %v4588 = vmul.f32 %v4567, 1.442695
    %v4589 = vpow.pop %v4588
    %v4590 = vmul.f32 %v4568, 1.442695
    %v4591 = vpow.pop %v4590
    %v4592 = vmul.f32 %v4569, 1.442695
    %v4593 = vpow.pop %v4592
    %v4594 = vmul.f32 %v4570, 1.442695
    %v4595 = vpow.pop %v4594
    %v4596 = vmul.f32 %v4571, 1.442695
    %v4597 = vpow.pop %v4596
    %v4598 = vmul.f32 %v4572, 1.442695
    %v4599 = vpow.pop %v4598
    %v4600 = vmul.f32 %v4573, 1.442695
    %v4601 = vpow.pop %v4600
    %v4602 = vmul.f32 %v4574, 1.442695
    %v4603 = vpow.pop %v4602
    %v4604 = vmul.f32 %v4575, 1.442695
    %v4605 = vpow.pop %v4604
    %v4606 = vmul.f32 %v4576, 1.442695
    %v4607 = vpow.pop %v4606
    %v4608 = vmul.f32 %v4577, 1.442695
    %v4609 = vpow.pop %v4608
    %v4610 = vadd.f32 %v4579, 1.0
    %v4611 = vadd.f32 %v4581, 1.0
    %v4612 = vadd.f32 %v4583, 1.0
    %v4613 = vadd.f32 %v4585, 1.0
    %v4614 = vadd.f32 %v4587, 1.0
    %v4615 = vadd.f32 %v4589, 1.0
    %v4616 = vadd.f32 %v4591, 1.0
    %v4617 = vadd.f32 %v4593, 1.0
    %v4618 = vadd.f32 %v4595, 1.0
    %v4619 = vadd.f32 %v4597, 1.0
    %v4620 = vadd.f32 %v4599, 1.0
    %v4621 = vadd.f32 %v4601, 1.0
    %v4622 = vadd.f32 %v4603, 1.0
    %v4623 = vadd.f32 %v4605, 1.0
    %v4624 = vadd.f32 %v4607, 1.0
    %v4625 = vadd.f32 %v4609, 1.0
    %v4626 = vrcp.pop %v4610
    %v4627 = vmul.f32 1.0, %v4626
    %v4628 = vrcp.pop %v4611
    %v4629 = vmul.f32 1.0, %v4628
    %v4630 = vrcp.pop %v4612
    %v4631 = vmul.f32 1.0, %v4630
    %v4632 = vrcp.pop %v4613
    %v4633 = vmul.f32 1.0, %v4632
    %v4634 = vrcp.pop %v4614
    %v4635 = vmul.f32 1.0, %v4634
    %v4636 = vrcp.pop %v4615
    %v4637 = vmul.f32 1.0, %v4636
    %v4638 = vrcp.pop %v4616
    %v4639 = vmul.f32 1.0, %v4638
    %v4640 = vrcp.pop %v4617
    %v4641 = vmul.f32 1.0, %v4640
    %v4642 = vrcp.pop %v4618
    %v4643 = vmul.f32 1.0, %v4642
    %v4644 = vrcp.pop %v4619
    %v4645 = vmul.f32 1.0, %v4644
    %v4646 = vrcp.pop %v4620
    %v4647 = vmul.f32 1.0, %v4646
    %v4648 = vrcp.pop %v4621
    %v4649 = vmul.f32 1.0, %v4648
    %v4650 = vrcp.pop %v4622
    %v4651 = vmul.f32 1.0, %v4650
    %v4652 = vrcp.pop %v4623
    %v4653 = vmul.f32 1.0, %v4652
    %v4654 = vrcp.pop %v4624
    %v4655 = vmul.f32 1.0, %v4654
    %v4656 = vrcp.pop %v4625
    %v4657 = vmul.f32 1.0, %v4656
    %v4658 = vmul.f32 %v4484, %v4627
    %v4659 = vmul.f32 %v4489, %v4629
    %v4660 = vmul.f32 %v4494, %v4631
    %v4661 = vmul.f32 %v4499, %v4633
    %v4662 = vmul.f32 %v4504, %v4635
    %v4663 = vmul.f32 %v4509, %v4637
    %v4664 = vmul.f32 %v4514, %v4639
    %v4665 = vmul.f32 %v4519, %v4641
    %v4666 = vmul.f32 %v4524, %v4643
    %v4667 = vmul.f32 %v4529, %v4645
    %v4668 = vmul.f32 %v4534, %v4647
    %v4669 = vmul.f32 %v4539, %v4649
    %v4670 = vmul.f32 %v4544, %v4651
    %v4671 = vmul.f32 %v4549, %v4653
    %v4672 = vmul.f32 %v4554, %v4655
    %v4673 = vmul.f32 %v4559, %v4657
    %s4674 = scalar_lea.vmem [#allocation16], 128
    %v4675 = vld [vmem:[%s4674] sm:$0xff]
    %v4676 = vld [vmem:[%s4674 + $0x8] sm:$0xff]
    %v4677 = vld [vmem:[%s4674 + $0x10] sm:$0xff]
    %v4678 = vld [vmem:[%s4674 + $0x18] sm:$0xff]
    %v4679 = vld [vmem:[%s4674 + $0x20] sm:$0xff]
    %v4680 = vld [vmem:[%s4674 + $0x28] sm:$0xff]
    %v4681 = vld [vmem:[%s4674 + $0x30] sm:$0xff]
    %v4682 = vld [vmem:[%s4674 + $0x38] sm:$0xff]
    %v4683 = vld [vmem:[%s4674 + $0x40] sm:$0xff]
    %v4684 = vld [vmem:[%s4674 + $0x48] sm:$0xff]
    %v4685 = vld [vmem:[%s4674 + $0x50] sm:$0xff]
    %v4686 = vld [vmem:[%s4674 + $0x58] sm:$0xff]
    %v4687 = vld [vmem:[%s4674 + $0x60] sm:$0xff]
    %v4688 = vld [vmem:[%s4674 + $0x68] sm:$0xff]
    %v4689 = vld [vmem:[%s4674 + $0x70] sm:$0xff]
    %v4690 = vld [vmem:[%s4674 + $0x78] sm:$0xff]
    %4691 = vmatprep.subr.mxu0 0.0
    %4692 = vmatpush1.msra.mxu0 %v4675
    %4693 = vmatprep.subr.mxu0 0.0
    %4694 = vmatpush1.msra.mxu0 %v4676
    %4695 = vmatprep.subr.mxu0 0.0
    %4696 = vmatpush1.msra.mxu0 %v4677
    %4697 = vmatprep.subr.mxu0 0.0
    %4698 = vmatpush1.msra.mxu0 %v4678
    %4699 = vmatprep.subr.mxu0 0.0
    %4700 = vmatpush1.msra.mxu0 %v4679
    %4701 = vmatprep.subr.mxu0 0.0
    %4702 = vmatpush1.msra.mxu0 %v4680
    %4703 = vmatprep.subr.mxu0 0.0
    %4704 = vmatpush1.msra.mxu0 %v4681
    %4705 = vmatprep.subr.mxu0 0.0
    %4706 = vmatpush1.msra.mxu0 %v4682
    %4707 = vmatprep.subr.mxu0 0.0
    %4708 = vmatpush1.msra.mxu0 %v4683
    %4709 = vmatprep.subr.mxu0 0.0
    %4710 = vmatpush1.msra.mxu0 %v4684
    %4711 = vmatprep.subr.mxu0 0.0
    %4712 = vmatpush1.msra.mxu0 %v4685
    %4713 = vmatprep.subr.mxu0 0.0
    %4714 = vmatpush1.msra.mxu0 %v4686
    %4715 = vmatprep.subr.mxu0 0.0
    %4716 = vmatpush1.msra.mxu0 %v4687
    %4717 = vmatprep.subr.mxu0 0.0
    %4718 = vmatpush1.msra.mxu0 %v4688
    %4719 = vmatprep.subr.mxu0 0.0
    %4720 = vmatpush1.msra.mxu0 %v4689
    %4721 = vmatprep.subr.mxu0 0.0
    %4722 = vmatpush1.msra.mxu0 %v4690
    %4723 = vmatprep.subr.mxu0 0.0
    %4724 = vmatpush1.msra.mxu0 0.0
    %4725 = vmatprep.subr.mxu0 0.0
    %4726 = vmatpush1.msra.mxu0 0.0
    %4727 = vmatprep.subr.mxu0 0.0
    %4728 = vmatpush1.msra.mxu0 0.0
    %4729 = vmatprep.subr.mxu0 0.0
    %4730 = vmatpush1.msra.mxu0 0.0
    %4731 = vmatprep.subr.mxu0 0.0
    %4732 = vmatpush1.msra.mxu0 0.0
    %4733 = vmatprep.subr.mxu0 0.0
    %4734 = vmatpush1.msra.mxu0 0.0
    %4735 = vmatprep.subr.mxu0 0.0
    %4736 = vmatpush1.msra.mxu0 0.0
    %4737 = vmatprep.subr.mxu0 0.0
    %4738 = vmatpush1.msra.mxu0 0.0
    %4739 = vmatprep.subr.mxu0 0.0
    %4740 = vmatpush1.msra.mxu0 0.0
    %4741 = vmatprep.subr.mxu0 0.0
    %4742 = vmatpush1.msra.mxu0 0.0
    %4743 = vmatprep.subr.mxu0 0.0
    %4744 = vmatpush1.msra.mxu0 0.0
    %4745 = vmatprep.subr.mxu0 0.0
    %4746 = vmatpush1.msra.mxu0 0.0
    %4747 = vmatprep.subr.mxu0 0.0
    %4748 = vmatpush1.msra.mxu0 0.0
    %4749 = vmatprep.subr.mxu0 0.0
    %4750 = vmatpush1.msra.mxu0 0.0
    %4751 = vmatprep.subr.mxu0 0.0
    %4752 = vmatpush1.msra.mxu0 0.0
    %4753 = vmatprep.subr.mxu0 0.0
    %4754 = vmatpush1.msra.mxu0 0.0
    %4755 = vmatprep.mubr.f32.mxu0 0.0
    %4756 = vmatmul.mubr.f32.gmra.mrb[0].mxu0 %v4658
    %v4757 = vpop.f32.mrb[0].mxu0
    %v4758 = vadd.f32 0.0, %v4757
    %v4759 = vpop.f32.mrb[0].mxu0
    %4760 = vmatprep.mubr.f32.mxu0 0.0
    %4761 = vmatmul.mubr.f32.gmra.mrb[0].mxu0 %v4659
    %v4762 = vpop.f32.mrb[0].mxu0
    %v4763 = vadd.f32 0.0, %v4762
    %v4764 = vpop.f32.mrb[0].mxu0
    %4765 = vmatprep.mubr.f32.mxu0 0.0
    %4766 = vmatmul.mubr.f32.gmra.mrb[0].mxu0 %v4660
    %v4767 = vpop.f32.mrb[0].mxu0
    %v4768 = vadd.f32 0.0, %v4767
    %v4769 = vpop.f32.mrb[0].mxu0
    %4770 = vmatprep.mubr.f32.mxu0 0.0
    %4771 = vmatmul.mubr.f32.gmra.mrb[0].mxu0 %v4661
    %v4772 = vpop.f32.mrb[0].mxu0
    %v4773 = vadd.f32 0.0, %v4772
    %v4774 = vpop.f32.mrb[0].mxu0
    %4775 = vmatprep.mubr.f32.mxu0 0.0
    %4776 = vmatmul.mubr.f32.gmra.mrb[0].mxu0 %v4662
    %v4777 = vpop.f32.mrb[0].mxu0
    %v4778 = vadd.f32 0.0, %v4777
    %v4779 = vpop.f32.mrb[0].mxu0
    %4780 = vmatprep.mubr.f32.mxu0 0.0
    %4781 = vmatmul.mubr.f32.gmra.mrb[0].mxu0 %v4663
    %v4782 = vpop.f32.mrb[0].mxu0
    %v4783 = vadd.f32 0.0, %v4782
    %v4784 = vpop.f32.mrb[0].mxu0
    %4785 = vmatprep.mubr.f32.mxu0 0.0
    %4786 = vmatmul.mubr.f32.gmra.mrb[0].mxu0 %v4664
    %v4787 = vpop.f32.mrb[0].mxu0
    %v4788 = vadd.f32 0.0, %v4787
    %v4789 = vpop.f32.mrb[0].mxu0
    %4790 = vmatprep.mubr.f32.mxu0 0.0
    %4791 = vmatmul.mubr.f32.gmra.mrb[0].mxu0 %v4665
    %v4792 = vpop.f32.mrb[0].mxu0
    %v4793 = vadd.f32 0.0, %v4792
    %v4794 = vpop.f32.mrb[0].mxu0
    %4795 = vmatprep.mubr.f32.mxu0 0.0
    %4796 = vmatmul.mubr.f32.gmra.mrb[0].mxu0 %v4666
    %v4797 = vpop.f32.mrb[0].mxu0
    %v4798 = vadd.f32 0.0, %v4797
    %v4799 = vpop.f32.mrb[0].mxu0
    %4800 = vmatprep.mubr.f32.mxu0 0.0
    %4801 = vmatmul.mubr.f32.gmra.mrb[0].mxu0 %v4667
    %v4802 = vpop.f32.mrb[0].mxu0
    %v4803 = vadd.f32 0.0, %v4802
    %v4804 = vpop.f32.mrb[0].mxu0
    %4805 = vmatprep.mubr.f32.mxu0 0.0
    %4806 = vmatmul.mubr.f32.gmra.mrb[0].mxu0 %v4668
    %v4807 = vpop.f32.mrb[0].mxu0
    %v4808 = vadd.f32 0.0, %v4807
    %v4809 = vpop.f32.mrb[0].mxu0
    %4810 = vmatprep.mubr.f32.mxu0 0.0
    %4811 = vmatmul.mubr.f32.gmra.mrb[0].mxu0 %v4669
    %v4812 = vpop.f32.mrb[0].mxu0
    %v4813 = vadd.f32 0.0, %v4812
    %v4814 = vpop.f32.mrb[0].mxu0
    %4815 = vmatprep.mubr.f32.mxu0 0.0
    %4816 = vmatmul.mubr.f32.gmra.mrb[0].mxu0 %v4670
    %v4817 = vpop.f32.mrb[0].mxu0
    %v4818 = vadd.f32 0.0, %v4817
    %v4819 = vpop.f32.mrb[0].mxu0
    %4820 = vmatprep.mubr.f32.mxu0 0.0
    %4821 = vmatmul.mubr.f32.gmra.mrb[0].mxu0 %v4671
    %v4822 = vpop.f32.mrb[0].mxu0
    %v4823 = vadd.f32 0.0, %v4822
    %v4824 = vpop.f32.mrb[0].mxu0
    %4825 = vmatprep.mubr.f32.mxu0 0.0
    %4826 = vmatmul.mubr.f32.gmra.mrb[0].mxu0 %v4672
    %v4827 = vpop.f32.mrb[0].mxu0
    %v4828 = vadd.f32 0.0, %v4827
    %v4829 = vpop.f32.mrb[0].mxu0
    %4830 = vmatprep.mubr.f32.mxu0 0.0
    %4831 = vmatmul.mubr.f32.gmra.mrb[0].mxu0 %v4673
    %v4832 = vpop.f32.mrb[0].mxu0
    %v4833 = vadd.f32 0.0, %v4832
    %v4834 = vpop.f32.mrb[0].mxu0
    %4835 = vdwg.mxu0
    %v4836 = vadd.f32 %v2703, %v4758
    %v4837 = vadd.f32 %v2704, %v4763
    %v4838 = vadd.f32 %v2705, %v4768
    %v4839 = vadd.f32 %v2706, %v4773
    %v4840 = vadd.f32 %v2707, %v4778
    %v4841 = vadd.f32 %v2708, %v4783
    %v4842 = vadd.f32 %v2709, %v4788
    %v4843 = vadd.f32 %v2710, %v4793
    %v4844 = vadd.f32 %v2711, %v4798
    %v4845 = vadd.f32 %v2712, %v4803
    %v4846 = vadd.f32 %v2713, %v4808
    %v4847 = vadd.f32 %v2714, %v4813
    %v4848 = vadd.f32 %v2715, %v4818
    %v4849 = vadd.f32 %v2716, %v4823
    %v4850 = vadd.f32 %v2717, %v4828
    %v4851 = vadd.f32 %v2718, %v4833
    %s4852 = scalar_lea.vmem %s13, 1
    %v4853 = vld [vmem:[%s4852] sm:$0x1]
    %v4855 = vlaneseq
    %v4856 = vshrl.u32 %v4855, 7
    %v4857 = vsub.s32 0, %v4856
    %v4858 = vrot.slane %v4853, %v4857
    %v4860 = vadd.f32 %v4836, %v4858
    %v4861 = vadd.f32 %v4837, %v4858
    %v4862 = vadd.f32 %v4838, %v4858
    %v4863 = vadd.f32 %v4839, %v4858
    %v4864 = vadd.f32 %v4840, %v4858
    %v4865 = vadd.f32 %v4841, %v4858
    %v4866 = vadd.f32 %v4842, %v4858
    %v4867 = vadd.f32 %v4843, %v4858
    %v4868 = vadd.f32 %v4844, %v4858
    %v4869 = vadd.f32 %v4845, %v4858
    %v4870 = vadd.f32 %v4846, %v4858
    %v4871 = vadd.f32 %v4847, %v4858
    %v4872 = vadd.f32 %v4848, %v4858
    %v4873 = vadd.f32 %v4849, %v4858
    %v4874 = vadd.f32 %v4850, %v4858
    %v4875 = vadd.f32 %v4851, %v4858
    %s4876 = scalar_lea.vmem [#allocation10], 512
    %v4877 = vld [vmem:[%s4876] sm:$0xff]
    %v4878 = vld [vmem:[%s4876 + $0x8] sm:$0xff]
    %v4879 = vld [vmem:[%s4876 + $0x10] sm:$0xff]
    %v4880 = vld [vmem:[%s4876 + $0x18] sm:$0xff]
    %v4881 = vld [vmem:[%s4876 + $0x20] sm:$0xff]
    %v4882 = vld [vmem:[%s4876 + $0x28] sm:$0xff]
    %v4883 = vld [vmem:[%s4876 + $0x30] sm:$0xff]
    %v4884 = vld [vmem:[%s4876 + $0x38] sm:$0xff]
    %v4885 = vld [vmem:[%s4876 + $0x40] sm:$0xff]
    %v4886 = vld [vmem:[%s4876 + $0x48] sm:$0xff]
    %v4887 = vld [vmem:[%s4876 + $0x50] sm:$0xff]
    %v4888 = vld [vmem:[%s4876 + $0x58] sm:$0xff]
    %v4889 = vld [vmem:[%s4876 + $0x60] sm:$0xff]
    %v4890 = vld [vmem:[%s4876 + $0x68] sm:$0xff]
    %v4891 = vld [vmem:[%s4876 + $0x70] sm:$0xff]
    %v4892 = vld [vmem:[%s4876 + $0x78] sm:$0xff]
    %v4893 = vld [vmem:[%s4876 + $0x80] sm:$0xff]
    %v4894 = vld [vmem:[%s4876 + $0x88] sm:$0xff]
    %v4895 = vld [vmem:[%s4876 + $0x90] sm:$0xff]
    %v4896 = vld [vmem:[%s4876 + $0x98] sm:$0xff]
    %v4897 = vld [vmem:[%s4876 + $0xa0] sm:$0xff]
    %v4898 = vld [vmem:[%s4876 + $0xa8] sm:$0xff]
    %v4899 = vld [vmem:[%s4876 + $0xb0] sm:$0xff]
    %v4900 = vld [vmem:[%s4876 + $0xb8] sm:$0xff]
    %v4901 = vld [vmem:[%s4876 + $0xc0] sm:$0xff]
    %v4902 = vld [vmem:[%s4876 + $0xc8] sm:$0xff]
    %v4903 = vld [vmem:[%s4876 + $0xd0] sm:$0xff]
    %v4904 = vld [vmem:[%s4876 + $0xd8] sm:$0xff]
    %v4905 = vld [vmem:[%s4876 + $0xe0] sm:$0xff]
    %v4906 = vld [vmem:[%s4876 + $0xe8] sm:$0xff]
    %v4907 = vld [vmem:[%s4876 + $0xf0] sm:$0xff]
    %v4908 = vld [vmem:[%s4876 + $0xf8] sm:$0xff]
    %4909 = vmatprep.subr.mxu0 %v4878
    %4910 = vmatpush1.msra.mxu0 %v4877
    %4911 = vmatprep.subr.mxu0 %v4880
    %4912 = vmatpush1.msra.mxu0 %v4879
    %4913 = vmatprep.subr.mxu0 %v4882
    %4914 = vmatpush1.msra.mxu0 %v4881
    %4915 = vmatprep.subr.mxu0 %v4884
    %4916 = vmatpush1.msra.mxu0 %v4883
    %4917 = vmatprep.subr.mxu0 %v4886
    %4918 = vmatpush1.msra.mxu0 %v4885
    %4919 = vmatprep.subr.mxu0 %v4888
    %4920 = vmatpush1.msra.mxu0 %v4887
    %4921 = vmatprep.subr.mxu0 %v4890
    %4922 = vmatpush1.msra.mxu0 %v4889
    %4923 = vmatprep.subr.mxu0 %v4892
    %4924 = vmatpush1.msra.mxu0 %v4891
    %4925 = vmatprep.subr.mxu0 %v4894
    %4926 = vmatpush1.msra.mxu0 %v4893
    %4927 = vmatprep.subr.mxu0 %v4896
    %4928 = vmatpush1.msra.mxu0 %v4895
    %4929 = vmatprep.subr.mxu0 %v4898
    %4930 = vmatpush1.msra.mxu0 %v4897
    %4931 = vmatprep.subr.mxu0 %v4900
    %4932 = vmatpush1.msra.mxu0 %v4899
    %4933 = vmatprep.subr.mxu0 %v4902
    %4934 = vmatpush1.msra.mxu0 %v4901
    %4935 = vmatprep.subr.mxu0 %v4904
    %4936 = vmatpush1.msra.mxu0 %v4903
    %4937 = vmatprep.subr.mxu0 %v4906
    %4938 = vmatpush1.msra.mxu0 %v4905
    %4939 = vmatprep.subr.mxu0 %v4908
    %4940 = vmatpush1.msra.mxu0 %v4907
    %4941 = vmatprep.subr.mxu0 0.0
    %4942 = vmatpush1.msra.mxu0 0.0
    %4943 = vmatprep.subr.mxu0 0.0
    %4944 = vmatpush1.msra.mxu0 0.0
    %4945 = vmatprep.subr.mxu0 0.0
    %4946 = vmatpush1.msra.mxu0 0.0
    %4947 = vmatprep.subr.mxu0 0.0
    %4948 = vmatpush1.msra.mxu0 0.0
    %4949 = vmatprep.subr.mxu0 0.0
    %4950 = vmatpush1.msra.mxu0 0.0
    %4951 = vmatprep.subr.mxu0 0.0
    %4952 = vmatpush1.msra.mxu0 0.0
    %4953 = vmatprep.subr.mxu0 0.0
    %4954 = vmatpush1.msra.mxu0 0.0
    %4955 = vmatprep.subr.mxu0 0.0
    %4956 = vmatpush1.msra.mxu0 0.0
    %4957 = vmatprep.subr.mxu0 0.0
    %4958 = vmatpush1.msra.mxu0 0.0
    %4959 = vmatprep.subr.mxu0 0.0
    %4960 = vmatpush1.msra.mxu0 0.0
    %4961 = vmatprep.subr.mxu0 0.0
    %4962 = vmatpush1.msra.mxu0 0.0
    %4963 = vmatprep.subr.mxu0 0.0
    %4964 = vmatpush1.msra.mxu0 0.0
    %4965 = vmatprep.subr.mxu0 0.0
    %4966 = vmatpush1.msra.mxu0 0.0
    %4967 = vmatprep.subr.mxu0 0.0
    %4968 = vmatpush1.msra.mxu0 0.0
    %4969 = vmatprep.subr.mxu0 0.0
    %4970 = vmatpush1.msra.mxu0 0.0
    %4971 = vmatprep.subr.mxu0 0.0
    %4972 = vmatpush1.msra.mxu0 0.0
    %4973 = vmatprep.mubr.f32.mxu0 0.0
    %4974 = vmatmul.mubr.f32.gmra.mrb[0].mxu0 %v4860
    %v4975 = vpop.f32.mrb[0].mxu0
    %v4976 = vadd.f32 0.0, %v4975
    %v4977 = vpop.f32.mrb[0].mxu0
    %v4978 = vadd.f32 0.0, %v4977
    %4979 = vmatprep.mubr.f32.mxu0 0.0
    %4980 = vmatmul.mubr.f32.gmra.mrb[0].mxu0 %v4861
    %v4981 = vpop.f32.mrb[0].mxu0
    %v4982 = vadd.f32 0.0, %v4981
    %v4983 = vpop.f32.mrb[0].mxu0
    %v4984 = vadd.f32 0.0, %v4983
    %4985 = vmatprep.mubr.f32.mxu0 0.0
    %4986 = vmatmul.mubr.f32.gmra.mrb[0].mxu0 %v4862
    %v4987 = vpop.f32.mrb[0].mxu0
    %v4988 = vadd.f32 0.0, %v4987
    %v4989 = vpop.f32.mrb[0].mxu0
    %v4990 = vadd.f32 0.0, %v4989
    %4991 = vmatprep.mubr.f32.mxu0 0.0
    %4992 = vmatmul.mubr.f32.gmra.mrb[0].mxu0 %v4863
    %v4993 = vpop.f32.mrb[0].mxu0
    %v4994 = vadd.f32 0.0, %v4993
    %v4995 = vpop.f32.mrb[0].mxu0
    %v4996 = vadd.f32 0.0, %v4995
    %4997 = vmatprep.mubr.f32.mxu0 0.0
    %4998 = vmatmul.mubr.f32.gmra.mrb[0].mxu0 %v4864
    %v4999 = vpop.f32.mrb[0].mxu0
    %v5000 = vadd.f32 0.0, %v4999
    %v5001 = vpop.f32.mrb[0].mxu0
    %v5002 = vadd.f32 0.0, %v5001
    %5003 = vmatprep.mubr.f32.mxu0 0.0
    %5004 = vmatmul.mubr.f32.gmra.mrb[0].mxu0 %v4865
    %v5005 = vpop.f32.mrb[0].mxu0
    %v5006 = vadd.f32 0.0, %v5005
    %v5007 = vpop.f32.mrb[0].mxu0
    %v5008 = vadd.f32 0.0, %v5007
    %5009 = vmatprep.mubr.f32.mxu0 0.0
    %5010 = vmatmul.mubr.f32.gmra.mrb[0].mxu0 %v4866
    %v5011 = vpop.f32.mrb[0].mxu0
    %v5012 = vadd.f32 0.0, %v5011
    %v5013 = vpop.f32.mrb[0].mxu0
    %v5014 = vadd.f32 0.0, %v5013
    %5015 = vmatprep.mubr.f32.mxu0 0.0
    %5016 = vmatmul.mubr.f32.gmra.mrb[0].mxu0 %v4867
    %v5017 = vpop.f32.mrb[0].mxu0
    %v5018 = vadd.f32 0.0, %v5017
    %v5019 = vpop.f32.mrb[0].mxu0
    %v5020 = vadd.f32 0.0, %v5019
    %5021 = vmatprep.mubr.f32.mxu0 0.0
    %5022 = vmatmul.mubr.f32.gmra.mrb[0].mxu0 %v4868
    %v5023 = vpop.f32.mrb[0].mxu0
    %v5024 = vadd.f32 0.0, %v5023
    %v5025 = vpop.f32.mrb[0].mxu0
    %v5026 = vadd.f32 0.0, %v5025
    %5027 = vmatprep.mubr.f32.mxu0 0.0
    %5028 = vmatmul.mubr.f32.gmra.mrb[0].mxu0 %v4869
    %v5029 = vpop.f32.mrb[0].mxu0
    %v5030 = vadd.f32 0.0, %v5029
    %v5031 = vpop.f32.mrb[0].mxu0
    %v5032 = vadd.f32 0.0, %v5031
    %5033 = vmatprep.mubr.f32.mxu0 0.0
    %5034 = vmatmul.mubr.f32.gmra.mrb[0].mxu0 %v4870
    %v5035 = vpop.f32.mrb[0].mxu0
    %v5036 = vadd.f32 0.0, %v5035
    %v5037 = vpop.f32.mrb[0].mxu0
    %v5038 = vadd.f32 0.0, %v5037
    %5039 = vmatprep.mubr.f32.mxu0 0.0
    %5040 = vmatmul.mubr.f32.gmra.mrb[0].mxu0 %v4871
    %v5041 = vpop.f32.mrb[0].mxu0
    %v5042 = vadd.f32 0.0, %v5041
    %v5043 = vpop.f32.mrb[0].mxu0
    %v5044 = vadd.f32 0.0, %v5043
    %5045 = vmatprep.mubr.f32.mxu0 0.0
    %5046 = vmatmul.mubr.f32.gmra.mrb[0].mxu0 %v4872
    %v5047 = vpop.f32.mrb[0].mxu0
    %v5048 = vadd.f32 0.0, %v5047
    %v5049 = vpop.f32.mrb[0].mxu0
    %v5050 = vadd.f32 0.0, %v5049
    %5051 = vmatprep.mubr.f32.mxu0 0.0
    %5052 = vmatmul.mubr.f32.gmra.mrb[0].mxu0 %v4873
    %v5053 = vpop.f32.mrb[0].mxu0
    %v5054 = vadd.f32 0.0, %v5053
    %v5055 = vpop.f32.mrb[0].mxu0
    %v5056 = vadd.f32 0.0, %v5055
    %5057 = vmatprep.mubr.f32.mxu0 0.0
    %5058 = vmatmul.mubr.f32.gmra.mrb[0].mxu0 %v4874
    %v5059 = vpop.f32.mrb[0].mxu0
    %v5060 = vadd.f32 0.0, %v5059
    %v5061 = vpop.f32.mrb[0].mxu0
    %v5062 = vadd.f32 0.0, %v5061
    %5063 = vmatprep.mubr.f32.mxu0 0.0
    %5064 = vmatmul.mubr.f32.gmra.mrb[0].mxu0 %v4875
    %v5065 = vpop.f32.mrb[0].mxu0
    %v5066 = vadd.f32 0.0, %v5065
    %v5067 = vpop.f32.mrb[0].mxu0
    %v5068 = vadd.f32 0.0, %v5067
    %5069 = vdwg.mxu0
    %v5070 = vpack.c.bf16 %v4982, %v4976
    %v5071 = vpack.c.bf16 %v4984, %v4978
    %v5072 = vpack.c.bf16 %v4994, %v4988
    %v5073 = vpack.c.bf16 %v4996, %v4990
    %v5074 = vpack.c.bf16 %v5006, %v5000
    %v5075 = vpack.c.bf16 %v5008, %v5002
    %v5076 = vpack.c.bf16 %v5018, %v5012
    %v5077 = vpack.c.bf16 %v5020, %v5014
    %v5078 = vpack.c.bf16 %v5030, %v5024
    %v5079 = vpack.c.bf16 %v5032, %v5026
    %v5080 = vpack.c.bf16 %v5042, %v5036
    %v5081 = vpack.c.bf16 %v5044, %v5038
    %v5082 = vpack.c.bf16 %v5054, %v5048
    %v5083 = vpack.c.bf16 %v5056, %v5050
    %v5084 = vpack.c.bf16 %v5066, %v5060
    %v5085 = vpack.c.bf16 %v5068, %v5062
    %5086 = vmatprep.subr.bf16.mxu0 0
    %5087 = vmatpush1.bf16.msra.mxu0 %v5071
    %5088 = vmatprep.subr.bf16.mxu0 0
    %5089 = vmatpush1.bf16.msra.mxu0 %v5073
    %5090 = vmatprep.subr.bf16.mxu0 0
    %5091 = vmatpush1.bf16.msra.mxu0 %v5075
    %5092 = vmatprep.subr.bf16.mxu0 0
    %5093 = vmatpush1.bf16.msra.mxu0 %v5077
    %5094 = vmatprep.subr.bf16.mxu0 0
    %5095 = vmatpush1.bf16.msra.mxu0 %v5079
    %5096 = vmatprep.subr.bf16.mxu0 0
    %5097 = vmatpush1.bf16.msra.mxu0 %v5081
    %5098 = vmatprep.subr.bf16.mxu0 0
    %5099 = vmatpush1.bf16.msra.mxu0 %v5083
    %5100 = vmatprep.subr.bf16.mxu0 0
    %5101 = vmatpush1.bf16.msra.mxu0 %v5085
    %5102 = vmatprep.subr.bf16.mxu0 0
    %5103 = vmatpush1.bf16.msra.mxu0 0
    %5104 = vmatprep.subr.bf16.mxu0 0
    %5105 = vmatpush1.bf16.msra.mxu0 0
    %5106 = vmatprep.subr.bf16.mxu0 0
    %5107 = vmatpush1.bf16.msra.mxu0 0
    %5108 = vmatprep.subr.bf16.mxu0 0
    %5109 = vmatpush1.bf16.msra.mxu0 0
    %5110 = vmatprep.subr.bf16.mxu0 0
    %5111 = vmatpush1.bf16.msra.mxu0 0
    %5112 = vmatprep.subr.bf16.mxu0 0
    %5113 = vmatpush1.bf16.msra.mxu0 0
    %5114 = vmatprep.subr.bf16.mxu0 0
    %5115 = vmatpush1.bf16.msra.mxu0 0
    %5116 = vmatprep.subr.bf16.mxu0 0
    %5117 = vmatpush1.bf16.msra.mxu0 0
    %5118 = vmatprep.mubr.bf16.mxu0 0
    %5119 = vmatmul.mubr.bf16.gmra.mrb[0].mxu0 %v572
    %v5120 = vpop.f32.mrb[0].mxu0
    %v5121 = vadd.f32 0.0, %v5120
    %v5122 = vpop.f32.mrb[0].mxu0
    %v5123 = vpop.f32.mrb[0].mxu0
    %v5124 = vadd.f32 0.0, %v5123
    %v5125 = vpop.f32.mrb[0].mxu0
    %5126 = vmatprep.mubr.bf16.mxu0 0
    %5127 = vmatmul.mubr.bf16.gmra.mrb[0].mxu0 %v573
    %v5128 = vpop.f32.mrb[0].mxu0
    %v5129 = vadd.f32 0.0, %v5128
    %v5130 = vpop.f32.mrb[0].mxu0
    %v5131 = vpop.f32.mrb[0].mxu0
    %v5132 = vadd.f32 0.0, %v5131
    %v5133 = vpop.f32.mrb[0].mxu0
    %5134 = vmatprep.mubr.bf16.mxu0 0
    %5135 = vmatmul.mubr.bf16.gmra.mrb[0].mxu0 %v574
    %v5136 = vpop.f32.mrb[0].mxu0
    %v5137 = vadd.f32 0.0, %v5136
    %v5138 = vpop.f32.mrb[0].mxu0
    %v5139 = vpop.f32.mrb[0].mxu0
    %v5140 = vadd.f32 0.0, %v5139
    %v5141 = vpop.f32.mrb[0].mxu0
    %5142 = vmatprep.mubr.bf16.mxu0 0
    %5143 = vmatmul.mubr.bf16.gmra.mrb[0].mxu0 %v575
    %v5144 = vpop.f32.mrb[0].mxu0
    %v5145 = vadd.f32 0.0, %v5144
    %v5146 = vpop.f32.mrb[0].mxu0
    %v5147 = vpop.f32.mrb[0].mxu0
    %v5148 = vadd.f32 0.0, %v5147
    %v5149 = vpop.f32.mrb[0].mxu0
    %5150 = vmatprep.mubr.bf16.mxu0 0
    %5151 = vmatmul.mubr.bf16.gmra.mrb[0].mxu0 %v576
    %v5152 = vpop.f32.mrb[0].mxu0
    %v5153 = vadd.f32 0.0, %v5152
    %v5154 = vpop.f32.mrb[0].mxu0
    %v5155 = vpop.f32.mrb[0].mxu0
    %v5156 = vadd.f32 0.0, %v5155
    %v5157 = vpop.f32.mrb[0].mxu0
    %5158 = vmatprep.mubr.bf16.mxu0 0
    %5159 = vmatmul.mubr.bf16.gmra.mrb[0].mxu0 %v577
    %v5160 = vpop.f32.mrb[0].mxu0
    %v5161 = vadd.f32 0.0, %v5160
    %v5162 = vpop.f32.mrb[0].mxu0
    %v5163 = vpop.f32.mrb[0].mxu0
    %v5164 = vadd.f32 0.0, %v5163
    %v5165 = vpop.f32.mrb[0].mxu0
    %5166 = vmatprep.mubr.bf16.mxu0 0
    %5167 = vmatmul.mubr.bf16.gmra.mrb[0].mxu0 %v578
    %v5168 = vpop.f32.mrb[0].mxu0
    %v5169 = vadd.f32 0.0, %v5168
    %v5170 = vpop.f32.mrb[0].mxu0
    %v5171 = vpop.f32.mrb[0].mxu0
    %v5172 = vadd.f32 0.0, %v5171
    %v5173 = vpop.f32.mrb[0].mxu0
    %5174 = vmatprep.mubr.bf16.mxu0 0
    %5175 = vmatmul.mubr.bf16.gmra.mrb[0].mxu0 %v579
    %v5176 = vpop.f32.mrb[0].mxu0
    %v5177 = vadd.f32 0.0, %v5176
    %v5178 = vpop.f32.mrb[0].mxu0
    %v5179 = vpop.f32.mrb[0].mxu0
    %v5180 = vadd.f32 0.0, %v5179
    %v5181 = vpop.f32.mrb[0].mxu0
    %5182 = vmatprep.mubr.bf16.mxu0 0
    %5183 = vmatmul.mubr.bf16.gmra.mrb[0].mxu0 %v580
    %v5184 = vpop.f32.mrb[0].mxu0
    %v5185 = vadd.f32 0.0, %v5184
    %v5186 = vpop.f32.mrb[0].mxu0
    %v5187 = vpop.f32.mrb[0].mxu0
    %v5188 = vadd.f32 0.0, %v5187
    %v5189 = vpop.f32.mrb[0].mxu0
    %5190 = vmatprep.mubr.bf16.mxu0 0
    %5191 = vmatmul.mubr.bf16.gmra.mrb[0].mxu0 %v581
    %v5192 = vpop.f32.mrb[0].mxu0
    %v5193 = vadd.f32 0.0, %v5192
    %v5194 = vpop.f32.mrb[0].mxu0
    %v5195 = vpop.f32.mrb[0].mxu0
    %v5196 = vadd.f32 0.0, %v5195
    %v5197 = vpop.f32.mrb[0].mxu0
    %5198 = vmatprep.mubr.bf16.mxu0 0
    %5199 = vmatmul.mubr.bf16.gmra.mrb[0].mxu0 %v582
    %v5200 = vpop.f32.mrb[0].mxu0
    %v5201 = vadd.f32 0.0, %v5200
    %v5202 = vpop.f32.mrb[0].mxu0
    %v5203 = vpop.f32.mrb[0].mxu0
    %v5204 = vadd.f32 0.0, %v5203
    %v5205 = vpop.f32.mrb[0].mxu0
    %5206 = vmatprep.mubr.bf16.mxu0 0
    %5207 = vmatmul.mubr.bf16.gmra.mrb[0].mxu0 %v583
    %v5208 = vpop.f32.mrb[0].mxu0
    %v5209 = vadd.f32 0.0, %v5208
    %v5210 = vpop.f32.mrb[0].mxu0
    %v5211 = vpop.f32.mrb[0].mxu0
    %v5212 = vadd.f32 0.0, %v5211
    %v5213 = vpop.f32.mrb[0].mxu0
    %5214 = vmatprep.mubr.bf16.mxu0 0
    %5215 = vmatmul.mubr.bf16.gmra.mrb[0].mxu0 %v584
    %v5216 = vpop.f32.mrb[0].mxu0
    %v5217 = vadd.f32 0.0, %v5216
    %v5218 = vpop.f32.mrb[0].mxu0
    %v5219 = vpop.f32.mrb[0].mxu0
    %v5220 = vadd.f32 0.0, %v5219
    %v5221 = vpop.f32.mrb[0].mxu0
    %5222 = vmatprep.mubr.bf16.mxu0 0
    %5223 = vmatmul.mubr.bf16.gmra.mrb[0].mxu0 %v585
    %v5224 = vpop.f32.mrb[0].mxu0
    %v5225 = vadd.f32 0.0, %v5224
    %v5226 = vpop.f32.mrb[0].mxu0
    %v5227 = vpop.f32.mrb[0].mxu0
    %v5228 = vadd.f32 0.0, %v5227
    %v5229 = vpop.f32.mrb[0].mxu0
    %5230 = vmatprep.mubr.bf16.mxu0 0
    %5231 = vmatmul.mubr.bf16.gmra.mrb[0].mxu0 %v586
    %v5232 = vpop.f32.mrb[0].mxu0
    %v5233 = vadd.f32 0.0, %v5232
    %v5234 = vpop.f32.mrb[0].mxu0
    %v5235 = vpop.f32.mrb[0].mxu0
    %v5236 = vadd.f32 0.0, %v5235
    %v5237 = vpop.f32.mrb[0].mxu0
    %5238 = vmatprep.mubr.bf16.mxu0 0
    %5239 = vmatmul.mubr.bf16.gmra.mrb[0].mxu0 %v587
    %v5240 = vpop.f32.mrb[0].mxu0
    %v5241 = vadd.f32 0.0, %v5240
    %v5242 = vpop.f32.mrb[0].mxu0
    %v5243 = vpop.f32.mrb[0].mxu0
    %v5244 = vadd.f32 0.0, %v5243
    %v5245 = vpop.f32.mrb[0].mxu0
    %5246 = vdwg.mxu0
    %5247 = vmatprep.subr.bf16.mxu0 0
    %5248 = vmatpush1.bf16.msra.mxu0 %v5070
    %5249 = vmatprep.subr.bf16.mxu0 0
    %5250 = vmatpush1.bf16.msra.mxu0 %v5072
    %5251 = vmatprep.subr.bf16.mxu0 0
    %5252 = vmatpush1.bf16.msra.mxu0 %v5074
    %5253 = vmatprep.subr.bf16.mxu0 0
    %5254 = vmatpush1.bf16.msra.mxu0 %v5076
    %5255 = vmatprep.subr.bf16.mxu0 0
    %5256 = vmatpush1.bf16.msra.mxu0 %v5078
    %5257 = vmatprep.subr.bf16.mxu0 0
    %5258 = vmatpush1.bf16.msra.mxu0 %v5080
    %5259 = vmatprep.subr.bf16.mxu0 0
    %5260 = vmatpush1.bf16.msra.mxu0 %v5082
    %5261 = vmatprep.subr.bf16.mxu0 0
    %5262 = vmatpush1.bf16.msra.mxu0 %v5084
    %5263 = vmatprep.subr.bf16.mxu0 0
    %5264 = vmatpush1.bf16.msra.mxu0 0
    %5265 = vmatprep.subr.bf16.mxu0 0
    %5266 = vmatpush1.bf16.msra.mxu0 0
    %5267 = vmatprep.subr.bf16.mxu0 0
    %5268 = vmatpush1.bf16.msra.mxu0 0
    %5269 = vmatprep.subr.bf16.mxu0 0
    %5270 = vmatpush1.bf16.msra.mxu0 0
    %5271 = vmatprep.subr.bf16.mxu0 0
    %5272 = vmatpush1.bf16.msra.mxu0 0
    %5273 = vmatprep.subr.bf16.mxu0 0
    %5274 = vmatpush1.bf16.msra.mxu0 0
    %5275 = vmatprep.subr.bf16.mxu0 0
    %5276 = vmatpush1.bf16.msra.mxu0 0
    %5277 = vmatprep.subr.bf16.mxu0 0
    %5278 = vmatpush1.bf16.msra.mxu0 0
    %5279 = vmatprep.mubr.bf16.mxu0 0
    %5280 = vmatmul.mubr.bf16.gmra.mrb[0].mxu0 %v829
    %v5281 = vpop.f32.mrb[0].mxu0
    %v5282 = vadd.f32 %v5121, %v5281
    %v5283 = vpop.f32.mrb[0].mxu0
    %v5284 = vpop.f32.mrb[0].mxu0
    %v5285 = vadd.f32 %v5124, %v5284
    %v5286 = vpop.f32.mrb[0].mxu0
    %5287 = vmatprep.mubr.bf16.mxu0 0
    %5288 = vmatmul.mubr.bf16.gmra.mrb[0].mxu0 %v830
    %v5289 = vpop.f32.mrb[0].mxu0
    %v5290 = vadd.f32 %v5129, %v5289
    %v5291 = vpop.f32.mrb[0].mxu0
    %v5292 = vpop.f32.mrb[0].mxu0
    %v5293 = vadd.f32 %v5132, %v5292
    %v5294 = vpop.f32.mrb[0].mxu0
    %5295 = vmatprep.mubr.bf16.mxu0 0
    %5296 = vmatmul.mubr.bf16.gmra.mrb[0].mxu0 %v831
    %v5297 = vpop.f32.mrb[0].mxu0
    %v5298 = vadd.f32 %v5137, %v5297
    %v5299 = vpop.f32.mrb[0].mxu0
    %v5300 = vpop.f32.mrb[0].mxu0
    %v5301 = vadd.f32 %v5140, %v5300
    %v5302 = vpop.f32.mrb[0].mxu0
    %5303 = vmatprep.mubr.bf16.mxu0 0
    %5304 = vmatmul.mubr.bf16.gmra.mrb[0].mxu0 %v832
    %v5305 = vpop.f32.mrb[0].mxu0
    %v5306 = vadd.f32 %v5145, %v5305
    %v5307 = vpop.f32.mrb[0].mxu0
    %v5308 = vpop.f32.mrb[0].mxu0
    %v5309 = vadd.f32 %v5148, %v5308
    %v5310 = vpop.f32.mrb[0].mxu0
    %5311 = vmatprep.mubr.bf16.mxu0 0
    %5312 = vmatmul.mubr.bf16.gmra.mrb[0].mxu0 %v833
    %v5313 = vpop.f32.mrb[0].mxu0
    %v5314 = vadd.f32 %v5153, %v5313
    %v5315 = vpop.f32.mrb[0].mxu0
    %v5316 = vpop.f32.mrb[0].mxu0
    %v5317 = vadd.f32 %v5156, %v5316
    %v5318 = vpop.f32.mrb[0].mxu0
    %5319 = vmatprep.mubr.bf16.mxu0 0
    %5320 = vmatmul.mubr.bf16.gmra.mrb[0].mxu0 %v834
    %v5321 = vpop.f32.mrb[0].mxu0
    %v5322 = vadd.f32 %v5161, %v5321
    %v5323 = vpop.f32.mrb[0].mxu0
    %v5324 = vpop.f32.mrb[0].mxu0
    %v5325 = vadd.f32 %v5164, %v5324
    %v5326 = vpop.f32.mrb[0].mxu0
    %5327 = vmatprep.mubr.bf16.mxu0 0
    %5328 = vmatmul.mubr.bf16.gmra.mrb[0].mxu0 %v835
    %v5329 = vpop.f32.mrb[0].mxu0
    %v5330 = vadd.f32 %v5169, %v5329
    %v5331 = vpop.f32.mrb[0].mxu0
    %v5332 = vpop.f32.mrb[0].mxu0
    %v5333 = vadd.f32 %v5172, %v5332
    %v5334 = vpop.f32.mrb[0].mxu0
    %5335 = vmatprep.mubr.bf16.mxu0 0
    %5336 = vmatmul.mubr.bf16.gmra.mrb[0].mxu0 %v836
    %v5337 = vpop.f32.mrb[0].mxu0
    %v5338 = vadd.f32 %v5177, %v5337
    %v5339 = vpop.f32.mrb[0].mxu0
    %v5340 = vpop.f32.mrb[0].mxu0
    %v5341 = vadd.f32 %v5180, %v5340
    %v5342 = vpop.f32.mrb[0].mxu0
    %5343 = vmatprep.mubr.bf16.mxu0 0
    %5344 = vmatmul.mubr.bf16.gmra.mrb[0].mxu0 %v837
    %v5345 = vpop.f32.mrb[0].mxu0
    %v5346 = vadd.f32 %v5185, %v5345
    %v5347 = vpop.f32.mrb[0].mxu0
    %v5348 = vpop.f32.mrb[0].mxu0
    %v5349 = vadd.f32 %v5188, %v5348
    %v5350 = vpop.f32.mrb[0].mxu0
    %5351 = vmatprep.mubr.bf16.mxu0 0
    %5352 = vmatmul.mubr.bf16.gmra.mrb[0].mxu0 %v838
    %v5353 = vpop.f32.mrb[0].mxu0
    %v5354 = vadd.f32 %v5193, %v5353
    %v5355 = vpop.f32.mrb[0].mxu0
    %v5356 = vpop.f32.mrb[0].mxu0
    %v5357 = vadd.f32 %v5196, %v5356
    %v5358 = vpop.f32.mrb[0].mxu0
    %5359 = vmatprep.mubr.bf16.mxu0 0
    %5360 = vmatmul.mubr.bf16.gmra.mrb[0].mxu0 %v839
    %v5361 = vpop.f32.mrb[0].mxu0
    %v5362 = vadd.f32 %v5201, %v5361
    %v5363 = vpop.f32.mrb[0].mxu0
    %v5364 = vpop.f32.mrb[0].mxu0
    %v5365 = vadd.f32 %v5204, %v5364
    %v5366 = vpop.f32.mrb[0].mxu0
    %5367 = vmatprep.mubr.bf16.mxu0 0
    %5368 = vmatmul.mubr.bf16.gmra.mrb[0].mxu0 %v840
    %v5369 = vpop.f32.mrb[0].mxu0
    %v5370 = vadd.f32 %v5209, %v5369
    %v5371 = vpop.f32.mrb[0].mxu0
    %v5372 = vpop.f32.mrb[0].mxu0
    %v5373 = vadd.f32 %v5212, %v5372
    %v5374 = vpop.f32.mrb[0].mxu0
    %5375 = vmatprep.mubr.bf16.mxu0 0
    %5376 = vmatmul.mubr.bf16.gmra.mrb[0].mxu0 %v841
    %v5377 = vpop.f32.mrb[0].mxu0
    %v5378 = vadd.f32 %v5217, %v5377
    %v5379 = vpop.f32.mrb[0].mxu0
    %v5380 = vpop.f32.mrb[0].mxu0
    %v5381 = vadd.f32 %v5220, %v5380
    %v5382 = vpop.f32.mrb[0].mxu0
    %5383 = vmatprep.mubr.bf16.mxu0 0
    %5384 = vmatmul.mubr.bf16.gmra.mrb[0].mxu0 %v842
    %v5385 = vpop.f32.mrb[0].mxu0
    %v5386 = vadd.f32 %v5225, %v5385
    %v5387 = vpop.f32.mrb[0].mxu0
    %v5388 = vpop.f32.mrb[0].mxu0
    %v5389 = vadd.f32 %v5228, %v5388
    %v5390 = vpop.f32.mrb[0].mxu0
    %5391 = vmatprep.mubr.bf16.mxu0 0
    %5392 = vmatmul.mubr.bf16.gmra.mrb[0].mxu0 %v843
    %v5393 = vpop.f32.mrb[0].mxu0
    %v5394 = vadd.f32 %v5233, %v5393
    %v5395 = vpop.f32.mrb[0].mxu0
    %v5396 = vpop.f32.mrb[0].mxu0
    %v5397 = vadd.f32 %v5236, %v5396
    %v5398 = vpop.f32.mrb[0].mxu0
    %5399 = vmatprep.mubr.bf16.mxu0 0
    %5400 = vmatmul.mubr.bf16.gmra.mrb[0].mxu0 %v844
    %v5401 = vpop.f32.mrb[0].mxu0
    %v5402 = vadd.f32 %v5241, %v5401
    %v5403 = vpop.f32.mrb[0].mxu0
    %v5404 = vpop.f32.mrb[0].mxu0
    %v5405 = vadd.f32 %v5244, %v5404
    %v5406 = vpop.f32.mrb[0].mxu0
    %5407 = vdwg.mxu0
    %s5408 = scalar_lea.vmem [#allocation11], 256
    %v5409 = vld [vmem:[%s5408] sm:$0xff]
    %v5410 = vld [vmem:[%s5408 + $0x8] sm:$0xff]
    %v5411 = vld [vmem:[%s5408 + $0x10] sm:$0xff]
    %v5412 = vld [vmem:[%s5408 + $0x18] sm:$0xff]
    %v5413 = vld [vmem:[%s5408 + $0x20] sm:$0xff]
    %v5414 = vld [vmem:[%s5408 + $0x28] sm:$0xff]
    %v5415 = vld [vmem:[%s5408 + $0x30] sm:$0xff]
    %v5416 = vld [vmem:[%s5408 + $0x38] sm:$0xff]
    %v5417 = vld [vmem:[%s5408 + $0x40] sm:$0xff]
    %v5418 = vld [vmem:[%s5408 + $0x48] sm:$0xff]
    %v5419 = vld [vmem:[%s5408 + $0x50] sm:$0xff]
    %v5420 = vld [vmem:[%s5408 + $0x58] sm:$0xff]
    %v5421 = vld [vmem:[%s5408 + $0x60] sm:$0xff]
    %v5422 = vld [vmem:[%s5408 + $0x68] sm:$0xff]
    %v5423 = vld [vmem:[%s5408 + $0x70] sm:$0xff]
    %v5424 = vld [vmem:[%s5408 + $0x78] sm:$0xff]
    %5425 = vmatprep.subr.mxu0 0.0
    %5426 = vmatpush1.msra.mxu0 %v5409
    %5427 = vmatprep.subr.mxu0 0.0
    %5428 = vmatpush1.msra.mxu0 %v5410
    %5429 = vmatprep.subr.mxu0 0.0
    %5430 = vmatpush1.msra.mxu0 %v5411
    %5431 = vmatprep.subr.mxu0 0.0
    %5432 = vmatpush1.msra.mxu0 %v5412
    %5433 = vmatprep.subr.mxu0 0.0
    %5434 = vmatpush1.msra.mxu0 %v5413
    %5435 = vmatprep.subr.mxu0 0.0
    %5436 = vmatpush1.msra.mxu0 %v5414
    %5437 = vmatprep.subr.mxu0 0.0
    %5438 = vmatpush1.msra.mxu0 %v5415
    %5439 = vmatprep.subr.mxu0 0.0
    %5440 = vmatpush1.msra.mxu0 %v5416
    %5441 = vmatprep.subr.mxu0 0.0
    %5442 = vmatpush1.msra.mxu0 %v5417
    %5443 = vmatprep.subr.mxu0 0.0
    %5444 = vmatpush1.msra.mxu0 %v5418
    %5445 = vmatprep.subr.mxu0 0.0
    %5446 = vmatpush1.msra.mxu0 %v5419
    %5447 = vmatprep.subr.mxu0 0.0
    %5448 = vmatpush1.msra.mxu0 %v5420
    %5449 = vmatprep.subr.mxu0 0.0
    %5450 = vmatpush1.msra.mxu0 %v5421
    %5451 = vmatprep.subr.mxu0 0.0
    %5452 = vmatpush1.msra.mxu0 %v5422
    %5453 = vmatprep.subr.mxu0 0.0
    %5454 = vmatpush1.msra.mxu0 %v5423
    %5455 = vmatprep.subr.mxu0 0.0
    %5456 = vmatpush1.msra.mxu0 %v5424
    %5457 = vmatprep.subr.mxu0 0.0
    %5458 = vmatpush1.msra.mxu0 0.0
    %5459 = vmatprep.subr.mxu0 0.0
    %5460 = vmatpush1.msra.mxu0 0.0
    %5461 = vmatprep.subr.mxu0 0.0
    %5462 = vmatpush1.msra.mxu0 0.0
    %5463 = vmatprep.subr.mxu0 0.0
    %5464 = vmatpush1.msra.mxu0 0.0
    %5465 = vmatprep.subr.mxu0 0.0
    %5466 = vmatpush1.msra.mxu0 0.0
    %5467 = vmatprep.subr.mxu0 0.0
    %5468 = vmatpush1.msra.mxu0 0.0
    %5469 = vmatprep.subr.mxu0 0.0
    %5470 = vmatpush1.msra.mxu0 0.0
    %5471 = vmatprep.subr.mxu0 0.0
    %5472 = vmatpush1.msra.mxu0 0.0
    %5473 = vmatprep.subr.mxu0 0.0
    %5474 = vmatpush1.msra.mxu0 0.0
    %5475 = vmatprep.subr.mxu0 0.0
    %5476 = vmatpush1.msra.mxu0 0.0
    %5477 = vmatprep.subr.mxu0 0.0
    %5478 = vmatpush1.msra.mxu0 0.0
    %5479 = vmatprep.subr.mxu0 0.0
    %5480 = vmatpush1.msra.mxu0 0.0
    %5481 = vmatprep.subr.mxu0 0.0
    %5482 = vmatpush1.msra.mxu0 0.0
    %5483 = vmatprep.subr.mxu0 0.0
    %5484 = vmatpush1.msra.mxu0 0.0
    %5485 = vmatprep.subr.mxu0 0.0
    %5486 = vmatpush1.msra.mxu0 0.0
    %5487 = vmatprep.subr.mxu0 0.0
    %5488 = vmatpush1.msra.mxu0 0.0
    %5489 = vmatprep.mubr.f32.mxu0 0.0
    %5490 = vmatmul.mubr.f32.gmra.mrb[0].mxu0 %v187
    %v5491 = vpop.f32.mrb[0].mxu0
    %v5492 = vadd.f32 0.0, %v5491
    %v5493 = vpop.f32.mrb[0].mxu0
    %5494 = vmatprep.mubr.f32.mxu0 0.0
    %5495 = vmatmul.mubr.f32.gmra.mrb[0].mxu0 %v188
    %v5496 = vpop.f32.mrb[0].mxu0
    %v5497 = vadd.f32 0.0, %v5496
    %v5498 = vpop.f32.mrb[0].mxu0
    %5499 = vmatprep.mubr.f32.mxu0 0.0
    %5500 = vmatmul.mubr.f32.gmra.mrb[0].mxu0 %v189
    %v5501 = vpop.f32.mrb[0].mxu0
    %v5502 = vadd.f32 0.0, %v5501
    %v5503 = vpop.f32.mrb[0].mxu0
    %5504 = vmatprep.mubr.f32.mxu0 0.0
    %5505 = vmatmul.mubr.f32.gmra.mrb[0].mxu0 %v190
    %v5506 = vpop.f32.mrb[0].mxu0
    %v5507 = vadd.f32 0.0, %v5506
    %v5508 = vpop.f32.mrb[0].mxu0
    %5509 = vmatprep.mubr.f32.mxu0 0.0
    %5510 = vmatmul.mubr.f32.gmra.mrb[0].mxu0 %v191
    %v5511 = vpop.f32.mrb[0].mxu0
    %v5512 = vadd.f32 0.0, %v5511
    %v5513 = vpop.f32.mrb[0].mxu0
    %5514 = vmatprep.mubr.f32.mxu0 0.0
    %5515 = vmatmul.mubr.f32.gmra.mrb[0].mxu0 %v192
    %v5516 = vpop.f32.mrb[0].mxu0
    %v5517 = vadd.f32 0.0, %v5516
    %v5518 = vpop.f32.mrb[0].mxu0
    %5519 = vmatprep.mubr.f32.mxu0 0.0
    %5520 = vmatmul.mubr.f32.gmra.mrb[0].mxu0 %v193
    %v5521 = vpop.f32.mrb[0].mxu0
    %v5522 = vadd.f32 0.0, %v5521
    %v5523 = vpop.f32.mrb[0].mxu0
    %5524 = vmatprep.mubr.f32.mxu0 0.0
    %5525 = vmatmul.mubr.f32.gmra.mrb[0].mxu0 %v194
    %v5526 = vpop.f32.mrb[0].mxu0
    %v5527 = vadd.f32 0.0, %v5526
    %v5528 = vpop.f32.mrb[0].mxu0
    %5529 = vmatprep.mubr.f32.mxu0 0.0
    %5530 = vmatmul.mubr.f32.gmra.mrb[0].mxu0 %v195
    %v5531 = vpop.f32.mrb[0].mxu0
    %v5532 = vadd.f32 0.0, %v5531
    %v5533 = vpop.f32.mrb[0].mxu0
    %5534 = vmatprep.mubr.f32.mxu0 0.0
    %5535 = vmatmul.mubr.f32.gmra.mrb[0].mxu0 %v196
    %v5536 = vpop.f32.mrb[0].mxu0
    %v5537 = vadd.f32 0.0, %v5536
    %v5538 = vpop.f32.mrb[0].mxu0
    %5539 = vmatprep.mubr.f32.mxu0 0.0
    %5540 = vmatmul.mubr.f32.gmra.mrb[0].mxu0 %v197
    %v5541 = vpop.f32.mrb[0].mxu0
    %v5542 = vadd.f32 0.0, %v5541
    %v5543 = vpop.f32.mrb[0].mxu0
    %5544 = vmatprep.mubr.f32.mxu0 0.0
    %5545 = vmatmul.mubr.f32.gmra.mrb[0].mxu0 %v198
    %v5546 = vpop.f32.mrb[0].mxu0
    %v5547 = vadd.f32 0.0, %v5546
    %v5548 = vpop.f32.mrb[0].mxu0
    %5549 = vmatprep.mubr.f32.mxu0 0.0
    %5550 = vmatmul.mubr.f32.gmra.mrb[0].mxu0 %v199
    %v5551 = vpop.f32.mrb[0].mxu0
    %v5552 = vadd.f32 0.0, %v5551
    %v5553 = vpop.f32.mrb[0].mxu0
    %5554 = vmatprep.mubr.f32.mxu0 0.0
    %5555 = vmatmul.mubr.f32.gmra.mrb[0].mxu0 %v200
    %v5556 = vpop.f32.mrb[0].mxu0
    %v5557 = vadd.f32 0.0, %v5556
    %v5558 = vpop.f32.mrb[0].mxu0
    %5559 = vmatprep.mubr.f32.mxu0 0.0
    %5560 = vmatmul.mubr.f32.gmra.mrb[0].mxu0 %v201
    %v5561 = vpop.f32.mrb[0].mxu0
    %v5562 = vadd.f32 0.0, %v5561
    %v5563 = vpop.f32.mrb[0].mxu0
    %5564 = vmatprep.mubr.f32.mxu0 0.0
    %5565 = vmatmul.mubr.f32.gmra.mrb[0].mxu0 %v202
    %v5566 = vpop.f32.mrb[0].mxu0
    %v5567 = vadd.f32 0.0, %v5566
    %v5568 = vpop.f32.mrb[0].mxu0
    %5569 = vmatprep.mubr.f32.mxu0 0.0
    %5570 = vmatmul.mubr.f32.gmra.mrb[0].mxu0 %v203
    %v5571 = vpop.f32.mrb[0].mxu0
    %v5572 = vadd.f32 0.0, %v5571
    %v5573 = vpop.f32.mrb[0].mxu0
    %5574 = vmatprep.mubr.f32.mxu0 0.0
    %5575 = vmatmul.mubr.f32.gmra.mrb[0].mxu0 %v204
    %v5576 = vpop.f32.mrb[0].mxu0
    %v5577 = vadd.f32 0.0, %v5576
    %v5578 = vpop.f32.mrb[0].mxu0
    %5579 = vmatprep.mubr.f32.mxu0 0.0
    %5580 = vmatmul.mubr.f32.gmra.mrb[0].mxu0 %v205
    %v5581 = vpop.f32.mrb[0].mxu0
    %v5582 = vadd.f32 0.0, %v5581
    %v5583 = vpop.f32.mrb[0].mxu0
    %5584 = vmatprep.mubr.f32.mxu0 0.0
    %5585 = vmatmul.mubr.f32.gmra.mrb[0].mxu0 %v206
    %v5586 = vpop.f32.mrb[0].mxu0
    %v5587 = vadd.f32 0.0, %v5586
    %v5588 = vpop.f32.mrb[0].mxu0
    %5589 = vmatprep.mubr.f32.mxu0 0.0
    %5590 = vmatmul.mubr.f32.gmra.mrb[0].mxu0 %v207
    %v5591 = vpop.f32.mrb[0].mxu0
    %v5592 = vadd.f32 0.0, %v5591
    %v5593 = vpop.f32.mrb[0].mxu0
    %5594 = vmatprep.mubr.f32.mxu0 0.0
    %5595 = vmatmul.mubr.f32.gmra.mrb[0].mxu0 %v208
    %v5596 = vpop.f32.mrb[0].mxu0
    %v5597 = vadd.f32 0.0, %v5596
    %v5598 = vpop.f32.mrb[0].mxu0
    %5599 = vmatprep.mubr.f32.mxu0 0.0
    %5600 = vmatmul.mubr.f32.gmra.mrb[0].mxu0 %v209
    %v5601 = vpop.f32.mrb[0].mxu0
    %v5602 = vadd.f32 0.0, %v5601
    %v5603 = vpop.f32.mrb[0].mxu0
    %5604 = vmatprep.mubr.f32.mxu0 0.0
    %5605 = vmatmul.mubr.f32.gmra.mrb[0].mxu0 %v210
    %v5606 = vpop.f32.mrb[0].mxu0
    %v5607 = vadd.f32 0.0, %v5606
    %v5608 = vpop.f32.mrb[0].mxu0
    %5609 = vmatprep.mubr.f32.mxu0 0.0
    %5610 = vmatmul.mubr.f32.gmra.mrb[0].mxu0 %v211
    %v5611 = vpop.f32.mrb[0].mxu0
    %v5612 = vadd.f32 0.0, %v5611
    %v5613 = vpop.f32.mrb[0].mxu0
    %5614 = vmatprep.mubr.f32.mxu0 0.0
    %5615 = vmatmul.mubr.f32.gmra.mrb[0].mxu0 %v212
    %v5616 = vpop.f32.mrb[0].mxu0
    %v5617 = vadd.f32 0.0, %v5616
    %v5618 = vpop.f32.mrb[0].mxu0
    %5619 = vmatprep.mubr.f32.mxu0 0.0
    %5620 = vmatmul.mubr.f32.gmra.mrb[0].mxu0 %v213
    %v5621 = vpop.f32.mrb[0].mxu0
    %v5622 = vadd.f32 0.0, %v5621
    %v5623 = vpop.f32.mrb[0].mxu0
    %5624 = vmatprep.mubr.f32.mxu0 0.0
    %5625 = vmatmul.mubr.f32.gmra.mrb[0].mxu0 %v214
    %v5626 = vpop.f32.mrb[0].mxu0
    %v5627 = vadd.f32 0.0, %v5626
    %v5628 = vpop.f32.mrb[0].mxu0
    %5629 = vmatprep.mubr.f32.mxu0 0.0
    %5630 = vmatmul.mubr.f32.gmra.mrb[0].mxu0 %v215
    %v5631 = vpop.f32.mrb[0].mxu0
    %v5632 = vadd.f32 0.0, %v5631
    %v5633 = vpop.f32.mrb[0].mxu0
    %5634 = vmatprep.mubr.f32.mxu0 0.0
    %5635 = vmatmul.mubr.f32.gmra.mrb[0].mxu0 %v216
    %v5636 = vpop.f32.mrb[0].mxu0
    %v5637 = vadd.f32 0.0, %v5636
    %v5638 = vpop.f32.mrb[0].mxu0
    %5639 = vmatprep.mubr.f32.mxu0 0.0
    %5640 = vmatmul.mubr.f32.gmra.mrb[0].mxu0 %v217
    %v5641 = vpop.f32.mrb[0].mxu0
    %v5642 = vadd.f32 0.0, %v5641
    %v5643 = vpop.f32.mrb[0].mxu0
    %5644 = vmatprep.mubr.f32.mxu0 0.0
    %5645 = vmatmul.mubr.f32.gmra.mrb[0].mxu0 %v218
    %v5646 = vpop.f32.mrb[0].mxu0
    %v5647 = vadd.f32 0.0, %v5646
    %v5648 = vpop.f32.mrb[0].mxu0
    %5649 = vdwg.mxu0
    %v5650 = vadd.f32 %v5282, %v5492
    %v5651 = vadd.f32 %v5285, %v5497
    %v5652 = vadd.f32 %v5290, %v5502
    %v5653 = vadd.f32 %v5293, %v5507
    %v5654 = vadd.f32 %v5298, %v5512
    %v5655 = vadd.f32 %v5301, %v5517
    %v5656 = vadd.f32 %v5306, %v5522
    %v5657 = vadd.f32 %v5309, %v5527
    %v5658 = vadd.f32 %v5314, %v5532
    %v5659 = vadd.f32 %v5317, %v5537
    %v5660 = vadd.f32 %v5322, %v5542
    %v5661 = vadd.f32 %v5325, %v5547
    %v5662 = vadd.f32 %v5330, %v5552
    %v5663 = vadd.f32 %v5333, %v5557
    %v5664 = vadd.f32 %v5338, %v5562
    %v5665 = vadd.f32 %v5341, %v5567
    %v5666 = vadd.f32 %v5346, %v5572
    %v5667 = vadd.f32 %v5349, %v5577
    %v5668 = vadd.f32 %v5354, %v5582
    %v5669 = vadd.f32 %v5357, %v5587
    %v5670 = vadd.f32 %v5362, %v5592
    %v5671 = vadd.f32 %v5365, %v5597
    %v5672 = vadd.f32 %v5370, %v5602
    %v5673 = vadd.f32 %v5373, %v5607
    %v5674 = vadd.f32 %v5378, %v5612
    %v5675 = vadd.f32 %v5381, %v5617
    %v5676 = vadd.f32 %v5386, %v5622
    %v5677 = vadd.f32 %v5389, %v5627
    %v5678 = vadd.f32 %v5394, %v5632
    %v5679 = vadd.f32 %v5397, %v5637
    %v5680 = vadd.f32 %v5402, %v5642
    %v5681 = vadd.f32 %v5405, %v5647
    %s5682 = scalar_lea.vmem %s7, 2
    %v5683 = vld [vmem:[%s5682] sm:$0x1]
    %v5685 = vlaneseq
    %v5686 = vshrl.u32 %v5685, 7
    %v5687 = vsub.s32 0, %v5686
    %v5688 = vrot.slane %v5683, %v5687
    %v5690 = vadd.f32 %v5650, %v5688
    %v5691 = vadd.f32 %v5651, %v5688
    %v5692 = vadd.f32 %v5652, %v5688
    %v5693 = vadd.f32 %v5653, %v5688
    %v5694 = vadd.f32 %v5654, %v5688
    %v5695 = vadd.f32 %v5655, %v5688
    %v5696 = vadd.f32 %v5656, %v5688
    %v5697 = vadd.f32 %v5657, %v5688
    %v5698 = vadd.f32 %v5658, %v5688
    %v5699 = vadd.f32 %v5659, %v5688
    %v5700 = vadd.f32 %v5660, %v5688
    %v5701 = vadd.f32 %v5661, %v5688
    %v5702 = vadd.f32 %v5662, %v5688
    %v5703 = vadd.f32 %v5663, %v5688
    %v5704 = vadd.f32 %v5664, %v5688
    %v5705 = vadd.f32 %v5665, %v5688
    %v5706 = vadd.f32 %v5666, %v5688
    %v5707 = vadd.f32 %v5667, %v5688
    %v5708 = vadd.f32 %v5668, %v5688
    %v5709 = vadd.f32 %v5669, %v5688
    %v5710 = vadd.f32 %v5670, %v5688
    %v5711 = vadd.f32 %v5671, %v5688
    %v5712 = vadd.f32 %v5672, %v5688
    %v5713 = vadd.f32 %v5673, %v5688
    %v5714 = vadd.f32 %v5674, %v5688
    %v5715 = vadd.f32 %v5675, %v5688
    %v5716 = vadd.f32 %v5676, %v5688
    %v5717 = vadd.f32 %v5677, %v5688
    %v5718 = vadd.f32 %v5678, %v5688
    %v5719 = vadd.f32 %v5679, %v5688
    %v5720 = vadd.f32 %v5680, %v5688
    %v5721 = vadd.f32 %v5681, %v5688
    %v5722 = vxor.u32 %v5690, 2147483648
    %v5723 = vxor.u32 %v5691, 2147483648
    %v5724 = vxor.u32 %v5692, 2147483648
    %v5725 = vxor.u32 %v5693, 2147483648
    %v5726 = vxor.u32 %v5694, 2147483648
    %v5727 = vxor.u32 %v5695, 2147483648
    %v5728 = vxor.u32 %v5696, 2147483648
    %v5729 = vxor.u32 %v5697, 2147483648
    %v5730 = vxor.u32 %v5698, 2147483648
    %v5731 = vxor.u32 %v5699, 2147483648
    %v5732 = vxor.u32 %v5700, 2147483648
    %v5733 = vxor.u32 %v5701, 2147483648
    %v5734 = vxor.u32 %v5702, 2147483648
    %v5735 = vxor.u32 %v5703, 2147483648
    %v5736 = vxor.u32 %v5704, 2147483648
    %v5737 = vxor.u32 %v5705, 2147483648
    %v5738 = vxor.u32 %v5706, 2147483648
    %v5739 = vxor.u32 %v5707, 2147483648
    %v5740 = vxor.u32 %v5708, 2147483648
    %v5741 = vxor.u32 %v5709, 2147483648
    %v5742 = vxor.u32 %v5710, 2147483648
    %v5743 = vxor.u32 %v5711, 2147483648
    %v5744 = vxor.u32 %v5712, 2147483648
    %v5745 = vxor.u32 %v5713, 2147483648
    %v5746 = vxor.u32 %v5714, 2147483648
    %v5747 = vxor.u32 %v5715, 2147483648
    %v5748 = vxor.u32 %v5716, 2147483648
    %v5749 = vxor.u32 %v5717, 2147483648
    %v5750 = vxor.u32 %v5718, 2147483648
    %v5751 = vxor.u32 %v5719, 2147483648
    %v5752 = vxor.u32 %v5720, 2147483648
    %v5753 = vxor.u32 %v5721, 2147483648
    %v5754 = vmul.f32 %v5722, 1.442695
    %v5755 = vpow.pop %v5754
    %v5756 = vmul.f32 %v5723, 1.442695
    %v5757 = vpow.pop %v5756
    %v5758 = vmul.f32 %v5724, 1.442695
    %v5759 = vpow.pop %v5758
    %v5760 = vmul.f32 %v5725, 1.442695
    %v5761 = vpow.pop %v5760
    %v5762 = vmul.f32 %v5726, 1.442695
    %v5763 = vpow.pop %v5762
    %v5764 = vmul.f32 %v5727, 1.442695
    %v5765 = vpow.pop %v5764
    %v5766 = vmul.f32 %v5728, 1.442695
    %v5767 = vpow.pop %v5766
    %v5768 = vmul.f32 %v5729, 1.442695
    %v5769 = vpow.pop %v5768
    %v5770 = vmul.f32 %v5730, 1.442695
    %v5771 = vpow.pop %v5770
    %v5772 = vmul.f32 %v5731, 1.442695
    %v5773 = vpow.pop %v5772
    %v5774 = vmul.f32 %v5732, 1.442695
    %v5775 = vpow.pop %v5774
    %v5776 = vmul.f32 %v5733, 1.442695
    %v5777 = vpow.pop %v5776
    %v5778 = vmul.f32 %v5734, 1.442695
    %v5779 = vpow.pop %v5778
    %v5780 = vmul.f32 %v5735, 1.442695
    %v5781 = vpow.pop %v5780
    %v5782 = vmul.f32 %v5736, 1.442695
    %v5783 = vpow.pop %v5782
    %v5784 = vmul.f32 %v5737, 1.442695
    %v5785 = vpow.pop %v5784
    %v5786 = vmul.f32 %v5738, 1.442695
    %v5787 = vpow.pop %v5786
    %v5788 = vmul.f32 %v5739, 1.442695
    %v5789 = vpow.pop %v5788
    %v5790 = vmul.f32 %v5740, 1.442695
    %v5791 = vpow.pop %v5790
    %v5792 = vmul.f32 %v5741, 1.442695
    %v5793 = vpow.pop %v5792
    %v5794 = vmul.f32 %v5742, 1.442695
    %v5795 = vpow.pop %v5794
    %v5796 = vmul.f32 %v5743, 1.442695
    %v5797 = vpow.pop %v5796
    %v5798 = vmul.f32 %v5744, 1.442695
    %v5799 = vpow.pop %v5798
    %v5800 = vmul.f32 %v5745, 1.442695
    %v5801 = vpow.pop %v5800
    %v5802 = vmul.f32 %v5746, 1.442695
    %v5803 = vpow.pop %v5802
    %v5804 = vmul.f32 %v5747, 1.442695
    %v5805 = vpow.pop %v5804
    %v5806 = vmul.f32 %v5748, 1.442695
    %v5807 = vpow.pop %v5806
    %v5808 = vmul.f32 %v5749, 1.442695
    %v5809 = vpow.pop %v5808
    %v5810 = vmul.f32 %v5750, 1.442695
    %v5811 = vpow.pop %v5810
    %v5812 = vmul.f32 %v5751, 1.442695
    %v5813 = vpow.pop %v5812
    %v5814 = vmul.f32 %v5752, 1.442695
    %v5815 = vpow.pop %v5814
    %v5816 = vmul.f32 %v5753, 1.442695
    %v5817 = vpow.pop %v5816
    %v5818 = vadd.f32 %v5755, 1.0
    %v5819 = vadd.f32 %v5757, 1.0
    %v5820 = vadd.f32 %v5759, 1.0
    %v5821 = vadd.f32 %v5761, 1.0
    %v5822 = vadd.f32 %v5763, 1.0
    %v5823 = vadd.f32 %v5765, 1.0
    %v5824 = vadd.f32 %v5767, 1.0
    %v5825 = vadd.f32 %v5769, 1.0
    %v5826 = vadd.f32 %v5771, 1.0
    %v5827 = vadd.f32 %v5773, 1.0
    %v5828 = vadd.f32 %v5775, 1.0
    %v5829 = vadd.f32 %v5777, 1.0
    %v5830 = vadd.f32 %v5779, 1.0
    %v5831 = vadd.f32 %v5781, 1.0
    %v5832 = vadd.f32 %v5783, 1.0
    %v5833 = vadd.f32 %v5785, 1.0
    %v5834 = vadd.f32 %v5787, 1.0
    %v5835 = vadd.f32 %v5789, 1.0
    %v5836 = vadd.f32 %v5791, 1.0
    %v5837 = vadd.f32 %v5793, 1.0
    %v5838 = vadd.f32 %v5795, 1.0
    %v5839 = vadd.f32 %v5797, 1.0
    %v5840 = vadd.f32 %v5799, 1.0
    %v5841 = vadd.f32 %v5801, 1.0
    %v5842 = vadd.f32 %v5803, 1.0
    %v5843 = vadd.f32 %v5805, 1.0
    %v5844 = vadd.f32 %v5807, 1.0
    %v5845 = vadd.f32 %v5809, 1.0
    %v5846 = vadd.f32 %v5811, 1.0
    %v5847 = vadd.f32 %v5813, 1.0
    %v5848 = vadd.f32 %v5815, 1.0
    %v5849 = vadd.f32 %v5817, 1.0
    %v5850 = vrcp.pop %v5818
    %v5851 = vmul.f32 1.0, %v5850
    %v5852 = vrcp.pop %v5819
    %v5853 = vmul.f32 1.0, %v5852
    %v5854 = vrcp.pop %v5820
    %v5855 = vmul.f32 1.0, %v5854
    %v5856 = vrcp.pop %v5821
    %v5857 = vmul.f32 1.0, %v5856
    %v5858 = vrcp.pop %v5822
    %v5859 = vmul.f32 1.0, %v5858
    %v5860 = vrcp.pop %v5823
    %v5861 = vmul.f32 1.0, %v5860
    %v5862 = vrcp.pop %v5824
    %v5863 = vmul.f32 1.0, %v5862
    %v5864 = vrcp.pop %v5825
    %v5865 = vmul.f32 1.0, %v5864
    %v5866 = vrcp.pop %v5826
    %v5867 = vmul.f32 1.0, %v5866
    %v5868 = vrcp.pop %v5827
    %v5869 = vmul.f32 1.0, %v5868
    %v5870 = vrcp.pop %v5828
    %v5871 = vmul.f32 1.0, %v5870
    %v5872 = vrcp.pop %v5829
    %v5873 = vmul.f32 1.0, %v5872
    %v5874 = vrcp.pop %v5830
    %v5875 = vmul.f32 1.0, %v5874
    %v5876 = vrcp.pop %v5831
    %v5877 = vmul.f32 1.0, %v5876
    %v5878 = vrcp.pop %v5832
    %v5879 = vmul.f32 1.0, %v5878
    %v5880 = vrcp.pop %v5833
    %v5881 = vmul.f32 1.0, %v5880
    %v5882 = vrcp.pop %v5834
    %v5883 = vmul.f32 1.0, %v5882
    %v5884 = vrcp.pop %v5835
    %v5885 = vmul.f32 1.0, %v5884
    %v5886 = vrcp.pop %v5836
    %v5887 = vmul.f32 1.0, %v5886
    %v5888 = vrcp.pop %v5837
    %v5889 = vmul.f32 1.0, %v5888
    %v5890 = vrcp.pop %v5838
    %v5891 = vmul.f32 1.0, %v5890
    %v5892 = vrcp.pop %v5839
    %v5893 = vmul.f32 1.0, %v5892
    %v5894 = vrcp.pop %v5840
    %v5895 = vmul.f32 1.0, %v5894
    %v5896 = vrcp.pop %v5841
    %v5897 = vmul.f32 1.0, %v5896
    %v5898 = vrcp.pop %v5842
    %v5899 = vmul.f32 1.0, %v5898
    %v5900 = vrcp.pop %v5843
    %v5901 = vmul.f32 1.0, %v5900
    %v5902 = vrcp.pop %v5844
    %v5903 = vmul.f32 1.0, %v5902
    %v5904 = vrcp.pop %v5845
    %v5905 = vmul.f32 1.0, %v5904
    %v5906 = vrcp.pop %v5846
    %v5907 = vmul.f32 1.0, %v5906
    %v5908 = vrcp.pop %v5847
    %v5909 = vmul.f32 1.0, %v5908
    %v5910 = vrcp.pop %v5848
    %v5911 = vmul.f32 1.0, %v5910
    %v5912 = vrcp.pop %v5849
    %v5913 = vmul.f32 1.0, %v5912
    %v5914 = vmul.f32 %v5690, %v5851
    %v5915 = vmul.f32 %v5691, %v5853
    %v5916 = vmul.f32 %v5692, %v5855
    %v5917 = vmul.f32 %v5693, %v5857
    %v5918 = vmul.f32 %v5694, %v5859
    %v5919 = vmul.f32 %v5695, %v5861
    %v5920 = vmul.f32 %v5696, %v5863
    %v5921 = vmul.f32 %v5697, %v5865
    %v5922 = vmul.f32 %v5698, %v5867
    %v5923 = vmul.f32 %v5699, %v5869
    %v5924 = vmul.f32 %v5700, %v5871
    %v5925 = vmul.f32 %v5701, %v5873
    %v5926 = vmul.f32 %v5702, %v5875
    %v5927 = vmul.f32 %v5703, %v5877
    %v5928 = vmul.f32 %v5704, %v5879
    %v5929 = vmul.f32 %v5705, %v5881
    %v5930 = vmul.f32 %v5706, %v5883
    %v5931 = vmul.f32 %v5707, %v5885
    %v5932 = vmul.f32 %v5708, %v5887
    %v5933 = vmul.f32 %v5709, %v5889
    %v5934 = vmul.f32 %v5710, %v5891
    %v5935 = vmul.f32 %v5711, %v5893
    %v5936 = vmul.f32 %v5712, %v5895
    %v5937 = vmul.f32 %v5713, %v5897
    %v5938 = vmul.f32 %v5714, %v5899
    %v5939 = vmul.f32 %v5715, %v5901
    %v5940 = vmul.f32 %v5716, %v5903
    %v5941 = vmul.f32 %v5717, %v5905
    %v5942 = vmul.f32 %v5718, %v5907
    %v5943 = vmul.f32 %v5719, %v5909
    %v5944 = vmul.f32 %v5720, %v5911
    %v5945 = vmul.f32 %v5721, %v5913
    %s5946 = scalar_lea.vmem [#allocation13], 256
    %v5947 = vld [vmem:[%s5946] sm:$0xff]
    %v5948 = vld [vmem:[%s5946 + $0x8] sm:$0xff]
    %v5949 = vld [vmem:[%s5946 + $0x10] sm:$0xff]
    %v5950 = vld [vmem:[%s5946 + $0x18] sm:$0xff]
    %v5951 = vld [vmem:[%s5946 + $0x20] sm:$0xff]
    %v5952 = vld [vmem:[%s5946 + $0x28] sm:$0xff]
    %v5953 = vld [vmem:[%s5946 + $0x30] sm:$0xff]
    %v5954 = vld [vmem:[%s5946 + $0x38] sm:$0xff]
    %v5955 = vld [vmem:[%s5946 + $0x40] sm:$0xff]
    %v5956 = vld [vmem:[%s5946 + $0x48] sm:$0xff]
    %v5957 = vld [vmem:[%s5946 + $0x50] sm:$0xff]
    %v5958 = vld [vmem:[%s5946 + $0x58] sm:$0xff]
    %v5959 = vld [vmem:[%s5946 + $0x60] sm:$0xff]
    %v5960 = vld [vmem:[%s5946 + $0x68] sm:$0xff]
    %v5961 = vld [vmem:[%s5946 + $0x70] sm:$0xff]
    %v5962 = vld [vmem:[%s5946 + $0x78] sm:$0xff]
    %s5963 = scalar_lea.vmem %s9, 2
    %v5964 = vld [vmem:[%s5963] sm:$0x1]
    %v5966 = vlaneseq
    %v5967 = vshrl.u32 %v5966, 7
    %v5968 = vsub.s32 0, %v5967
    %v5969 = vrot.slane %v5964, %v5968
    %5971 = vmatprep.subr.mxu0 0.0
    %5972 = vmatpush1.msra.mxu0 %v5947
    %5973 = vmatprep.subr.mxu0 0.0
    %5974 = vmatpush1.msra.mxu0 %v5948
    %5975 = vmatprep.subr.mxu0 0.0
    %5976 = vmatpush1.msra.mxu0 %v5949
    %5977 = vmatprep.subr.mxu0 0.0
    %5978 = vmatpush1.msra.mxu0 %v5950
    %5979 = vmatprep.subr.mxu0 0.0
    %5980 = vmatpush1.msra.mxu0 %v5951
    %5981 = vmatprep.subr.mxu0 0.0
    %5982 = vmatpush1.msra.mxu0 %v5952
    %5983 = vmatprep.subr.mxu0 0.0
    %5984 = vmatpush1.msra.mxu0 %v5953
    %5985 = vmatprep.subr.mxu0 0.0
    %5986 = vmatpush1.msra.mxu0 %v5954
    %5987 = vmatprep.subr.mxu0 0.0
    %5988 = vmatpush1.msra.mxu0 %v5955
    %5989 = vmatprep.subr.mxu0 0.0
    %5990 = vmatpush1.msra.mxu0 %v5956
    %5991 = vmatprep.subr.mxu0 0.0
    %5992 = vmatpush1.msra.mxu0 %v5957
    %5993 = vmatprep.subr.mxu0 0.0
    %5994 = vmatpush1.msra.mxu0 %v5958
    %5995 = vmatprep.subr.mxu0 0.0
    %5996 = vmatpush1.msra.mxu0 %v5959
    %5997 = vmatprep.subr.mxu0 0.0
    %5998 = vmatpush1.msra.mxu0 %v5960
    %5999 = vmatprep.subr.mxu0 0.0
    %6000 = vmatpush1.msra.mxu0 %v5961
    %6001 = vmatprep.subr.mxu0 0.0
    %6002 = vmatpush1.msra.mxu0 %v5962
    %6003 = vmatprep.subr.mxu0 0.0
    %6004 = vmatpush1.msra.mxu0 0.0
    %6005 = vmatprep.subr.mxu0 0.0
    %6006 = vmatpush1.msra.mxu0 0.0
    %6007 = vmatprep.subr.mxu0 0.0
    %6008 = vmatpush1.msra.mxu0 0.0
    %6009 = vmatprep.subr.mxu0 0.0
    %6010 = vmatpush1.msra.mxu0 0.0
    %6011 = vmatprep.subr.mxu0 0.0
    %6012 = vmatpush1.msra.mxu0 0.0
    %6013 = vmatprep.subr.mxu0 0.0
    %6014 = vmatpush1.msra.mxu0 0.0
    %6015 = vmatprep.subr.mxu0 0.0
    %6016 = vmatpush1.msra.mxu0 0.0
    %6017 = vmatprep.subr.mxu0 0.0
    %6018 = vmatpush1.msra.mxu0 0.0
    %6019 = vmatprep.subr.mxu0 0.0
    %6020 = vmatpush1.msra.mxu0 0.0
    %6021 = vmatprep.subr.mxu0 0.0
    %6022 = vmatpush1.msra.mxu0 0.0
    %6023 = vmatprep.subr.mxu0 0.0
    %6024 = vmatpush1.msra.mxu0 0.0
    %6025 = vmatprep.subr.mxu0 0.0
    %6026 = vmatpush1.msra.mxu0 0.0
    %6027 = vmatprep.subr.mxu0 0.0
    %6028 = vmatpush1.msra.mxu0 0.0
    %6029 = vmatprep.subr.mxu0 0.0
    %6030 = vmatpush1.msra.mxu0 0.0
    %6031 = vmatprep.subr.mxu0 0.0
    %6032 = vmatpush1.msra.mxu0 0.0
    %6033 = vmatprep.subr.mxu0 0.0
    %6034 = vmatpush1.msra.mxu0 0.0
    %6035 = vmatprep.mubr.f32.mxu0 0.0
    %6036 = vmatmul.mubr.f32.gmra.mrb[0].mxu0 %v5914
    %v6037 = vpop.f32.mrb[0].mxu0
    %v6038 = vadd.f32 %v5969, %v6037
    %v6039 = vpop.f32.mrb[0].mxu0
    %6040 = vmatprep.mubr.f32.mxu0 0.0
    %6041 = vmatmul.mubr.f32.gmra.mrb[0].mxu0 %v5915
    %v6042 = vpop.f32.mrb[0].mxu0
    %v6043 = vadd.f32 %v5969, %v6042
    %v6044 = vpop.f32.mrb[0].mxu0
    %6045 = vmatprep.mubr.f32.mxu0 0.0
    %6046 = vmatmul.mubr.f32.gmra.mrb[0].mxu0 %v5916
    %v6047 = vpop.f32.mrb[0].mxu0
    %v6048 = vadd.f32 %v5969, %v6047
    %v6049 = vpop.f32.mrb[0].mxu0
    %6050 = vmatprep.mubr.f32.mxu0 0.0
    %6051 = vmatmul.mubr.f32.gmra.mrb[0].mxu0 %v5917
    %v6052 = vpop.f32.mrb[0].mxu0
    %v6053 = vadd.f32 %v5969, %v6052
    %v6054 = vpop.f32.mrb[0].mxu0
    %6055 = vmatprep.mubr.f32.mxu0 0.0
    %6056 = vmatmul.mubr.f32.gmra.mrb[0].mxu0 %v5918
    %v6057 = vpop.f32.mrb[0].mxu0
    %v6058 = vadd.f32 %v5969, %v6057
    %v6059 = vpop.f32.mrb[0].mxu0
    %6060 = vmatprep.mubr.f32.mxu0 0.0
    %6061 = vmatmul.mubr.f32.gmra.mrb[0].mxu0 %v5919
    %v6062 = vpop.f32.mrb[0].mxu0
    %v6063 = vadd.f32 %v5969, %v6062
    %v6064 = vpop.f32.mrb[0].mxu0
    %6065 = vmatprep.mubr.f32.mxu0 0.0
    %6066 = vmatmul.mubr.f32.gmra.mrb[0].mxu0 %v5920
    %v6067 = vpop.f32.mrb[0].mxu0
    %v6068 = vadd.f32 %v5969, %v6067
    %v6069 = vpop.f32.mrb[0].mxu0
    %6070 = vmatprep.mubr.f32.mxu0 0.0
    %6071 = vmatmul.mubr.f32.gmra.mrb[0].mxu0 %v5921
    %v6072 = vpop.f32.mrb[0].mxu0
    %v6073 = vadd.f32 %v5969, %v6072
    %v6074 = vpop.f32.mrb[0].mxu0
    %6075 = vmatprep.mubr.f32.mxu0 0.0
    %6076 = vmatmul.mubr.f32.gmra.mrb[0].mxu0 %v5922
    %v6077 = vpop.f32.mrb[0].mxu0
    %v6078 = vadd.f32 %v5969, %v6077
    %v6079 = vpop.f32.mrb[0].mxu0
    %6080 = vmatprep.mubr.f32.mxu0 0.0
    %6081 = vmatmul.mubr.f32.gmra.mrb[0].mxu0 %v5923
    %v6082 = vpop.f32.mrb[0].mxu0
    %v6083 = vadd.f32 %v5969, %v6082
    %v6084 = vpop.f32.mrb[0].mxu0
    %6085 = vmatprep.mubr.f32.mxu0 0.0
    %6086 = vmatmul.mubr.f32.gmra.mrb[0].mxu0 %v5924
    %v6087 = vpop.f32.mrb[0].mxu0
    %v6088 = vadd.f32 %v5969, %v6087
    %v6089 = vpop.f32.mrb[0].mxu0
    %6090 = vmatprep.mubr.f32.mxu0 0.0
    %6091 = vmatmul.mubr.f32.gmra.mrb[0].mxu0 %v5925
    %v6092 = vpop.f32.mrb[0].mxu0
    %v6093 = vadd.f32 %v5969, %v6092
    %v6094 = vpop.f32.mrb[0].mxu0
    %6095 = vmatprep.mubr.f32.mxu0 0.0
    %6096 = vmatmul.mubr.f32.gmra.mrb[0].mxu0 %v5926
    %v6097 = vpop.f32.mrb[0].mxu0
    %v6098 = vadd.f32 %v5969, %v6097
    %v6099 = vpop.f32.mrb[0].mxu0
    %6100 = vmatprep.mubr.f32.mxu0 0.0
    %6101 = vmatmul.mubr.f32.gmra.mrb[0].mxu0 %v5927
    %v6102 = vpop.f32.mrb[0].mxu0
    %v6103 = vadd.f32 %v5969, %v6102
    %v6104 = vpop.f32.mrb[0].mxu0
    %6105 = vmatprep.mubr.f32.mxu0 0.0
    %6106 = vmatmul.mubr.f32.gmra.mrb[0].mxu0 %v5928
    %v6107 = vpop.f32.mrb[0].mxu0
    %v6108 = vadd.f32 %v5969, %v6107
    %v6109 = vpop.f32.mrb[0].mxu0
    %6110 = vmatprep.mubr.f32.mxu0 0.0
    %6111 = vmatmul.mubr.f32.gmra.mrb[0].mxu0 %v5929
    %v6112 = vpop.f32.mrb[0].mxu0
    %v6113 = vadd.f32 %v5969, %v6112
    %v6114 = vpop.f32.mrb[0].mxu0
    %6115 = vmatprep.mubr.f32.mxu0 0.0
    %6116 = vmatmul.mubr.f32.gmra.mrb[0].mxu0 %v5930
    %v6117 = vpop.f32.mrb[0].mxu0
    %v6118 = vadd.f32 %v5969, %v6117
    %v6119 = vpop.f32.mrb[0].mxu0
    %6120 = vmatprep.mubr.f32.mxu0 0.0
    %6121 = vmatmul.mubr.f32.gmra.mrb[0].mxu0 %v5931
    %v6122 = vpop.f32.mrb[0].mxu0
    %v6123 = vadd.f32 %v5969, %v6122
    %v6124 = vpop.f32.mrb[0].mxu0
    %6125 = vmatprep.mubr.f32.mxu0 0.0
    %6126 = vmatmul.mubr.f32.gmra.mrb[0].mxu0 %v5932
    %v6127 = vpop.f32.mrb[0].mxu0
    %v6128 = vadd.f32 %v5969, %v6127
    %v6129 = vpop.f32.mrb[0].mxu0
    %6130 = vmatprep.mubr.f32.mxu0 0.0
    %6131 = vmatmul.mubr.f32.gmra.mrb[0].mxu0 %v5933
    %v6132 = vpop.f32.mrb[0].mxu0
    %v6133 = vadd.f32 %v5969, %v6132
    %v6134 = vpop.f32.mrb[0].mxu0
    %6135 = vmatprep.mubr.f32.mxu0 0.0
    %6136 = vmatmul.mubr.f32.gmra.mrb[0].mxu0 %v5934
    %v6137 = vpop.f32.mrb[0].mxu0
    %v6138 = vadd.f32 %v5969, %v6137
    %v6139 = vpop.f32.mrb[0].mxu0
    %6140 = vmatprep.mubr.f32.mxu0 0.0
    %6141 = vmatmul.mubr.f32.gmra.mrb[0].mxu0 %v5935
    %v6142 = vpop.f32.mrb[0].mxu0
    %v6143 = vadd.f32 %v5969, %v6142
    %v6144 = vpop.f32.mrb[0].mxu0
    %6145 = vmatprep.mubr.f32.mxu0 0.0
    %6146 = vmatmul.mubr.f32.gmra.mrb[0].mxu0 %v5936
    %v6147 = vpop.f32.mrb[0].mxu0
    %v6148 = vadd.f32 %v5969, %v6147
    %v6149 = vpop.f32.mrb[0].mxu0
    %6150 = vmatprep.mubr.f32.mxu0 0.0
    %6151 = vmatmul.mubr.f32.gmra.mrb[0].mxu0 %v5937
    %v6152 = vpop.f32.mrb[0].mxu0
    %v6153 = vadd.f32 %v5969, %v6152
    %v6154 = vpop.f32.mrb[0].mxu0
    %6155 = vmatprep.mubr.f32.mxu0 0.0
    %6156 = vmatmul.mubr.f32.gmra.mrb[0].mxu0 %v5938
    %v6157 = vpop.f32.mrb[0].mxu0
    %v6158 = vadd.f32 %v5969, %v6157
    %v6159 = vpop.f32.mrb[0].mxu0
    %6160 = vmatprep.mubr.f32.mxu0 0.0
    %6161 = vmatmul.mubr.f32.gmra.mrb[0].mxu0 %v5939
    %v6162 = vpop.f32.mrb[0].mxu0
    %v6163 = vadd.f32 %v5969, %v6162
    %v6164 = vpop.f32.mrb[0].mxu0
    %6165 = vmatprep.mubr.f32.mxu0 0.0
    %6166 = vmatmul.mubr.f32.gmra.mrb[0].mxu0 %v5940
    %v6167 = vpop.f32.mrb[0].mxu0
    %v6168 = vadd.f32 %v5969, %v6167
    %v6169 = vpop.f32.mrb[0].mxu0
    %6170 = vmatprep.mubr.f32.mxu0 0.0
    %6171 = vmatmul.mubr.f32.gmra.mrb[0].mxu0 %v5941
    %v6172 = vpop.f32.mrb[0].mxu0
    %v6173 = vadd.f32 %v5969, %v6172
    %v6174 = vpop.f32.mrb[0].mxu0
    %6175 = vmatprep.mubr.f32.mxu0 0.0
    %6176 = vmatmul.mubr.f32.gmra.mrb[0].mxu0 %v5942
    %v6177 = vpop.f32.mrb[0].mxu0
    %v6178 = vadd.f32 %v5969, %v6177
    %v6179 = vpop.f32.mrb[0].mxu0
    %6180 = vmatprep.mubr.f32.mxu0 0.0
    %6181 = vmatmul.mubr.f32.gmra.mrb[0].mxu0 %v5943
    %v6182 = vpop.f32.mrb[0].mxu0
    %v6183 = vadd.f32 %v5969, %v6182
    %v6184 = vpop.f32.mrb[0].mxu0
    %6185 = vmatprep.mubr.f32.mxu0 0.0
    %6186 = vmatmul.mubr.f32.gmra.mrb[0].mxu0 %v5944
    %v6187 = vpop.f32.mrb[0].mxu0
    %v6188 = vadd.f32 %v5969, %v6187
    %v6189 = vpop.f32.mrb[0].mxu0
    %6190 = vmatprep.mubr.f32.mxu0 0.0
    %6191 = vmatmul.mubr.f32.gmra.mrb[0].mxu0 %v5945
    %v6192 = vpop.f32.mrb[0].mxu0
    %v6193 = vadd.f32 %v5969, %v6192
    %v6194 = vpop.f32.mrb[0].mxu0
    %6195 = vdwg.mxu0
    %v6196 = vxor.u32 %v6038, 2147483648
    %v6197 = vxor.u32 %v6043, 2147483648
    %v6198 = vxor.u32 %v6048, 2147483648
    %v6199 = vxor.u32 %v6053, 2147483648
    %v6200 = vxor.u32 %v6058, 2147483648
    %v6201 = vxor.u32 %v6063, 2147483648
    %v6202 = vxor.u32 %v6068, 2147483648
    %v6203 = vxor.u32 %v6073, 2147483648
    %v6204 = vxor.u32 %v6078, 2147483648
    %v6205 = vxor.u32 %v6083, 2147483648
    %v6206 = vxor.u32 %v6088, 2147483648
    %v6207 = vxor.u32 %v6093, 2147483648
    %v6208 = vxor.u32 %v6098, 2147483648
    %v6209 = vxor.u32 %v6103, 2147483648
    %v6210 = vxor.u32 %v6108, 2147483648
    %v6211 = vxor.u32 %v6113, 2147483648
    %v6212 = vxor.u32 %v6118, 2147483648
    %v6213 = vxor.u32 %v6123, 2147483648
    %v6214 = vxor.u32 %v6128, 2147483648
    %v6215 = vxor.u32 %v6133, 2147483648
    %v6216 = vxor.u32 %v6138, 2147483648
    %v6217 = vxor.u32 %v6143, 2147483648
    %v6218 = vxor.u32 %v6148, 2147483648
    %v6219 = vxor.u32 %v6153, 2147483648
    %v6220 = vxor.u32 %v6158, 2147483648
    %v6221 = vxor.u32 %v6163, 2147483648
    %v6222 = vxor.u32 %v6168, 2147483648
    %v6223 = vxor.u32 %v6173, 2147483648
    %v6224 = vxor.u32 %v6178, 2147483648
    %v6225 = vxor.u32 %v6183, 2147483648
    %v6226 = vxor.u32 %v6188, 2147483648
    %v6227 = vxor.u32 %v6193, 2147483648
    %v6228 = vmul.f32 %v6196, 1.442695
    %v6229 = vpow.pop %v6228
    %v6230 = vmul.f32 %v6197, 1.442695
    %v6231 = vpow.pop %v6230
    %v6232 = vmul.f32 %v6198, 1.442695
    %v6233 = vpow.pop %v6232
    %v6234 = vmul.f32 %v6199, 1.442695
    %v6235 = vpow.pop %v6234
    %v6236 = vmul.f32 %v6200, 1.442695
    %v6237 = vpow.pop %v6236
    %v6238 = vmul.f32 %v6201, 1.442695
    %v6239 = vpow.pop %v6238
    %v6240 = vmul.f32 %v6202, 1.442695
    %v6241 = vpow.pop %v6240
    %v6242 = vmul.f32 %v6203, 1.442695
    %v6243 = vpow.pop %v6242
    %v6244 = vmul.f32 %v6204, 1.442695
    %v6245 = vpow.pop %v6244
    %v6246 = vmul.f32 %v6205, 1.442695
    %v6247 = vpow.pop %v6246
    %v6248 = vmul.f32 %v6206, 1.442695
    %v6249 = vpow.pop %v6248
    %v6250 = vmul.f32 %v6207, 1.442695
    %v6251 = vpow.pop %v6250
    %v6252 = vmul.f32 %v6208, 1.442695
    %v6253 = vpow.pop %v6252
    %v6254 = vmul.f32 %v6209, 1.442695
    %v6255 = vpow.pop %v6254
    %v6256 = vmul.f32 %v6210, 1.442695
    %v6257 = vpow.pop %v6256
    %v6258 = vmul.f32 %v6211, 1.442695
    %v6259 = vpow.pop %v6258
    %v6260 = vmul.f32 %v6212, 1.442695
    %v6261 = vpow.pop %v6260
    %v6262 = vmul.f32 %v6213, 1.442695
    %v6263 = vpow.pop %v6262
    %v6264 = vmul.f32 %v6214, 1.442695
    %v6265 = vpow.pop %v6264
    %v6266 = vmul.f32 %v6215, 1.442695
    %v6267 = vpow.pop %v6266
    %v6268 = vmul.f32 %v6216, 1.442695
    %v6269 = vpow.pop %v6268
    %v6270 = vmul.f32 %v6217, 1.442695
    %v6271 = vpow.pop %v6270
    %v6272 = vmul.f32 %v6218, 1.442695
    %v6273 = vpow.pop %v6272
    %v6274 = vmul.f32 %v6219, 1.442695
    %v6275 = vpow.pop %v6274
    %v6276 = vmul.f32 %v6220, 1.442695
    %v6277 = vpow.pop %v6276
    %v6278 = vmul.f32 %v6221, 1.442695
    %v6279 = vpow.pop %v6278
    %v6280 = vmul.f32 %v6222, 1.442695
    %v6281 = vpow.pop %v6280
    %v6282 = vmul.f32 %v6223, 1.442695
    %v6283 = vpow.pop %v6282
    %v6284 = vmul.f32 %v6224, 1.442695
    %v6285 = vpow.pop %v6284
    %v6286 = vmul.f32 %v6225, 1.442695
    %v6287 = vpow.pop %v6286
    %v6288 = vmul.f32 %v6226, 1.442695
    %v6289 = vpow.pop %v6288
    %v6290 = vmul.f32 %v6227, 1.442695
    %v6291 = vpow.pop %v6290
    %v6292 = vadd.f32 %v6229, 1.0
    %v6293 = vadd.f32 %v6231, 1.0
    %v6294 = vadd.f32 %v6233, 1.0
    %v6295 = vadd.f32 %v6235, 1.0
    %v6296 = vadd.f32 %v6237, 1.0
    %v6297 = vadd.f32 %v6239, 1.0
    %v6298 = vadd.f32 %v6241, 1.0
    %v6299 = vadd.f32 %v6243, 1.0
    %v6300 = vadd.f32 %v6245, 1.0
    %v6301 = vadd.f32 %v6247, 1.0
    %v6302 = vadd.f32 %v6249, 1.0
    %v6303 = vadd.f32 %v6251, 1.0
    %v6304 = vadd.f32 %v6253, 1.0
    %v6305 = vadd.f32 %v6255, 1.0
    %v6306 = vadd.f32 %v6257, 1.0
    %v6307 = vadd.f32 %v6259, 1.0
    %v6308 = vadd.f32 %v6261, 1.0
    %v6309 = vadd.f32 %v6263, 1.0
    %v6310 = vadd.f32 %v6265, 1.0
    %v6311 = vadd.f32 %v6267, 1.0
    %v6312 = vadd.f32 %v6269, 1.0
    %v6313 = vadd.f32 %v6271, 1.0
    %v6314 = vadd.f32 %v6273, 1.0
    %v6315 = vadd.f32 %v6275, 1.0
    %v6316 = vadd.f32 %v6277, 1.0
    %v6317 = vadd.f32 %v6279, 1.0
    %v6318 = vadd.f32 %v6281, 1.0
    %v6319 = vadd.f32 %v6283, 1.0
    %v6320 = vadd.f32 %v6285, 1.0
    %v6321 = vadd.f32 %v6287, 1.0
    %v6322 = vadd.f32 %v6289, 1.0
    %v6323 = vadd.f32 %v6291, 1.0
    %v6324 = vrcp.pop %v6292
    %v6325 = vmul.f32 1.0, %v6324
    %v6326 = vrcp.pop %v6293
    %v6327 = vmul.f32 1.0, %v6326
    %v6328 = vrcp.pop %v6294
    %v6329 = vmul.f32 1.0, %v6328
    %v6330 = vrcp.pop %v6295
    %v6331 = vmul.f32 1.0, %v6330
    %v6332 = vrcp.pop %v6296
    %v6333 = vmul.f32 1.0, %v6332
    %v6334 = vrcp.pop %v6297
    %v6335 = vmul.f32 1.0, %v6334
    %v6336 = vrcp.pop %v6298
    %v6337 = vmul.f32 1.0, %v6336
    %v6338 = vrcp.pop %v6299
    %v6339 = vmul.f32 1.0, %v6338
    %v6340 = vrcp.pop %v6300
    %v6341 = vmul.f32 1.0, %v6340
    %v6342 = vrcp.pop %v6301
    %v6343 = vmul.f32 1.0, %v6342
    %v6344 = vrcp.pop %v6302
    %v6345 = vmul.f32 1.0, %v6344
    %v6346 = vrcp.pop %v6303
    %v6347 = vmul.f32 1.0, %v6346
    %v6348 = vrcp.pop %v6304
    %v6349 = vmul.f32 1.0, %v6348
    %v6350 = vrcp.pop %v6305
    %v6351 = vmul.f32 1.0, %v6350
    %v6352 = vrcp.pop %v6306
    %v6353 = vmul.f32 1.0, %v6352
    %v6354 = vrcp.pop %v6307
    %v6355 = vmul.f32 1.0, %v6354
    %v6356 = vrcp.pop %v6308
    %v6357 = vmul.f32 1.0, %v6356
    %v6358 = vrcp.pop %v6309
    %v6359 = vmul.f32 1.0, %v6358
    %v6360 = vrcp.pop %v6310
    %v6361 = vmul.f32 1.0, %v6360
    %v6362 = vrcp.pop %v6311
    %v6363 = vmul.f32 1.0, %v6362
    %v6364 = vrcp.pop %v6312
    %v6365 = vmul.f32 1.0, %v6364
    %v6366 = vrcp.pop %v6313
    %v6367 = vmul.f32 1.0, %v6366
    %v6368 = vrcp.pop %v6314
    %v6369 = vmul.f32 1.0, %v6368
    %v6370 = vrcp.pop %v6315
    %v6371 = vmul.f32 1.0, %v6370
    %v6372 = vrcp.pop %v6316
    %v6373 = vmul.f32 1.0, %v6372
    %v6374 = vrcp.pop %v6317
    %v6375 = vmul.f32 1.0, %v6374
    %v6376 = vrcp.pop %v6318
    %v6377 = vmul.f32 1.0, %v6376
    %v6378 = vrcp.pop %v6319
    %v6379 = vmul.f32 1.0, %v6378
    %v6380 = vrcp.pop %v6320
    %v6381 = vmul.f32 1.0, %v6380
    %v6382 = vrcp.pop %v6321
    %v6383 = vmul.f32 1.0, %v6382
    %v6384 = vrcp.pop %v6322
    %v6385 = vmul.f32 1.0, %v6384
    %v6386 = vrcp.pop %v6323
    %v6387 = vmul.f32 1.0, %v6386
    %v6388 = vmul.f32 %v6038, %v6325
    %v6389 = vmul.f32 %v6043, %v6327
    %v6390 = vmul.f32 %v6048, %v6329
    %v6391 = vmul.f32 %v6053, %v6331
    %v6392 = vmul.f32 %v6058, %v6333
    %v6393 = vmul.f32 %v6063, %v6335
    %v6394 = vmul.f32 %v6068, %v6337
    %v6395 = vmul.f32 %v6073, %v6339
    %v6396 = vmul.f32 %v6078, %v6341
    %v6397 = vmul.f32 %v6083, %v6343
    %v6398 = vmul.f32 %v6088, %v6345
    %v6399 = vmul.f32 %v6093, %v6347
    %v6400 = vmul.f32 %v6098, %v6349
    %v6401 = vmul.f32 %v6103, %v6351
    %v6402 = vmul.f32 %v6108, %v6353
    %v6403 = vmul.f32 %v6113, %v6355
    %v6404 = vmul.f32 %v6118, %v6357
    %v6405 = vmul.f32 %v6123, %v6359
    %v6406 = vmul.f32 %v6128, %v6361
    %v6407 = vmul.f32 %v6133, %v6363
    %v6408 = vmul.f32 %v6138, %v6365
    %v6409 = vmul.f32 %v6143, %v6367
    %v6410 = vmul.f32 %v6148, %v6369
    %v6411 = vmul.f32 %v6153, %v6371
    %v6412 = vmul.f32 %v6158, %v6373
    %v6413 = vmul.f32 %v6163, %v6375
    %v6414 = vmul.f32 %v6168, %v6377
    %v6415 = vmul.f32 %v6173, %v6379
    %v6416 = vmul.f32 %v6178, %v6381
    %v6417 = vmul.f32 %v6183, %v6383
    %v6418 = vmul.f32 %v6188, %v6385
    %v6419 = vmul.f32 %v6193, %v6387
    %v6420 = vpack.c.bf16 %v6389, %v6388
    %v6421 = vpack.c.bf16 %v6391, %v6390
    %v6422 = vpack.c.bf16 %v6393, %v6392
    %v6423 = vpack.c.bf16 %v6395, %v6394
    %v6424 = vpack.c.bf16 %v6397, %v6396
    %v6425 = vpack.c.bf16 %v6399, %v6398
    %v6426 = vpack.c.bf16 %v6401, %v6400
    %v6427 = vpack.c.bf16 %v6403, %v6402
    %v6428 = vpack.c.bf16 %v6405, %v6404
    %v6429 = vpack.c.bf16 %v6407, %v6406
    %v6430 = vpack.c.bf16 %v6409, %v6408
    %v6431 = vpack.c.bf16 %v6411, %v6410
    %v6432 = vpack.c.bf16 %v6413, %v6412
    %v6433 = vpack.c.bf16 %v6415, %v6414
    %v6434 = vpack.c.bf16 %v6417, %v6416
    %v6435 = vpack.c.bf16 %v6419, %v6418
    %6436 = vmatprep.subr.bf16.mxu0 0
    %6437 = vmatpush1.bf16.msra.mxu0 %v6420
    %6438 = vmatprep.subr.bf16.mxu0 0
    %6439 = vmatpush1.bf16.msra.mxu0 %v6421
    %6440 = vmatprep.subr.bf16.mxu0 0
    %6441 = vmatpush1.bf16.msra.mxu0 %v6422
    %6442 = vmatprep.subr.bf16.mxu0 0
    %6443 = vmatpush1.bf16.msra.mxu0 %v6423
    %6444 = vmatprep.subr.bf16.mxu0 0
    %6445 = vmatpush1.bf16.msra.mxu0 %v6424
    %6446 = vmatprep.subr.bf16.mxu0 0
    %6447 = vmatpush1.bf16.msra.mxu0 %v6425
    %6448 = vmatprep.subr.bf16.mxu0 0
    %6449 = vmatpush1.bf16.msra.mxu0 %v6426
    %6450 = vmatprep.subr.bf16.mxu0 0
    %6451 = vmatpush1.bf16.msra.mxu0 %v6427
    %6452 = vmatprep.subr.bf16.mxu0 0
    %6453 = vmatpush1.bf16.msra.mxu0 %v6428
    %6454 = vmatprep.subr.bf16.mxu0 0
    %6455 = vmatpush1.bf16.msra.mxu0 %v6429
    %6456 = vmatprep.subr.bf16.mxu0 0
    %6457 = vmatpush1.bf16.msra.mxu0 %v6430
    %6458 = vmatprep.subr.bf16.mxu0 0
    %6459 = vmatpush1.bf16.msra.mxu0 %v6431
    %6460 = vmatprep.subr.bf16.mxu0 0
    %6461 = vmatpush1.bf16.msra.mxu0 %v6432
    %6462 = vmatprep.subr.bf16.mxu0 0
    %6463 = vmatpush1.bf16.msra.mxu0 %v6433
    %6464 = vmatprep.subr.bf16.mxu0 0
    %6465 = vmatpush1.bf16.msra.mxu0 %v6434
    %6466 = vmatprep.subr.bf16.mxu0 0
    %6467 = vmatpush1.bf16.msra.mxu0 %v6435
    %6468 = vmatprep.mubr.bf16.mxu0 %v2095
    %6469 = vmatmul.mubr.bf16.gmra.mrb[0].mxu0 %v2094
    %v6470 = vpop.f32.mrb[0].mxu0
    %v6471 = vadd.f32 0.0, %v6470
    %v6472 = vpop.f32.mrb[0].mxu0
    %v6473 = vpop.f32.mrb[0].mxu0
    %v6474 = vadd.f32 0.0, %v6473
    %v6475 = vpop.f32.mrb[0].mxu0
    %6476 = vmatprep.mubr.bf16.mxu0 %v2097
    %6477 = vmatmul.mubr.bf16.gmra.mrb[0].mxu0 %v2096
    %v6478 = vpop.f32.mrb[0].mxu0
    %v6479 = vadd.f32 0.0, %v6478
    %v6480 = vpop.f32.mrb[0].mxu0
    %v6481 = vpop.f32.mrb[0].mxu0
    %v6482 = vadd.f32 0.0, %v6481
    %v6483 = vpop.f32.mrb[0].mxu0
    %6484 = vmatprep.mubr.bf16.mxu0 %v2099
    %6485 = vmatmul.mubr.bf16.gmra.mrb[0].mxu0 %v2098
    %v6486 = vpop.f32.mrb[0].mxu0
    %v6487 = vadd.f32 0.0, %v6486
    %v6488 = vpop.f32.mrb[0].mxu0
    %v6489 = vpop.f32.mrb[0].mxu0
    %v6490 = vadd.f32 0.0, %v6489
    %v6491 = vpop.f32.mrb[0].mxu0
    %6492 = vmatprep.mubr.bf16.mxu0 %v2101
    %6493 = vmatmul.mubr.bf16.gmra.mrb[0].mxu0 %v2100
    %v6494 = vpop.f32.mrb[0].mxu0
    %v6495 = vadd.f32 0.0, %v6494
    %v6496 = vpop.f32.mrb[0].mxu0
    %v6497 = vpop.f32.mrb[0].mxu0
    %v6498 = vadd.f32 0.0, %v6497
    %v6499 = vpop.f32.mrb[0].mxu0
    %6500 = vmatprep.mubr.bf16.mxu0 %v2103
    %6501 = vmatmul.mubr.bf16.gmra.mrb[0].mxu0 %v2102
    %v6502 = vpop.f32.mrb[0].mxu0
    %v6503 = vadd.f32 0.0, %v6502
    %v6504 = vpop.f32.mrb[0].mxu0
    %v6505 = vpop.f32.mrb[0].mxu0
    %v6506 = vadd.f32 0.0, %v6505
    %v6507 = vpop.f32.mrb[0].mxu0
    %6508 = vmatprep.mubr.bf16.mxu0 %v2105
    %6509 = vmatmul.mubr.bf16.gmra.mrb[0].mxu0 %v2104
    %v6510 = vpop.f32.mrb[0].mxu0
    %v6511 = vadd.f32 0.0, %v6510
    %v6512 = vpop.f32.mrb[0].mxu0
    %v6513 = vpop.f32.mrb[0].mxu0
    %v6514 = vadd.f32 0.0, %v6513
    %v6515 = vpop.f32.mrb[0].mxu0
    %6516 = vmatprep.mubr.bf16.mxu0 %v2107
    %6517 = vmatmul.mubr.bf16.gmra.mrb[0].mxu0 %v2106
    %v6518 = vpop.f32.mrb[0].mxu0
    %v6519 = vadd.f32 0.0, %v6518
    %v6520 = vpop.f32.mrb[0].mxu0
    %v6521 = vpop.f32.mrb[0].mxu0
    %v6522 = vadd.f32 0.0, %v6521
    %v6523 = vpop.f32.mrb[0].mxu0
    %6524 = vmatprep.mubr.bf16.mxu0 %v2109
    %6525 = vmatmul.mubr.bf16.gmra.mrb[0].mxu0 %v2108
    %v6526 = vpop.f32.mrb[0].mxu0
    %v6527 = vadd.f32 0.0, %v6526
    %v6528 = vpop.f32.mrb[0].mxu0
    %v6529 = vpop.f32.mrb[0].mxu0
    %v6530 = vadd.f32 0.0, %v6529
    %v6531 = vpop.f32.mrb[0].mxu0
    %6532 = vdwg.mxu0
    %s6533 = scalar_lea.vmem [#allocation14], 512
    %v6534 = vld [vmem:[%s6533] sm:$0xff]
    %v6535 = vld [vmem:[%s6533 + $0x8] sm:$0xff]
    %v6536 = vld [vmem:[%s6533 + $0x10] sm:$0xff]
    %v6537 = vld [vmem:[%s6533 + $0x18] sm:$0xff]
    %v6538 = vld [vmem:[%s6533 + $0x20] sm:$0xff]
    %v6539 = vld [vmem:[%s6533 + $0x28] sm:$0xff]
    %v6540 = vld [vmem:[%s6533 + $0x30] sm:$0xff]
    %v6541 = vld [vmem:[%s6533 + $0x38] sm:$0xff]
    %v6542 = vld [vmem:[%s6533 + $0x40] sm:$0xff]
    %v6543 = vld [vmem:[%s6533 + $0x48] sm:$0xff]
    %v6544 = vld [vmem:[%s6533 + $0x50] sm:$0xff]
    %v6545 = vld [vmem:[%s6533 + $0x58] sm:$0xff]
    %v6546 = vld [vmem:[%s6533 + $0x60] sm:$0xff]
    %v6547 = vld [vmem:[%s6533 + $0x68] sm:$0xff]
    %v6548 = vld [vmem:[%s6533 + $0x70] sm:$0xff]
    %v6549 = vld [vmem:[%s6533 + $0x78] sm:$0xff]
    %v6550 = vld [vmem:[%s6533 + $0x80] sm:$0xff]
    %v6551 = vld [vmem:[%s6533 + $0x88] sm:$0xff]
    %v6552 = vld [vmem:[%s6533 + $0x90] sm:$0xff]
    %v6553 = vld [vmem:[%s6533 + $0x98] sm:$0xff]
    %v6554 = vld [vmem:[%s6533 + $0xa0] sm:$0xff]
    %v6555 = vld [vmem:[%s6533 + $0xa8] sm:$0xff]
    %v6556 = vld [vmem:[%s6533 + $0xb0] sm:$0xff]
    %v6557 = vld [vmem:[%s6533 + $0xb8] sm:$0xff]
    %v6558 = vld [vmem:[%s6533 + $0xc0] sm:$0xff]
    %v6559 = vld [vmem:[%s6533 + $0xc8] sm:$0xff]
    %v6560 = vld [vmem:[%s6533 + $0xd0] sm:$0xff]
    %v6561 = vld [vmem:[%s6533 + $0xd8] sm:$0xff]
    %v6562 = vld [vmem:[%s6533 + $0xe0] sm:$0xff]
    %v6563 = vld [vmem:[%s6533 + $0xe8] sm:$0xff]
    %v6564 = vld [vmem:[%s6533 + $0xf0] sm:$0xff]
    %v6565 = vld [vmem:[%s6533 + $0xf8] sm:$0xff]
    %s6566 = scalar_lea.vmem %s11, 2
    %v6567 = vld [vmem:[%s6566] sm:$0x1]
    %v6569 = vlaneseq
    %v6570 = vshrl.u32 %v6569, 7
    %v6571 = vsub.s32 0, %v6570
    %v6572 = vrot.slane %v6567, %v6571
    %6574 = vmatprep.subr.mxu0 0.0
    %6575 = vmatpush1.msra.mxu0 %v6534
    %6576 = vmatprep.subr.mxu0 0.0
    %6577 = vmatpush1.msra.mxu0 %v6535
    %6578 = vmatprep.subr.mxu0 0.0
    %6579 = vmatpush1.msra.mxu0 %v6536
    %6580 = vmatprep.subr.mxu0 0.0
    %6581 = vmatpush1.msra.mxu0 %v6537
    %6582 = vmatprep.subr.mxu0 0.0
    %6583 = vmatpush1.msra.mxu0 %v6538
    %6584 = vmatprep.subr.mxu0 0.0
    %6585 = vmatpush1.msra.mxu0 %v6539
    %6586 = vmatprep.subr.mxu0 0.0
    %6587 = vmatpush1.msra.mxu0 %v6540
    %6588 = vmatprep.subr.mxu0 0.0
    %6589 = vmatpush1.msra.mxu0 %v6541
    %6590 = vmatprep.subr.mxu0 0.0
    %6591 = vmatpush1.msra.mxu0 %v6542
    %6592 = vmatprep.subr.mxu0 0.0
    %6593 = vmatpush1.msra.mxu0 %v6543
    %6594 = vmatprep.subr.mxu0 0.0
    %6595 = vmatpush1.msra.mxu0 %v6544
    %6596 = vmatprep.subr.mxu0 0.0
    %6597 = vmatpush1.msra.mxu0 %v6545
    %6598 = vmatprep.subr.mxu0 0.0
    %6599 = vmatpush1.msra.mxu0 %v6546
    %6600 = vmatprep.subr.mxu0 0.0
    %6601 = vmatpush1.msra.mxu0 %v6547
    %6602 = vmatprep.subr.mxu0 0.0
    %6603 = vmatpush1.msra.mxu0 %v6548
    %6604 = vmatprep.subr.mxu0 0.0
    %6605 = vmatpush1.msra.mxu0 %v6549
    %6606 = vmatprep.subr.mxu0 0.0
    %6607 = vmatpush1.msra.mxu0 %v6550
    %6608 = vmatprep.subr.mxu0 0.0
    %6609 = vmatpush1.msra.mxu0 %v6551
    %6610 = vmatprep.subr.mxu0 0.0
    %6611 = vmatpush1.msra.mxu0 %v6552
    %6612 = vmatprep.subr.mxu0 0.0
    %6613 = vmatpush1.msra.mxu0 %v6553
    %6614 = vmatprep.subr.mxu0 0.0
    %6615 = vmatpush1.msra.mxu0 %v6554
    %6616 = vmatprep.subr.mxu0 0.0
    %6617 = vmatpush1.msra.mxu0 %v6555
    %6618 = vmatprep.subr.mxu0 0.0
    %6619 = vmatpush1.msra.mxu0 %v6556
    %6620 = vmatprep.subr.mxu0 0.0
    %6621 = vmatpush1.msra.mxu0 %v6557
    %6622 = vmatprep.subr.mxu0 0.0
    %6623 = vmatpush1.msra.mxu0 %v6558
    %6624 = vmatprep.subr.mxu0 0.0
    %6625 = vmatpush1.msra.mxu0 %v6559
    %6626 = vmatprep.subr.mxu0 0.0
    %6627 = vmatpush1.msra.mxu0 %v6560
    %6628 = vmatprep.subr.mxu0 0.0
    %6629 = vmatpush1.msra.mxu0 %v6561
    %6630 = vmatprep.subr.mxu0 0.0
    %6631 = vmatpush1.msra.mxu0 %v6562
    %6632 = vmatprep.subr.mxu0 0.0
    %6633 = vmatpush1.msra.mxu0 %v6563
    %6634 = vmatprep.subr.mxu0 0.0
    %6635 = vmatpush1.msra.mxu0 %v6564
    %6636 = vmatprep.subr.mxu0 0.0
    %6637 = vmatpush1.msra.mxu0 %v6565
    %6638 = vmatprep.mubr.f32.mxu0 %v6471
    %6639 = vmatmul.mubr.f32.gmra.mrb[0].mxu0 %v4860
    %v6640 = vpop.f32.mrb[0].mxu0
    %v6641 = vadd.f32 %v6572, %v6640
    %v6642 = vpop.f32.mrb[0].mxu0
    %6643 = vmatprep.mubr.f32.mxu0 %v6474
    %6644 = vmatmul.mubr.f32.gmra.mrb[0].mxu0 %v4861
    %v6645 = vpop.f32.mrb[0].mxu0
    %v6646 = vadd.f32 %v6572, %v6645
    %v6647 = vpop.f32.mrb[0].mxu0
    %6648 = vmatprep.mubr.f32.mxu0 %v6479
    %6649 = vmatmul.mubr.f32.gmra.mrb[0].mxu0 %v4862
    %v6650 = vpop.f32.mrb[0].mxu0
    %v6651 = vadd.f32 %v6572, %v6650
    %v6652 = vpop.f32.mrb[0].mxu0
    %6653 = vmatprep.mubr.f32.mxu0 %v6482
    %6654 = vmatmul.mubr.f32.gmra.mrb[0].mxu0 %v4863
    %v6655 = vpop.f32.mrb[0].mxu0
    %v6656 = vadd.f32 %v6572, %v6655
    %v6657 = vpop.f32.mrb[0].mxu0
    %6658 = vmatprep.mubr.f32.mxu0 %v6487
    %6659 = vmatmul.mubr.f32.gmra.mrb[0].mxu0 %v4864
    %v6660 = vpop.f32.mrb[0].mxu0
    %v6661 = vadd.f32 %v6572, %v6660
    %v6662 = vpop.f32.mrb[0].mxu0
    %6663 = vmatprep.mubr.f32.mxu0 %v6490
    %6664 = vmatmul.mubr.f32.gmra.mrb[0].mxu0 %v4865
    %v6665 = vpop.f32.mrb[0].mxu0
    %v6666 = vadd.f32 %v6572, %v6665
    %v6667 = vpop.f32.mrb[0].mxu0
    %6668 = vmatprep.mubr.f32.mxu0 %v6495
    %6669 = vmatmul.mubr.f32.gmra.mrb[0].mxu0 %v4866
    %v6670 = vpop.f32.mrb[0].mxu0
    %v6671 = vadd.f32 %v6572, %v6670
    %v6672 = vpop.f32.mrb[0].mxu0
    %6673 = vmatprep.mubr.f32.mxu0 %v6498
    %6674 = vmatmul.mubr.f32.gmra.mrb[0].mxu0 %v4867
    %v6675 = vpop.f32.mrb[0].mxu0
    %v6676 = vadd.f32 %v6572, %v6675
    %v6677 = vpop.f32.mrb[0].mxu0
    %6678 = vmatprep.mubr.f32.mxu0 %v6503
    %6679 = vmatmul.mubr.f32.gmra.mrb[0].mxu0 %v4868
    %v6680 = vpop.f32.mrb[0].mxu0
    %v6681 = vadd.f32 %v6572, %v6680
    %v6682 = vpop.f32.mrb[0].mxu0
    %6683 = vmatprep.mubr.f32.mxu0 %v6506
    %6684 = vmatmul.mubr.f32.gmra.mrb[0].mxu0 %v4869
    %v6685 = vpop.f32.mrb[0].mxu0
    %v6686 = vadd.f32 %v6572, %v6685
    %v6687 = vpop.f32.mrb[0].mxu0
    %6688 = vmatprep.mubr.f32.mxu0 %v6511
    %6689 = vmatmul.mubr.f32.gmra.mrb[0].mxu0 %v4870
    %v6690 = vpop.f32.mrb[0].mxu0
    %v6691 = vadd.f32 %v6572, %v6690
    %v6692 = vpop.f32.mrb[0].mxu0
    %6693 = vmatprep.mubr.f32.mxu0 %v6514
    %6694 = vmatmul.mubr.f32.gmra.mrb[0].mxu0 %v4871
    %v6695 = vpop.f32.mrb[0].mxu0
    %v6696 = vadd.f32 %v6572, %v6695
    %v6697 = vpop.f32.mrb[0].mxu0
    %6698 = vmatprep.mubr.f32.mxu0 %v6519
    %6699 = vmatmul.mubr.f32.gmra.mrb[0].mxu0 %v4872
    %v6700 = vpop.f32.mrb[0].mxu0
    %v6701 = vadd.f32 %v6572, %v6700
    %v6702 = vpop.f32.mrb[0].mxu0
    %6703 = vmatprep.mubr.f32.mxu0 %v6522
    %6704 = vmatmul.mubr.f32.gmra.mrb[0].mxu0 %v4873
    %v6705 = vpop.f32.mrb[0].mxu0
    %v6706 = vadd.f32 %v6572, %v6705
    %v6707 = vpop.f32.mrb[0].mxu0
    %6708 = vmatprep.mubr.f32.mxu0 %v6527
    %6709 = vmatmul.mubr.f32.gmra.mrb[0].mxu0 %v4874
    %v6710 = vpop.f32.mrb[0].mxu0
    %v6711 = vadd.f32 %v6572, %v6710
    %v6712 = vpop.f32.mrb[0].mxu0
    %6713 = vmatprep.mubr.f32.mxu0 %v6530
    %6714 = vmatmul.mubr.f32.gmra.mrb[0].mxu0 %v4875
    %v6715 = vpop.f32.mrb[0].mxu0
    %v6716 = vadd.f32 %v6572, %v6715
    %v6717 = vpop.f32.mrb[0].mxu0
    %6718 = vdwg.mxu0
    %v6719 = vxor.u32 %v6641, 2147483648
    %v6720 = vxor.u32 %v6646, 2147483648
    %v6721 = vxor.u32 %v6651, 2147483648
    %v6722 = vxor.u32 %v6656, 2147483648
    %v6723 = vxor.u32 %v6661, 2147483648
    %v6724 = vxor.u32 %v6666, 2147483648
    %v6725 = vxor.u32 %v6671, 2147483648
    %v6726 = vxor.u32 %v6676, 2147483648
    %v6727 = vxor.u32 %v6681, 2147483648
    %v6728 = vxor.u32 %v6686, 2147483648
    %v6729 = vxor.u32 %v6691, 2147483648
    %v6730 = vxor.u32 %v6696, 2147483648
    %v6731 = vxor.u32 %v6701, 2147483648
    %v6732 = vxor.u32 %v6706, 2147483648
    %v6733 = vxor.u32 %v6711, 2147483648
    %v6734 = vxor.u32 %v6716, 2147483648
    %v6735 = vmul.f32 %v6719, 1.442695
    %v6736 = vpow.pop %v6735
    %v6737 = vmul.f32 %v6720, 1.442695
    %v6738 = vpow.pop %v6737
    %v6739 = vmul.f32 %v6721, 1.442695
    %v6740 = vpow.pop %v6739
    %v6741 = vmul.f32 %v6722, 1.442695
    %v6742 = vpow.pop %v6741
    %v6743 = vmul.f32 %v6723, 1.442695
    %v6744 = vpow.pop %v6743
    %v6745 = vmul.f32 %v6724, 1.442695
    %v6746 = vpow.pop %v6745
    %v6747 = vmul.f32 %v6725, 1.442695
    %v6748 = vpow.pop %v6747
    %v6749 = vmul.f32 %v6726, 1.442695
    %v6750 = vpow.pop %v6749
    %v6751 = vmul.f32 %v6727, 1.442695
    %v6752 = vpow.pop %v6751
    %v6753 = vmul.f32 %v6728, 1.442695
    %v6754 = vpow.pop %v6753
    %v6755 = vmul.f32 %v6729, 1.442695
    %v6756 = vpow.pop %v6755
    %v6757 = vmul.f32 %v6730, 1.442695
    %v6758 = vpow.pop %v6757
    %v6759 = vmul.f32 %v6731, 1.442695
    %v6760 = vpow.pop %v6759
    %v6761 = vmul.f32 %v6732, 1.442695
    %v6762 = vpow.pop %v6761
    %v6763 = vmul.f32 %v6733, 1.442695
    %v6764 = vpow.pop %v6763
    %v6765 = vmul.f32 %v6734, 1.442695
    %v6766 = vpow.pop %v6765
    %v6767 = vadd.f32 %v6736, 1.0
    %v6768 = vadd.f32 %v6738, 1.0
    %v6769 = vadd.f32 %v6740, 1.0
    %v6770 = vadd.f32 %v6742, 1.0
    %v6771 = vadd.f32 %v6744, 1.0
    %v6772 = vadd.f32 %v6746, 1.0
    %v6773 = vadd.f32 %v6748, 1.0
    %v6774 = vadd.f32 %v6750, 1.0
    %v6775 = vadd.f32 %v6752, 1.0
    %v6776 = vadd.f32 %v6754, 1.0
    %v6777 = vadd.f32 %v6756, 1.0
    %v6778 = vadd.f32 %v6758, 1.0
    %v6779 = vadd.f32 %v6760, 1.0
    %v6780 = vadd.f32 %v6762, 1.0
    %v6781 = vadd.f32 %v6764, 1.0
    %v6782 = vadd.f32 %v6766, 1.0
    %v6783 = vrcp.pop %v6767
    %v6784 = vmul.f32 1.0, %v6783
    %v6785 = vrcp.pop %v6768
    %v6786 = vmul.f32 1.0, %v6785
    %v6787 = vrcp.pop %v6769
    %v6788 = vmul.f32 1.0, %v6787
    %v6789 = vrcp.pop %v6770
    %v6790 = vmul.f32 1.0, %v6789
    %v6791 = vrcp.pop %v6771
    %v6792 = vmul.f32 1.0, %v6791
    %v6793 = vrcp.pop %v6772
    %v6794 = vmul.f32 1.0, %v6793
    %v6795 = vrcp.pop %v6773
    %v6796 = vmul.f32 1.0, %v6795
    %v6797 = vrcp.pop %v6774
    %v6798 = vmul.f32 1.0, %v6797
    %v6799 = vrcp.pop %v6775
    %v6800 = vmul.f32 1.0, %v6799
    %v6801 = vrcp.pop %v6776
    %v6802 = vmul.f32 1.0, %v6801
    %v6803 = vrcp.pop %v6777
    %v6804 = vmul.f32 1.0, %v6803
    %v6805 = vrcp.pop %v6778
    %v6806 = vmul.f32 1.0, %v6805
    %v6807 = vrcp.pop %v6779
    %v6808 = vmul.f32 1.0, %v6807
    %v6809 = vrcp.pop %v6780
    %v6810 = vmul.f32 1.0, %v6809
    %v6811 = vrcp.pop %v6781
    %v6812 = vmul.f32 1.0, %v6811
    %v6813 = vrcp.pop %v6782
    %v6814 = vmul.f32 1.0, %v6813
    %v6815 = vmul.f32 %v6641, %v6784
    %v6816 = vmul.f32 %v6646, %v6786
    %v6817 = vmul.f32 %v6651, %v6788
    %v6818 = vmul.f32 %v6656, %v6790
    %v6819 = vmul.f32 %v6661, %v6792
    %v6820 = vmul.f32 %v6666, %v6794
    %v6821 = vmul.f32 %v6671, %v6796
    %v6822 = vmul.f32 %v6676, %v6798
    %v6823 = vmul.f32 %v6681, %v6800
    %v6824 = vmul.f32 %v6686, %v6802
    %v6825 = vmul.f32 %v6691, %v6804
    %v6826 = vmul.f32 %v6696, %v6806
    %v6827 = vmul.f32 %v6701, %v6808
    %v6828 = vmul.f32 %v6706, %v6810
    %v6829 = vmul.f32 %v6711, %v6812
    %v6830 = vmul.f32 %v6716, %v6814
    %s6831 = scalar_lea.vmem [#allocation16], 256
    %v6832 = vld [vmem:[%s6831] sm:$0xff]
    %v6833 = vld [vmem:[%s6831 + $0x8] sm:$0xff]
    %v6834 = vld [vmem:[%s6831 + $0x10] sm:$0xff]
    %v6835 = vld [vmem:[%s6831 + $0x18] sm:$0xff]
    %v6836 = vld [vmem:[%s6831 + $0x20] sm:$0xff]
    %v6837 = vld [vmem:[%s6831 + $0x28] sm:$0xff]
    %v6838 = vld [vmem:[%s6831 + $0x30] sm:$0xff]
    %v6839 = vld [vmem:[%s6831 + $0x38] sm:$0xff]
    %v6840 = vld [vmem:[%s6831 + $0x40] sm:$0xff]
    %v6841 = vld [vmem:[%s6831 + $0x48] sm:$0xff]
    %v6842 = vld [vmem:[%s6831 + $0x50] sm:$0xff]
    %v6843 = vld [vmem:[%s6831 + $0x58] sm:$0xff]
    %v6844 = vld [vmem:[%s6831 + $0x60] sm:$0xff]
    %v6845 = vld [vmem:[%s6831 + $0x68] sm:$0xff]
    %v6846 = vld [vmem:[%s6831 + $0x70] sm:$0xff]
    %v6847 = vld [vmem:[%s6831 + $0x78] sm:$0xff]
    %6848 = vmatprep.subr.mxu0 0.0
    %6849 = vmatpush1.msra.mxu0 %v6832
    %6850 = vmatprep.subr.mxu0 0.0
    %6851 = vmatpush1.msra.mxu0 %v6833
    %6852 = vmatprep.subr.mxu0 0.0
    %6853 = vmatpush1.msra.mxu0 %v6834
    %6854 = vmatprep.subr.mxu0 0.0
    %6855 = vmatpush1.msra.mxu0 %v6835
    %6856 = vmatprep.subr.mxu0 0.0
    %6857 = vmatpush1.msra.mxu0 %v6836
    %6858 = vmatprep.subr.mxu0 0.0
    %6859 = vmatpush1.msra.mxu0 %v6837
    %6860 = vmatprep.subr.mxu0 0.0
    %6861 = vmatpush1.msra.mxu0 %v6838
    %6862 = vmatprep.subr.mxu0 0.0
    %6863 = vmatpush1.msra.mxu0 %v6839
    %6864 = vmatprep.subr.mxu0 0.0
    %6865 = vmatpush1.msra.mxu0 %v6840
    %6866 = vmatprep.subr.mxu0 0.0
    %6867 = vmatpush1.msra.mxu0 %v6841
    %6868 = vmatprep.subr.mxu0 0.0
    %6869 = vmatpush1.msra.mxu0 %v6842
    %6870 = vmatprep.subr.mxu0 0.0
    %6871 = vmatpush1.msra.mxu0 %v6843
    %6872 = vmatprep.subr.mxu0 0.0
    %6873 = vmatpush1.msra.mxu0 %v6844
    %6874 = vmatprep.subr.mxu0 0.0
    %6875 = vmatpush1.msra.mxu0 %v6845
    %6876 = vmatprep.subr.mxu0 0.0
    %6877 = vmatpush1.msra.mxu0 %v6846
    %6878 = vmatprep.subr.mxu0 0.0
    %6879 = vmatpush1.msra.mxu0 %v6847
    %6880 = vmatprep.subr.mxu0 0.0
    %6881 = vmatpush1.msra.mxu0 0.0
    %6882 = vmatprep.subr.mxu0 0.0
    %6883 = vmatpush1.msra.mxu0 0.0
    %6884 = vmatprep.subr.mxu0 0.0
    %6885 = vmatpush1.msra.mxu0 0.0
    %6886 = vmatprep.subr.mxu0 0.0
    %6887 = vmatpush1.msra.mxu0 0.0
    %6888 = vmatprep.subr.mxu0 0.0
    %6889 = vmatpush1.msra.mxu0 0.0
    %6890 = vmatprep.subr.mxu0 0.0
    %6891 = vmatpush1.msra.mxu0 0.0
    %6892 = vmatprep.subr.mxu0 0.0
    %6893 = vmatpush1.msra.mxu0 0.0
    %6894 = vmatprep.subr.mxu0 0.0
    %6895 = vmatpush1.msra.mxu0 0.0
    %6896 = vmatprep.subr.mxu0 0.0
    %6897 = vmatpush1.msra.mxu0 0.0
    %6898 = vmatprep.subr.mxu0 0.0
    %6899 = vmatpush1.msra.mxu0 0.0
    %6900 = vmatprep.subr.mxu0 0.0
    %6901 = vmatpush1.msra.mxu0 0.0
    %6902 = vmatprep.subr.mxu0 0.0
    %6903 = vmatpush1.msra.mxu0 0.0
    %6904 = vmatprep.subr.mxu0 0.0
    %6905 = vmatpush1.msra.mxu0 0.0
    %6906 = vmatprep.subr.mxu0 0.0
    %6907 = vmatpush1.msra.mxu0 0.0
    %6908 = vmatprep.subr.mxu0 0.0
    %6909 = vmatpush1.msra.mxu0 0.0
    %6910 = vmatprep.subr.mxu0 0.0
    %6911 = vmatpush1.msra.mxu0 0.0
    %6912 = vmatprep.mubr.f32.mxu0 0.0
    %6913 = vmatmul.mubr.f32.gmra.mrb[0].mxu0 %v6815
    %v6914 = vpop.f32.mrb[0].mxu0
    %v6915 = vadd.f32 0.0, %v6914
    %v6916 = vpop.f32.mrb[0].mxu0
    %6917 = vmatprep.mubr.f32.mxu0 0.0
    %6918 = vmatmul.mubr.f32.gmra.mrb[0].mxu0 %v6816
    %v6919 = vpop.f32.mrb[0].mxu0
    %v6920 = vadd.f32 0.0, %v6919
    %v6921 = vpop.f32.mrb[0].mxu0
    %6922 = vmatprep.mubr.f32.mxu0 0.0
    %6923 = vmatmul.mubr.f32.gmra.mrb[0].mxu0 %v6817
    %v6924 = vpop.f32.mrb[0].mxu0
    %v6925 = vadd.f32 0.0, %v6924
    %v6926 = vpop.f32.mrb[0].mxu0
    %6927 = vmatprep.mubr.f32.mxu0 0.0
    %6928 = vmatmul.mubr.f32.gmra.mrb[0].mxu0 %v6818
    %v6929 = vpop.f32.mrb[0].mxu0
    %v6930 = vadd.f32 0.0, %v6929
    %v6931 = vpop.f32.mrb[0].mxu0
    %6932 = vmatprep.mubr.f32.mxu0 0.0
    %6933 = vmatmul.mubr.f32.gmra.mrb[0].mxu0 %v6819
    %v6934 = vpop.f32.mrb[0].mxu0
    %v6935 = vadd.f32 0.0, %v6934
    %v6936 = vpop.f32.mrb[0].mxu0
    %6937 = vmatprep.mubr.f32.mxu0 0.0
    %6938 = vmatmul.mubr.f32.gmra.mrb[0].mxu0 %v6820
    %v6939 = vpop.f32.mrb[0].mxu0
    %v6940 = vadd.f32 0.0, %v6939
    %v6941 = vpop.f32.mrb[0].mxu0
    %6942 = vmatprep.mubr.f32.mxu0 0.0
    %6943 = vmatmul.mubr.f32.gmra.mrb[0].mxu0 %v6821
    %v6944 = vpop.f32.mrb[0].mxu0
    %v6945 = vadd.f32 0.0, %v6944
    %v6946 = vpop.f32.mrb[0].mxu0
    %6947 = vmatprep.mubr.f32.mxu0 0.0
    %6948 = vmatmul.mubr.f32.gmra.mrb[0].mxu0 %v6822
    %v6949 = vpop.f32.mrb[0].mxu0
    %v6950 = vadd.f32 0.0, %v6949
    %v6951 = vpop.f32.mrb[0].mxu0
    %6952 = vmatprep.mubr.f32.mxu0 0.0
    %6953 = vmatmul.mubr.f32.gmra.mrb[0].mxu0 %v6823
    %v6954 = vpop.f32.mrb[0].mxu0
    %v6955 = vadd.f32 0.0, %v6954
    %v6956 = vpop.f32.mrb[0].mxu0
    %6957 = vmatprep.mubr.f32.mxu0 0.0
    %6958 = vmatmul.mubr.f32.gmra.mrb[0].mxu0 %v6824
    %v6959 = vpop.f32.mrb[0].mxu0
    %v6960 = vadd.f32 0.0, %v6959
    %v6961 = vpop.f32.mrb[0].mxu0
    %6962 = vmatprep.mubr.f32.mxu0 0.0
    %6963 = vmatmul.mubr.f32.gmra.mrb[0].mxu0 %v6825
    %v6964 = vpop.f32.mrb[0].mxu0
    %v6965 = vadd.f32 0.0, %v6964
    %v6966 = vpop.f32.mrb[0].mxu0
    %6967 = vmatprep.mubr.f32.mxu0 0.0
    %6968 = vmatmul.mubr.f32.gmra.mrb[0].mxu0 %v6826
    %v6969 = vpop.f32.mrb[0].mxu0
    %v6970 = vadd.f32 0.0, %v6969
    %v6971 = vpop.f32.mrb[0].mxu0
    %6972 = vmatprep.mubr.f32.mxu0 0.0
    %6973 = vmatmul.mubr.f32.gmra.mrb[0].mxu0 %v6827
    %v6974 = vpop.f32.mrb[0].mxu0
    %v6975 = vadd.f32 0.0, %v6974
    %v6976 = vpop.f32.mrb[0].mxu0
    %6977 = vmatprep.mubr.f32.mxu0 0.0
    %6978 = vmatmul.mubr.f32.gmra.mrb[0].mxu0 %v6828
    %v6979 = vpop.f32.mrb[0].mxu0
    %v6980 = vadd.f32 0.0, %v6979
    %v6981 = vpop.f32.mrb[0].mxu0
    %6982 = vmatprep.mubr.f32.mxu0 0.0
    %6983 = vmatmul.mubr.f32.gmra.mrb[0].mxu0 %v6829
    %v6984 = vpop.f32.mrb[0].mxu0
    %v6985 = vadd.f32 0.0, %v6984
    %v6986 = vpop.f32.mrb[0].mxu0
    %6987 = vmatprep.mubr.f32.mxu0 0.0
    %6988 = vmatmul.mubr.f32.gmra.mrb[0].mxu0 %v6830
    %v6989 = vpop.f32.mrb[0].mxu0
    %v6990 = vadd.f32 0.0, %v6989
    %v6991 = vpop.f32.mrb[0].mxu0
    %6992 = vdwg.mxu0
    %v6993 = vadd.f32 %v4860, %v6915
    %v6994 = vadd.f32 %v4861, %v6920
    %v6995 = vadd.f32 %v4862, %v6925
    %v6996 = vadd.f32 %v4863, %v6930
    %v6997 = vadd.f32 %v4864, %v6935
    %v6998 = vadd.f32 %v4865, %v6940
    %v6999 = vadd.f32 %v4866, %v6945
    %v7000 = vadd.f32 %v4867, %v6950
    %v7001 = vadd.f32 %v4868, %v6955
    %v7002 = vadd.f32 %v4869, %v6960
    %v7003 = vadd.f32 %v4870, %v6965
    %v7004 = vadd.f32 %v4871, %v6970
    %v7005 = vadd.f32 %v4872, %v6975
    %v7006 = vadd.f32 %v4873, %v6980
    %v7007 = vadd.f32 %v4874, %v6985
    %v7008 = vadd.f32 %v4875, %v6990
    %s7009 = scalar_lea.vmem %s13, 2
    %v7010 = vld [vmem:[%s7009] sm:$0x1]
    %v7012 = vlaneseq
    %v7013 = vshrl.u32 %v7012, 7
    %v7014 = vsub.s32 0, %v7013
    %v7015 = vrot.slane %v7010, %v7014
    %v7017 = vadd.f32 %v6993, %v7015
    %v7018 = vadd.f32 %v6994, %v7015
    %v7019 = vadd.f32 %v6995, %v7015
    %v7020 = vadd.f32 %v6996, %v7015
    %v7021 = vadd.f32 %v6997, %v7015
    %v7022 = vadd.f32 %v6998, %v7015
    %v7023 = vadd.f32 %v6999, %v7015
    %v7024 = vadd.f32 %v7000, %v7015
    %v7025 = vadd.f32 %v7001, %v7015
    %v7026 = vadd.f32 %v7002, %v7015
    %v7027 = vadd.f32 %v7003, %v7015
    %v7028 = vadd.f32 %v7004, %v7015
    %v7029 = vadd.f32 %v7005, %v7015
    %v7030 = vadd.f32 %v7006, %v7015
    %v7031 = vadd.f32 %v7007, %v7015
    %v7032 = vadd.f32 %v7008, %v7015
    %7033 = vst [vmem:[#allocation17] sm:$0xff] %v7017
    %7034 = vst [vmem:[#allocation17 + $0x8] sm:$0xff] %v7018
    %7035 = vst [vmem:[#allocation17 + $0x10] sm:$0xff] %v7019
    %7036 = vst [vmem:[#allocation17 + $0x18] sm:$0xff] %v7020
    %7037 = vst [vmem:[#allocation17 + $0x20] sm:$0xff] %v7021
    %7038 = vst [vmem:[#allocation17 + $0x28] sm:$0xff] %v7022
    %7039 = vst [vmem:[#allocation17 + $0x30] sm:$0xff] %v7023
    %7040 = vst [vmem:[#allocation17 + $0x38] sm:$0xff] %v7024
    %7041 = vst [vmem:[#allocation17 + $0x40] sm:$0xff] %v7025
    %7042 = vst [vmem:[#allocation17 + $0x48] sm:$0xff] %v7026
    %7043 = vst [vmem:[#allocation17 + $0x50] sm:$0xff] %v7027
    %7044 = vst [vmem:[#allocation17 + $0x58] sm:$0xff] %v7028
    %7045 = vst [vmem:[#allocation17 + $0x60] sm:$0xff] %v7029
    %7046 = vst [vmem:[#allocation17 + $0x68] sm:$0xff] %v7030
    %7047 = vst [vmem:[#allocation17 + $0x70] sm:$0xff] %v7031
    %7048 = vst [vmem:[#allocation17 + $0x78] sm:$0xff] %v7032
    // Predicated region
    $region94: #{tpu_custom_call.1} parent=1 // pred_check
      _
    $region95: #{tpu_custom_call.1} parent=1 // pred_check_branch
      %7050 = sbr.rel (0) target = $region97
    $region96: #{tpu_custom_call.1} parent=1 // pred_region
      %s7052 = ssub.s32 2048, 2048
      %7053 = vsyncadd [#allocation4], %s7052
      %s7054 = sshll.u32 [#allocation17], 4
      %s7055 = int_to_ptr.vmem [resolvable:$true] %s7054
      %7060 = dma.vmem_to_hbm [thread:$0]  %s7055, 2048, %s14, [#allocation4], 128, 128, 8
    $region97: #{tpu_custom_call.1} parent=1 // pred_fallthru
      _
    // Predicated region
    $region98: #{tpu_custom_call.1} parent=1 // pred_check
      _
    $region99: #{tpu_custom_call.1} parent=1 // pred_check_branch
      %7062 = sbr.rel (0) target = $region101
    $region100: #{tpu_custom_call.1} parent=1 // pred_region
      %7063 = dma.done [#allocation4], 2048
    $region101: #{tpu_custom_call.1} parent=1 // pred_fallthru
      _
    %7064 = vsyncpa [#allocation3], 1
    %7065 = vsyncpa [#allocation6], 1
    %7066 = vsyncpa [#allocation9], 1
    %7067 = vsyncpa [#allocation12], 1
    %7068 = vsyncpa [#allocation15], 1
    %7069 = vsyncpa [#allocation4], 1

</llo_original>
